<compile_context>
chip_gen: v5e
topology: v5e:2x2
jax: 0.10.0
libtpu: 0.0.40
codegen_flags: <defaults>
</compile_context>

<pallas_src>
import functools

import jax
import jax.numpy as jnp
from jax.experimental import pallas as pl
from jax.experimental.pallas import tpu as pltpu

V_TH = 1.0
V_RESET = 0.0


def _if_step(v_ref, h):
    """MultiStepIFNode single step: integrate, fire, hard reset (membrane in VMEM)."""
    v = v_ref[...] + h
    fire = v >= V_TH
    spike = fire.astype(jnp.float32)
    v_ref[...] = jnp.where(fire, V_RESET, v)
    return spike


def _connect(spike, identity, connect_f):
    if connect_f == 'AND':
        return spike * identity
    elif connect_f == 'IAND':
        return identity * (1.0 - spike)
    elif connect_f == 'OR':
        return spike + identity - identity * spike
    elif connect_f == 'XOR':
        return identity * (1.0 - spike) + spike * (1.0 - identity)
    raise NotImplementedError(connect_f)


def _fold_bn(params):
    """Fold inference-mode BN scale into the conv weights; keep only the biases."""
    w1, w2, w3, bn1s, bn1b, bn2s, bn2b, bn3s, bn3b = params
    Cw = w1.shape[1]
    w1f = w1 * bn1s                          # (Cid, Cw) * (1, Cw)
    w2f = (w2 * bn2s).reshape(9 * Cw, Cw)    # (ky, kx, cin, cout) -> (9*Cw, Cw)
    w3f = w3 * bn3s                          # (Cw, Cid) * (1, Cid)
    return w1f, w2f, w3f, bn1b, bn2b, bn3b


def _bottleneck_kernel(ident_ref, xacc_ref,
                       w1_ref, w2_ref, w3_ref,
                       b1_ref, b2_ref, b3_ref,
                       out_ref, xaccout_ref,
                       v1_ref, v2_ref, v3_ref, s1pad_ref, h1_ref,
                       *, TB, NB, H, W, Cw, Cid, connect_f):
    t_blk = pl.program_id(1)

    @pl.when(t_blk == 0)
    def _init():
        v1_ref[...] = jnp.zeros_like(v1_ref)
        v2_ref[...] = jnp.zeros_like(v2_ref)
        v3_ref[...] = jnp.zeros_like(v3_ref)
        s1pad_ref[...] = jnp.zeros_like(s1pad_ref)   # border stays 0; interior rewritten

    M = NB * H * W

    # Constant tiles: read once per grid step (hoisted out of the time unroll).
    w2_all = w2_ref[...]            # (9*Cw, Cw) — rows grouped per (ky, kx) tap
    w3 = w3_ref[...]                # (Cw, Cid)
    b2 = b2_ref[...]                # (1, Cw)
    b3 = b3_ref[...]                # (1, Cid)

    # conv1 (1x1, BN-folded) for the WHOLE time block in one matmul: identity is
    # not recurrent, so its TB timesteps batch into the row dimension (better MXU
    # row fill, one weight push instead of TB).
    ident_all = ident_ref[...].astype(jnp.float32).reshape(TB * M, Cid)
    h1_ref[...] = jnp.dot(ident_all, w1_ref[...],
                          preferred_element_type=jnp.float32) + b1_ref[...]

    for tb in range(TB):            # static unroll over the (small) time block
        r0 = tb * M

        # ---- IF1 ----
        s1 = _if_step(v1_ref, h1_ref[r0:r0 + M, :])

        # ---- conv2 (3x3, pad=1, BN-folded) + IF2: 9 accumulating MXU taps read
        # straight from the padded spike buffer (no im2col concat buffer). ----
        s1pad_ref[:, 1:1 + H, 1:1 + W, :] = s1.reshape(NB, H, W, Cw)
        h2 = jnp.broadcast_to(b2, (M, Cw))
        for k in range(9):
            ky, kx = k // 3, k % 3
            tap = s1pad_ref[:, ky:ky + H, kx:kx + W, :].reshape(M, Cw)
            h2 = h2 + jnp.dot(tap, w2_all[k * Cw:(k + 1) * Cw, :],
                              preferred_element_type=jnp.float32)
        s2 = _if_step(v2_ref, h2)

        # ---- conv3 (1x1, BN-folded) + IF3 (output channels lane-dense) ----
        s3 = _if_step(v3_ref,
                      jnp.dot(s2, w3, preferred_element_type=jnp.float32) + b3)

        # ---- residual bookkeeping (compute f32, store activation dtype) ----
        ident_t = ident_ref[tb].astype(jnp.float32).reshape(M, Cid)
        xacc_t = xacc_ref[tb].astype(jnp.float32).reshape(M, Cid)
        xaccout_ref[tb] = (xacc_t + s3).reshape(NB, H, W, Cid).astype(xaccout_ref.dtype)
        out_ref[tb] = _connect(s3, ident_t, connect_f).reshape(
            NB, H, W, Cid).astype(out_ref.dtype)


def _pick_nb(N, H, W, Cid, TB, itemsize, target_rows=256,
             max_block_bytes=2 * 1024 * 1024):
    """Pick the batch tile so M = NB*H*W >= target_rows where possible, while
    keeping >= 2 tiles on the parallel axis (v7x megacore) and bounded block bytes."""
    best = 1
    for nb in range(1, N + 1):
        if N % nb != 0:
            continue
        if N >= 2 and N // nb < 2:          # keep both TensorCores fed on v7x
            continue
        if TB * nb * H * W * Cid * itemsize > max_block_bytes:
            continue
        best = nb
        if nb * H * W >= target_rows:
            break
    return best


def bottleneck_forward(identity, x_acc, params, *, connect_f='AND', TB=2, NB=None):
    """identity, x_acc: (T, N, H, W, Cid), bf16 or f32.
    params = (w1 (Cid,Cw), w2 (3,3,Cw,Cw), w3 (Cw,Cid), bn1s, bn1b, bn2s, bn2b, bn3s, bn3b)."""
    T, N, H, W, Cid = identity.shape
    assert x_acc.shape == identity.shape and x_acc.dtype == identity.dtype
    w1f, w2f, w3f, b1, b2, b3 = _fold_bn(params)
    Cw = w1f.shape[1]
    assert T % TB == 0

    itemsize = jnp.dtype(identity.dtype).itemsize
    if NB is None:
        NB = _pick_nb(N, H, W, Cid, TB, itemsize)
    assert N % NB == 0
    M = NB * H * W

    kernel = functools.partial(_bottleneck_kernel, TB=TB, NB=NB, H=H, W=W,
                               Cw=Cw, Cid=Cid, connect_f=connect_f)

    act_spec = pl.BlockSpec((TB, NB, H, W, Cid), lambda n, t: (t, n, 0, 0, 0))
    const2 = lambda n, t: (0, 0)

    # VMEM budget: 4 activation streams x 2 pipeline buffers + constants + scratch,
    # 2x headroom, capped at 48 MiB (v7x physical VMEM is 64 MiB per TensorCore).
    act_block = TB * M * Cid * itemsize
    scratch_bytes = 4 * (2 * M * Cw + M * Cid
                         + NB * (H + 2) * (W + 2) * Cw + TB * M * Cw)
    weight_bytes = 4 * (Cid * Cw + 9 * Cw * Cw + Cw * Cid + 2 * Cw + Cid)
    need = 4 * 2 * act_block + 2 * weight_bytes + scratch_bytes
    vmem_limit = int(min(48 * 1024 * 1024, max(2 * need, 16 * 1024 * 1024)))

    grid_spec = pltpu.PrefetchScalarGridSpec(
        num_scalar_prefetch=0,
        grid=(N // NB, T // TB),      # (batch tile: parallel, time block: sequential)
        in_specs=[
            act_spec,                                   # identity
            act_spec,                                   # x_acc
            pl.BlockSpec((Cid, Cw), const2),            # w1 (1x1, BN-folded)
            pl.BlockSpec((9 * Cw, Cw), const2),         # w2 (3x3 taps, BN-folded)
            pl.BlockSpec((Cw, Cid), const2),            # w3 (1x1, BN-folded)
            pl.BlockSpec((1, Cw), const2),              # BN1 bias
            pl.BlockSpec((1, Cw), const2),              # BN2 bias
            pl.BlockSpec((1, Cid), const2),             # BN3 bias
        ],
        out_specs=[act_spec, act_spec],
        scratch_shapes=[
            pltpu.VMEM((M, Cw), jnp.float32),                 # v1 membrane
            pltpu.VMEM((M, Cw), jnp.float32),                 # v2 membrane
            pltpu.VMEM((M, Cid), jnp.float32),                # v3 membrane (lane-dense)
            pltpu.VMEM((NB, H + 2, W + 2, Cw), jnp.float32),  # padded spike1 buffer
            pltpu.VMEM((TB * M, Cw), jnp.float32),            # h1 for whole time block
        ],
    )

    out, xacc_out = pl.pallas_call(
        kernel,
        out_shape=(jax.ShapeDtypeStruct((T, N, H, W, Cid), identity.dtype),
                   jax.ShapeDtypeStruct((T, N, H, W, Cid), identity.dtype)),
        grid_spec=grid_spec,
        input_output_aliases={1: 1},     # x_acc -> x_acc_out (same shape/dtype)
        compiler_params=pltpu.CompilerParams(
            dimension_semantics=("parallel", "arbitrary"),
            vmem_limit_bytes=vmem_limit),
    )(identity, x_acc, w1f, w2f, w3f, b1, b2, b3)
    return out, xacc_out


def ref_forward(identity, x_acc, params, connect_f='AND'):
    """Pure-JAX reference (inference-mode BN folded into conv weights, as in the kernel)."""
    T, N, H, W, Cid = identity.shape
    w1f, w2f, w3f, b1, b2, b3 = _fold_bn(params)
    Cw = w1f.shape[1]
    M = N * H * W

    def if_step(v, h):
        v = v + h
        fire = v >= V_TH
        return jnp.where(fire, V_RESET, v), fire.astype(jnp.float32)

    v1 = jnp.zeros((M, Cw), jnp.float32)
    v2 = jnp.zeros((M, Cw), jnp.float32)
    v3 = jnp.zeros((M, Cid), jnp.float32)
    outs, accs = [], []
    for t in range(T):
        xt = identity[t].reshape(M, Cid)
        h1 = jnp.dot(xt, w1f, preferred_element_type=jnp.float32) + b1
        v1, s1 = if_step(v1, h1)
        sp = jnp.pad(s1.reshape(N, H, W, Cw), ((0, 0), (1, 1), (1, 1), (0, 0)))
        patches = jnp.concatenate(
            [sp[:, ky:ky + H, kx:kx + W, :].reshape(M, Cw)
             for ky in range(3) for kx in range(3)], axis=-1)
        h2 = jnp.dot(patches, w2f, preferred_element_type=jnp.float32) + b2
        v2, s2 = if_step(v2, h2)
        h3 = jnp.dot(s2, w3f, preferred_element_type=jnp.float32) + b3
        v3, s3 = if_step(v3, h3)
        accs.append((x_acc[t].reshape(M, Cid) + s3).reshape(N, H, W, Cid))
        outs.append(_connect(s3, xt, connect_f).reshape(N, H, W, Cid))
    return jnp.stack(outs), jnp.stack(accs)


if __name__ == "__main__":
    # Small shapes: T=4 timesteps, batch N=8 (keeps >= 2 tiles on the parallel
    # batch axis -> both TensorCores on v7x, and M = NB*H*W = 256 MXU rows),
    # planes=32 -> width=32, inplanes = planes*expansion = 128 (lane-dense), H=W=8.
    T, N, H, W = 4, 8, 8, 8
    planes = 32
    Cw = planes          # width = planes * (base_width/64) * groups
    Cid = planes * 4     # expansion = 4; downsample=None requires inplanes == planes*4

    key = jax.random.PRNGKey(0)
    ks = jax.random.split(key, 17)

    # Activations stored bf16 (residual streams are HBM-bound at scale); the
    # kernel computes in f32 and keeps membranes/accumulators in f32.
    act_dtype = jnp.bfloat16
    identity = jax.random.normal(ks[0], (T, N, H, W, Cid), jnp.float32).astype(act_dtype)
    x_acc = jax.random.normal(ks[1], (T, N, H, W, Cid), jnp.float32).astype(act_dtype)

    # conv weights, channels-last layouts:
    #   w1: (Cin, Cout)       == PyTorch (Cout, Cin, 1, 1).squeeze().T
    #   w2: (3, 3, Cin, Cout) == PyTorch (Cout, Cin, 3, 3).transpose(2, 3, 1, 0)
    #   w3: (Cin, Cout)
    w1 = jax.random.normal(ks[2], (Cid, Cw), jnp.float32) * (2.0 / Cid) ** 0.5
    w2 = jax.random.normal(ks[3], (3, 3, Cw, Cw), jnp.float32) * (2.0 / (9 * Cw)) ** 0.5
    w3 = jax.random.normal(ks[4], (Cw, Cid), jnp.float32) * (2.0 / Cw) ** 0.5

    def bn_params(kg, kb, km, kv, C):
        gamma = 1.0 + 0.1 * jax.random.normal(kg, (C,), jnp.float32)
        beta = 0.1 * jax.random.normal(kb, (C,), jnp.float32)
        mean = 0.1 * jax.random.normal(km, (C,), jnp.float32)
        var = 1.0 + 0.2 * jax.random.uniform(kv, (C,), jnp.float32)
        scale = gamma * jax.lax.rsqrt(var + 1e-5)
        bias = beta - mean * scale
        return scale.reshape(1, C), bias.reshape(1, C)

    bn1s, bn1b = bn_params(ks[5], ks[6], ks[7], ks[8], Cw)
    bn2s, bn2b = bn_params(ks[9], ks[10], ks[11], ks[12], Cw)
    bn3s, bn3b = bn_params(ks[13], ks[14], ks[15], ks[16], Cid)

    params = (w1, w2, w3, bn1s, bn1b, bn2s, bn2b, bn3s, bn3b)

    # Compute the reference FIRST (x_acc is aliased into the kernel's 2nd output).
    out_r, xacc_r = ref_forward(identity.astype(jnp.float32),
                                x_acc.astype(jnp.float32), params, connect_f='AND')
    out_r = out_r.astype(act_dtype)
    xacc_r = xacc_r.astype(act_dtype)
    out_r, xacc_r = jax.block_until_ready((out_r, xacc_r))

    out, xacc_out = bottleneck_forward(identity, x_acc, params, connect_f='AND', TB=2)
    out, xacc_out = jax.block_until_ready((out, xacc_out))

    # Correctness check vs pure-JAX reference.  Spikes are binary, so mismatches
    # can only come from rounding-induced flips exactly at the IF threshold
    # (different conv2 accumulation order); a tiny fraction is tolerated.
    def mismatch_frac(a, b):
        a = a.astype(jnp.float32)
        b = b.astype(jnp.float32)
        return float(jnp.mean((jnp.abs(a - b) > 1e-3).astype(jnp.float32)))

    assert mismatch_frac(out, out_r) < 0.01, "out mismatch vs reference"
    assert mismatch_frac(xacc_out, xacc_r) < 0.01, "x_acc mismatch vs reference"

    print("KERNEL_OK")
</pallas_src>

<mosaic_0001>
module attributes {stable_mosaic.version = 11 : i64} {
  func.func @_bottleneck_kernel(%arg0: i32, %arg1: i32, %arg2: memref<2x4x8x8x128xbf16, #tpu.memory_space<vmem>>, %arg3: memref<2x4x8x8x128xbf16, #tpu.memory_space<vmem>>, %arg4: memref<128x32xf32, #tpu.memory_space<vmem>>, %arg5: memref<288x32xf32, #tpu.memory_space<vmem>>, %arg6: memref<32x128xf32, #tpu.memory_space<vmem>>, %arg7: memref<1x32xf32, #tpu.memory_space<vmem>>, %arg8: memref<1x32xf32, #tpu.memory_space<vmem>>, %arg9: memref<1x128xf32, #tpu.memory_space<vmem>>, %arg10: memref<2x4x8x8x128xbf16, #tpu.memory_space<vmem>>, %arg11: memref<2x4x8x8x128xbf16, #tpu.memory_space<vmem>>, %arg12: memref<256x32xf32, #tpu.memory_space<vmem>>, %arg13: memref<256x32xf32, #tpu.memory_space<vmem>>, %arg14: memref<256x128xf32, #tpu.memory_space<vmem>>, %arg15: memref<4x10x10x32xf32, #tpu.memory_space<vmem>>, %arg16: memref<512x32xf32, #tpu.memory_space<vmem>>) attributes {dimension_semantics = [#tpu.dimension_semantics<parallel>, #tpu.dimension_semantics<arbitrary>], iteration_bounds = array<i64: 2, 2>, scalar_prefetch = 0 : i64, scratch_operands = 5 : i64, tpu.core_type = #tpu.core_type<tc>, window_params = [{transform_indices = @transform_0, window_bounds = array<i64: 2, 4, 8, 8, 128>}, {transform_indices = @transform_1, window_bounds = array<i64: 2, 4, 8, 8, 128>}, {pipeline_mode = #tpu.pipeline_mode<synchronous>, transform_indices = @transform_2, window_bounds = array<i64: 128, 32>}, {pipeline_mode = #tpu.pipeline_mode<synchronous>, transform_indices = @transform_3, window_bounds = array<i64: 288, 32>}, {pipeline_mode = #tpu.pipeline_mode<synchronous>, transform_indices = @transform_4, window_bounds = array<i64: 32, 128>}, {pipeline_mode = #tpu.pipeline_mode<synchronous>, transform_indices = @transform_5, window_bounds = array<i64: 1, 32>}, {pipeline_mode = #tpu.pipeline_mode<synchronous>, transform_indices = @transform_6, window_bounds = array<i64: 1, 32>}, {pipeline_mode = #tpu.pipeline_mode<synchronous>, transform_indices = @transform_7, window_bounds = array<i64: 1, 128>}, {transform_indices = @transform_8, window_bounds = array<i64: 2, 4, 8, 8, 128>}, {transform_indices = @transform_9, window_bounds = array<i64: 2, 4, 8, 8, 128>}]} {
    %c0_i32 = arith.constant 0 : i32
    %0 = arith.cmpi eq, %arg1, %c0_i32 : i32
    %1 = arith.extui %0 : i1 to i32
    %c0_i32_0 = arith.constant 0 : i32
    %2 = arith.cmpi ne, %1, %c0_i32_0 : i32
    scf.if %2 {
      %cst_196 = arith.constant 0.000000e+00 : f32
      %216 = vector.broadcast %cst_196 : f32 to vector<256x32xf32>
      %c0_197 = arith.constant 0 : index
      %c0_198 = arith.constant 0 : index
      %217 = vector.load %arg12[%c0_197, %c0_198] : memref<256x32xf32, #tpu.memory_space<vmem>>, vector<256x32xf32>
      tpu.vector_store %arg12[%c0_197, %c0_198], %216 {strides = array<i32>} : memref<256x32xf32, #tpu.memory_space<vmem>>, vector<256x32xf32>,
      %cst_199 = arith.constant 0.000000e+00 : f32
      %218 = vector.broadcast %cst_199 : f32 to vector<256x32xf32>
      %c0_200 = arith.constant 0 : index
      %c0_201 = arith.constant 0 : index
      %219 = vector.load %arg13[%c0_200, %c0_201] : memref<256x32xf32, #tpu.memory_space<vmem>>, vector<256x32xf32>
      tpu.vector_store %arg13[%c0_200, %c0_201], %218 {strides = array<i32>} : memref<256x32xf32, #tpu.memory_space<vmem>>, vector<256x32xf32>,
      %cst_202 = arith.constant 0.000000e+00 : f32
      %220 = vector.broadcast %cst_202 : f32 to vector<256x128xf32>
      %c0_203 = arith.constant 0 : index
      %c0_204 = arith.constant 0 : index
      %221 = vector.load %arg14[%c0_203, %c0_204] : memref<256x128xf32, #tpu.memory_space<vmem>>, vector<256x128xf32>
      tpu.vector_store %arg14[%c0_203, %c0_204], %220 {strides = array<i32>} : memref<256x128xf32, #tpu.memory_space<vmem>>, vector<256x128xf32>,
      %cst_205 = arith.constant 0.000000e+00 : f32
      %222 = vector.broadcast %cst_205 : f32 to vector<4x10x10x32xf32>
      %c0_206 = arith.constant 0 : index
      %c0_207 = arith.constant 0 : index
      %c0_208 = arith.constant 0 : index
      %c0_209 = arith.constant 0 : index
      %223 = vector.load %arg15[%c0_206, %c0_207, %c0_208, %c0_209] : memref<4x10x10x32xf32, #tpu.memory_space<vmem>>, vector<4x10x10x32xf32>
      tpu.vector_store %arg15[%c0_206, %c0_207, %c0_208, %c0_209], %222 {strides = array<i32>} : memref<4x10x10x32xf32, #tpu.memory_space<vmem>>, vector<4x10x10x32xf32>,
    } else {
    }
    %c0 = arith.constant 0 : index
    %c0_1 = arith.constant 0 : index
    %3 = vector.load %arg5[%c0, %c0_1] : memref<288x32xf32, #tpu.memory_space<vmem>>, vector<288x32xf32>
    %c0_2 = arith.constant 0 : index
    %c0_3 = arith.constant 0 : index
    %4 = vector.load %arg6[%c0_2, %c0_3] : memref<32x128xf32, #tpu.memory_space<vmem>>, vector<32x128xf32>
    %c0_4 = arith.constant 0 : index
    %c0_5 = arith.constant 0 : index
    %5 = vector.load %arg8[%c0_4, %c0_5] : memref<1x32xf32, #tpu.memory_space<vmem>>, vector<1x32xf32>
    %c0_6 = arith.constant 0 : index
    %c0_7 = arith.constant 0 : index
    %6 = vector.load %arg9[%c0_6, %c0_7] : memref<1x128xf32, #tpu.memory_space<vmem>>, vector<1x128xf32>
    %c0_8 = arith.constant 0 : index
    %c0_9 = arith.constant 0 : index
    %c0_10 = arith.constant 0 : index
    %c0_11 = arith.constant 0 : index
    %c0_12 = arith.constant 0 : index
    %7 = vector.load %arg2[%c0_8, %c0_9, %c0_10, %c0_11, %c0_12] : memref<2x4x8x8x128xbf16, #tpu.memory_space<vmem>>, vector<2x4x8x8x128xbf16>
    %8 = arith.extf %7 : vector<2x4x8x8x128xbf16> to vector<2x4x8x8x128xf32>
    %9 = vector.shape_cast %8 : vector<2x4x8x8x128xf32> to vector<512x128xf32>
    %c0_13 = arith.constant 0 : index
    %c0_14 = arith.constant 0 : index
    %10 = vector.load %arg4[%c0_13, %c0_14] : memref<128x32xf32, #tpu.memory_space<vmem>>, vector<128x32xf32>
    %cst = arith.constant dense<0.000000e+00> : vector<512x32xf32>
    %11 = tpu.matmul %9, %10, %cst {dimension_numbers = #tpu.dot_dimension_numbers<[1], [0], [0], [1], [0, 0, 1, 1], [], []>} : vector<512x128xf32>, vector<128x32xf32>, vector<512x32xf32> -> vector<512x32xf32>
    %c0_15 = arith.constant 0 : index
    %c0_16 = arith.constant 0 : index
    %12 = vector.load %arg7[%c0_15, %c0_16] : memref<1x32xf32, #tpu.memory_space<vmem>>, vector<1x32xf32>
    %13 = vector.broadcast %12 : vector<1x32xf32> to vector<512x32xf32>
    %14 = arith.addf %11, %13 : vector<512x32xf32>
    %c0_17 = arith.constant 0 : index
    %c0_18 = arith.constant 0 : index
    %15 = vector.load %arg16[%c0_17, %c0_18] : memref<512x32xf32, #tpu.memory_space<vmem>>, vector<512x32xf32>
    tpu.vector_store %arg16[%c0_17, %c0_18], %14 {strides = array<i32>} : memref<512x32xf32, #tpu.memory_space<vmem>>, vector<512x32xf32>,
    %c0_19 = arith.constant 0 : index
    %c0_20 = arith.constant 0 : index
    %16 = vector.load %arg16[%c0_19, %c0_20] : memref<512x32xf32, #tpu.memory_space<vmem>>, vector<256x32xf32>
    %c0_21 = arith.constant 0 : index
    %c0_22 = arith.constant 0 : index
    %17 = vector.load %arg12[%c0_21, %c0_22] : memref<256x32xf32, #tpu.memory_space<vmem>>, vector<256x32xf32>
    %18 = arith.addf %17, %16 : vector<256x32xf32>
    %cst_23 = arith.constant 1.000000e+00 : f32
    %19 = vector.broadcast %cst_23 : f32 to vector<256x32xf32>
    %20 = arith.cmpf oge, %18, %19 : vector<256x32xf32>
    %21 = arith.extui %20 : vector<256x32xi1> to vector<256x32xi32>
    %22 = arith.sitofp %21 : vector<256x32xi32> to vector<256x32xf32>
    %cst_24 = arith.constant 0.000000e+00 : f32
    %23 = vector.broadcast %cst_24 : f32 to vector<256x32xf32>
    %24 = arith.select %20, %23, %18 : vector<256x32xi1>, vector<256x32xf32>
    %c0_25 = arith.constant 0 : index
    %c0_26 = arith.constant 0 : index
    %25 = vector.load %arg12[%c0_25, %c0_26] : memref<256x32xf32, #tpu.memory_space<vmem>>, vector<256x32xf32>
    tpu.vector_store %arg12[%c0_25, %c0_26], %24 {strides = array<i32>} : memref<256x32xf32, #tpu.memory_space<vmem>>, vector<256x32xf32>,
    %26 = vector.shape_cast %22 : vector<256x32xf32> to vector<4x8x8x32xf32>
    %c0_27 = arith.constant 0 : index
    %c1 = arith.constant 1 : index
    %c1_28 = arith.constant 1 : index
    %c0_29 = arith.constant 0 : index
    %27 = vector.load %arg15[%c0_27, %c1, %c1_28, %c0_29] : memref<4x10x10x32xf32, #tpu.memory_space<vmem>>, vector<4x8x8x32xf32>
    tpu.vector_store %arg15[%c0_27, %c1, %c1_28, %c0_29], %26 {strides = array<i32>} : memref<4x10x10x32xf32, #tpu.memory_space<vmem>>, vector<4x8x8x32xf32>,
    %28 = vector.shape_cast %5 : vector<1x32xf32> to vector<1x32xf32>
    %29 = vector.broadcast %28 : vector<1x32xf32> to vector<256x32xf32>
    %c0_30 = arith.constant 0 : index
    %c0_31 = arith.constant 0 : index
    %c0_32 = arith.constant 0 : index
    %c0_33 = arith.constant 0 : index
    %30 = vector.load %arg15[%c0_30, %c0_31, %c0_32, %c0_33] : memref<4x10x10x32xf32, #tpu.memory_space<vmem>>, vector<4x8x8x32xf32>
    %31 = vector.shape_cast %30 : vector<4x8x8x32xf32> to vector<256x32xf32>
    %32 = vector.extract_strided_slice %3 {offsets = [0, 0], sizes = [32, 32], strides = [1, 1]} : vector<288x32xf32> to vector<32x32xf32>
    %cst_34 = arith.constant dense<0.000000e+00> : vector<256x32xf32>
    %33 = tpu.matmul %31, %32, %cst_34 {dimension_numbers = #tpu.dot_dimension_numbers<[1], [0], [0], [1], [0, 0, 1, 1], [], []>} : vector<256x32xf32>, vector<32x32xf32>, vector<256x32xf32> -> vector<256x32xf32>
    %34 = arith.addf %29, %33 : vector<256x32xf32>
    %c0_35 = arith.constant 0 : index
    %c0_36 = arith.constant 0 : index
    %c1_37 = arith.constant 1 : index
    %c0_38 = arith.constant 0 : index
    %35 = vector.load %arg15[%c0_35, %c0_36, %c1_37, %c0_38] : memref<4x10x10x32xf32, #tpu.memory_space<vmem>>, vector<4x8x8x32xf32>
    %36 = vector.shape_cast %35 : vector<4x8x8x32xf32> to vector<256x32xf32>
    %37 = vector.extract_strided_slice %3 {offsets = [32, 0], sizes = [32, 32], strides = [1, 1]} : vector<288x32xf32> to vector<32x32xf32>
    %cst_39 = arith.constant dense<0.000000e+00> : vector<256x32xf32>
    %38 = tpu.matmul %36, %37, %cst_39 {dimension_numbers = #tpu.dot_dimension_numbers<[1], [0], [0], [1], [0, 0, 1, 1], [], []>} : vector<256x32xf32>, vector<32x32xf32>, vector<256x32xf32> -> vector<256x32xf32>
    %39 = arith.addf %34, %38 : vector<256x32xf32>
    %c0_40 = arith.constant 0 : index
    %c0_41 = arith.constant 0 : index
    %c2 = arith.constant 2 : index
    %c0_42 = arith.constant 0 : index
    %40 = vector.load %arg15[%c0_40, %c0_41, %c2, %c0_42] : memref<4x10x10x32xf32, #tpu.memory_space<vmem>>, vector<4x8x8x32xf32>
    %41 = vector.shape_cast %40 : vector<4x8x8x32xf32> to vector<256x32xf32>
    %42 = vector.extract_strided_slice %3 {offsets = [64, 0], sizes = [32, 32], strides = [1, 1]} : vector<288x32xf32> to vector<32x32xf32>
    %cst_43 = arith.constant dense<0.000000e+00> : vector<256x32xf32>
    %43 = tpu.matmul %41, %42, %cst_43 {dimension_numbers = #tpu.dot_dimension_numbers<[1], [0], [0], [1], [0, 0, 1, 1], [], []>} : vector<256x32xf32>, vector<32x32xf32>, vector<256x32xf32> -> vector<256x32xf32>
    %44 = arith.addf %39, %43 : vector<256x32xf32>
    %c0_44 = arith.constant 0 : index
    %c1_45 = arith.constant 1 : index
    %c0_46 = arith.constant 0 : index
    %c0_47 = arith.constant 0 : index
    %45 = vector.load %arg15[%c0_44, %c1_45, %c0_46, %c0_47] : memref<4x10x10x32xf32, #tpu.memory_space<vmem>>, vector<4x8x8x32xf32>
    %46 = vector.shape_cast %45 : vector<4x8x8x32xf32> to vector<256x32xf32>
    %47 = vector.extract_strided_slice %3 {offsets = [96, 0], sizes = [32, 32], strides = [1, 1]} : vector<288x32xf32> to vector<32x32xf32>
    %cst_48 = arith.constant dense<0.000000e+00> : vector<256x32xf32>
    %48 = tpu.matmul %46, %47, %cst_48 {dimension_numbers = #tpu.dot_dimension_numbers<[1], [0], [0], [1], [0, 0, 1, 1], [], []>} : vector<256x32xf32>, vector<32x32xf32>, vector<256x32xf32> -> vector<256x32xf32>
    %49 = arith.addf %44, %48 : vector<256x32xf32>
    %c0_49 = arith.constant 0 : index
    %c1_50 = arith.constant 1 : index
    %c1_51 = arith.constant 1 : index
    %c0_52 = arith.constant 0 : index
    %50 = vector.load %arg15[%c0_49, %c1_50, %c1_51, %c0_52] : memref<4x10x10x32xf32, #tpu.memory_space<vmem>>, vector<4x8x8x32xf32>
    %51 = vector.shape_cast %50 : vector<4x8x8x32xf32> to vector<256x32xf32>
    %52 = vector.extract_strided_slice %3 {offsets = [128, 0], sizes = [32, 32], strides = [1, 1]} : vector<288x32xf32> to vector<32x32xf32>
    %cst_53 = arith.constant dense<0.000000e+00> : vector<256x32xf32>
    %53 = tpu.matmul %51, %52, %cst_53 {dimension_numbers = #tpu.dot_dimension_numbers<[1], [0], [0], [1], [0, 0, 1, 1], [], []>} : vector<256x32xf32>, vector<32x32xf32>, vector<256x32xf32> -> vector<256x32xf32>
    %54 = arith.addf %49, %53 : vector<256x32xf32>
    %c0_54 = arith.constant 0 : index
    %c1_55 = arith.constant 1 : index
    %c2_56 = arith.constant 2 : index
    %c0_57 = arith.constant 0 : index
    %55 = vector.load %arg15[%c0_54, %c1_55, %c2_56, %c0_57] : memref<4x10x10x32xf32, #tpu.memory_space<vmem>>, vector<4x8x8x32xf32>
    %56 = vector.shape_cast %55 : vector<4x8x8x32xf32> to vector<256x32xf32>
    %57 = vector.extract_strided_slice %3 {offsets = [160, 0], sizes = [32, 32], strides = [1, 1]} : vector<288x32xf32> to vector<32x32xf32>
    %cst_58 = arith.constant dense<0.000000e+00> : vector<256x32xf32>
    %58 = tpu.matmul %56, %57, %cst_58 {dimension_numbers = #tpu.dot_dimension_numbers<[1], [0], [0], [1], [0, 0, 1, 1], [], []>} : vector<256x32xf32>, vector<32x32xf32>, vector<256x32xf32> -> vector<256x32xf32>
    %59 = arith.addf %54, %58 : vector<256x32xf32>
    %c0_59 = arith.constant 0 : index
    %c2_60 = arith.constant 2 : index
    %c0_61 = arith.constant 0 : index
    %c0_62 = arith.constant 0 : index
    %60 = vector.load %arg15[%c0_59, %c2_60, %c0_61, %c0_62] : memref<4x10x10x32xf32, #tpu.memory_space<vmem>>, vector<4x8x8x32xf32>
    %61 = vector.shape_cast %60 : vector<4x8x8x32xf32> to vector<256x32xf32>
    %62 = vector.extract_strided_slice %3 {offsets = [192, 0], sizes = [32, 32], strides = [1, 1]} : vector<288x32xf32> to vector<32x32xf32>
    %cst_63 = arith.constant dense<0.000000e+00> : vector<256x32xf32>
    %63 = tpu.matmul %61, %62, %cst_63 {dimension_numbers = #tpu.dot_dimension_numbers<[1], [0], [0], [1], [0, 0, 1, 1], [], []>} : vector<256x32xf32>, vector<32x32xf32>, vector<256x32xf32> -> vector<256x32xf32>
    %64 = arith.addf %59, %63 : vector<256x32xf32>
    %c0_64 = arith.constant 0 : index
    %c2_65 = arith.constant 2 : index
    %c1_66 = arith.constant 1 : index
    %c0_67 = arith.constant 0 : index
    %65 = vector.load %arg15[%c0_64, %c2_65, %c1_66, %c0_67] : memref<4x10x10x32xf32, #tpu.memory_space<vmem>>, vector<4x8x8x32xf32>
    %66 = vector.shape_cast %65 : vector<4x8x8x32xf32> to vector<256x32xf32>
    %67 = vector.extract_strided_slice %3 {offsets = [224, 0], sizes = [32, 32], strides = [1, 1]} : vector<288x32xf32> to vector<32x32xf32>
    %cst_68 = arith.constant dense<0.000000e+00> : vector<256x32xf32>
    %68 = tpu.matmul %66, %67, %cst_68 {dimension_numbers = #tpu.dot_dimension_numbers<[1], [0], [0], [1], [0, 0, 1, 1], [], []>} : vector<256x32xf32>, vector<32x32xf32>, vector<256x32xf32> -> vector<256x32xf32>
    %69 = arith.addf %64, %68 : vector<256x32xf32>
    %c0_69 = arith.constant 0 : index
    %c2_70 = arith.constant 2 : index
    %c2_71 = arith.constant 2 : index
    %c0_72 = arith.constant 0 : index
    %70 = vector.load %arg15[%c0_69, %c2_70, %c2_71, %c0_72] : memref<4x10x10x32xf32, #tpu.memory_space<vmem>>, vector<4x8x8x32xf32>
    %71 = vector.shape_cast %70 : vector<4x8x8x32xf32> to vector<256x32xf32>
    %72 = vector.extract_strided_slice %3 {offsets = [256, 0], sizes = [32, 32], strides = [1, 1]} : vector<288x32xf32> to vector<32x32xf32>
    %cst_73 = arith.constant dense<0.000000e+00> : vector<256x32xf32>
    %73 = tpu.matmul %71, %72, %cst_73 {dimension_numbers = #tpu.dot_dimension_numbers<[1], [0], [0], [1], [0, 0, 1, 1], [], []>} : vector<256x32xf32>, vector<32x32xf32>, vector<256x32xf32> -> vector<256x32xf32>
    %74 = arith.addf %69, %73 : vector<256x32xf32>
    %c0_74 = arith.constant 0 : index
    %c0_75 = arith.constant 0 : index
    %75 = vector.load %arg13[%c0_74, %c0_75] : memref<256x32xf32, #tpu.memory_space<vmem>>, vector<256x32xf32>
    %76 = arith.addf %75, %74 : vector<256x32xf32>
    %cst_76 = arith.constant 1.000000e+00 : f32
    %77 = vector.broadcast %cst_76 : f32 to vector<256x32xf32>
    %78 = arith.cmpf oge, %76, %77 : vector<256x32xf32>
    %79 = arith.extui %78 : vector<256x32xi1> to vector<256x32xi32>
    %80 = arith.sitofp %79 : vector<256x32xi32> to vector<256x32xf32>
    %cst_77 = arith.constant 0.000000e+00 : f32
    %81 = vector.broadcast %cst_77 : f32 to vector<256x32xf32>
    %82 = arith.select %78, %81, %76 : vector<256x32xi1>, vector<256x32xf32>
    %c0_78 = arith.constant 0 : index
    %c0_79 = arith.constant 0 : index
    %83 = vector.load %arg13[%c0_78, %c0_79] : memref<256x32xf32, #tpu.memory_space<vmem>>, vector<256x32xf32>
    tpu.vector_store %arg13[%c0_78, %c0_79], %82 {strides = array<i32>} : memref<256x32xf32, #tpu.memory_space<vmem>>, vector<256x32xf32>,
    %cst_80 = arith.constant dense<0.000000e+00> : vector<256x128xf32>
    %84 = tpu.matmul %80, %4, %cst_80 {dimension_numbers = #tpu.dot_dimension_numbers<[1], [0], [0], [1], [0, 0, 1, 1], [], []>} : vector<256x32xf32>, vector<32x128xf32>, vector<256x128xf32> -> vector<256x128xf32>
    %85 = vector.broadcast %6 : vector<1x128xf32> to vector<256x128xf32>
    %86 = arith.addf %84, %85 : vector<256x128xf32>
    %c0_81 = arith.constant 0 : index
    %c0_82 = arith.constant 0 : index
    %87 = vector.load %arg14[%c0_81, %c0_82] : memref<256x128xf32, #tpu.memory_space<vmem>>, vector<256x128xf32>
    %88 = arith.addf %87, %86 : vector<256x128xf32>
    %cst_83 = arith.constant 1.000000e+00 : f32
    %89 = vector.broadcast %cst_83 : f32 to vector<256x128xf32>
    %90 = arith.cmpf oge, %88, %89 : vector<256x128xf32>
    %91 = arith.extui %90 : vector<256x128xi1> to vector<256x128xi32>
    %92 = arith.sitofp %91 : vector<256x128xi32> to vector<256x128xf32>
    %cst_84 = arith.constant 0.000000e+00 : f32
    %93 = vector.broadcast %cst_84 : f32 to vector<256x128xf32>
    %94 = arith.select %90, %93, %88 : vector<256x128xi1>, vector<256x128xf32>
    %c0_85 = arith.constant 0 : index
    %c0_86 = arith.constant 0 : index
    %95 = vector.load %arg14[%c0_85, %c0_86] : memref<256x128xf32, #tpu.memory_space<vmem>>, vector<256x128xf32>
    tpu.vector_store %arg14[%c0_85, %c0_86], %94 {strides = array<i32>} : memref<256x128xf32, #tpu.memory_space<vmem>>, vector<256x128xf32>,
    %c0_87 = arith.constant 0 : index
    %c0_88 = arith.constant 0 : index
    %c0_89 = arith.constant 0 : index
    %c0_90 = arith.constant 0 : index
    %c0_91 = arith.constant 0 : index
    %96 = vector.load %arg2[%c0_87, %c0_88, %c0_89, %c0_90, %c0_91] : memref<2x4x8x8x128xbf16, #tpu.memory_space<vmem>>, vector<1x4x8x8x128xbf16>
    %97 = vector.shape_cast %96 : vector<1x4x8x8x128xbf16> to vector<4x8x8x128xbf16>
    %98 = arith.extf %97 : vector<4x8x8x128xbf16> to vector<4x8x8x128xf32>
    %99 = vector.shape_cast %98 : vector<4x8x8x128xf32> to vector<256x128xf32>
    %c0_92 = arith.constant 0 : index
    %c0_93 = arith.constant 0 : index
    %c0_94 = arith.constant 0 : index
    %c0_95 = arith.constant 0 : index
    %c0_96 = arith.constant 0 : index
    %100 = vector.load %arg3[%c0_92, %c0_93, %c0_94, %c0_95, %c0_96] : memref<2x4x8x8x128xbf16, #tpu.memory_space<vmem>>, vector<1x4x8x8x128xbf16>
    %101 = vector.shape_cast %100 : vector<1x4x8x8x128xbf16> to vector<4x8x8x128xbf16>
    %102 = arith.extf %101 : vector<4x8x8x128xbf16> to vector<4x8x8x128xf32>
    %103 = vector.shape_cast %102 : vector<4x8x8x128xf32> to vector<256x128xf32>
    %104 = arith.addf %103, %92 : vector<256x128xf32>
    %105 = vector.shape_cast %104 : vector<256x128xf32> to vector<4x8x8x128xf32>
    %106 = arith.truncf %105 : vector<4x8x8x128xf32> to vector<4x8x8x128xbf16>
    %c0_97 = arith.constant 0 : index
    %c0_98 = arith.constant 0 : index
    %c0_99 = arith.constant 0 : index
    %c0_100 = arith.constant 0 : index
    %c0_101 = arith.constant 0 : index
    %107 = vector.load %arg11[%c0_97, %c0_98, %c0_99, %c0_100, %c0_101] : memref<2x4x8x8x128xbf16, #tpu.memory_space<vmem>>, vector<1x4x8x8x128xbf16>
    %108 = vector.shape_cast %107 : vector<1x4x8x8x128xbf16> to vector<4x8x8x128xbf16>
    %109 = vector.shape_cast %106 : vector<4x8x8x128xbf16> to vector<1x4x8x8x128xbf16>
    tpu.vector_store %arg11[%c0_97, %c0_98, %c0_99, %c0_100, %c0_101], %109 {strides = array<i32>} : memref<2x4x8x8x128xbf16, #tpu.memory_space<vmem>>, vector<1x4x8x8x128xbf16>,
    %110 = arith.mulf %92, %99 : vector<256x128xf32>
    %111 = vector.shape_cast %110 : vector<256x128xf32> to vector<4x8x8x128xf32>
    %112 = arith.truncf %111 : vector<4x8x8x128xf32> to vector<4x8x8x128xbf16>
    %c0_102 = arith.constant 0 : index
    %c0_103 = arith.constant 0 : index
    %c0_104 = arith.constant 0 : index
    %c0_105 = arith.constant 0 : index
    %c0_106 = arith.constant 0 : index
    %113 = vector.load %arg10[%c0_102, %c0_103, %c0_104, %c0_105, %c0_106] : memref<2x4x8x8x128xbf16, #tpu.memory_space<vmem>>, vector<1x4x8x8x128xbf16>
    %114 = vector.shape_cast %113 : vector<1x4x8x8x128xbf16> to vector<4x8x8x128xbf16>
    %115 = vector.shape_cast %112 : vector<4x8x8x128xbf16> to vector<1x4x8x8x128xbf16>
    tpu.vector_store %arg10[%c0_102, %c0_103, %c0_104, %c0_105, %c0_106], %115 {strides = array<i32>} : memref<2x4x8x8x128xbf16, #tpu.memory_space<vmem>>, vector<1x4x8x8x128xbf16>,
    %c256 = arith.constant 256 : index
    %c0_107 = arith.constant 0 : index
    %116 = vector.load %arg16[%c256, %c0_107] : memref<512x32xf32, #tpu.memory_space<vmem>>, vector<256x32xf32>
    %c0_108 = arith.constant 0 : index
    %c0_109 = arith.constant 0 : index
    %117 = vector.load %arg12[%c0_108, %c0_109] : memref<256x32xf32, #tpu.memory_space<vmem>>, vector<256x32xf32>
    %118 = arith.addf %117, %116 : vector<256x32xf32>
    %cst_110 = arith.constant 1.000000e+00 : f32
    %119 = vector.broadcast %cst_110 : f32 to vector<256x32xf32>
    %120 = arith.cmpf oge, %118, %119 : vector<256x32xf32>
    %121 = arith.extui %120 : vector<256x32xi1> to vector<256x32xi32>
    %122 = arith.sitofp %121 : vector<256x32xi32> to vector<256x32xf32>
    %cst_111 = arith.constant 0.000000e+00 : f32
    %123 = vector.broadcast %cst_111 : f32 to vector<256x32xf32>
    %124 = arith.select %120, %123, %118 : vector<256x32xi1>, vector<256x32xf32>
    %c0_112 = arith.constant 0 : index
    %c0_113 = arith.constant 0 : index
    %125 = vector.load %arg12[%c0_112, %c0_113] : memref<256x32xf32, #tpu.memory_space<vmem>>, vector<256x32xf32>
    tpu.vector_store %arg12[%c0_112, %c0_113], %124 {strides = array<i32>} : memref<256x32xf32, #tpu.memory_space<vmem>>, vector<256x32xf32>,
    %126 = vector.shape_cast %122 : vector<256x32xf32> to vector<4x8x8x32xf32>
    %c0_114 = arith.constant 0 : index
    %c1_115 = arith.constant 1 : index
    %c1_116 = arith.constant 1 : index
    %c0_117 = arith.constant 0 : index
    %127 = vector.load %arg15[%c0_114, %c1_115, %c1_116, %c0_117] : memref<4x10x10x32xf32, #tpu.memory_space<vmem>>, vector<4x8x8x32xf32>
    tpu.vector_store %arg15[%c0_114, %c1_115, %c1_116, %c0_117], %126 {strides = array<i32>} : memref<4x10x10x32xf32, #tpu.memory_space<vmem>>, vector<4x8x8x32xf32>,
    %128 = vector.shape_cast %5 : vector<1x32xf32> to vector<1x32xf32>
    %129 = vector.broadcast %128 : vector<1x32xf32> to vector<256x32xf32>
    %c0_118 = arith.constant 0 : index
    %c0_119 = arith.constant 0 : index
    %c0_120 = arith.constant 0 : index
    %c0_121 = arith.constant 0 : index
    %130 = vector.load %arg15[%c0_118, %c0_119, %c0_120, %c0_121] : memref<4x10x10x32xf32, #tpu.memory_space<vmem>>, vector<4x8x8x32xf32>
    %131 = vector.shape_cast %130 : vector<4x8x8x32xf32> to vector<256x32xf32>
    %132 = vector.extract_strided_slice %3 {offsets = [0, 0], sizes = [32, 32], strides = [1, 1]} : vector<288x32xf32> to vector<32x32xf32>
    %cst_122 = arith.constant dense<0.000000e+00> : vector<256x32xf32>
    %133 = tpu.matmul %131, %132, %cst_122 {dimension_numbers = #tpu.dot_dimension_numbers<[1], [0], [0], [1], [0, 0, 1, 1], [], []>} : vector<256x32xf32>, vector<32x32xf32>, vector<256x32xf32> -> vector<256x32xf32>
    %134 = arith.addf %129, %133 : vector<256x32xf32>
    %c0_123 = arith.constant 0 : index
    %c0_124 = arith.constant 0 : index
    %c1_125 = arith.constant 1 : index
    %c0_126 = arith.constant 0 : index
    %135 = vector.load %arg15[%c0_123, %c0_124, %c1_125, %c0_126] : memref<4x10x10x32xf32, #tpu.memory_space<vmem>>, vector<4x8x8x32xf32>
    %136 = vector.shape_cast %135 : vector<4x8x8x32xf32> to vector<256x32xf32>
    %137 = vector.extract_strided_slice %3 {offsets = [32, 0], sizes = [32, 32], strides = [1, 1]} : vector<288x32xf32> to vector<32x32xf32>
    %cst_127 = arith.constant dense<0.000000e+00> : vector<256x32xf32>
    %138 = tpu.matmul %136, %137, %cst_127 {dimension_numbers = #tpu.dot_dimension_numbers<[1], [0], [0], [1], [0, 0, 1, 1], [], []>} : vector<256x32xf32>, vector<32x32xf32>, vector<256x32xf32> -> vector<256x32xf32>
    %139 = arith.addf %134, %138 : vector<256x32xf32>
    %c0_128 = arith.constant 0 : index
    %c0_129 = arith.constant 0 : index
    %c2_130 = arith.constant 2 : index
    %c0_131 = arith.constant 0 : index
    %140 = vector.load %arg15[%c0_128, %c0_129, %c2_130, %c0_131] : memref<4x10x10x32xf32, #tpu.memory_space<vmem>>, vector<4x8x8x32xf32>
    %141 = vector.shape_cast %140 : vector<4x8x8x32xf32> to vector<256x32xf32>
    %142 = vector.extract_strided_slice %3 {offsets = [64, 0], sizes = [32, 32], strides = [1, 1]} : vector<288x32xf32> to vector<32x32xf32>
    %cst_132 = arith.constant dense<0.000000e+00> : vector<256x32xf32>
    %143 = tpu.matmul %141, %142, %cst_132 {dimension_numbers = #tpu.dot_dimension_numbers<[1], [0], [0], [1], [0, 0, 1, 1], [], []>} : vector<256x32xf32>, vector<32x32xf32>, vector<256x32xf32> -> vector<256x32xf32>
    %144 = arith.addf %139, %143 : vector<256x32xf32>
    %c0_133 = arith.constant 0 : index
    %c1_134 = arith.constant 1 : index
    %c0_135 = arith.constant 0 : index
    %c0_136 = arith.constant 0 : index
    %145 = vector.load %arg15[%c0_133, %c1_134, %c0_135, %c0_136] : memref<4x10x10x32xf32, #tpu.memory_space<vmem>>, vector<4x8x8x32xf32>
    %146 = vector.shape_cast %145 : vector<4x8x8x32xf32> to vector<256x32xf32>
    %147 = vector.extract_strided_slice %3 {offsets = [96, 0], sizes = [32, 32], strides = [1, 1]} : vector<288x32xf32> to vector<32x32xf32>
    %cst_137 = arith.constant dense<0.000000e+00> : vector<256x32xf32>
    %148 = tpu.matmul %146, %147, %cst_137 {dimension_numbers = #tpu.dot_dimension_numbers<[1], [0], [0], [1], [0, 0, 1, 1], [], []>} : vector<256x32xf32>, vector<32x32xf32>, vector<256x32xf32> -> vector<256x32xf32>
    %149 = arith.addf %144, %148 : vector<256x32xf32>
    %c0_138 = arith.constant 0 : index
    %c1_139 = arith.constant 1 : index
    %c1_140 = arith.constant 1 : index
    %c0_141 = arith.constant 0 : index
    %150 = vector.load %arg15[%c0_138, %c1_139, %c1_140, %c0_141] : memref<4x10x10x32xf32, #tpu.memory_space<vmem>>, vector<4x8x8x32xf32>
    %151 = vector.shape_cast %150 : vector<4x8x8x32xf32> to vector<256x32xf32>
    %152 = vector.extract_strided_slice %3 {offsets = [128, 0], sizes = [32, 32], strides = [1, 1]} : vector<288x32xf32> to vector<32x32xf32>
    %cst_142 = arith.constant dense<0.000000e+00> : vector<256x32xf32>
    %153 = tpu.matmul %151, %152, %cst_142 {dimension_numbers = #tpu.dot_dimension_numbers<[1], [0], [0], [1], [0, 0, 1, 1], [], []>} : vector<256x32xf32>, vector<32x32xf32>, vector<256x32xf32> -> vector<256x32xf32>
    %154 = arith.addf %149, %153 : vector<256x32xf32>
    %c0_143 = arith.constant 0 : index
    %c1_144 = arith.constant 1 : index
    %c2_145 = arith.constant 2 : index
    %c0_146 = arith.constant 0 : index
    %155 = vector.load %arg15[%c0_143, %c1_144, %c2_145, %c0_146] : memref<4x10x10x32xf32, #tpu.memory_space<vmem>>, vector<4x8x8x32xf32>
    %156 = vector.shape_cast %155 : vector<4x8x8x32xf32> to vector<256x32xf32>
    %157 = vector.extract_strided_slice %3 {offsets = [160, 0], sizes = [32, 32], strides = [1, 1]} : vector<288x32xf32> to vector<32x32xf32>
    %cst_147 = arith.constant dense<0.000000e+00> : vector<256x32xf32>
    %158 = tpu.matmul %156, %157, %cst_147 {dimension_numbers = #tpu.dot_dimension_numbers<[1], [0], [0], [1], [0, 0, 1, 1], [], []>} : vector<256x32xf32>, vector<32x32xf32>, vector<256x32xf32> -> vector<256x32xf32>
    %159 = arith.addf %154, %158 : vector<256x32xf32>
    %c0_148 = arith.constant 0 : index
    %c2_149 = arith.constant 2 : index
    %c0_150 = arith.constant 0 : index
    %c0_151 = arith.constant 0 : index
    %160 = vector.load %arg15[%c0_148, %c2_149, %c0_150, %c0_151] : memref<4x10x10x32xf32, #tpu.memory_space<vmem>>, vector<4x8x8x32xf32>
    %161 = vector.shape_cast %160 : vector<4x8x8x32xf32> to vector<256x32xf32>
    %162 = vector.extract_strided_slice %3 {offsets = [192, 0], sizes = [32, 32], strides = [1, 1]} : vector<288x32xf32> to vector<32x32xf32>
    %cst_152 = arith.constant dense<0.000000e+00> : vector<256x32xf32>
    %163 = tpu.matmul %161, %162, %cst_152 {dimension_numbers = #tpu.dot_dimension_numbers<[1], [0], [0], [1], [0, 0, 1, 1], [], []>} : vector<256x32xf32>, vector<32x32xf32>, vector<256x32xf32> -> vector<256x32xf32>
    %164 = arith.addf %159, %163 : vector<256x32xf32>
    %c0_153 = arith.constant 0 : index
    %c2_154 = arith.constant 2 : index
    %c1_155 = arith.constant 1 : index
    %c0_156 = arith.constant 0 : index
    %165 = vector.load %arg15[%c0_153, %c2_154, %c1_155, %c0_156] : memref<4x10x10x32xf32, #tpu.memory_space<vmem>>, vector<4x8x8x32xf32>
    %166 = vector.shape_cast %165 : vector<4x8x8x32xf32> to vector<256x32xf32>
    %167 = vector.extract_strided_slice %3 {offsets = [224, 0], sizes = [32, 32], strides = [1, 1]} : vector<288x32xf32> to vector<32x32xf32>
    %cst_157 = arith.constant dense<0.000000e+00> : vector<256x32xf32>
    %168 = tpu.matmul %166, %167, %cst_157 {dimension_numbers = #tpu.dot_dimension_numbers<[1], [0], [0], [1], [0, 0, 1, 1], [], []>} : vector<256x32xf32>, vector<32x32xf32>, vector<256x32xf32> -> vector<256x32xf32>
    %169 = arith.addf %164, %168 : vector<256x32xf32>
    %c0_158 = arith.constant 0 : index
    %c2_159 = arith.constant 2 : index
    %c2_160 = arith.constant 2 : index
    %c0_161 = arith.constant 0 : index
    %170 = vector.load %arg15[%c0_158, %c2_159, %c2_160, %c0_161] : memref<4x10x10x32xf32, #tpu.memory_space<vmem>>, vector<4x8x8x32xf32>
    %171 = vector.shape_cast %170 : vector<4x8x8x32xf32> to vector<256x32xf32>
    %172 = vector.extract_strided_slice %3 {offsets = [256, 0], sizes = [32, 32], strides = [1, 1]} : vector<288x32xf32> to vector<32x32xf32>
    %cst_162 = arith.constant dense<0.000000e+00> : vector<256x32xf32>
    %173 = tpu.matmul %171, %172, %cst_162 {dimension_numbers = #tpu.dot_dimension_numbers<[1], [0], [0], [1], [0, 0, 1, 1], [], []>} : vector<256x32xf32>, vector<32x32xf32>, vector<256x32xf32> -> vector<256x32xf32>
    %174 = arith.addf %169, %173 : vector<256x32xf32>
    %c0_163 = arith.constant 0 : index
    %c0_164 = arith.constant 0 : index
    %175 = vector.load %arg13[%c0_163, %c0_164] : memref<256x32xf32, #tpu.memory_space<vmem>>, vector<256x32xf32>
    %176 = arith.addf %175, %174 : vector<256x32xf32>
    %cst_165 = arith.constant 1.000000e+00 : f32
    %177 = vector.broadcast %cst_165 : f32 to vector<256x32xf32>
    %178 = arith.cmpf oge, %176, %177 : vector<256x32xf32>
    %179 = arith.extui %178 : vector<256x32xi1> to vector<256x32xi32>
    %180 = arith.sitofp %179 : vector<256x32xi32> to vector<256x32xf32>
    %cst_166 = arith.constant 0.000000e+00 : f32
    %181 = vector.broadcast %cst_166 : f32 to vector<256x32xf32>
    %182 = arith.select %178, %181, %176 : vector<256x32xi1>, vector<256x32xf32>
    %c0_167 = arith.constant 0 : index
    %c0_168 = arith.constant 0 : index
    %183 = vector.load %arg13[%c0_167, %c0_168] : memref<256x32xf32, #tpu.memory_space<vmem>>, vector<256x32xf32>
    tpu.vector_store %arg13[%c0_167, %c0_168], %182 {strides = array<i32>} : memref<256x32xf32, #tpu.memory_space<vmem>>, vector<256x32xf32>,
    %cst_169 = arith.constant dense<0.000000e+00> : vector<256x128xf32>
    %184 = tpu.matmul %180, %4, %cst_169 {dimension_numbers = #tpu.dot_dimension_numbers<[1], [0], [0], [1], [0, 0, 1, 1], [], []>} : vector<256x32xf32>, vector<32x128xf32>, vector<256x128xf32> -> vector<256x128xf32>
    %185 = vector.broadcast %6 : vector<1x128xf32> to vector<256x128xf32>
    %186 = arith.addf %184, %185 : vector<256x128xf32>
    %c0_170 = arith.constant 0 : index
    %c0_171 = arith.constant 0 : index
    %187 = vector.load %arg14[%c0_170, %c0_171] : memref<256x128xf32, #tpu.memory_space<vmem>>, vector<256x128xf32>
    %188 = arith.addf %187, %186 : vector<256x128xf32>
    %cst_172 = arith.constant 1.000000e+00 : f32
    %189 = vector.broadcast %cst_172 : f32 to vector<256x128xf32>
    %190 = arith.cmpf oge, %188, %189 : vector<256x128xf32>
    %191 = arith.extui %190 : vector<256x128xi1> to vector<256x128xi32>
    %192 = arith.sitofp %191 : vector<256x128xi32> to vector<256x128xf32>
    %cst_173 = arith.constant 0.000000e+00 : f32
    %193 = vector.broadcast %cst_173 : f32 to vector<256x128xf32>
    %194 = arith.select %190, %193, %188 : vector<256x128xi1>, vector<256x128xf32>
    %c0_174 = arith.constant 0 : index
    %c0_175 = arith.constant 0 : index
    %195 = vector.load %arg14[%c0_174, %c0_175] : memref<256x128xf32, #tpu.memory_space<vmem>>, vector<256x128xf32>
    tpu.vector_store %arg14[%c0_174, %c0_175], %194 {strides = array<i32>} : memref<256x128xf32, #tpu.memory_space<vmem>>, vector<256x128xf32>,
    %c1_176 = arith.constant 1 : index
    %c0_177 = arith.constant 0 : index
    %c0_178 = arith.constant 0 : index
    %c0_179 = arith.constant 0 : index
    %c0_180 = arith.constant 0 : index
    %196 = vector.load %arg2[%c1_176, %c0_177, %c0_178, %c0_179, %c0_180] : memref<2x4x8x8x128xbf16, #tpu.memory_space<vmem>>, vector<1x4x8x8x128xbf16>
    %197 = vector.shape_cast %196 : vector<1x4x8x8x128xbf16> to vector<4x8x8x128xbf16>
    %198 = arith.extf %197 : vector<4x8x8x128xbf16> to vector<4x8x8x128xf32>
    %199 = vector.shape_cast %198 : vector<4x8x8x128xf32> to vector<256x128xf32>
    %c1_181 = arith.constant 1 : index
    %c0_182 = arith.constant 0 : index
    %c0_183 = arith.constant 0 : index
    %c0_184 = arith.constant 0 : index
    %c0_185 = arith.constant 0 : index
    %200 = vector.load %arg3[%c1_181, %c0_182, %c0_183, %c0_184, %c0_185] : memref<2x4x8x8x128xbf16, #tpu.memory_space<vmem>>, vector<1x4x8x8x128xbf16>
    %201 = vector.shape_cast %200 : vector<1x4x8x8x128xbf16> to vector<4x8x8x128xbf16>
    %202 = arith.extf %201 : vector<4x8x8x128xbf16> to vector<4x8x8x128xf32>
    %203 = vector.shape_cast %202 : vector<4x8x8x128xf32> to vector<256x128xf32>
    %204 = arith.addf %203, %192 : vector<256x128xf32>
    %205 = vector.shape_cast %204 : vector<256x128xf32> to vector<4x8x8x128xf32>
    %206 = arith.truncf %205 : vector<4x8x8x128xf32> to vector<4x8x8x128xbf16>
    %c1_186 = arith.constant 1 : index
    %c0_187 = arith.constant 0 : index
    %c0_188 = arith.constant 0 : index
    %c0_189 = arith.constant 0 : index
    %c0_190 = arith.constant 0 : index
    %207 = vector.load %arg11[%c1_186, %c0_187, %c0_188, %c0_189, %c0_190] : memref<2x4x8x8x128xbf16, #tpu.memory_space<vmem>>, vector<1x4x8x8x128xbf16>
    %208 = vector.shape_cast %207 : vector<1x4x8x8x128xbf16> to vector<4x8x8x128xbf16>
    %209 = vector.shape_cast %206 : vector<4x8x8x128xbf16> to vector<1x4x8x8x128xbf16>
    tpu.vector_store %arg11[%c1_186, %c0_187, %c0_188, %c0_189, %c0_190], %209 {strides = array<i32>} : memref<2x4x8x8x128xbf16, #tpu.memory_space<vmem>>, vector<1x4x8x8x128xbf16>,
    %210 = arith.mulf %192, %199 : vector<256x128xf32>
    %211 = vector.shape_cast %210 : vector<256x128xf32> to vector<4x8x8x128xf32>
    %212 = arith.truncf %211 : vector<4x8x8x128xf32> to vector<4x8x8x128xbf16>
    %c1_191 = arith.constant 1 : index
    %c0_192 = arith.constant 0 : index
    %c0_193 = arith.constant 0 : index
    %c0_194 = arith.constant 0 : index
    %c0_195 = arith.constant 0 : index
    %213 = vector.load %arg10[%c1_191, %c0_192, %c0_193, %c0_194, %c0_195] : memref<2x4x8x8x128xbf16, #tpu.memory_space<vmem>>, vector<1x4x8x8x128xbf16>
    %214 = vector.shape_cast %213 : vector<1x4x8x8x128xbf16> to vector<4x8x8x128xbf16>
    %215 = vector.shape_cast %212 : vector<4x8x8x128xbf16> to vector<1x4x8x8x128xbf16>
    tpu.vector_store %arg10[%c1_191, %c0_192, %c0_193, %c0_194, %c0_195], %215 {strides = array<i32>} : memref<2x4x8x8x128xbf16, #tpu.memory_space<vmem>>, vector<1x4x8x8x128xbf16>,
    return
  }
  func.func @transform_0(%arg0: i32, %arg1: i32) -> (i32, i32, i32, i32, i32) {
    %c0_i32 = arith.constant 0 : i32
    %c0_i32_0 = arith.constant 0 : i32
    %c0_i32_1 = arith.constant 0 : i32
    %c0_i32_2 = arith.constant 0 : i32
    return %arg1, %arg0, %c0_i32, %c0_i32_0, %c0_i32_1 : i32, i32, i32, i32, i32
  }
  func.func @transform_1(%arg0: i32, %arg1: i32) -> (i32, i32, i32, i32, i32) {
    %c0_i32 = arith.constant 0 : i32
    %c0_i32_0 = arith.constant 0 : i32
    %c0_i32_1 = arith.constant 0 : i32
    %c0_i32_2 = arith.constant 0 : i32
    return %arg1, %arg0, %c0_i32, %c0_i32_0, %c0_i32_1 : i32, i32, i32, i32, i32
  }
  func.func @transform_2(%arg0: i32, %arg1: i32) -> (i32, i32) {
    %c0_i32 = arith.constant 0 : i32
    %c0_i32_0 = arith.constant 0 : i32
    %c0_i32_1 = arith.constant 0 : i32
    return %c0_i32, %c0_i32_0 : i32, i32
  }
  func.func @transform_3(%arg0: i32, %arg1: i32) -> (i32, i32) {
    %c0_i32 = arith.constant 0 : i32
    %c0_i32_0 = arith.constant 0 : i32
    %c0_i32_1 = arith.constant 0 : i32
    return %c0_i32, %c0_i32_0 : i32, i32
  }
  func.func @transform_4(%arg0: i32, %arg1: i32) -> (i32, i32) {
    %c0_i32 = arith.constant 0 : i32
    %c0_i32_0 = arith.constant 0 : i32
    %c0_i32_1 = arith.constant 0 : i32
    return %c0_i32, %c0_i32_0 : i32, i32
  }
  func.func @transform_5(%arg0: i32, %arg1: i32) -> (i32, i32) {
    %c0_i32 = arith.constant 0 : i32
    %c0_i32_0 = arith.constant 0 : i32
    %c0_i32_1 = arith.constant 0 : i32
    return %c0_i32, %c0_i32_0 : i32, i32
  }
  func.func @transform_6(%arg0: i32, %arg1: i32) -> (i32, i32) {
    %c0_i32 = arith.constant 0 : i32
    %c0_i32_0 = arith.constant 0 : i32
    %c0_i32_1 = arith.constant 0 : i32
    return %c0_i32, %c0_i32_0 : i32, i32
  }
  func.func @transform_7(%arg0: i32, %arg1: i32) -> (i32, i32) {
    %c0_i32 = arith.constant 0 : i32
    %c0_i32_0 = arith.constant 0 : i32
    %c0_i32_1 = arith.constant 0 : i32
    return %c0_i32, %c0_i32_0 : i32, i32
  }
  func.func @transform_8(%arg0: i32, %arg1: i32) -> (i32, i32, i32, i32, i32) {
    %c0_i32 = arith.constant 0 : i32
    %c0_i32_0 = arith.constant 0 : i32
    %c0_i32_1 = arith.constant 0 : i32
    %c0_i32_2 = arith.constant 0 : i32
    return %arg1, %arg0, %c0_i32, %c0_i32_0, %c0_i32_1 : i32, i32, i32, i32, i32
  }
  func.func @transform_9(%arg0: i32, %arg1: i32) -> (i32, i32, i32, i32, i32) {
    %c0_i32 = arith.constant 0 : i32
    %c0_i32_0 = arith.constant 0 : i32
    %c0_i32_1 = arith.constant 0 : i32
    %c0_i32_2 = arith.constant 0 : i32
    return %arg1, %arg0, %c0_i32, %c0_i32_0, %c0_i32_1 : i32, i32, i32, i32, i32
  }
}

</mosaic_0001>

<llo_original>
// kernel: tpu_custom_call.1
$region0: #{tpu_custom_call.1}
  #allocation0 [shape = 'u32[]', space=smem, size = 0x4, offset = 0x4, fixed_abs, tag = 'smem constant byte address 0x4 - core index']
  #allocation1 [shape = 'u32[72,128]{1,0:T(1,128)}', space=vmem, size = 0x9000, scoped, tag = 'internal scratch']
  #allocation2 [shape = 'f32[256,32]{1,0:T(8,128)}', space=vmem, size = 0x20000, scoped, tag = 'scratch operand']
  #allocation3 [shape = 'f32[256,32]{1,0:T(8,128)}', space=vmem, size = 0x20000, scoped, tag = 'scratch operand']
  #allocation4 [shape = 'f32[256,128]{1,0:T(8,128)}', space=vmem, size = 0x20000, scoped, tag = 'scratch operand']
  #allocation5 [shape = 'f32[4,10,10,32]{3,2,1,0:T(8,128)}', space=vmem, size = 0x50000, scoped, tag = 'scratch operand']
  #allocation6 [shape = 'f32[512,32]{1,0:T(8,128)}', space=vmem, size = 0x40000, scoped, tag = 'scratch operand']
  #allocation14 [shape = 's32[]', space=sflag, size = 0x4, offset = 0, fixed_abs, tag = 'sflag constant byte address 0x0 - dummy sync flag']
  #allocation16 [shape = 's32[]', space=sflag, size = 0x4, offset = 0, fixed_abs, tag = 'sflag constant byte address 0x0 - dummy sync flag']
  #allocation18 [shape = 's32[]', space=sflag, size = 0x4, offset = 0, fixed_abs, tag = 'sflag constant byte address 0x0 - dummy sync flag']
  %s0 = inlined_call_operand.vmem [shape: bf16[4,8,8,8,128], index: 0, kind: input, shape index: {}]
  %s1 = inlined_call_operand.hbm [shape: bf16[4,8,8,8,128], index: 1, kind: input, shape index: {}, may-alias: {1,9}]
  %s2 = inlined_call_operand.vmem [shape: f32[128,32], index: 2, kind: input, shape index: {}]
  %s3 = inlined_call_operand.vmem [shape: f32[288,32], index: 3, kind: input, shape index: {}]
  %s4 = inlined_call_operand.vmem [shape: f32[32,128], index: 4, kind: input, shape index: {}]
  %s5 = inlined_call_operand.vmem [shape: f32[1,32], index: 5, kind: input, shape index: {}]
  %s6 = inlined_call_operand.vmem [shape: f32[1,32], index: 6, kind: input, shape index: {}]
  %s7 = inlined_call_operand.vmem [shape: f32[1,128], index: 7, kind: input, shape index: {}]
  %s8 = inlined_call_operand.hbm [shape: bf16[4,8,8,8,128], index: 8, kind: output, shape index: {0}]
  %s9 = inlined_call_operand.hbm [shape: bf16[4,8,8,8,128], index: 9, kind: output, shape index: {1}, may-alias: {1,9}]
  %10 = xla_tuple %s8, %s9
  %s11 = sld [smem:[#allocation0]]
  $region122: #{tpu_custom_call.1} parent=0
    _
  %s13 = ssub.s32 1, %s11
  %s14 = scalar_select 0, %s13, %s11
  $region1: #{tpu_custom_call.1} parent=0
    #allocation7 [shape = 'u8[262144]{0}', space=vmem, size = 0x40000, scoped, tag = 'input window, operand 0']
    #allocation8 [shape = 'u8[262144]{0}', space=vmem, size = 0x40000, scoped, tag = 'input window, operand 1']
    #allocation9 [shape = 's32[2]{0}', space=sflag, size = 0x8, scoped, tag = 'scoped memory for tpu_custom_call.1']
    #allocation10 [shape = 's32[2]{0}', space=sflag, size = 0x8, scoped, tag = 'scoped memory for tpu_custom_call.1']
    #allocation11 [shape = 'u8[262144]{0}', space=vmem, size = 0x40000, scoped, tag = 'output window, operand 0']
    #allocation12 [shape = 'u8[262144]{0}', space=vmem, size = 0x40000, scoped, tag = 'output window, operand 1']
    #allocation13 [shape = 's32[2]{0}', space=sflag, size = 0x8, scoped, tag = 'scoped memory for tpu_custom_call.1']
    %15 = vsyncpa [#allocation9], 0
    %s16 = scalar_lea.sflag [#allocation9], 1
    %17 = vsyncpa %s16, 0
    %18 = vsyncpa [#allocation10], 0
    %s19 = scalar_lea.sflag [#allocation10], 1
    %20 = vsyncpa %s19, 0
    %21 = vsyncpa [#allocation13], 0
    %s22 = scalar_lea.sflag [#allocation13], 1
    %23 = vsyncpa %s22, 0
    loop: start=0, step=1, limit=6
    $region2: #{tpu_custom_call.1} parent=1 // loop_pre_header
      _
    $region3: #{tpu_custom_call.1} parent=1 // loop_header
      %s25 = sphi 0, %s29
      %p26 = scmp.ge.s32.totalorder %s25, 6
      %s32 = sphi 0, %s44
      %s33 = sphi 0, %s40
      %s34 = sphi 0, %s32
      %s35 = sphi 0, %s33
      %s36 = sphi 0, %s34
      %s37 = sphi 0, %s35
      %s49 = sphi 0, %s51
      %s52 = sphi 0, %s49
      %s53 = sphi 0, %s52
      %s69 = sphi 0, %s53
      %s77 = sphi 0, %s79
      %s80 = sphi 0, %s77
      %s81 = sphi 0, %s80
      %s97 = sphi 0, %s81
      %s101 = sphi 0, %s101
      %s103 = sphi 0, %s101
      %s104 = sphi 0, %s103
      %s118 = sphi 0, %s104
      %s122 = sphi 0, %s122
      %s124 = sphi 0, %s122
      %s125 = sphi 0, %s124
      %s139 = sphi 0, %s125
      %s143 = sphi 0, %s143
      %s145 = sphi 0, %s143
      %s146 = sphi 0, %s145
      %s160 = sphi 0, %s146
      %s164 = sphi 0, %s164
      %s166 = sphi 0, %s164
      %s167 = sphi 0, %s166
      %s181 = sphi 0, %s167
      %s185 = sphi 0, %s185
      %s187 = sphi 0, %s185
      %s188 = sphi 0, %s187
      %s202 = sphi 0, %s188
      %s206 = sphi 0, %s206
      %s208 = sphi 0, %s206
      %s209 = sphi 0, %s208
      %s223 = sphi 0, %s209
      %s231 = sphi 0, %s233
      %s234 = sphi 0, %s231
      %s235 = sphi 0, %s234
      %s251 = sphi 0, %s235
      %s259 = sphi 0, %s261
      %s262 = sphi 0, %s259
      %s263 = sphi 0, %s262
      %s279 = sphi 0, %s263
    $region4: #{tpu_custom_call.1} parent=1 // loop_header_branch
      %28 = sbr.rel (%p26) target = $region8
    $region5: #{tpu_custom_call.1} parent=1 // loop_body
      %s30 = ssub.s32 %s25, 1
      %s31 = ssub.s32 %s25, 2
      %s38 = sadd.s32 1, %s33
      %p39 = scmp.ge.s32.totalorder %s38, 2
      %s40 = scalar_select %p39, 0, %s38
      %s41 = sadd.s32 1, %s32
      %s42 = scalar_select %p39, %s41, %s32
      %p43 = scmp.ge.s32.totalorder %s42, 2
      %s44 = scalar_select %p43, 0, %s42
      %s45 = ssub.s32 %s33, %s40
      %s46 = ssub.s32 %s32, %s44
      %s47 = sor.u32 %s45, %s46
      %p48 = scmp.eq.s32.totalorder %s47, 0
      %s50 = sadd.s32 %s49, 1
      %s51 = scalar_select %p48, %s49, %s50
      %p54 = pneg %p48
      %p55 = scmp.eq.s32.totalorder %s25, 3
      %p56 = por %p54, %p55
      %p57 = scmp.ne.s32.totalorder %s49, %s52
      %p58 = scmp.eq.s32.totalorder %s25, 0
      %p59 = por %p57, %p58
      %p60 = scmp.ne.s32.totalorder %s49, %s52
      %p61 = scmp.eq.s32.totalorder %s30, 3
      %p62 = por %p60, %p61
      %p63 = scmp.ne.s32.totalorder %s52, %s53
      %p64 = scmp.eq.s32.totalorder %s30, 0
      %p65 = por %p63, %p64
      %p66 = scmp.ne.s32.totalorder %s52, %s53
      %p67 = scmp.eq.s32.totalorder %s31, 3
      %p68 = por %p66, %p67
      %p70 = scmp.ne.s32.totalorder %s53, %s69
      %p71 = scmp.eq.s32.totalorder %s31, 0
      %p72 = por %p70, %p71
      %s73 = ssub.s32 %s33, %s40
      %s74 = ssub.s32 %s32, %s44
      %s75 = sor.u32 %s73, %s74
      %p76 = scmp.eq.s32.totalorder %s75, 0
      %s78 = sadd.s32 %s77, 1
      %s79 = scalar_select %p76, %s77, %s78
      %p82 = pneg %p76
      %p83 = scmp.eq.s32.totalorder %s25, 3
      %p84 = por %p82, %p83
      %p85 = scmp.ne.s32.totalorder %s77, %s80
      %p86 = scmp.eq.s32.totalorder %s25, 0
      %p87 = por %p85, %p86
      %p88 = scmp.ne.s32.totalorder %s77, %s80
      %p89 = scmp.eq.s32.totalorder %s30, 3
      %p90 = por %p88, %p89
      %p91 = scmp.ne.s32.totalorder %s80, %s81
      %p92 = scmp.eq.s32.totalorder %s30, 0
      %p93 = por %p91, %p92
      %p94 = scmp.ne.s32.totalorder %s80, %s81
      %p95 = scmp.eq.s32.totalorder %s31, 3
      %p96 = por %p94, %p95
      %p98 = scmp.ne.s32.totalorder %s81, %s97
      %p99 = scmp.eq.s32.totalorder %s31, 0
      %p100 = por %p98, %p99
      %s102 = sadd.s32 %s101, 1
      %p105 = scmp.eq.s32.totalorder %s25, 3
      %p106 = scmp.ne.s32.totalorder %s101, %s103
      %p107 = scmp.eq.s32.totalorder %s25, 0
      %p108 = por %p106, %p107
      %p109 = scmp.ne.s32.totalorder %s101, %s103
      %p110 = scmp.eq.s32.totalorder %s30, 3
      %p111 = por %p109, %p110
      %p112 = scmp.ne.s32.totalorder %s103, %s104
      %p113 = scmp.eq.s32.totalorder %s30, 0
      %p114 = por %p112, %p113
      %p115 = scmp.ne.s32.totalorder %s103, %s104
      %p116 = scmp.eq.s32.totalorder %s31, 3
      %p117 = por %p115, %p116
      %p119 = scmp.ne.s32.totalorder %s104, %s118
      %p120 = scmp.eq.s32.totalorder %s31, 0
      %p121 = por %p119, %p120
      %s123 = sadd.s32 %s122, 1
      %p126 = scmp.eq.s32.totalorder %s25, 3
      %p127 = scmp.ne.s32.totalorder %s122, %s124
      %p128 = scmp.eq.s32.totalorder %s25, 0
      %p129 = por %p127, %p128
      %p130 = scmp.ne.s32.totalorder %s122, %s124
      %p131 = scmp.eq.s32.totalorder %s30, 3
      %p132 = por %p130, %p131
      %p133 = scmp.ne.s32.totalorder %s124, %s125
      %p134 = scmp.eq.s32.totalorder %s30, 0
      %p135 = por %p133, %p134
      %p136 = scmp.ne.s32.totalorder %s124, %s125
      %p137 = scmp.eq.s32.totalorder %s31, 3
      %p138 = por %p136, %p137
      %p140 = scmp.ne.s32.totalorder %s125, %s139
      %p141 = scmp.eq.s32.totalorder %s31, 0
      %p142 = por %p140, %p141
      %s144 = sadd.s32 %s143, 1
      %p147 = scmp.eq.s32.totalorder %s25, 3
      %p148 = scmp.ne.s32.totalorder %s143, %s145
      %p149 = scmp.eq.s32.totalorder %s25, 0
      %p150 = por %p148, %p149
      %p151 = scmp.ne.s32.totalorder %s143, %s145
      %p152 = scmp.eq.s32.totalorder %s30, 3
      %p153 = por %p151, %p152
      %p154 = scmp.ne.s32.totalorder %s145, %s146
      %p155 = scmp.eq.s32.totalorder %s30, 0
      %p156 = por %p154, %p155
      %p157 = scmp.ne.s32.totalorder %s145, %s146
      %p158 = scmp.eq.s32.totalorder %s31, 3
      %p159 = por %p157, %p158
      %p161 = scmp.ne.s32.totalorder %s146, %s160
      %p162 = scmp.eq.s32.totalorder %s31, 0
      %p163 = por %p161, %p162
      %s165 = sadd.s32 %s164, 1
      %p168 = scmp.eq.s32.totalorder %s25, 3
      %p169 = scmp.ne.s32.totalorder %s164, %s166
      %p170 = scmp.eq.s32.totalorder %s25, 0
      %p171 = por %p169, %p170
      %p172 = scmp.ne.s32.totalorder %s164, %s166
      %p173 = scmp.eq.s32.totalorder %s30, 3
      %p174 = por %p172, %p173
      %p175 = scmp.ne.s32.totalorder %s166, %s167
      %p176 = scmp.eq.s32.totalorder %s30, 0
      %p177 = por %p175, %p176
      %p178 = scmp.ne.s32.totalorder %s166, %s167
      %p179 = scmp.eq.s32.totalorder %s31, 3
      %p180 = por %p178, %p179
      %p182 = scmp.ne.s32.totalorder %s167, %s181
      %p183 = scmp.eq.s32.totalorder %s31, 0
      %p184 = por %p182, %p183
      %s186 = sadd.s32 %s185, 1
      %p189 = scmp.eq.s32.totalorder %s25, 3
      %p190 = scmp.ne.s32.totalorder %s185, %s187
      %p191 = scmp.eq.s32.totalorder %s25, 0
      %p192 = por %p190, %p191
      %p193 = scmp.ne.s32.totalorder %s185, %s187
      %p194 = scmp.eq.s32.totalorder %s30, 3
      %p195 = por %p193, %p194
      %p196 = scmp.ne.s32.totalorder %s187, %s188
      %p197 = scmp.eq.s32.totalorder %s30, 0
      %p198 = por %p196, %p197
      %p199 = scmp.ne.s32.totalorder %s187, %s188
      %p200 = scmp.eq.s32.totalorder %s31, 3
      %p201 = por %p199, %p200
      %p203 = scmp.ne.s32.totalorder %s188, %s202
      %p204 = scmp.eq.s32.totalorder %s31, 0
      %p205 = por %p203, %p204
      %s207 = sadd.s32 %s206, 1
      %p210 = scmp.eq.s32.totalorder %s25, 3
      %p211 = scmp.ne.s32.totalorder %s206, %s208
      %p212 = scmp.eq.s32.totalorder %s25, 0
      %p213 = por %p211, %p212
      %p214 = scmp.ne.s32.totalorder %s206, %s208
      %p215 = scmp.eq.s32.totalorder %s30, 3
      %p216 = por %p214, %p215
      %p217 = scmp.ne.s32.totalorder %s208, %s209
      %p218 = scmp.eq.s32.totalorder %s30, 0
      %p219 = por %p217, %p218
      %p220 = scmp.ne.s32.totalorder %s208, %s209
      %p221 = scmp.eq.s32.totalorder %s31, 3
      %p222 = por %p220, %p221
      %p224 = scmp.ne.s32.totalorder %s209, %s223
      %p225 = scmp.eq.s32.totalorder %s31, 0
      %p226 = por %p224, %p225
      %s227 = ssub.s32 %s33, %s40
      %s228 = ssub.s32 %s32, %s44
      %s229 = sor.u32 %s227, %s228
      %p230 = scmp.eq.s32.totalorder %s229, 0
      %s232 = sadd.s32 %s231, 1
      %s233 = scalar_select %p230, %s231, %s232
      %p236 = pneg %p230
      %p237 = scmp.eq.s32.totalorder %s25, 3
      %p238 = por %p236, %p237
      %p239 = scmp.ne.s32.totalorder %s231, %s234
      %p240 = scmp.eq.s32.totalorder %s25, 0
      %p241 = por %p239, %p240
      %p242 = scmp.ne.s32.totalorder %s231, %s234
      %p243 = scmp.eq.s32.totalorder %s30, 3
      %p244 = por %p242, %p243
      %p245 = scmp.ne.s32.totalorder %s234, %s235
      %p246 = scmp.eq.s32.totalorder %s30, 0
      %p247 = por %p245, %p246
      %p248 = scmp.ne.s32.totalorder %s234, %s235
      %p249 = scmp.eq.s32.totalorder %s31, 3
      %p250 = por %p248, %p249
      %p252 = scmp.ne.s32.totalorder %s235, %s251
      %p253 = scmp.eq.s32.totalorder %s31, 0
      %p254 = por %p252, %p253
      %s255 = ssub.s32 %s33, %s40
      %s256 = ssub.s32 %s32, %s44
      %s257 = sor.u32 %s255, %s256
      %p258 = scmp.eq.s32.totalorder %s257, 0
      %s260 = sadd.s32 %s259, 1
      %s261 = scalar_select %p258, %s259, %s260
      %p264 = pneg %p258
      %p265 = scmp.eq.s32.totalorder %s25, 3
      %p266 = por %p264, %p265
      %p267 = scmp.ne.s32.totalorder %s259, %s262
      %p268 = scmp.eq.s32.totalorder %s25, 0
      %p269 = por %p267, %p268
      %p270 = scmp.ne.s32.totalorder %s259, %s262
      %p271 = scmp.eq.s32.totalorder %s30, 3
      %p272 = por %p270, %p271
      %p273 = scmp.ne.s32.totalorder %s262, %s263
      %p274 = scmp.eq.s32.totalorder %s30, 0
      %p275 = por %p273, %p274
      %p276 = scmp.ne.s32.totalorder %s262, %s263
      %p277 = scmp.eq.s32.totalorder %s31, 3
      %p278 = por %p276, %p277
      %p280 = scmp.ne.s32.totalorder %s263, %s279
      %p281 = scmp.eq.s32.totalorder %s31, 0
      %p282 = por %p280, %p281
      %p283 = scmp.le.s32.totalorder 1, %s25
      %p284 = scmp.lt.s32.totalorder %s25, 5
      %p285 = pnand %p283, %p284
      %p286 = pneg %p285
      // Predicated region
      $region9: #{tpu_custom_call.1} parent=5 // pred_check
        _
      $region10: #{tpu_custom_call.1} parent=5 // pred_check_branch
        %288 = sbr.rel (%p285) target = $region12
      $region11: #{tpu_custom_call.1} parent=5 // pred_region
        %s289 = ssub.s32 %s25, 1
        // Predicated region
        $region13: #{tpu_custom_call.1} parent=11 // pred_check
          %p290 = pneg %p114
        $region14: #{tpu_custom_call.1} parent=11 // pred_check_branch
          %292 = sbr.rel (%p290) target = $region16
        $region15: #{tpu_custom_call.1} parent=11 // pred_region
          _
        $region16: #{tpu_custom_call.1} parent=11 // pred_fallthru
          _
        // Predicated region
        $region17: #{tpu_custom_call.1} parent=11 // pred_check
          %p293 = pneg %p135
        $region18: #{tpu_custom_call.1} parent=11 // pred_check_branch
          %295 = sbr.rel (%p293) target = $region20
        $region19: #{tpu_custom_call.1} parent=11 // pred_region
          _
        $region20: #{tpu_custom_call.1} parent=11 // pred_fallthru
          _
        // Predicated region
        $region21: #{tpu_custom_call.1} parent=11 // pred_check
          %p296 = pneg %p156
        $region22: #{tpu_custom_call.1} parent=11 // pred_check_branch
          %298 = sbr.rel (%p296) target = $region24
        $region23: #{tpu_custom_call.1} parent=11 // pred_region
          _
        $region24: #{tpu_custom_call.1} parent=11 // pred_fallthru
          _
        // Predicated region
        $region25: #{tpu_custom_call.1} parent=11 // pred_check
          %p299 = pneg %p177
        $region26: #{tpu_custom_call.1} parent=11 // pred_check_branch
          %301 = sbr.rel (%p299) target = $region28
        $region27: #{tpu_custom_call.1} parent=11 // pred_region
          _
        $region28: #{tpu_custom_call.1} parent=11 // pred_fallthru
          _
        // Predicated region
        $region29: #{tpu_custom_call.1} parent=11 // pred_check
          %p302 = pneg %p198
        $region30: #{tpu_custom_call.1} parent=11 // pred_check_branch
          %304 = sbr.rel (%p302) target = $region32
        $region31: #{tpu_custom_call.1} parent=11 // pred_region
          _
        $region32: #{tpu_custom_call.1} parent=11 // pred_fallthru
          _
        // Predicated region
        $region33: #{tpu_custom_call.1} parent=11 // pred_check
          %p305 = pneg %p219
        $region34: #{tpu_custom_call.1} parent=11 // pred_check_branch
          %307 = sbr.rel (%p305) target = $region36
        $region35: #{tpu_custom_call.1} parent=11 // pred_region
          _
        $region36: #{tpu_custom_call.1} parent=11 // pred_fallthru
          _
      $region12: #{tpu_custom_call.1} parent=5 // pred_fallthru
        _
      %p308 = scmp.lt.s32.totalorder %s25, 4
      // Predicated region
      $region37: #{tpu_custom_call.1} parent=5 // pred_check
        %p309 = pneg %p308
      $region38: #{tpu_custom_call.1} parent=5 // pred_check_branch
        %311 = sbr.rel (%p309) target = $region40
      $region39: #{tpu_custom_call.1} parent=5 // pred_region
        // Predicated region
        $region41: #{tpu_custom_call.1} parent=39 // pred_check
          %p312 = pneg %p59
        $region42: #{tpu_custom_call.1} parent=39 // pred_check_branch
          %314 = sbr.rel (%p312) target = $region44
        $region43: #{tpu_custom_call.1} parent=39 // pred_region
          %s315 = sand.u32 %s49, 1
          %s316 = sand.u32 %s49, 1
          %s317 = smul.addr %s316, 256
          %s318 = scalar_lea.vmem [#allocation7], %s317
          %s319 = smul.u32 2, %s33
          %s320 = smul.u32 4, %s32
          %s321 = smul.addr %s320, 8
          %s322 = smul.addr %s319, 64
          %s323 = sadd.s32 %s321, %s322
          %s324 = smul.addr %s323, 4
          %s325 = scalar_lea.vmem %s0, %s324
          // Predicated region
          $region45: #{tpu_custom_call.1} parent=43 // pred_check
            _
          $region46: #{tpu_custom_call.1} parent=43 // pred_check_branch
            %327 = sbr.rel (0) target = $region48
          $region47: #{tpu_custom_call.1} parent=43 // pred_region
            // Predicated region
            $region49: #{tpu_custom_call.1} parent=47 // pred_check
              _
            $region50: #{tpu_custom_call.1} parent=47 // pred_check_branch
              %329 = sbr.rel target = $region52
            $region51: #{tpu_custom_call.1} parent=47 // pred_region
              // Predicated region
              $region64: #{tpu_custom_call.1} parent=51 // pred_check
                _
              $region65: #{tpu_custom_call.1} parent=51 // pred_check_branch
                %471 = sbr.rel (0) target = $region67
              $region66: #{tpu_custom_call.1} parent=51 // pred_region
                loop: start=0, step=1, limit=1
                $region68: #{tpu_custom_call.1} parent=66 // loop_pre_header
                  _
                $region69: #{tpu_custom_call.1} parent=66 // loop_header
                  %s473 = sphi 0, %s477
                  %p474 = scmp.ge.s32.totalorder %s473, 1
                  %s478 = sphi %s325, %s325
                  %s479 = sphi %s318, %s318
                $region70: #{tpu_custom_call.1} parent=66 // loop_header_branch
                  %476 = sbr.rel (%p474) target = $region74
                $region71: #{tpu_custom_call.1} parent=66 // loop_body
                  _
                $region72: #{tpu_custom_call.1} parent=66 // loop_footer
                  %s477 = sadd.s32 1, %s473
                $region73: #{tpu_custom_call.1} parent=66 // loop_footer_branch
                  %472 = sbr.rel target = $region69
                $region74: #{tpu_custom_call.1} parent=66 // loop_exit
                  _
                %s481 = ssub.s32 16, 1
                loop: start=0, step=1, limit=1
                $region75: #{tpu_custom_call.1} parent=66 // loop_pre_header
                  _
                $region76: #{tpu_custom_call.1} parent=66 // loop_header
                  %s483 = sphi 0, %s487
                  %p484 = scmp.ge.s32.totalorder %s483, 1
                  %s488 = sphi %s325, %s325
                  %s489 = sphi %s318, %s318
                $region77: #{tpu_custom_call.1} parent=66 // loop_header_branch
                  %486 = sbr.rel (%p484) target = $region81
                $region78: #{tpu_custom_call.1} parent=66 // loop_body
                  %v490 = vld [vmem:[%s488] sm:%s481]
                  %491 = vst [vmem:[%s489] sm:%s481] %v490
                  %v492 = vld [vmem:[%s488 + $0x4] sm:%s481]
                  %493 = vst [vmem:[%s489 + $0x4] sm:%s481] %v492
                  %v494 = vld [vmem:[%s488 + $0x8] sm:%s481]
                  %495 = vst [vmem:[%s489 + $0x8] sm:%s481] %v494
                  %v496 = vld [vmem:[%s488 + $0xc] sm:%s481]
                  %497 = vst [vmem:[%s489 + $0xc] sm:%s481] %v496
                  %v498 = vld [vmem:[%s488 + $0x10] sm:%s481]
                  %499 = vst [vmem:[%s489 + $0x10] sm:%s481] %v498
                  %v500 = vld [vmem:[%s488 + $0x14] sm:%s481]
                  %501 = vst [vmem:[%s489 + $0x14] sm:%s481] %v500
                  %v502 = vld [vmem:[%s488 + $0x18] sm:%s481]
                  %503 = vst [vmem:[%s489 + $0x18] sm:%s481] %v502
                  %v504 = vld [vmem:[%s488 + $0x1c] sm:%s481]
                  %505 = vst [vmem:[%s489 + $0x1c] sm:%s481] %v504
                  %v506 = vld [vmem:[%s488 + $0x20] sm:%s481]
                  %507 = vst [vmem:[%s489 + $0x20] sm:%s481] %v506
                  %v508 = vld [vmem:[%s488 + $0x24] sm:%s481]
                  %509 = vst [vmem:[%s489 + $0x24] sm:%s481] %v508
                  %v510 = vld [vmem:[%s488 + $0x28] sm:%s481]
                  %511 = vst [vmem:[%s489 + $0x28] sm:%s481] %v510
                  %v512 = vld [vmem:[%s488 + $0x2c] sm:%s481]
                  %513 = vst [vmem:[%s489 + $0x2c] sm:%s481] %v512
                  %v514 = vld [vmem:[%s488 + $0x30] sm:%s481]
                  %515 = vst [vmem:[%s489 + $0x30] sm:%s481] %v514
                  %v516 = vld [vmem:[%s488 + $0x34] sm:%s481]
                  %517 = vst [vmem:[%s489 + $0x34] sm:%s481] %v516
                  %v518 = vld [vmem:[%s488 + $0x38] sm:%s481]
                  %519 = vst [vmem:[%s489 + $0x38] sm:%s481] %v518
                  %v520 = vld [vmem:[%s488 + $0x3c] sm:%s481]
                  %521 = vst [vmem:[%s489 + $0x3c] sm:%s481] %v520
                  %v522 = vld [vmem:[%s488 + $0x40] sm:%s481]
                  %523 = vst [vmem:[%s489 + $0x40] sm:%s481] %v522
                  %v524 = vld [vmem:[%s488 + $0x44] sm:%s481]
                  %525 = vst [vmem:[%s489 + $0x44] sm:%s481] %v524
                  %v526 = vld [vmem:[%s488 + $0x48] sm:%s481]
                  %527 = vst [vmem:[%s489 + $0x48] sm:%s481] %v526
                  %v528 = vld [vmem:[%s488 + $0x4c] sm:%s481]
                  %529 = vst [vmem:[%s489 + $0x4c] sm:%s481] %v528
                  %v530 = vld [vmem:[%s488 + $0x50] sm:%s481]
                  %531 = vst [vmem:[%s489 + $0x50] sm:%s481] %v530
                  %v532 = vld [vmem:[%s488 + $0x54] sm:%s481]
                  %533 = vst [vmem:[%s489 + $0x54] sm:%s481] %v532
                  %v534 = vld [vmem:[%s488 + $0x58] sm:%s481]
                  %535 = vst [vmem:[%s489 + $0x58] sm:%s481] %v534
                  %v536 = vld [vmem:[%s488 + $0x5c] sm:%s481]
                  %537 = vst [vmem:[%s489 + $0x5c] sm:%s481] %v536
                  %v538 = vld [vmem:[%s488 + $0x60] sm:%s481]
                  %539 = vst [vmem:[%s489 + $0x60] sm:%s481] %v538
                  %v540 = vld [vmem:[%s488 + $0x64] sm:%s481]
                  %541 = vst [vmem:[%s489 + $0x64] sm:%s481] %v540
                  %v542 = vld [vmem:[%s488 + $0x68] sm:%s481]
                  %543 = vst [vmem:[%s489 + $0x68] sm:%s481] %v542
                  %v544 = vld [vmem:[%s488 + $0x6c] sm:%s481]
                  %545 = vst [vmem:[%s489 + $0x6c] sm:%s481] %v544
                  %v546 = vld [vmem:[%s488 + $0x70] sm:%s481]
                  %547 = vst [vmem:[%s489 + $0x70] sm:%s481] %v546
                  %v548 = vld [vmem:[%s488 + $0x74] sm:%s481]
                  %549 = vst [vmem:[%s489 + $0x74] sm:%s481] %v548
                  %v550 = vld [vmem:[%s488 + $0x78] sm:%s481]
                  %551 = vst [vmem:[%s489 + $0x78] sm:%s481] %v550
                  %v552 = vld [vmem:[%s488 + $0x7c] sm:%s481]
                  %553 = vst [vmem:[%s489 + $0x7c] sm:%s481] %v552
                  %v554 = vld [vmem:[%s488 + $0x100] sm:%s481]
                  %555 = vst [vmem:[%s489 + $0x80] sm:%s481] %v554
                  %v556 = vld [vmem:[%s488 + $0x104] sm:%s481]
                  %557 = vst [vmem:[%s489 + $0x84] sm:%s481] %v556
                  %v558 = vld [vmem:[%s488 + $0x108] sm:%s481]
                  %559 = vst [vmem:[%s489 + $0x88] sm:%s481] %v558
                  %v560 = vld [vmem:[%s488 + $0x10c] sm:%s481]
                  %561 = vst [vmem:[%s489 + $0x8c] sm:%s481] %v560
                  %v562 = vld [vmem:[%s488 + $0x110] sm:%s481]
                  %563 = vst [vmem:[%s489 + $0x90] sm:%s481] %v562
                  %v564 = vld [vmem:[%s488 + $0x114] sm:%s481]
                  %565 = vst [vmem:[%s489 + $0x94] sm:%s481] %v564
                  %v566 = vld [vmem:[%s488 + $0x118] sm:%s481]
                  %567 = vst [vmem:[%s489 + $0x98] sm:%s481] %v566
                  %v568 = vld [vmem:[%s488 + $0x11c] sm:%s481]
                  %569 = vst [vmem:[%s489 + $0x9c] sm:%s481] %v568
                  %v570 = vld [vmem:[%s488 + $0x120] sm:%s481]
                  %571 = vst [vmem:[%s489 + $0xa0] sm:%s481] %v570
                  %v572 = vld [vmem:[%s488 + $0x124] sm:%s481]
                  %573 = vst [vmem:[%s489 + $0xa4] sm:%s481] %v572
                  %v574 = vld [vmem:[%s488 + $0x128] sm:%s481]
                  %575 = vst [vmem:[%s489 + $0xa8] sm:%s481] %v574
                  %v576 = vld [vmem:[%s488 + $0x12c] sm:%s481]
                  %577 = vst [vmem:[%s489 + $0xac] sm:%s481] %v576
                  %v578 = vld [vmem:[%s488 + $0x130] sm:%s481]
                  %579 = vst [vmem:[%s489 + $0xb0] sm:%s481] %v578
                  %v580 = vld [vmem:[%s488 + $0x134] sm:%s481]
                  %581 = vst [vmem:[%s489 + $0xb4] sm:%s481] %v580
                  %v582 = vld [vmem:[%s488 + $0x138] sm:%s481]
                  %583 = vst [vmem:[%s489 + $0xb8] sm:%s481] %v582
                  %v584 = vld [vmem:[%s488 + $0x13c] sm:%s481]
                  %585 = vst [vmem:[%s489 + $0xbc] sm:%s481] %v584
                  %v586 = vld [vmem:[%s488 + $0x140] sm:%s481]
                  %587 = vst [vmem:[%s489 + $0xc0] sm:%s481] %v586
                  %v588 = vld [vmem:[%s488 + $0x144] sm:%s481]
                  %589 = vst [vmem:[%s489 + $0xc4] sm:%s481] %v588
                  %v590 = vld [vmem:[%s488 + $0x148] sm:%s481]
                  %591 = vst [vmem:[%s489 + $0xc8] sm:%s481] %v590
                  %v592 = vld [vmem:[%s488 + $0x14c] sm:%s481]
                  %593 = vst [vmem:[%s489 + $0xcc] sm:%s481] %v592
                  %v594 = vld [vmem:[%s488 + $0x150] sm:%s481]
                  %595 = vst [vmem:[%s489 + $0xd0] sm:%s481] %v594
                  %v596 = vld [vmem:[%s488 + $0x154] sm:%s481]
                  %597 = vst [vmem:[%s489 + $0xd4] sm:%s481] %v596
                  %v598 = vld [vmem:[%s488 + $0x158] sm:%s481]
                  %599 = vst [vmem:[%s489 + $0xd8] sm:%s481] %v598
                  %v600 = vld [vmem:[%s488 + $0x15c] sm:%s481]
                  %601 = vst [vmem:[%s489 + $0xdc] sm:%s481] %v600
                  %v602 = vld [vmem:[%s488 + $0x160] sm:%s481]
                  %603 = vst [vmem:[%s489 + $0xe0] sm:%s481] %v602
                  %v604 = vld [vmem:[%s488 + $0x164] sm:%s481]
                  %605 = vst [vmem:[%s489 + $0xe4] sm:%s481] %v604
                  %v606 = vld [vmem:[%s488 + $0x168] sm:%s481]
                  %607 = vst [vmem:[%s489 + $0xe8] sm:%s481] %v606
                  %v608 = vld [vmem:[%s488 + $0x16c] sm:%s481]
                  %609 = vst [vmem:[%s489 + $0xec] sm:%s481] %v608
                  %v610 = vld [vmem:[%s488 + $0x170] sm:%s481]
                  %611 = vst [vmem:[%s489 + $0xf0] sm:%s481] %v610
                  %v612 = vld [vmem:[%s488 + $0x174] sm:%s481]
                  %613 = vst [vmem:[%s489 + $0xf4] sm:%s481] %v612
                  %v614 = vld [vmem:[%s488 + $0x178] sm:%s481]
                  %615 = vst [vmem:[%s489 + $0xf8] sm:%s481] %v614
                  %v616 = vld [vmem:[%s488 + $0x17c] sm:%s481]
                  %617 = vst [vmem:[%s489 + $0xfc] sm:%s481] %v616
                $region79: #{tpu_custom_call.1} parent=66 // loop_footer
                  %s487 = sadd.s32 1, %s483
                $region80: #{tpu_custom_call.1} parent=66 // loop_footer_branch
                  %482 = sbr.rel target = $region76
                $region81: #{tpu_custom_call.1} parent=66 // loop_exit
                  _
              $region67: #{tpu_custom_call.1} parent=51 // pred_fallthru
                _
            $region52: #{tpu_custom_call.1} parent=47 // pred_fallthru
              _
            // Predicated region
            $region53: #{tpu_custom_call.1} parent=47 // pred_check
              _
            $region54: #{tpu_custom_call.1} parent=47 // pred_check_branch
              %331 = sbr.rel (0) target = $region56
            $region55: #{tpu_custom_call.1} parent=47 // pred_region
              %s333 = ssub.s32 16, 1
              loop: start=0, step=1, limit=1
              $region57: #{tpu_custom_call.1} parent=55 // loop_pre_header
                _
              $region58: #{tpu_custom_call.1} parent=55 // loop_header
                %s335 = sphi 0, %s339
                %p336 = scmp.ge.s32.totalorder %s335, 1
                %s340 = sphi %s325, %s325
                %s341 = sphi %s318, %s318
              $region59: #{tpu_custom_call.1} parent=55 // loop_header_branch
                %338 = sbr.rel (%p336) target = $region63
              $region60: #{tpu_custom_call.1} parent=55 // loop_body
                %v342 = vld [vmem:[%s340] sm:%s333]
                %343 = vst [vmem:[%s341] sm:%s333] %v342
                %v344 = vld [vmem:[%s340 + $0x4] sm:%s333]
                %345 = vst [vmem:[%s341 + $0x4] sm:%s333] %v344
                %v346 = vld [vmem:[%s340 + $0x8] sm:%s333]
                %347 = vst [vmem:[%s341 + $0x8] sm:%s333] %v346
                %v348 = vld [vmem:[%s340 + $0xc] sm:%s333]
                %349 = vst [vmem:[%s341 + $0xc] sm:%s333] %v348
                %v350 = vld [vmem:[%s340 + $0x10] sm:%s333]
                %351 = vst [vmem:[%s341 + $0x10] sm:%s333] %v350
                %v352 = vld [vmem:[%s340 + $0x14] sm:%s333]
                %353 = vst [vmem:[%s341 + $0x14] sm:%s333] %v352
                %v354 = vld [vmem:[%s340 + $0x18] sm:%s333]
                %355 = vst [vmem:[%s341 + $0x18] sm:%s333] %v354
                %v356 = vld [vmem:[%s340 + $0x1c] sm:%s333]
                %357 = vst [vmem:[%s341 + $0x1c] sm:%s333] %v356
                %v358 = vld [vmem:[%s340 + $0x20] sm:%s333]
                %359 = vst [vmem:[%s341 + $0x20] sm:%s333] %v358
                %v360 = vld [vmem:[%s340 + $0x24] sm:%s333]
                %361 = vst [vmem:[%s341 + $0x24] sm:%s333] %v360
                %v362 = vld [vmem:[%s340 + $0x28] sm:%s333]
                %363 = vst [vmem:[%s341 + $0x28] sm:%s333] %v362
                %v364 = vld [vmem:[%s340 + $0x2c] sm:%s333]
                %365 = vst [vmem:[%s341 + $0x2c] sm:%s333] %v364
                %v366 = vld [vmem:[%s340 + $0x30] sm:%s333]
                %367 = vst [vmem:[%s341 + $0x30] sm:%s333] %v366
                %v368 = vld [vmem:[%s340 + $0x34] sm:%s333]
                %369 = vst [vmem:[%s341 + $0x34] sm:%s333] %v368
                %v370 = vld [vmem:[%s340 + $0x38] sm:%s333]
                %371 = vst [vmem:[%s341 + $0x38] sm:%s333] %v370
                %v372 = vld [vmem:[%s340 + $0x3c] sm:%s333]
                %373 = vst [vmem:[%s341 + $0x3c] sm:%s333] %v372
                %v374 = vld [vmem:[%s340 + $0x40] sm:%s333]
                %375 = vst [vmem:[%s341 + $0x40] sm:%s333] %v374
                %v376 = vld [vmem:[%s340 + $0x44] sm:%s333]
                %377 = vst [vmem:[%s341 + $0x44] sm:%s333] %v376
                %v378 = vld [vmem:[%s340 + $0x48] sm:%s333]
                %379 = vst [vmem:[%s341 + $0x48] sm:%s333] %v378
                %v380 = vld [vmem:[%s340 + $0x4c] sm:%s333]
                %381 = vst [vmem:[%s341 + $0x4c] sm:%s333] %v380
                %v382 = vld [vmem:[%s340 + $0x50] sm:%s333]
                %383 = vst [vmem:[%s341 + $0x50] sm:%s333] %v382
                %v384 = vld [vmem:[%s340 + $0x54] sm:%s333]
                %385 = vst [vmem:[%s341 + $0x54] sm:%s333] %v384
                %v386 = vld [vmem:[%s340 + $0x58] sm:%s333]
                %387 = vst [vmem:[%s341 + $0x58] sm:%s333] %v386
                %v388 = vld [vmem:[%s340 + $0x5c] sm:%s333]
                %389 = vst [vmem:[%s341 + $0x5c] sm:%s333] %v388
                %v390 = vld [vmem:[%s340 + $0x60] sm:%s333]
                %391 = vst [vmem:[%s341 + $0x60] sm:%s333] %v390
                %v392 = vld [vmem:[%s340 + $0x64] sm:%s333]
                %393 = vst [vmem:[%s341 + $0x64] sm:%s333] %v392
                %v394 = vld [vmem:[%s340 + $0x68] sm:%s333]
                %395 = vst [vmem:[%s341 + $0x68] sm:%s333] %v394
                %v396 = vld [vmem:[%s340 + $0x6c] sm:%s333]
                %397 = vst [vmem:[%s341 + $0x6c] sm:%s333] %v396
                %v398 = vld [vmem:[%s340 + $0x70] sm:%s333]
                %399 = vst [vmem:[%s341 + $0x70] sm:%s333] %v398
                %v400 = vld [vmem:[%s340 + $0x74] sm:%s333]
                %401 = vst [vmem:[%s341 + $0x74] sm:%s333] %v400
                %v402 = vld [vmem:[%s340 + $0x78] sm:%s333]
                %403 = vst [vmem:[%s341 + $0x78] sm:%s333] %v402
                %v404 = vld [vmem:[%s340 + $0x7c] sm:%s333]
                %405 = vst [vmem:[%s341 + $0x7c] sm:%s333] %v404
                %v406 = vld [vmem:[%s340 + $0x100] sm:%s333]
                %407 = vst [vmem:[%s341 + $0x80] sm:%s333] %v406
                %v408 = vld [vmem:[%s340 + $0x104] sm:%s333]
                %409 = vst [vmem:[%s341 + $0x84] sm:%s333] %v408
                %v410 = vld [vmem:[%s340 + $0x108] sm:%s333]
                %411 = vst [vmem:[%s341 + $0x88] sm:%s333] %v410
                %v412 = vld [vmem:[%s340 + $0x10c] sm:%s333]
                %413 = vst [vmem:[%s341 + $0x8c] sm:%s333] %v412
                %v414 = vld [vmem:[%s340 + $0x110] sm:%s333]
                %415 = vst [vmem:[%s341 + $0x90] sm:%s333] %v414
                %v416 = vld [vmem:[%s340 + $0x114] sm:%s333]
                %417 = vst [vmem:[%s341 + $0x94] sm:%s333] %v416
                %v418 = vld [vmem:[%s340 + $0x118] sm:%s333]
                %419 = vst [vmem:[%s341 + $0x98] sm:%s333] %v418
                %v420 = vld [vmem:[%s340 + $0x11c] sm:%s333]
                %421 = vst [vmem:[%s341 + $0x9c] sm:%s333] %v420
                %v422 = vld [vmem:[%s340 + $0x120] sm:%s333]
                %423 = vst [vmem:[%s341 + $0xa0] sm:%s333] %v422
                %v424 = vld [vmem:[%s340 + $0x124] sm:%s333]
                %425 = vst [vmem:[%s341 + $0xa4] sm:%s333] %v424
                %v426 = vld [vmem:[%s340 + $0x128] sm:%s333]
                %427 = vst [vmem:[%s341 + $0xa8] sm:%s333] %v426
                %v428 = vld [vmem:[%s340 + $0x12c] sm:%s333]
                %429 = vst [vmem:[%s341 + $0xac] sm:%s333] %v428
                %v430 = vld [vmem:[%s340 + $0x130] sm:%s333]
                %431 = vst [vmem:[%s341 + $0xb0] sm:%s333] %v430
                %v432 = vld [vmem:[%s340 + $0x134] sm:%s333]
                %433 = vst [vmem:[%s341 + $0xb4] sm:%s333] %v432
                %v434 = vld [vmem:[%s340 + $0x138] sm:%s333]
                %435 = vst [vmem:[%s341 + $0xb8] sm:%s333] %v434
                %v436 = vld [vmem:[%s340 + $0x13c] sm:%s333]
                %437 = vst [vmem:[%s341 + $0xbc] sm:%s333] %v436
                %v438 = vld [vmem:[%s340 + $0x140] sm:%s333]
                %439 = vst [vmem:[%s341 + $0xc0] sm:%s333] %v438
                %v440 = vld [vmem:[%s340 + $0x144] sm:%s333]
                %441 = vst [vmem:[%s341 + $0xc4] sm:%s333] %v440
                %v442 = vld [vmem:[%s340 + $0x148] sm:%s333]
                %443 = vst [vmem:[%s341 + $0xc8] sm:%s333] %v442
                %v444 = vld [vmem:[%s340 + $0x14c] sm:%s333]
                %445 = vst [vmem:[%s341 + $0xcc] sm:%s333] %v444
                %v446 = vld [vmem:[%s340 + $0x150] sm:%s333]
                %447 = vst [vmem:[%s341 + $0xd0] sm:%s333] %v446
                %v448 = vld [vmem:[%s340 + $0x154] sm:%s333]
                %449 = vst [vmem:[%s341 + $0xd4] sm:%s333] %v448
                %v450 = vld [vmem:[%s340 + $0x158] sm:%s333]
                %451 = vst [vmem:[%s341 + $0xd8] sm:%s333] %v450
                %v452 = vld [vmem:[%s340 + $0x15c] sm:%s333]
                %453 = vst [vmem:[%s341 + $0xdc] sm:%s333] %v452
                %v454 = vld [vmem:[%s340 + $0x160] sm:%s333]
                %455 = vst [vmem:[%s341 + $0xe0] sm:%s333] %v454
                %v456 = vld [vmem:[%s340 + $0x164] sm:%s333]
                %457 = vst [vmem:[%s341 + $0xe4] sm:%s333] %v456
                %v458 = vld [vmem:[%s340 + $0x168] sm:%s333]
                %459 = vst [vmem:[%s341 + $0xe8] sm:%s333] %v458
                %v460 = vld [vmem:[%s340 + $0x16c] sm:%s333]
                %461 = vst [vmem:[%s341 + $0xec] sm:%s333] %v460
                %v462 = vld [vmem:[%s340 + $0x170] sm:%s333]
                %463 = vst [vmem:[%s341 + $0xf0] sm:%s333] %v462
                %v464 = vld [vmem:[%s340 + $0x174] sm:%s333]
                %465 = vst [vmem:[%s341 + $0xf4] sm:%s333] %v464
                %v466 = vld [vmem:[%s340 + $0x178] sm:%s333]
                %467 = vst [vmem:[%s341 + $0xf8] sm:%s333] %v466
                %v468 = vld [vmem:[%s340 + $0x17c] sm:%s333]
                %469 = vst [vmem:[%s341 + $0xfc] sm:%s333] %v468
              $region61: #{tpu_custom_call.1} parent=55 // loop_footer
                %s339 = sadd.s32 1, %s335
              $region62: #{tpu_custom_call.1} parent=55 // loop_footer_branch
                %334 = sbr.rel target = $region58
              $region63: #{tpu_custom_call.1} parent=55 // loop_exit
                _
            $region56: #{tpu_custom_call.1} parent=47 // pred_fallthru
              _
          $region48: #{tpu_custom_call.1} parent=43 // pred_fallthru
            _
          %618 = vnop
        $region44: #{tpu_custom_call.1} parent=39 // pred_fallthru
          _
        // Predicated region
        $region82: #{tpu_custom_call.1} parent=39 // pred_check
          %p619 = pneg %p87
        $region83: #{tpu_custom_call.1} parent=39 // pred_check_branch
          %621 = sbr.rel (%p619) target = $region85
        $region84: #{tpu_custom_call.1} parent=39 // pred_region
          #allocation15 [shape = 'u32[6]{0}', space=smem, size = 0x18, scoped, tag = 'DMA stride descriptor']
          %s622 = sand.u32 %s77, 1
          %s623 = scalar_lea.sflag [#allocation9], %s622
          %s624 = sand.u32 %s77, 1
          %s625 = smul.addr %s624, 256
          %s626 = scalar_lea.vmem [#allocation8], %s625
          %s627 = smul.u32 2, %s33
          %s628 = smul.u32 4, %s32
          %630 = vsyncadd %s623, 0
          %s631 = smul.addr %s628, 8
          %s632 = smul.addr %s627, 64
          %s633 = sadd.s32 %s631, %s632
          %s634 = smul.addr %s633, 4
          %s635 = scalar_lea.hbm %s1, %s634
          %s637 = sshll.u32 1, 14
          %s638 = sxor.u32 4294967295, %s637
          %s640 = sld [smem:[#allocation0]]
          %s641 = sadd.s32 2, %s640
          %s643 = sshll.u32 7, 26
          %s644 = sxor.u32 4294967295, %s643
          %s645 = sand.u32 0, %s644
          %s646 = sshll.u32 %s641, 26
          %s647 = sor.u32 %s645, %s646
          %s648 = sshll.u32 %s635, 4
          %s649 = int_to_ptr.hbm [resolvable:$true] %s648
          %s650 = sshll.u32 %s626, 4
          %s651 = int_to_ptr.vmem [resolvable:$true] %s650
          %657 = sst [smem:[#allocation15]] 4096
          %s658 = scalar_lea.smem [#allocation15], 1
          %659 = sst [smem:[%s658]] 2048
          %s660 = scalar_lea.smem [#allocation15], 2
          %661 = sst [smem:[%s660]] 32
          %s662 = scalar_lea.smem [#allocation15], 3
          %663 = sst [smem:[%s662]] 64
          %s664 = scalar_lea.smem [#allocation15], 4
          %665 = sst [smem:[%s664]] 64
          %s666 = scalar_lea.smem [#allocation15], 5
          %667 = sst [smem:[%s666]] 4
          %669 = dma.general %s649, 4096, %s651, %s623, [#allocation14], [#allocation15], %s647, 0
        $region85: #{tpu_custom_call.1} parent=39 // pred_fallthru
          _
      $region40: #{tpu_custom_call.1} parent=5 // pred_fallthru
        _
      %p670 = scmp.le.s32.totalorder 1, %s25
      %p671 = scmp.lt.s32.totalorder %s25, 5
      %p672 = pnand %p670, %p671
      %p673 = pneg %p672
      // Predicated region
      $region86: #{tpu_custom_call.1} parent=5 // pred_check
        _
      $region87: #{tpu_custom_call.1} parent=5 // pred_check_branch
        %675 = sbr.rel (%p672) target = $region89
      $region88: #{tpu_custom_call.1} parent=5 // pred_region
        %s676 = ssub.s32 %s25, 1
        %s677 = sand.u32 %s52, 1
        %s678 = sand.u32 %s52, 1
        %s679 = smul.addr %s678, 256
        %s680 = scalar_lea.vmem [#allocation7], %s679
        // Predicated region
        $region90: #{tpu_custom_call.1} parent=88 // pred_check
          %p681 = pneg %p65
        $region91: #{tpu_custom_call.1} parent=88 // pred_check_branch
          %683 = sbr.rel (%p681) target = $region93
        $region92: #{tpu_custom_call.1} parent=88 // pred_region
          _
        $region93: #{tpu_custom_call.1} parent=88 // pred_fallthru
          _
        %s684 = sand.u32 %s80, 1
        %s685 = scalar_lea.sflag [#allocation9], %s684
        %s686 = sand.u32 %s80, 1
        %s687 = smul.addr %s686, 256
        %s688 = scalar_lea.vmem [#allocation8], %s687
        // Predicated region
        $region94: #{tpu_custom_call.1} parent=88 // pred_check
          %p689 = pneg %p93
        $region95: #{tpu_custom_call.1} parent=88 // pred_check_branch
          %691 = sbr.rel (%p689) target = $region97
        $region96: #{tpu_custom_call.1} parent=88 // pred_region
          %693 = dma.done %s685, 4096
        $region97: #{tpu_custom_call.1} parent=88 // pred_fallthru
          _
        %s694 = sand.u32 %s52, 1
        %s695 = sand.u32 %s52, 1
        %s696 = smul.addr %s695, 256
        %s697 = scalar_lea.vmem [#allocation7], %s696
        %p698 = pneg %p65
        %p699 = pneg %p62
        %s700 = sand.u32 %s80, 1
        %s701 = scalar_lea.sflag [#allocation9], %s700
        %s702 = sand.u32 %s80, 1
        %s703 = smul.addr %s702, 256
        %s704 = scalar_lea.vmem [#allocation8], %s703
        %p705 = pneg %p93
        %p706 = pneg %p90
        %p707 = pneg %p114
        %p708 = pneg %p111
        %p709 = pneg %p135
        %p710 = pneg %p132
        %p711 = pneg %p156
        %p712 = pneg %p153
        %p713 = pneg %p177
        %p714 = pneg %p174
        %p715 = pneg %p198
        %p716 = pneg %p195
        %p717 = pneg %p219
        %p718 = pneg %p216
        %p719 = pneg %p247
        %p720 = pneg %p244
        %s721 = sand.u32 %s234, 1
        %s722 = scalar_lea.sflag [#allocation10], %s721
        %s723 = sand.u32 %s234, 1
        %s724 = smul.addr %s723, 256
        %s725 = scalar_lea.vmem [#allocation11], %s724
        %p726 = pneg %p275
        %p727 = pneg %p272
        %s728 = sand.u32 %s262, 1
        %s729 = scalar_lea.sflag [#allocation13], %s728
        %s730 = sand.u32 %s262, 1
        %s731 = smul.addr %s730, 256
        %s732 = scalar_lea.vmem [#allocation12], %s731
        %s733 = smul.u32 2, %s35
        %s734 = smul.u32 4, %s34
        %s735 = smul.u32 2, %s35
        %s736 = smul.u32 4, %s34
        %s737 = smul.u32 2, %s35
        %s738 = smul.u32 4, %s34
        %s739 = smul.u32 2, %s35
        %s740 = smul.u32 4, %s34
        %p741 = scmp.eq.s32.totalorder %s35, 0
        // Predicated region
        $region98: #{tpu_custom_call.1} parent=88 // pred_check
          %p742 = pneg %p741
        $region99: #{tpu_custom_call.1} parent=88 // pred_check_branch
          %744 = sbr.rel (%p742) target = $region101
        $region100: #{tpu_custom_call.1} parent=88 // pred_region
          %vm745 = vcmask 261120
          %746 = vst.msk [vmem:[#allocation2] sm:$0xff] %vm745, 0.0
          %747 = vst.msk [vmem:[#allocation2 + $0x8] sm:$0xff] %vm745, 0.0
          %748 = vst.msk [vmem:[#allocation2 + $0x10] sm:$0xff] %vm745, 0.0
          %749 = vst.msk [vmem:[#allocation2 + $0x18] sm:$0xff] %vm745, 0.0
          %750 = vst.msk [vmem:[#allocation2 + $0x20] sm:$0xff] %vm745, 0.0
          %751 = vst.msk [vmem:[#allocation2 + $0x28] sm:$0xff] %vm745, 0.0
          %752 = vst.msk [vmem:[#allocation2 + $0x30] sm:$0xff] %vm745, 0.0
          %753 = vst.msk [vmem:[#allocation2 + $0x38] sm:$0xff] %vm745, 0.0
          %754 = vst.msk [vmem:[#allocation2 + $0x40] sm:$0xff] %vm745, 0.0
          %755 = vst.msk [vmem:[#allocation2 + $0x48] sm:$0xff] %vm745, 0.0
          %756 = vst.msk [vmem:[#allocation2 + $0x50] sm:$0xff] %vm745, 0.0
          %757 = vst.msk [vmem:[#allocation2 + $0x58] sm:$0xff] %vm745, 0.0
          %758 = vst.msk [vmem:[#allocation2 + $0x60] sm:$0xff] %vm745, 0.0
          %759 = vst.msk [vmem:[#allocation2 + $0x68] sm:$0xff] %vm745, 0.0
          %760 = vst.msk [vmem:[#allocation2 + $0x70] sm:$0xff] %vm745, 0.0
          %761 = vst.msk [vmem:[#allocation2 + $0x78] sm:$0xff] %vm745, 0.0
          %762 = vst.msk [vmem:[#allocation2 + $0x80] sm:$0xff] %vm745, 0.0
          %763 = vst.msk [vmem:[#allocation2 + $0x88] sm:$0xff] %vm745, 0.0
          %764 = vst.msk [vmem:[#allocation2 + $0x90] sm:$0xff] %vm745, 0.0
          %765 = vst.msk [vmem:[#allocation2 + $0x98] sm:$0xff] %vm745, 0.0
          %766 = vst.msk [vmem:[#allocation2 + $0xa0] sm:$0xff] %vm745, 0.0
          %767 = vst.msk [vmem:[#allocation2 + $0xa8] sm:$0xff] %vm745, 0.0
          %768 = vst.msk [vmem:[#allocation2 + $0xb0] sm:$0xff] %vm745, 0.0
          %769 = vst.msk [vmem:[#allocation2 + $0xb8] sm:$0xff] %vm745, 0.0
          %770 = vst.msk [vmem:[#allocation2 + $0xc0] sm:$0xff] %vm745, 0.0
          %771 = vst.msk [vmem:[#allocation2 + $0xc8] sm:$0xff] %vm745, 0.0
          %772 = vst.msk [vmem:[#allocation2 + $0xd0] sm:$0xff] %vm745, 0.0
          %773 = vst.msk [vmem:[#allocation2 + $0xd8] sm:$0xff] %vm745, 0.0
          %774 = vst.msk [vmem:[#allocation2 + $0xe0] sm:$0xff] %vm745, 0.0
          %775 = vst.msk [vmem:[#allocation2 + $0xe8] sm:$0xff] %vm745, 0.0
          %776 = vst.msk [vmem:[#allocation2 + $0xf0] sm:$0xff] %vm745, 0.0
          %777 = vst.msk [vmem:[#allocation2 + $0xf8] sm:$0xff] %vm745, 0.0
          %778 = vst.msk [vmem:[#allocation3] sm:$0xff] %vm745, 0.0
          %779 = vst.msk [vmem:[#allocation3 + $0x8] sm:$0xff] %vm745, 0.0
          %780 = vst.msk [vmem:[#allocation3 + $0x10] sm:$0xff] %vm745, 0.0
          %781 = vst.msk [vmem:[#allocation3 + $0x18] sm:$0xff] %vm745, 0.0
          %782 = vst.msk [vmem:[#allocation3 + $0x20] sm:$0xff] %vm745, 0.0
          %783 = vst.msk [vmem:[#allocation3 + $0x28] sm:$0xff] %vm745, 0.0
          %784 = vst.msk [vmem:[#allocation3 + $0x30] sm:$0xff] %vm745, 0.0
          %785 = vst.msk [vmem:[#allocation3 + $0x38] sm:$0xff] %vm745, 0.0
          %786 = vst.msk [vmem:[#allocation3 + $0x40] sm:$0xff] %vm745, 0.0
          %787 = vst.msk [vmem:[#allocation3 + $0x48] sm:$0xff] %vm745, 0.0
          %788 = vst.msk [vmem:[#allocation3 + $0x50] sm:$0xff] %vm745, 0.0
          %789 = vst.msk [vmem:[#allocation3 + $0x58] sm:$0xff] %vm745, 0.0
          %790 = vst.msk [vmem:[#allocation3 + $0x60] sm:$0xff] %vm745, 0.0
          %791 = vst.msk [vmem:[#allocation3 + $0x68] sm:$0xff] %vm745, 0.0
          %792 = vst.msk [vmem:[#allocation3 + $0x70] sm:$0xff] %vm745, 0.0
          %793 = vst.msk [vmem:[#allocation3 + $0x78] sm:$0xff] %vm745, 0.0
          %794 = vst.msk [vmem:[#allocation3 + $0x80] sm:$0xff] %vm745, 0.0
          %795 = vst.msk [vmem:[#allocation3 + $0x88] sm:$0xff] %vm745, 0.0
          %796 = vst.msk [vmem:[#allocation3 + $0x90] sm:$0xff] %vm745, 0.0
          %797 = vst.msk [vmem:[#allocation3 + $0x98] sm:$0xff] %vm745, 0.0
          %798 = vst.msk [vmem:[#allocation3 + $0xa0] sm:$0xff] %vm745, 0.0
          %799 = vst.msk [vmem:[#allocation3 + $0xa8] sm:$0xff] %vm745, 0.0
          %800 = vst.msk [vmem:[#allocation3 + $0xb0] sm:$0xff] %vm745, 0.0
          %801 = vst.msk [vmem:[#allocation3 + $0xb8] sm:$0xff] %vm745, 0.0
          %802 = vst.msk [vmem:[#allocation3 + $0xc0] sm:$0xff] %vm745, 0.0
          %803 = vst.msk [vmem:[#allocation3 + $0xc8] sm:$0xff] %vm745, 0.0
          %804 = vst.msk [vmem:[#allocation3 + $0xd0] sm:$0xff] %vm745, 0.0
          %805 = vst.msk [vmem:[#allocation3 + $0xd8] sm:$0xff] %vm745, 0.0
          %806 = vst.msk [vmem:[#allocation3 + $0xe0] sm:$0xff] %vm745, 0.0
          %807 = vst.msk [vmem:[#allocation3 + $0xe8] sm:$0xff] %vm745, 0.0
          %808 = vst.msk [vmem:[#allocation3 + $0xf0] sm:$0xff] %vm745, 0.0
          %809 = vst.msk [vmem:[#allocation3 + $0xf8] sm:$0xff] %vm745, 0.0
          %810 = vst [vmem:[#allocation4] sm:$0xff] 0.0
          %811 = vst [vmem:[#allocation4 + $0x8] sm:$0xff] 0.0
          %812 = vst [vmem:[#allocation4 + $0x10] sm:$0xff] 0.0
          %813 = vst [vmem:[#allocation4 + $0x18] sm:$0xff] 0.0
          %814 = vst [vmem:[#allocation4 + $0x20] sm:$0xff] 0.0
          %815 = vst [vmem:[#allocation4 + $0x28] sm:$0xff] 0.0
          %816 = vst [vmem:[#allocation4 + $0x30] sm:$0xff] 0.0
          %817 = vst [vmem:[#allocation4 + $0x38] sm:$0xff] 0.0
          %818 = vst [vmem:[#allocation4 + $0x40] sm:$0xff] 0.0
          %819 = vst [vmem:[#allocation4 + $0x48] sm:$0xff] 0.0
          %820 = vst [vmem:[#allocation4 + $0x50] sm:$0xff] 0.0
          %821 = vst [vmem:[#allocation4 + $0x58] sm:$0xff] 0.0
          %822 = vst [vmem:[#allocation4 + $0x60] sm:$0xff] 0.0
          %823 = vst [vmem:[#allocation4 + $0x68] sm:$0xff] 0.0
          %824 = vst [vmem:[#allocation4 + $0x70] sm:$0xff] 0.0
          %825 = vst [vmem:[#allocation4 + $0x78] sm:$0xff] 0.0
          %826 = vst [vmem:[#allocation4 + $0x80] sm:$0xff] 0.0
          %827 = vst [vmem:[#allocation4 + $0x88] sm:$0xff] 0.0
          %828 = vst [vmem:[#allocation4 + $0x90] sm:$0xff] 0.0
          %829 = vst [vmem:[#allocation4 + $0x98] sm:$0xff] 0.0
          %830 = vst [vmem:[#allocation4 + $0xa0] sm:$0xff] 0.0
          %831 = vst [vmem:[#allocation4 + $0xa8] sm:$0xff] 0.0
          %832 = vst [vmem:[#allocation4 + $0xb0] sm:$0xff] 0.0
          %833 = vst [vmem:[#allocation4 + $0xb8] sm:$0xff] 0.0
          %834 = vst [vmem:[#allocation4 + $0xc0] sm:$0xff] 0.0
          %835 = vst [vmem:[#allocation4 + $0xc8] sm:$0xff] 0.0
          %836 = vst [vmem:[#allocation4 + $0xd0] sm:$0xff] 0.0
          %837 = vst [vmem:[#allocation4 + $0xd8] sm:$0xff] 0.0
          %838 = vst [vmem:[#allocation4 + $0xe0] sm:$0xff] 0.0
          %839 = vst [vmem:[#allocation4 + $0xe8] sm:$0xff] 0.0
          %840 = vst [vmem:[#allocation4 + $0xf0] sm:$0xff] 0.0
          %841 = vst [vmem:[#allocation4 + $0xf8] sm:$0xff] 0.0
          %842 = vst.msk [vmem:[#allocation5] sm:$0xff] %vm745, 0.0
          %vm843 = vcmask 254976
          %844 = vst.msk [vmem:[#allocation5 + $0x8] sm:$0x3] %vm843, 0.0
          %845 = vst.msk [vmem:[#allocation5 + $0x10] sm:$0xff] %vm745, 0.0
          %846 = vst.msk [vmem:[#allocation5 + $0x18] sm:$0x3] %vm843, 0.0
          %847 = vst.msk [vmem:[#allocation5 + $0x20] sm:$0xff] %vm745, 0.0
          %848 = vst.msk [vmem:[#allocation5 + $0x28] sm:$0x3] %vm843, 0.0
          %849 = vst.msk [vmem:[#allocation5 + $0x30] sm:$0xff] %vm745, 0.0
          %850 = vst.msk [vmem:[#allocation5 + $0x38] sm:$0x3] %vm843, 0.0
          %851 = vst.msk [vmem:[#allocation5 + $0x40] sm:$0xff] %vm745, 0.0
          %852 = vst.msk [vmem:[#allocation5 + $0x48] sm:$0x3] %vm843, 0.0
          %853 = vst.msk [vmem:[#allocation5 + $0x50] sm:$0xff] %vm745, 0.0
          %854 = vst.msk [vmem:[#allocation5 + $0x58] sm:$0x3] %vm843, 0.0
          %855 = vst.msk [vmem:[#allocation5 + $0x60] sm:$0xff] %vm745, 0.0
          %856 = vst.msk [vmem:[#allocation5 + $0x68] sm:$0x3] %vm843, 0.0
          %857 = vst.msk [vmem:[#allocation5 + $0x70] sm:$0xff] %vm745, 0.0
          %858 = vst.msk [vmem:[#allocation5 + $0x78] sm:$0x3] %vm843, 0.0
          %859 = vst.msk [vmem:[#allocation5 + $0x80] sm:$0xff] %vm745, 0.0
          %860 = vst.msk [vmem:[#allocation5 + $0x88] sm:$0x3] %vm843, 0.0
          %861 = vst.msk [vmem:[#allocation5 + $0x90] sm:$0xff] %vm745, 0.0
          %862 = vst.msk [vmem:[#allocation5 + $0x98] sm:$0x3] %vm843, 0.0
          %863 = vst.msk [vmem:[#allocation5 + $0xa0] sm:$0xff] %vm745, 0.0
          %864 = vst.msk [vmem:[#allocation5 + $0xa8] sm:$0x3] %vm843, 0.0
          %865 = vst.msk [vmem:[#allocation5 + $0xb0] sm:$0xff] %vm745, 0.0
          %866 = vst.msk [vmem:[#allocation5 + $0xb8] sm:$0x3] %vm843, 0.0
          %867 = vst.msk [vmem:[#allocation5 + $0xc0] sm:$0xff] %vm745, 0.0
          %868 = vst.msk [vmem:[#allocation5 + $0xc8] sm:$0x3] %vm843, 0.0
          %869 = vst.msk [vmem:[#allocation5 + $0xd0] sm:$0xff] %vm745, 0.0
          %870 = vst.msk [vmem:[#allocation5 + $0xd8] sm:$0x3] %vm843, 0.0
          %871 = vst.msk [vmem:[#allocation5 + $0xe0] sm:$0xff] %vm745, 0.0
          %872 = vst.msk [vmem:[#allocation5 + $0xe8] sm:$0x3] %vm843, 0.0
          %873 = vst.msk [vmem:[#allocation5 + $0xf0] sm:$0xff] %vm745, 0.0
          %874 = vst.msk [vmem:[#allocation5 + $0xf8] sm:$0x3] %vm843, 0.0
          %875 = vst.msk [vmem:[#allocation5 + $0x100] sm:$0xff] %vm745, 0.0
          %876 = vst.msk [vmem:[#allocation5 + $0x108] sm:$0x3] %vm843, 0.0
          %877 = vst.msk [vmem:[#allocation5 + $0x110] sm:$0xff] %vm745, 0.0
          %878 = vst.msk [vmem:[#allocation5 + $0x118] sm:$0x3] %vm843, 0.0
          %879 = vst.msk [vmem:[#allocation5 + $0x120] sm:$0xff] %vm745, 0.0
          %880 = vst.msk [vmem:[#allocation5 + $0x128] sm:$0x3] %vm843, 0.0
          %881 = vst.msk [vmem:[#allocation5 + $0x130] sm:$0xff] %vm745, 0.0
          %882 = vst.msk [vmem:[#allocation5 + $0x138] sm:$0x3] %vm843, 0.0
          %883 = vst.msk [vmem:[#allocation5 + $0x140] sm:$0xff] %vm745, 0.0
          %884 = vst.msk [vmem:[#allocation5 + $0x148] sm:$0x3] %vm843, 0.0
          %885 = vst.msk [vmem:[#allocation5 + $0x150] sm:$0xff] %vm745, 0.0
          %886 = vst.msk [vmem:[#allocation5 + $0x158] sm:$0x3] %vm843, 0.0
          %887 = vst.msk [vmem:[#allocation5 + $0x160] sm:$0xff] %vm745, 0.0
          %888 = vst.msk [vmem:[#allocation5 + $0x168] sm:$0x3] %vm843, 0.0
          %889 = vst.msk [vmem:[#allocation5 + $0x170] sm:$0xff] %vm745, 0.0
          %890 = vst.msk [vmem:[#allocation5 + $0x178] sm:$0x3] %vm843, 0.0
          %891 = vst.msk [vmem:[#allocation5 + $0x180] sm:$0xff] %vm745, 0.0
          %892 = vst.msk [vmem:[#allocation5 + $0x188] sm:$0x3] %vm843, 0.0
          %893 = vst.msk [vmem:[#allocation5 + $0x190] sm:$0xff] %vm745, 0.0
          %894 = vst.msk [vmem:[#allocation5 + $0x198] sm:$0x3] %vm843, 0.0
          %895 = vst.msk [vmem:[#allocation5 + $0x1a0] sm:$0xff] %vm745, 0.0
          %896 = vst.msk [vmem:[#allocation5 + $0x1a8] sm:$0x3] %vm843, 0.0
          %897 = vst.msk [vmem:[#allocation5 + $0x1b0] sm:$0xff] %vm745, 0.0
          %898 = vst.msk [vmem:[#allocation5 + $0x1b8] sm:$0x3] %vm843, 0.0
          %899 = vst.msk [vmem:[#allocation5 + $0x1c0] sm:$0xff] %vm745, 0.0
          %900 = vst.msk [vmem:[#allocation5 + $0x1c8] sm:$0x3] %vm843, 0.0
          %901 = vst.msk [vmem:[#allocation5 + $0x1d0] sm:$0xff] %vm745, 0.0
          %902 = vst.msk [vmem:[#allocation5 + $0x1d8] sm:$0x3] %vm843, 0.0
          %903 = vst.msk [vmem:[#allocation5 + $0x1e0] sm:$0xff] %vm745, 0.0
          %904 = vst.msk [vmem:[#allocation5 + $0x1e8] sm:$0x3] %vm843, 0.0
          %905 = vst.msk [vmem:[#allocation5 + $0x1f0] sm:$0xff] %vm745, 0.0
          %906 = vst.msk [vmem:[#allocation5 + $0x1f8] sm:$0x3] %vm843, 0.0
          %907 = vst.msk [vmem:[#allocation5 + $0x200] sm:$0xff] %vm745, 0.0
          %908 = vst.msk [vmem:[#allocation5 + $0x208] sm:$0x3] %vm843, 0.0
          %909 = vst.msk [vmem:[#allocation5 + $0x210] sm:$0xff] %vm745, 0.0
          %910 = vst.msk [vmem:[#allocation5 + $0x218] sm:$0x3] %vm843, 0.0
          %911 = vst.msk [vmem:[#allocation5 + $0x220] sm:$0xff] %vm745, 0.0
          %912 = vst.msk [vmem:[#allocation5 + $0x228] sm:$0x3] %vm843, 0.0
          %913 = vst.msk [vmem:[#allocation5 + $0x230] sm:$0xff] %vm745, 0.0
          %914 = vst.msk [vmem:[#allocation5 + $0x238] sm:$0x3] %vm843, 0.0
          %915 = vst.msk [vmem:[#allocation5 + $0x240] sm:$0xff] %vm745, 0.0
          %916 = vst.msk [vmem:[#allocation5 + $0x248] sm:$0x3] %vm843, 0.0
          %917 = vst.msk [vmem:[#allocation5 + $0x250] sm:$0xff] %vm745, 0.0
          %918 = vst.msk [vmem:[#allocation5 + $0x258] sm:$0x3] %vm843, 0.0
          %919 = vst.msk [vmem:[#allocation5 + $0x260] sm:$0xff] %vm745, 0.0
          %920 = vst.msk [vmem:[#allocation5 + $0x268] sm:$0x3] %vm843, 0.0
          %921 = vst.msk [vmem:[#allocation5 + $0x270] sm:$0xff] %vm745, 0.0
          %922 = vst.msk [vmem:[#allocation5 + $0x278] sm:$0x3] %vm843, 0.0
        $region101: #{tpu_custom_call.1} parent=88 // pred_fallthru
          _
        %v923 = vld [vmem:[%s3] sm:$0xff]
        %v924 = vld [vmem:[%s3 + $0x8] sm:$0xff]
        %v925 = vld [vmem:[%s3 + $0x10] sm:$0xff]
        %v926 = vld [vmem:[%s3 + $0x18] sm:$0xff]
        %v927 = vld [vmem:[%s3 + $0x20] sm:$0xff]
        %v928 = vld [vmem:[%s3 + $0x28] sm:$0xff]
        %v929 = vld [vmem:[%s3 + $0x30] sm:$0xff]
        %v930 = vld [vmem:[%s3 + $0x38] sm:$0xff]
        %v931 = vld [vmem:[%s3 + $0x40] sm:$0xff]
        %v932 = vld [vmem:[%s3 + $0x48] sm:$0xff]
        %v933 = vld [vmem:[%s3 + $0x50] sm:$0xff]
        %v934 = vld [vmem:[%s3 + $0x58] sm:$0xff]
        %v935 = vld [vmem:[%s3 + $0x60] sm:$0xff]
        %v936 = vld [vmem:[%s3 + $0x68] sm:$0xff]
        %v937 = vld [vmem:[%s3 + $0x70] sm:$0xff]
        %v938 = vld [vmem:[%s3 + $0x78] sm:$0xff]
        %v939 = vld [vmem:[%s3 + $0x80] sm:$0xff]
        %v940 = vld [vmem:[%s3 + $0x88] sm:$0xff]
        %v941 = vld [vmem:[%s3 + $0x90] sm:$0xff]
        %v942 = vld [vmem:[%s3 + $0x98] sm:$0xff]
        %v943 = vld [vmem:[%s3 + $0xa0] sm:$0xff]
        %v944 = vld [vmem:[%s3 + $0xa8] sm:$0xff]
        %v945 = vld [vmem:[%s3 + $0xb0] sm:$0xff]
        %v946 = vld [vmem:[%s3 + $0xb8] sm:$0xff]
        %v947 = vld [vmem:[%s3 + $0xc0] sm:$0xff]
        %v948 = vld [vmem:[%s3 + $0xc8] sm:$0xff]
        %v949 = vld [vmem:[%s3 + $0xd0] sm:$0xff]
        %v950 = vld [vmem:[%s3 + $0xd8] sm:$0xff]
        %v951 = vld [vmem:[%s3 + $0xe0] sm:$0xff]
        %v952 = vld [vmem:[%s3 + $0xe8] sm:$0xff]
        %v953 = vld [vmem:[%s3 + $0xf0] sm:$0xff]
        %v954 = vld [vmem:[%s3 + $0xf8] sm:$0xff]
        %v955 = vld [vmem:[%s3 + $0x100] sm:$0xff]
        %v956 = vld [vmem:[%s3 + $0x108] sm:$0xff]
        %v957 = vld [vmem:[%s3 + $0x110] sm:$0xff]
        %v958 = vld [vmem:[%s3 + $0x118] sm:$0xff]
        %v959 = vld [vmem:[%s4] sm:$0xff]
        %v960 = vld [vmem:[%s4 + $0x8] sm:$0xff]
        %v961 = vld [vmem:[%s4 + $0x10] sm:$0xff]
        %v962 = vld [vmem:[%s4 + $0x18] sm:$0xff]
        %v963 = vld [vmem:[%s6] sm:$0x1]
        %v964 = vld [vmem:[%s7] sm:$0x1]
        %v965 = vld [vmem:[%s680] sm:$0xf]
        %v966 = vld [vmem:[%s680 + $0x4] sm:$0xf]
        %v967 = vld [vmem:[%s680 + $0x8] sm:$0xf]
        %v968 = vld [vmem:[%s680 + $0xc] sm:$0xf]
        %v969 = vld [vmem:[%s680 + $0x10] sm:$0xf]
        %v970 = vld [vmem:[%s680 + $0x14] sm:$0xf]
        %v971 = vld [vmem:[%s680 + $0x18] sm:$0xf]
        %v972 = vld [vmem:[%s680 + $0x1c] sm:$0xf]
        %v973 = vld [vmem:[%s680 + $0x20] sm:$0xf]
        %v974 = vld [vmem:[%s680 + $0x24] sm:$0xf]
        %v975 = vld [vmem:[%s680 + $0x28] sm:$0xf]
        %v976 = vld [vmem:[%s680 + $0x2c] sm:$0xf]
        %v977 = vld [vmem:[%s680 + $0x30] sm:$0xf]
        %v978 = vld [vmem:[%s680 + $0x34] sm:$0xf]
        %v979 = vld [vmem:[%s680 + $0x38] sm:$0xf]
        %v980 = vld [vmem:[%s680 + $0x3c] sm:$0xf]
        %v981 = vld [vmem:[%s680 + $0x40] sm:$0xf]
        %v982 = vld [vmem:[%s680 + $0x44] sm:$0xf]
        %v983 = vld [vmem:[%s680 + $0x48] sm:$0xf]
        %v984 = vld [vmem:[%s680 + $0x4c] sm:$0xf]
        %v985 = vld [vmem:[%s680 + $0x50] sm:$0xf]
        %v986 = vld [vmem:[%s680 + $0x54] sm:$0xf]
        %v987 = vld [vmem:[%s680 + $0x58] sm:$0xf]
        %v988 = vld [vmem:[%s680 + $0x5c] sm:$0xf]
        %v989 = vld [vmem:[%s680 + $0x60] sm:$0xf]
        %v990 = vld [vmem:[%s680 + $0x64] sm:$0xf]
        %v991 = vld [vmem:[%s680 + $0x68] sm:$0xf]
        %v992 = vld [vmem:[%s680 + $0x6c] sm:$0xf]
        %v993 = vld [vmem:[%s680 + $0x70] sm:$0xf]
        %v994 = vld [vmem:[%s680 + $0x74] sm:$0xf]
        %v995 = vld [vmem:[%s680 + $0x78] sm:$0xf]
        %v996 = vld [vmem:[%s680 + $0x7c] sm:$0xf]
        %v997 = vld [vmem:[%s680 + $0x80] sm:$0xf]
        %v998 = vld [vmem:[%s680 + $0x84] sm:$0xf]
        %v999 = vld [vmem:[%s680 + $0x88] sm:$0xf]
        %v1000 = vld [vmem:[%s680 + $0x8c] sm:$0xf]
        %v1001 = vld [vmem:[%s680 + $0x90] sm:$0xf]
        %v1002 = vld [vmem:[%s680 + $0x94] sm:$0xf]
        %v1003 = vld [vmem:[%s680 + $0x98] sm:$0xf]
        %v1004 = vld [vmem:[%s680 + $0x9c] sm:$0xf]
        %v1005 = vld [vmem:[%s680 + $0xa0] sm:$0xf]
        %v1006 = vld [vmem:[%s680 + $0xa4] sm:$0xf]
        %v1007 = vld [vmem:[%s680 + $0xa8] sm:$0xf]
        %v1008 = vld [vmem:[%s680 + $0xac] sm:$0xf]
        %v1009 = vld [vmem:[%s680 + $0xb0] sm:$0xf]
        %v1010 = vld [vmem:[%s680 + $0xb4] sm:$0xf]
        %v1011 = vld [vmem:[%s680 + $0xb8] sm:$0xf]
        %v1012 = vld [vmem:[%s680 + $0xbc] sm:$0xf]
        %v1013 = vld [vmem:[%s680 + $0xc0] sm:$0xf]
        %v1014 = vld [vmem:[%s680 + $0xc4] sm:$0xf]
        %v1015 = vld [vmem:[%s680 + $0xc8] sm:$0xf]
        %v1016 = vld [vmem:[%s680 + $0xcc] sm:$0xf]
        %v1017 = vld [vmem:[%s680 + $0xd0] sm:$0xf]
        %v1018 = vld [vmem:[%s680 + $0xd4] sm:$0xf]
        %v1019 = vld [vmem:[%s680 + $0xd8] sm:$0xf]
        %v1020 = vld [vmem:[%s680 + $0xdc] sm:$0xf]
        %v1021 = vld [vmem:[%s680 + $0xe0] sm:$0xf]
        %v1022 = vld [vmem:[%s680 + $0xe4] sm:$0xf]
        %v1023 = vld [vmem:[%s680 + $0xe8] sm:$0xf]
        %v1024 = vld [vmem:[%s680 + $0xec] sm:$0xf]
        %v1025 = vld [vmem:[%s680 + $0xf0] sm:$0xf]
        %v1026 = vld [vmem:[%s680 + $0xf4] sm:$0xf]
        %v1027 = vld [vmem:[%s680 + $0xf8] sm:$0xf]
        %v1028 = vld [vmem:[%s680 + $0xfc] sm:$0xf]
        %v1029 = vunpack.c.l.bf16 %v965
        %v1030 = vunpack.c.l.bf16 %v966
        %v1031 = vunpack.c.l.bf16 %v967
        %v1032 = vunpack.c.l.bf16 %v968
        %v1033 = vunpack.c.l.bf16 %v969
        %v1034 = vunpack.c.l.bf16 %v970
        %v1035 = vunpack.c.l.bf16 %v971
        %v1036 = vunpack.c.l.bf16 %v972
        %v1037 = vunpack.c.l.bf16 %v973
        %v1038 = vunpack.c.l.bf16 %v974
        %v1039 = vunpack.c.l.bf16 %v975
        %v1040 = vunpack.c.l.bf16 %v976
        %v1041 = vunpack.c.l.bf16 %v977
        %v1042 = vunpack.c.l.bf16 %v978
        %v1043 = vunpack.c.l.bf16 %v979
        %v1044 = vunpack.c.l.bf16 %v980
        %v1045 = vunpack.c.l.bf16 %v981
        %v1046 = vunpack.c.l.bf16 %v982
        %v1047 = vunpack.c.l.bf16 %v983
        %v1048 = vunpack.c.l.bf16 %v984
        %v1049 = vunpack.c.l.bf16 %v985
        %v1050 = vunpack.c.l.bf16 %v986
        %v1051 = vunpack.c.l.bf16 %v987
        %v1052 = vunpack.c.l.bf16 %v988
        %v1053 = vunpack.c.l.bf16 %v989
        %v1054 = vunpack.c.l.bf16 %v990
        %v1055 = vunpack.c.l.bf16 %v991
        %v1056 = vunpack.c.l.bf16 %v992
        %v1057 = vunpack.c.l.bf16 %v993
        %v1058 = vunpack.c.l.bf16 %v994
        %v1059 = vunpack.c.l.bf16 %v995
        %v1060 = vunpack.c.l.bf16 %v996
        %v1061 = vunpack.c.l.bf16 %v997
        %v1062 = vunpack.c.l.bf16 %v998
        %v1063 = vunpack.c.l.bf16 %v999
        %v1064 = vunpack.c.l.bf16 %v1000
        %v1065 = vunpack.c.l.bf16 %v1001
        %v1066 = vunpack.c.l.bf16 %v1002
        %v1067 = vunpack.c.l.bf16 %v1003
        %v1068 = vunpack.c.l.bf16 %v1004
        %v1069 = vunpack.c.l.bf16 %v1005
        %v1070 = vunpack.c.l.bf16 %v1006
        %v1071 = vunpack.c.l.bf16 %v1007
        %v1072 = vunpack.c.l.bf16 %v1008
        %v1073 = vunpack.c.l.bf16 %v1009
        %v1074 = vunpack.c.l.bf16 %v1010
        %v1075 = vunpack.c.l.bf16 %v1011
        %v1076 = vunpack.c.l.bf16 %v1012
        %v1077 = vunpack.c.l.bf16 %v1013
        %v1078 = vunpack.c.l.bf16 %v1014
        %v1079 = vunpack.c.l.bf16 %v1015
        %v1080 = vunpack.c.l.bf16 %v1016
        %v1081 = vunpack.c.l.bf16 %v1017
        %v1082 = vunpack.c.l.bf16 %v1018
        %v1083 = vunpack.c.l.bf16 %v1019
        %v1084 = vunpack.c.l.bf16 %v1020
        %v1085 = vunpack.c.l.bf16 %v1021
        %v1086 = vunpack.c.l.bf16 %v1022
        %v1087 = vunpack.c.l.bf16 %v1023
        %v1088 = vunpack.c.l.bf16 %v1024
        %v1089 = vunpack.c.l.bf16 %v1025
        %v1090 = vunpack.c.l.bf16 %v1026
        %v1091 = vunpack.c.l.bf16 %v1027
        %v1092 = vunpack.c.l.bf16 %v1028
        %v1093 = vld [vmem:[%s2] sm:$0xff]
        %v1094 = vld [vmem:[%s2 + $0x8] sm:$0xff]
        %v1095 = vld [vmem:[%s2 + $0x10] sm:$0xff]
        %v1096 = vld [vmem:[%s2 + $0x18] sm:$0xff]
        %v1097 = vld [vmem:[%s2 + $0x20] sm:$0xff]
        %v1098 = vld [vmem:[%s2 + $0x28] sm:$0xff]
        %v1099 = vld [vmem:[%s2 + $0x30] sm:$0xff]
        %v1100 = vld [vmem:[%s2 + $0x38] sm:$0xff]
        %v1101 = vld [vmem:[%s2 + $0x40] sm:$0xff]
        %v1102 = vld [vmem:[%s2 + $0x48] sm:$0xff]
        %v1103 = vld [vmem:[%s2 + $0x50] sm:$0xff]
        %v1104 = vld [vmem:[%s2 + $0x58] sm:$0xff]
        %v1105 = vld [vmem:[%s2 + $0x60] sm:$0xff]
        %v1106 = vld [vmem:[%s2 + $0x68] sm:$0xff]
        %v1107 = vld [vmem:[%s2 + $0x70] sm:$0xff]
        %v1108 = vld [vmem:[%s2 + $0x78] sm:$0xff]
        %v1109 = vld [vmem:[%s5] sm:$0x1]
        %v1111 = vperm.slane %v1109, 0
        %1113 = vmatpush.msra.mxu0 %v1108
        %1114 = vmatpush.msra.mxu0 %v1107
        %1115 = vmatpush.msra.mxu0 %v1106
        %1116 = vmatpush.msra.mxu0 %v1105
        %1117 = vmatpush.msra.mxu0 %v1104
        %1118 = vmatpush.msra.mxu0 %v1103
        %1119 = vmatpush.msra.mxu0 %v1102
        %1120 = vmatpush.msra.mxu0 %v1101
        %1121 = vmatpush.msra.mxu0 %v1100
        %1122 = vmatpush.msra.mxu0 %v1099
        %1123 = vmatpush.msra.mxu0 %v1098
        %1124 = vmatpush.msra.mxu0 %v1097
        %1125 = vmatpush.msra.mxu0 %v1096
        %1126 = vmatpush.msra.mxu0 %v1095
        %1127 = vmatpush.msra.mxu0 %v1094
        %1128 = vmatpush.msra.mxu0 %v1093
        %1129 = vmatmul.f32.gmra.mxu0 %v1029
        %v1130 = vpop.f32.mrf.mxu0
        %v1131 = vadd.f32 %v1111, %v1130
        %1132 = vmatmul.f32.gmra.mxu0 %v1030
        %v1133 = vpop.f32.mrf.mxu0
        %v1134 = vadd.f32 %v1111, %v1133
        %1135 = vmatmul.f32.gmra.mxu0 %v1031
        %v1136 = vpop.f32.mrf.mxu0
        %v1137 = vadd.f32 %v1111, %v1136
        %1138 = vmatmul.f32.gmra.mxu0 %v1032
        %v1139 = vpop.f32.mrf.mxu0
        %v1140 = vadd.f32 %v1111, %v1139
        %1141 = vmatmul.f32.gmra.mxu0 %v1033
        %v1142 = vpop.f32.mrf.mxu0
        %v1143 = vadd.f32 %v1111, %v1142
        %1144 = vmatmul.f32.gmra.mxu0 %v1034
        %v1145 = vpop.f32.mrf.mxu0
        %v1146 = vadd.f32 %v1111, %v1145
        %1147 = vmatmul.f32.gmra.mxu0 %v1035
        %v1148 = vpop.f32.mrf.mxu0
        %v1149 = vadd.f32 %v1111, %v1148
        %1150 = vmatmul.f32.gmra.mxu0 %v1036
        %v1151 = vpop.f32.mrf.mxu0
        %v1152 = vadd.f32 %v1111, %v1151
        %1153 = vmatmul.f32.gmra.mxu0 %v1037
        %v1154 = vpop.f32.mrf.mxu0
        %v1155 = vadd.f32 %v1111, %v1154
        %1156 = vmatmul.f32.gmra.mxu0 %v1038
        %v1157 = vpop.f32.mrf.mxu0
        %v1158 = vadd.f32 %v1111, %v1157
        %1159 = vmatmul.f32.gmra.mxu0 %v1039
        %v1160 = vpop.f32.mrf.mxu0
        %v1161 = vadd.f32 %v1111, %v1160
        %1162 = vmatmul.f32.gmra.mxu0 %v1040
        %v1163 = vpop.f32.mrf.mxu0
        %v1164 = vadd.f32 %v1111, %v1163
        %1165 = vmatmul.f32.gmra.mxu0 %v1041
        %v1166 = vpop.f32.mrf.mxu0
        %v1167 = vadd.f32 %v1111, %v1166
        %1168 = vmatmul.f32.gmra.mxu0 %v1042
        %v1169 = vpop.f32.mrf.mxu0
        %v1170 = vadd.f32 %v1111, %v1169
        %1171 = vmatmul.f32.gmra.mxu0 %v1043
        %v1172 = vpop.f32.mrf.mxu0
        %v1173 = vadd.f32 %v1111, %v1172
        %1174 = vmatmul.f32.gmra.mxu0 %v1044
        %v1175 = vpop.f32.mrf.mxu0
        %v1176 = vadd.f32 %v1111, %v1175
        %1177 = vmatmul.f32.gmra.mxu0 %v1045
        %v1178 = vpop.f32.mrf.mxu0
        %v1179 = vadd.f32 %v1111, %v1178
        %1180 = vmatmul.f32.gmra.mxu0 %v1046
        %v1181 = vpop.f32.mrf.mxu0
        %v1182 = vadd.f32 %v1111, %v1181
        %1183 = vmatmul.f32.gmra.mxu0 %v1047
        %v1184 = vpop.f32.mrf.mxu0
        %v1185 = vadd.f32 %v1111, %v1184
        %1186 = vmatmul.f32.gmra.mxu0 %v1048
        %v1187 = vpop.f32.mrf.mxu0
        %v1188 = vadd.f32 %v1111, %v1187
        %1189 = vmatmul.f32.gmra.mxu0 %v1049
        %v1190 = vpop.f32.mrf.mxu0
        %v1191 = vadd.f32 %v1111, %v1190
        %1192 = vmatmul.f32.gmra.mxu0 %v1050
        %v1193 = vpop.f32.mrf.mxu0
        %v1194 = vadd.f32 %v1111, %v1193
        %1195 = vmatmul.f32.gmra.mxu0 %v1051
        %v1196 = vpop.f32.mrf.mxu0
        %v1197 = vadd.f32 %v1111, %v1196
        %1198 = vmatmul.f32.gmra.mxu0 %v1052
        %v1199 = vpop.f32.mrf.mxu0
        %v1200 = vadd.f32 %v1111, %v1199
        %1201 = vmatmul.f32.gmra.mxu0 %v1053
        %v1202 = vpop.f32.mrf.mxu0
        %v1203 = vadd.f32 %v1111, %v1202
        %1204 = vmatmul.f32.gmra.mxu0 %v1054
        %v1205 = vpop.f32.mrf.mxu0
        %v1206 = vadd.f32 %v1111, %v1205
        %1207 = vmatmul.f32.gmra.mxu0 %v1055
        %v1208 = vpop.f32.mrf.mxu0
        %v1209 = vadd.f32 %v1111, %v1208
        %1210 = vmatmul.f32.gmra.mxu0 %v1056
        %v1211 = vpop.f32.mrf.mxu0
        %v1212 = vadd.f32 %v1111, %v1211
        %1213 = vmatmul.f32.gmra.mxu0 %v1057
        %v1214 = vpop.f32.mrf.mxu0
        %v1215 = vadd.f32 %v1111, %v1214
        %1216 = vmatmul.f32.gmra.mxu0 %v1058
        %v1217 = vpop.f32.mrf.mxu0
        %v1218 = vadd.f32 %v1111, %v1217
        %1219 = vmatmul.f32.gmra.mxu0 %v1059
        %v1220 = vpop.f32.mrf.mxu0
        %v1221 = vadd.f32 %v1111, %v1220
        %1222 = vmatmul.f32.gmra.mxu0 %v1060
        %v1223 = vpop.f32.mrf.mxu0
        %v1224 = vadd.f32 %v1111, %v1223
        %1225 = vmatmul.f32.gmra.mxu0 %v1061
        %v1226 = vpop.f32.mrf.mxu0
        %v1227 = vadd.f32 %v1111, %v1226
        %1228 = vmatmul.f32.gmra.mxu0 %v1062
        %v1229 = vpop.f32.mrf.mxu0
        %v1230 = vadd.f32 %v1111, %v1229
        %1231 = vmatmul.f32.gmra.mxu0 %v1063
        %v1232 = vpop.f32.mrf.mxu0
        %v1233 = vadd.f32 %v1111, %v1232
        %1234 = vmatmul.f32.gmra.mxu0 %v1064
        %v1235 = vpop.f32.mrf.mxu0
        %v1236 = vadd.f32 %v1111, %v1235
        %1237 = vmatmul.f32.gmra.mxu0 %v1065
        %v1238 = vpop.f32.mrf.mxu0
        %v1239 = vadd.f32 %v1111, %v1238
        %1240 = vmatmul.f32.gmra.mxu0 %v1066
        %v1241 = vpop.f32.mrf.mxu0
        %v1242 = vadd.f32 %v1111, %v1241
        %1243 = vmatmul.f32.gmra.mxu0 %v1067
        %v1244 = vpop.f32.mrf.mxu0
        %v1245 = vadd.f32 %v1111, %v1244
        %1246 = vmatmul.f32.gmra.mxu0 %v1068
        %v1247 = vpop.f32.mrf.mxu0
        %v1248 = vadd.f32 %v1111, %v1247
        %1249 = vmatmul.f32.gmra.mxu0 %v1069
        %v1250 = vpop.f32.mrf.mxu0
        %v1251 = vadd.f32 %v1111, %v1250
        %1252 = vmatmul.f32.gmra.mxu0 %v1070
        %v1253 = vpop.f32.mrf.mxu0
        %v1254 = vadd.f32 %v1111, %v1253
        %1255 = vmatmul.f32.gmra.mxu0 %v1071
        %v1256 = vpop.f32.mrf.mxu0
        %v1257 = vadd.f32 %v1111, %v1256
        %1258 = vmatmul.f32.gmra.mxu0 %v1072
        %v1259 = vpop.f32.mrf.mxu0
        %v1260 = vadd.f32 %v1111, %v1259
        %1261 = vmatmul.f32.gmra.mxu0 %v1073
        %v1262 = vpop.f32.mrf.mxu0
        %v1263 = vadd.f32 %v1111, %v1262
        %1264 = vmatmul.f32.gmra.mxu0 %v1074
        %v1265 = vpop.f32.mrf.mxu0
        %v1266 = vadd.f32 %v1111, %v1265
        %1267 = vmatmul.f32.gmra.mxu0 %v1075
        %v1268 = vpop.f32.mrf.mxu0
        %v1269 = vadd.f32 %v1111, %v1268
        %1270 = vmatmul.f32.gmra.mxu0 %v1076
        %v1271 = vpop.f32.mrf.mxu0
        %v1272 = vadd.f32 %v1111, %v1271
        %1273 = vmatmul.f32.gmra.mxu0 %v1077
        %v1274 = vpop.f32.mrf.mxu0
        %v1275 = vadd.f32 %v1111, %v1274
        %1276 = vmatmul.f32.gmra.mxu0 %v1078
        %v1277 = vpop.f32.mrf.mxu0
        %v1278 = vadd.f32 %v1111, %v1277
        %1279 = vmatmul.f32.gmra.mxu0 %v1079
        %v1280 = vpop.f32.mrf.mxu0
        %v1281 = vadd.f32 %v1111, %v1280
        %1282 = vmatmul.f32.gmra.mxu0 %v1080
        %v1283 = vpop.f32.mrf.mxu0
        %v1284 = vadd.f32 %v1111, %v1283
        %1285 = vmatmul.f32.gmra.mxu0 %v1081
        %v1286 = vpop.f32.mrf.mxu0
        %v1287 = vadd.f32 %v1111, %v1286
        %1288 = vmatmul.f32.gmra.mxu0 %v1082
        %v1289 = vpop.f32.mrf.mxu0
        %v1290 = vadd.f32 %v1111, %v1289
        %1291 = vmatmul.f32.gmra.mxu0 %v1083
        %v1292 = vpop.f32.mrf.mxu0
        %v1293 = vadd.f32 %v1111, %v1292
        %1294 = vmatmul.f32.gmra.mxu0 %v1084
        %v1295 = vpop.f32.mrf.mxu0
        %v1296 = vadd.f32 %v1111, %v1295
        %1297 = vmatmul.f32.gmra.mxu0 %v1085
        %v1298 = vpop.f32.mrf.mxu0
        %v1299 = vadd.f32 %v1111, %v1298
        %1300 = vmatmul.f32.gmra.mxu0 %v1086
        %v1301 = vpop.f32.mrf.mxu0
        %v1302 = vadd.f32 %v1111, %v1301
        %1303 = vmatmul.f32.gmra.mxu0 %v1087
        %v1304 = vpop.f32.mrf.mxu0
        %v1305 = vadd.f32 %v1111, %v1304
        %1306 = vmatmul.f32.gmra.mxu0 %v1088
        %v1307 = vpop.f32.mrf.mxu0
        %v1308 = vadd.f32 %v1111, %v1307
        %1309 = vmatmul.f32.gmra.mxu0 %v1089
        %v1310 = vpop.f32.mrf.mxu0
        %v1311 = vadd.f32 %v1111, %v1310
        %1312 = vmatmul.f32.gmra.mxu0 %v1090
        %v1313 = vpop.f32.mrf.mxu0
        %v1314 = vadd.f32 %v1111, %v1313
        %1315 = vmatmul.f32.gmra.mxu0 %v1091
        %v1316 = vpop.f32.mrf.mxu0
        %v1317 = vadd.f32 %v1111, %v1316
        %1318 = vmatmul.f32.gmra.mxu0 %v1092
        %v1319 = vpop.f32.mrf.mxu0
        %v1320 = vadd.f32 %v1111, %v1319
        %1321 = vdwg.mxu0
        %vm1322 = vcmask 261120
        %1323 = vst.msk [vmem:[#allocation6] sm:$0xff] %vm1322, %v1131
        %1324 = vst.msk [vmem:[#allocation6 + $0x8] sm:$0xff] %vm1322, %v1134
        %1325 = vst.msk [vmem:[#allocation6 + $0x10] sm:$0xff] %vm1322, %v1137
        %1326 = vst.msk [vmem:[#allocation6 + $0x18] sm:$0xff] %vm1322, %v1140
        %1327 = vst.msk [vmem:[#allocation6 + $0x20] sm:$0xff] %vm1322, %v1143
        %1328 = vst.msk [vmem:[#allocation6 + $0x28] sm:$0xff] %vm1322, %v1146
        %1329 = vst.msk [vmem:[#allocation6 + $0x30] sm:$0xff] %vm1322, %v1149
        %1330 = vst.msk [vmem:[#allocation6 + $0x38] sm:$0xff] %vm1322, %v1152
        %1331 = vst.msk [vmem:[#allocation6 + $0x40] sm:$0xff] %vm1322, %v1155
        %1332 = vst.msk [vmem:[#allocation6 + $0x48] sm:$0xff] %vm1322, %v1158
        %1333 = vst.msk [vmem:[#allocation6 + $0x50] sm:$0xff] %vm1322, %v1161
        %1334 = vst.msk [vmem:[#allocation6 + $0x58] sm:$0xff] %vm1322, %v1164
        %1335 = vst.msk [vmem:[#allocation6 + $0x60] sm:$0xff] %vm1322, %v1167
        %1336 = vst.msk [vmem:[#allocation6 + $0x68] sm:$0xff] %vm1322, %v1170
        %1337 = vst.msk [vmem:[#allocation6 + $0x70] sm:$0xff] %vm1322, %v1173
        %1338 = vst.msk [vmem:[#allocation6 + $0x78] sm:$0xff] %vm1322, %v1176
        %1339 = vst.msk [vmem:[#allocation6 + $0x80] sm:$0xff] %vm1322, %v1179
        %1340 = vst.msk [vmem:[#allocation6 + $0x88] sm:$0xff] %vm1322, %v1182
        %1341 = vst.msk [vmem:[#allocation6 + $0x90] sm:$0xff] %vm1322, %v1185
        %1342 = vst.msk [vmem:[#allocation6 + $0x98] sm:$0xff] %vm1322, %v1188
        %1343 = vst.msk [vmem:[#allocation6 + $0xa0] sm:$0xff] %vm1322, %v1191
        %1344 = vst.msk [vmem:[#allocation6 + $0xa8] sm:$0xff] %vm1322, %v1194
        %1345 = vst.msk [vmem:[#allocation6 + $0xb0] sm:$0xff] %vm1322, %v1197
        %1346 = vst.msk [vmem:[#allocation6 + $0xb8] sm:$0xff] %vm1322, %v1200
        %1347 = vst.msk [vmem:[#allocation6 + $0xc0] sm:$0xff] %vm1322, %v1203
        %1348 = vst.msk [vmem:[#allocation6 + $0xc8] sm:$0xff] %vm1322, %v1206
        %1349 = vst.msk [vmem:[#allocation6 + $0xd0] sm:$0xff] %vm1322, %v1209
        %1350 = vst.msk [vmem:[#allocation6 + $0xd8] sm:$0xff] %vm1322, %v1212
        %1351 = vst.msk [vmem:[#allocation6 + $0xe0] sm:$0xff] %vm1322, %v1215
        %1352 = vst.msk [vmem:[#allocation6 + $0xe8] sm:$0xff] %vm1322, %v1218
        %1353 = vst.msk [vmem:[#allocation6 + $0xf0] sm:$0xff] %vm1322, %v1221
        %1354 = vst.msk [vmem:[#allocation6 + $0xf8] sm:$0xff] %vm1322, %v1224
        %1355 = vst.msk [vmem:[#allocation6 + $0x100] sm:$0xff] %vm1322, %v1227
        %1356 = vst.msk [vmem:[#allocation6 + $0x108] sm:$0xff] %vm1322, %v1230
        %1357 = vst.msk [vmem:[#allocation6 + $0x110] sm:$0xff] %vm1322, %v1233
        %1358 = vst.msk [vmem:[#allocation6 + $0x118] sm:$0xff] %vm1322, %v1236
        %1359 = vst.msk [vmem:[#allocation6 + $0x120] sm:$0xff] %vm1322, %v1239
        %1360 = vst.msk [vmem:[#allocation6 + $0x128] sm:$0xff] %vm1322, %v1242
        %1361 = vst.msk [vmem:[#allocation6 + $0x130] sm:$0xff] %vm1322, %v1245
        %1362 = vst.msk [vmem:[#allocation6 + $0x138] sm:$0xff] %vm1322, %v1248
        %1363 = vst.msk [vmem:[#allocation6 + $0x140] sm:$0xff] %vm1322, %v1251
        %1364 = vst.msk [vmem:[#allocation6 + $0x148] sm:$0xff] %vm1322, %v1254
        %1365 = vst.msk [vmem:[#allocation6 + $0x150] sm:$0xff] %vm1322, %v1257
        %1366 = vst.msk [vmem:[#allocation6 + $0x158] sm:$0xff] %vm1322, %v1260
        %1367 = vst.msk [vmem:[#allocation6 + $0x160] sm:$0xff] %vm1322, %v1263
        %1368 = vst.msk [vmem:[#allocation6 + $0x168] sm:$0xff] %vm1322, %v1266
        %1369 = vst.msk [vmem:[#allocation6 + $0x170] sm:$0xff] %vm1322, %v1269
        %1370 = vst.msk [vmem:[#allocation6 + $0x178] sm:$0xff] %vm1322, %v1272
        %1371 = vst.msk [vmem:[#allocation6 + $0x180] sm:$0xff] %vm1322, %v1275
        %1372 = vst.msk [vmem:[#allocation6 + $0x188] sm:$0xff] %vm1322, %v1278
        %1373 = vst.msk [vmem:[#allocation6 + $0x190] sm:$0xff] %vm1322, %v1281
        %1374 = vst.msk [vmem:[#allocation6 + $0x198] sm:$0xff] %vm1322, %v1284
        %1375 = vst.msk [vmem:[#allocation6 + $0x1a0] sm:$0xff] %vm1322, %v1287
        %1376 = vst.msk [vmem:[#allocation6 + $0x1a8] sm:$0xff] %vm1322, %v1290
        %1377 = vst.msk [vmem:[#allocation6 + $0x1b0] sm:$0xff] %vm1322, %v1293
        %1378 = vst.msk [vmem:[#allocation6 + $0x1b8] sm:$0xff] %vm1322, %v1296
        %1379 = vst.msk [vmem:[#allocation6 + $0x1c0] sm:$0xff] %vm1322, %v1299
        %1380 = vst.msk [vmem:[#allocation6 + $0x1c8] sm:$0xff] %vm1322, %v1302
        %1381 = vst.msk [vmem:[#allocation6 + $0x1d0] sm:$0xff] %vm1322, %v1305
        %1382 = vst.msk [vmem:[#allocation6 + $0x1d8] sm:$0xff] %vm1322, %v1308
        %1383 = vst.msk [vmem:[#allocation6 + $0x1e0] sm:$0xff] %vm1322, %v1311
        %1384 = vst.msk [vmem:[#allocation6 + $0x1e8] sm:$0xff] %vm1322, %v1314
        %1385 = vst.msk [vmem:[#allocation6 + $0x1f0] sm:$0xff] %vm1322, %v1317
        %1386 = vst.msk [vmem:[#allocation6 + $0x1f8] sm:$0xff] %vm1322, %v1320
        %v1387 = vld [vmem:[#allocation6] sm:$0xff]
        %v1388 = vld [vmem:[#allocation6 + $0x8] sm:$0xff]
        %v1389 = vld [vmem:[#allocation6 + $0x10] sm:$0xff]
        %v1390 = vld [vmem:[#allocation6 + $0x18] sm:$0xff]
        %v1391 = vld [vmem:[#allocation6 + $0x20] sm:$0xff]
        %v1392 = vld [vmem:[#allocation6 + $0x28] sm:$0xff]
        %v1393 = vld [vmem:[#allocation6 + $0x30] sm:$0xff]
        %v1394 = vld [vmem:[#allocation6 + $0x38] sm:$0xff]
        %v1395 = vld [vmem:[#allocation6 + $0x40] sm:$0xff]
        %v1396 = vld [vmem:[#allocation6 + $0x48] sm:$0xff]
        %v1397 = vld [vmem:[#allocation6 + $0x50] sm:$0xff]
        %v1398 = vld [vmem:[#allocation6 + $0x58] sm:$0xff]
        %v1399 = vld [vmem:[#allocation6 + $0x60] sm:$0xff]
        %v1400 = vld [vmem:[#allocation6 + $0x68] sm:$0xff]
        %v1401 = vld [vmem:[#allocation6 + $0x70] sm:$0xff]
        %v1402 = vld [vmem:[#allocation6 + $0x78] sm:$0xff]
        %v1403 = vld [vmem:[#allocation6 + $0x80] sm:$0xff]
        %v1404 = vld [vmem:[#allocation6 + $0x88] sm:$0xff]
        %v1405 = vld [vmem:[#allocation6 + $0x90] sm:$0xff]
        %v1406 = vld [vmem:[#allocation6 + $0x98] sm:$0xff]
        %v1407 = vld [vmem:[#allocation6 + $0xa0] sm:$0xff]
        %v1408 = vld [vmem:[#allocation6 + $0xa8] sm:$0xff]
        %v1409 = vld [vmem:[#allocation6 + $0xb0] sm:$0xff]
        %v1410 = vld [vmem:[#allocation6 + $0xb8] sm:$0xff]
        %v1411 = vld [vmem:[#allocation6 + $0xc0] sm:$0xff]
        %v1412 = vld [vmem:[#allocation6 + $0xc8] sm:$0xff]
        %v1413 = vld [vmem:[#allocation6 + $0xd0] sm:$0xff]
        %v1414 = vld [vmem:[#allocation6 + $0xd8] sm:$0xff]
        %v1415 = vld [vmem:[#allocation6 + $0xe0] sm:$0xff]
        %v1416 = vld [vmem:[#allocation6 + $0xe8] sm:$0xff]
        %v1417 = vld [vmem:[#allocation6 + $0xf0] sm:$0xff]
        %v1418 = vld [vmem:[#allocation6 + $0xf8] sm:$0xff]
        %v1419 = vld [vmem:[#allocation2] sm:$0xff]
        %v1420 = vld [vmem:[#allocation2 + $0x8] sm:$0xff]
        %v1421 = vld [vmem:[#allocation2 + $0x10] sm:$0xff]
        %v1422 = vld [vmem:[#allocation2 + $0x18] sm:$0xff]
        %v1423 = vld [vmem:[#allocation2 + $0x20] sm:$0xff]
        %v1424 = vld [vmem:[#allocation2 + $0x28] sm:$0xff]
        %v1425 = vld [vmem:[#allocation2 + $0x30] sm:$0xff]
        %v1426 = vld [vmem:[#allocation2 + $0x38] sm:$0xff]
        %v1427 = vld [vmem:[#allocation2 + $0x40] sm:$0xff]
        %v1428 = vld [vmem:[#allocation2 + $0x48] sm:$0xff]
        %v1429 = vld [vmem:[#allocation2 + $0x50] sm:$0xff]
        %v1430 = vld [vmem:[#allocation2 + $0x58] sm:$0xff]
        %v1431 = vld [vmem:[#allocation2 + $0x60] sm:$0xff]
        %v1432 = vld [vmem:[#allocation2 + $0x68] sm:$0xff]
        %v1433 = vld [vmem:[#allocation2 + $0x70] sm:$0xff]
        %v1434 = vld [vmem:[#allocation2 + $0x78] sm:$0xff]
        %v1435 = vld [vmem:[#allocation2 + $0x80] sm:$0xff]
        %v1436 = vld [vmem:[#allocation2 + $0x88] sm:$0xff]
        %v1437 = vld [vmem:[#allocation2 + $0x90] sm:$0xff]
        %v1438 = vld [vmem:[#allocation2 + $0x98] sm:$0xff]
        %v1439 = vld [vmem:[#allocation2 + $0xa0] sm:$0xff]
        %v1440 = vld [vmem:[#allocation2 + $0xa8] sm:$0xff]
        %v1441 = vld [vmem:[#allocation2 + $0xb0] sm:$0xff]
        %v1442 = vld [vmem:[#allocation2 + $0xb8] sm:$0xff]
        %v1443 = vld [vmem:[#allocation2 + $0xc0] sm:$0xff]
        %v1444 = vld [vmem:[#allocation2 + $0xc8] sm:$0xff]
        %v1445 = vld [vmem:[#allocation2 + $0xd0] sm:$0xff]
        %v1446 = vld [vmem:[#allocation2 + $0xd8] sm:$0xff]
        %v1447 = vld [vmem:[#allocation2 + $0xe0] sm:$0xff]
        %v1448 = vld [vmem:[#allocation2 + $0xe8] sm:$0xff]
        %v1449 = vld [vmem:[#allocation2 + $0xf0] sm:$0xff]
        %v1450 = vld [vmem:[#allocation2 + $0xf8] sm:$0xff]
        %v1451 = vadd.f32 %v1419, %v1387
        %v1452 = vadd.f32 %v1420, %v1388
        %v1453 = vadd.f32 %v1421, %v1389
        %v1454 = vadd.f32 %v1422, %v1390
        %v1455 = vadd.f32 %v1423, %v1391
        %v1456 = vadd.f32 %v1424, %v1392
        %v1457 = vadd.f32 %v1425, %v1393
        %v1458 = vadd.f32 %v1426, %v1394
        %v1459 = vadd.f32 %v1427, %v1395
        %v1460 = vadd.f32 %v1428, %v1396
        %v1461 = vadd.f32 %v1429, %v1397
        %v1462 = vadd.f32 %v1430, %v1398
        %v1463 = vadd.f32 %v1431, %v1399
        %v1464 = vadd.f32 %v1432, %v1400
        %v1465 = vadd.f32 %v1433, %v1401
        %v1466 = vadd.f32 %v1434, %v1402
        %v1467 = vadd.f32 %v1435, %v1403
        %v1468 = vadd.f32 %v1436, %v1404
        %v1469 = vadd.f32 %v1437, %v1405
        %v1470 = vadd.f32 %v1438, %v1406
        %v1471 = vadd.f32 %v1439, %v1407
        %v1472 = vadd.f32 %v1440, %v1408
        %v1473 = vadd.f32 %v1441, %v1409
        %v1474 = vadd.f32 %v1442, %v1410
        %v1475 = vadd.f32 %v1443, %v1411
        %v1476 = vadd.f32 %v1444, %v1412
        %v1477 = vadd.f32 %v1445, %v1413
        %v1478 = vadd.f32 %v1446, %v1414
        %v1479 = vadd.f32 %v1447, %v1415
        %v1480 = vadd.f32 %v1448, %v1416
        %v1481 = vadd.f32 %v1449, %v1417
        %v1482 = vadd.f32 %v1450, %v1418
        %vm1483 = vcmp.ge.f32.partialorder %v1451, 1.0
        %vm1484 = vcmp.ge.f32.partialorder %v1452, 1.0
        %vm1485 = vcmp.ge.f32.partialorder %v1453, 1.0
        %vm1486 = vcmp.ge.f32.partialorder %v1454, 1.0
        %vm1487 = vcmp.ge.f32.partialorder %v1455, 1.0
        %vm1488 = vcmp.ge.f32.partialorder %v1456, 1.0
        %vm1489 = vcmp.ge.f32.partialorder %v1457, 1.0
        %vm1490 = vcmp.ge.f32.partialorder %v1458, 1.0
        %vm1491 = vcmp.ge.f32.partialorder %v1459, 1.0
        %vm1492 = vcmp.ge.f32.partialorder %v1460, 1.0
        %vm1493 = vcmp.ge.f32.partialorder %v1461, 1.0
        %vm1494 = vcmp.ge.f32.partialorder %v1462, 1.0
        %vm1495 = vcmp.ge.f32.partialorder %v1463, 1.0
        %vm1496 = vcmp.ge.f32.partialorder %v1464, 1.0
        %vm1497 = vcmp.ge.f32.partialorder %v1465, 1.0
        %vm1498 = vcmp.ge.f32.partialorder %v1466, 1.0
        %vm1499 = vcmp.ge.f32.partialorder %v1467, 1.0
        %vm1500 = vcmp.ge.f32.partialorder %v1468, 1.0
        %vm1501 = vcmp.ge.f32.partialorder %v1469, 1.0
        %vm1502 = vcmp.ge.f32.partialorder %v1470, 1.0
        %vm1503 = vcmp.ge.f32.partialorder %v1471, 1.0
        %vm1504 = vcmp.ge.f32.partialorder %v1472, 1.0
        %vm1505 = vcmp.ge.f32.partialorder %v1473, 1.0
        %vm1506 = vcmp.ge.f32.partialorder %v1474, 1.0
        %vm1507 = vcmp.ge.f32.partialorder %v1475, 1.0
        %vm1508 = vcmp.ge.f32.partialorder %v1476, 1.0
        %vm1509 = vcmp.ge.f32.partialorder %v1477, 1.0
        %vm1510 = vcmp.ge.f32.partialorder %v1478, 1.0
        %vm1511 = vcmp.ge.f32.partialorder %v1479, 1.0
        %vm1512 = vcmp.ge.f32.partialorder %v1480, 1.0
        %vm1513 = vcmp.ge.f32.partialorder %v1481, 1.0
        %vm1514 = vcmp.ge.f32.partialorder %v1482, 1.0
        %v1515 = vsel %vm1483, 1, 0
        %v1516 = vsel %vm1484, 1, 0
        %v1517 = vsel %vm1485, 1, 0
        %v1518 = vsel %vm1486, 1, 0
        %v1519 = vsel %vm1487, 1, 0
        %v1520 = vsel %vm1488, 1, 0
        %v1521 = vsel %vm1489, 1, 0
        %v1522 = vsel %vm1490, 1, 0
        %v1523 = vsel %vm1491, 1, 0
        %v1524 = vsel %vm1492, 1, 0
        %v1525 = vsel %vm1493, 1, 0
        %v1526 = vsel %vm1494, 1, 0
        %v1527 = vsel %vm1495, 1, 0
        %v1528 = vsel %vm1496, 1, 0
        %v1529 = vsel %vm1497, 1, 0
        %v1530 = vsel %vm1498, 1, 0
        %v1531 = vsel %vm1499, 1, 0
        %v1532 = vsel %vm1500, 1, 0
        %v1533 = vsel %vm1501, 1, 0
        %v1534 = vsel %vm1502, 1, 0
        %v1535 = vsel %vm1503, 1, 0
        %v1536 = vsel %vm1504, 1, 0
        %v1537 = vsel %vm1505, 1, 0
        %v1538 = vsel %vm1506, 1, 0
        %v1539 = vsel %vm1507, 1, 0
        %v1540 = vsel %vm1508, 1, 0
        %v1541 = vsel %vm1509, 1, 0
        %v1542 = vsel %vm1510, 1, 0
        %v1543 = vsel %vm1511, 1, 0
        %v1544 = vsel %vm1512, 1, 0
        %v1545 = vsel %vm1513, 1, 0
        %v1546 = vsel %vm1514, 1, 0
        %v1547 = vcvt.s32.f32 %v1515
        %v1548 = vcvt.s32.f32 %v1516
        %v1549 = vcvt.s32.f32 %v1517
        %v1550 = vcvt.s32.f32 %v1518
        %v1551 = vcvt.s32.f32 %v1519
        %v1552 = vcvt.s32.f32 %v1520
        %v1553 = vcvt.s32.f32 %v1521
        %v1554 = vcvt.s32.f32 %v1522
        %v1555 = vcvt.s32.f32 %v1523
        %v1556 = vcvt.s32.f32 %v1524
        %v1557 = vcvt.s32.f32 %v1525
        %v1558 = vcvt.s32.f32 %v1526
        %v1559 = vcvt.s32.f32 %v1527
        %v1560 = vcvt.s32.f32 %v1528
        %v1561 = vcvt.s32.f32 %v1529
        %v1562 = vcvt.s32.f32 %v1530
        %v1563 = vcvt.s32.f32 %v1531
        %v1564 = vcvt.s32.f32 %v1532
        %v1565 = vcvt.s32.f32 %v1533
        %v1566 = vcvt.s32.f32 %v1534
        %v1567 = vcvt.s32.f32 %v1535
        %v1568 = vcvt.s32.f32 %v1536
        %v1569 = vcvt.s32.f32 %v1537
        %v1570 = vcvt.s32.f32 %v1538
        %v1571 = vcvt.s32.f32 %v1539
        %v1572 = vcvt.s32.f32 %v1540
        %v1573 = vcvt.s32.f32 %v1541
        %v1574 = vcvt.s32.f32 %v1542
        %v1575 = vcvt.s32.f32 %v1543
        %v1576 = vcvt.s32.f32 %v1544
        %v1577 = vcvt.s32.f32 %v1545
        %v1578 = vcvt.s32.f32 %v1546
        %v1579 = vsel %vm1483, 0.0, %v1451
        %v1580 = vsel %vm1484, 0.0, %v1452
        %v1581 = vsel %vm1485, 0.0, %v1453
        %v1582 = vsel %vm1486, 0.0, %v1454
        %v1583 = vsel %vm1487, 0.0, %v1455
        %v1584 = vsel %vm1488, 0.0, %v1456
        %v1585 = vsel %vm1489, 0.0, %v1457
        %v1586 = vsel %vm1490, 0.0, %v1458
        %v1587 = vsel %vm1491, 0.0, %v1459
        %v1588 = vsel %vm1492, 0.0, %v1460
        %v1589 = vsel %vm1493, 0.0, %v1461
        %v1590 = vsel %vm1494, 0.0, %v1462
        %v1591 = vsel %vm1495, 0.0, %v1463
        %v1592 = vsel %vm1496, 0.0, %v1464
        %v1593 = vsel %vm1497, 0.0, %v1465
        %v1594 = vsel %vm1498, 0.0, %v1466
        %v1595 = vsel %vm1499, 0.0, %v1467
        %v1596 = vsel %vm1500, 0.0, %v1468
        %v1597 = vsel %vm1501, 0.0, %v1469
        %v1598 = vsel %vm1502, 0.0, %v1470
        %v1599 = vsel %vm1503, 0.0, %v1471
        %v1600 = vsel %vm1504, 0.0, %v1472
        %v1601 = vsel %vm1505, 0.0, %v1473
        %v1602 = vsel %vm1506, 0.0, %v1474
        %v1603 = vsel %vm1507, 0.0, %v1475
        %v1604 = vsel %vm1508, 0.0, %v1476
        %v1605 = vsel %vm1509, 0.0, %v1477
        %v1606 = vsel %vm1510, 0.0, %v1478
        %v1607 = vsel %vm1511, 0.0, %v1479
        %v1608 = vsel %vm1512, 0.0, %v1480
        %v1609 = vsel %vm1513, 0.0, %v1481
        %v1610 = vsel %vm1514, 0.0, %v1482
        %1611 = vst.msk [vmem:[#allocation2] sm:$0xff] %vm1322, %v1579
        %1612 = vst.msk [vmem:[#allocation2 + $0x8] sm:$0xff] %vm1322, %v1580
        %1613 = vst.msk [vmem:[#allocation2 + $0x10] sm:$0xff] %vm1322, %v1581
        %1614 = vst.msk [vmem:[#allocation2 + $0x18] sm:$0xff] %vm1322, %v1582
        %1615 = vst.msk [vmem:[#allocation2 + $0x20] sm:$0xff] %vm1322, %v1583
        %1616 = vst.msk [vmem:[#allocation2 + $0x28] sm:$0xff] %vm1322, %v1584
        %1617 = vst.msk [vmem:[#allocation2 + $0x30] sm:$0xff] %vm1322, %v1585
        %1618 = vst.msk [vmem:[#allocation2 + $0x38] sm:$0xff] %vm1322, %v1586
        %1619 = vst.msk [vmem:[#allocation2 + $0x40] sm:$0xff] %vm1322, %v1587
        %1620 = vst.msk [vmem:[#allocation2 + $0x48] sm:$0xff] %vm1322, %v1588
        %1621 = vst.msk [vmem:[#allocation2 + $0x50] sm:$0xff] %vm1322, %v1589
        %1622 = vst.msk [vmem:[#allocation2 + $0x58] sm:$0xff] %vm1322, %v1590
        %1623 = vst.msk [vmem:[#allocation2 + $0x60] sm:$0xff] %vm1322, %v1591
        %1624 = vst.msk [vmem:[#allocation2 + $0x68] sm:$0xff] %vm1322, %v1592
        %1625 = vst.msk [vmem:[#allocation2 + $0x70] sm:$0xff] %vm1322, %v1593
        %1626 = vst.msk [vmem:[#allocation2 + $0x78] sm:$0xff] %vm1322, %v1594
        %1627 = vst.msk [vmem:[#allocation2 + $0x80] sm:$0xff] %vm1322, %v1595
        %1628 = vst.msk [vmem:[#allocation2 + $0x88] sm:$0xff] %vm1322, %v1596
        %1629 = vst.msk [vmem:[#allocation2 + $0x90] sm:$0xff] %vm1322, %v1597
        %1630 = vst.msk [vmem:[#allocation2 + $0x98] sm:$0xff] %vm1322, %v1598
        %1631 = vst.msk [vmem:[#allocation2 + $0xa0] sm:$0xff] %vm1322, %v1599
        %1632 = vst.msk [vmem:[#allocation2 + $0xa8] sm:$0xff] %vm1322, %v1600
        %1633 = vst.msk [vmem:[#allocation2 + $0xb0] sm:$0xff] %vm1322, %v1601
        %1634 = vst.msk [vmem:[#allocation2 + $0xb8] sm:$0xff] %vm1322, %v1602
        %1635 = vst.msk [vmem:[#allocation2 + $0xc0] sm:$0xff] %vm1322, %v1603
        %1636 = vst.msk [vmem:[#allocation2 + $0xc8] sm:$0xff] %vm1322, %v1604
        %1637 = vst.msk [vmem:[#allocation2 + $0xd0] sm:$0xff] %vm1322, %v1605
        %1638 = vst.msk [vmem:[#allocation2 + $0xd8] sm:$0xff] %vm1322, %v1606
        %1639 = vst.msk [vmem:[#allocation2 + $0xe0] sm:$0xff] %vm1322, %v1607
        %1640 = vst.msk [vmem:[#allocation2 + $0xe8] sm:$0xff] %vm1322, %v1608
        %1641 = vst.msk [vmem:[#allocation2 + $0xf0] sm:$0xff] %vm1322, %v1609
        %1642 = vst.msk [vmem:[#allocation2 + $0xf8] sm:$0xff] %vm1322, %v1610
        %s1643 = scalar_lea.vmem [#allocation5], 16
        %1644 = vst.msk [vmem:[%s1643 + $0x1] sm:$0xff] %vm1322, %v1547
        %1645 = vst.msk [vmem:[%s1643 + $0x11] sm:$0xff] %vm1322, %v1548
        %1646 = vst.msk [vmem:[%s1643 + $0x21] sm:$0xff] %vm1322, %v1549
        %1647 = vst.msk [vmem:[%s1643 + $0x31] sm:$0xff] %vm1322, %v1550
        %1648 = vst.msk [vmem:[%s1643 + $0x41] sm:$0xff] %vm1322, %v1551
        %1649 = vst.msk [vmem:[%s1643 + $0x51] sm:$0xff] %vm1322, %v1552
        %1650 = vst.msk [vmem:[%s1643 + $0x61] sm:$0xff] %vm1322, %v1553
        %1651 = vst.msk [vmem:[%s1643 + $0x71] sm:$0xff] %vm1322, %v1554
        %1652 = vst.msk [vmem:[%s1643 + $0xa1] sm:$0xff] %vm1322, %v1555
        %1653 = vst.msk [vmem:[%s1643 + $0xb1] sm:$0xff] %vm1322, %v1556
        %1654 = vst.msk [vmem:[%s1643 + $0xc1] sm:$0xff] %vm1322, %v1557
        %1655 = vst.msk [vmem:[%s1643 + $0xd1] sm:$0xff] %vm1322, %v1558
        %1656 = vst.msk [vmem:[%s1643 + $0xe1] sm:$0xff] %vm1322, %v1559
        %1657 = vst.msk [vmem:[%s1643 + $0xf1] sm:$0xff] %vm1322, %v1560
        %1658 = vst.msk [vmem:[%s1643 + $0x101] sm:$0xff] %vm1322, %v1561
        %1659 = vst.msk [vmem:[%s1643 + $0x111] sm:$0xff] %vm1322, %v1562
        %1660 = vst.msk [vmem:[%s1643 + $0x141] sm:$0xff] %vm1322, %v1563
        %1661 = vst.msk [vmem:[%s1643 + $0x151] sm:$0xff] %vm1322, %v1564
        %1662 = vst.msk [vmem:[%s1643 + $0x161] sm:$0xff] %vm1322, %v1565
        %1663 = vst.msk [vmem:[%s1643 + $0x171] sm:$0xff] %vm1322, %v1566
        %1664 = vst.msk [vmem:[%s1643 + $0x181] sm:$0xff] %vm1322, %v1567
        %1665 = vst.msk [vmem:[%s1643 + $0x191] sm:$0xff] %vm1322, %v1568
        %1666 = vst.msk [vmem:[%s1643 + $0x1a1] sm:$0xff] %vm1322, %v1569
        %1667 = vst.msk [vmem:[%s1643 + $0x1b1] sm:$0xff] %vm1322, %v1570
        %1668 = vst.msk [vmem:[%s1643 + $0x1e1] sm:$0xff] %vm1322, %v1571
        %1669 = vst.msk [vmem:[%s1643 + $0x1f1] sm:$0xff] %vm1322, %v1572
        %1670 = vst.msk [vmem:[%s1643 + $0x201] sm:$0xff] %vm1322, %v1573
        %1671 = vst.msk [vmem:[%s1643 + $0x211] sm:$0xff] %vm1322, %v1574
        %1672 = vst.msk [vmem:[%s1643 + $0x221] sm:$0xff] %vm1322, %v1575
        %1673 = vst.msk [vmem:[%s1643 + $0x231] sm:$0xff] %vm1322, %v1576
        %1674 = vst.msk [vmem:[%s1643 + $0x241] sm:$0xff] %vm1322, %v1577
        %1675 = vst.msk [vmem:[%s1643 + $0x251] sm:$0xff] %vm1322, %v1578
        %v1677 = vperm.slane %v963, 0
        %v1679 = vld [vmem:[#allocation5] sm:$0xff]
        %v1680 = vld [vmem:[#allocation5 + $0x10] sm:$0xff]
        %v1681 = vld [vmem:[#allocation5 + $0x20] sm:$0xff]
        %v1682 = vld [vmem:[#allocation5 + $0x30] sm:$0xff]
        %v1683 = vld [vmem:[#allocation5 + $0x40] sm:$0xff]
        %v1684 = vld [vmem:[#allocation5 + $0x50] sm:$0xff]
        %v1685 = vld [vmem:[#allocation5 + $0x60] sm:$0xff]
        %v1686 = vld [vmem:[#allocation5 + $0x70] sm:$0xff]
        %v1687 = vld [vmem:[#allocation5 + $0xa0] sm:$0xff]
        %v1688 = vld [vmem:[#allocation5 + $0xb0] sm:$0xff]
        %v1689 = vld [vmem:[#allocation5 + $0xc0] sm:$0xff]
        %v1690 = vld [vmem:[#allocation5 + $0xd0] sm:$0xff]
        %v1691 = vld [vmem:[#allocation5 + $0xe0] sm:$0xff]
        %v1692 = vld [vmem:[#allocation5 + $0xf0] sm:$0xff]
        %v1693 = vld [vmem:[#allocation5 + $0x100] sm:$0xff]
        %v1694 = vld [vmem:[#allocation5 + $0x110] sm:$0xff]
        %v1695 = vld [vmem:[#allocation5 + $0x140] sm:$0xff]
        %v1696 = vld [vmem:[#allocation5 + $0x150] sm:$0xff]
        %v1697 = vld [vmem:[#allocation5 + $0x160] sm:$0xff]
        %v1698 = vld [vmem:[#allocation5 + $0x170] sm:$0xff]
        %v1699 = vld [vmem:[#allocation5 + $0x180] sm:$0xff]
        %v1700 = vld [vmem:[#allocation5 + $0x190] sm:$0xff]
        %v1701 = vld [vmem:[#allocation5 + $0x1a0] sm:$0xff]
        %v1702 = vld [vmem:[#allocation5 + $0x1b0] sm:$0xff]
        %v1703 = vld [vmem:[#allocation5 + $0x1e0] sm:$0xff]
        %v1704 = vld [vmem:[#allocation5 + $0x1f0] sm:$0xff]
        %v1705 = vld [vmem:[#allocation5 + $0x200] sm:$0xff]
        %v1706 = vld [vmem:[#allocation5 + $0x210] sm:$0xff]
        %v1707 = vld [vmem:[#allocation5 + $0x220] sm:$0xff]
        %v1708 = vld [vmem:[#allocation5 + $0x230] sm:$0xff]
        %v1709 = vld [vmem:[#allocation5 + $0x240] sm:$0xff]
        %v1710 = vld [vmem:[#allocation5 + $0x250] sm:$0xff]
        %v1712 = vsel %vm1322, %v1679, 0
        %v1715 = vsel %vm1322, %v1680, 0
        %v1718 = vsel %vm1322, %v1681, 0
        %v1721 = vsel %vm1322, %v1682, 0
        %v1724 = vsel %vm1322, %v1683, 0
        %v1727 = vsel %vm1322, %v1684, 0
        %v1730 = vsel %vm1322, %v1685, 0
        %v1733 = vsel %vm1322, %v1686, 0
        %v1736 = vsel %vm1322, %v1687, 0
        %v1739 = vsel %vm1322, %v1688, 0
        %v1742 = vsel %vm1322, %v1689, 0
        %v1745 = vsel %vm1322, %v1690, 0
        %v1748 = vsel %vm1322, %v1691, 0
        %v1751 = vsel %vm1322, %v1692, 0
        %v1754 = vsel %vm1322, %v1693, 0
        %v1757 = vsel %vm1322, %v1694, 0
        %v1760 = vsel %vm1322, %v1695, 0
        %v1763 = vsel %vm1322, %v1696, 0
        %v1766 = vsel %vm1322, %v1697, 0
        %v1769 = vsel %vm1322, %v1698, 0
        %v1772 = vsel %vm1322, %v1699, 0
        %v1775 = vsel %vm1322, %v1700, 0
        %v1778 = vsel %vm1322, %v1701, 0
        %v1781 = vsel %vm1322, %v1702, 0
        %v1784 = vsel %vm1322, %v1703, 0
        %v1787 = vsel %vm1322, %v1704, 0
        %v1790 = vsel %vm1322, %v1705, 0
        %v1793 = vsel %vm1322, %v1706, 0
        %v1796 = vsel %vm1322, %v1707, 0
        %v1799 = vsel %vm1322, %v1708, 0
        %v1802 = vsel %vm1322, %v1709, 0
        %v1805 = vsel %vm1322, %v1710, 0
        %1807 = vmatpush.msra.mxu0 0.0
        %1808 = vmatpush.msra.mxu0 0.0
        %1809 = vmatpush.msra.mxu0 0.0
        %1810 = vmatpush.msra.mxu0 0.0
        %1811 = vmatpush.msra.mxu0 0.0
        %1812 = vmatpush.msra.mxu0 0.0
        %1813 = vmatpush.msra.mxu0 0.0
        %1814 = vmatpush.msra.mxu0 0.0
        %1815 = vmatpush.msra.mxu0 0.0
        %1816 = vmatpush.msra.mxu0 0.0
        %1817 = vmatpush.msra.mxu0 0.0
        %1818 = vmatpush.msra.mxu0 0.0
        %1819 = vmatpush.msra.mxu0 %v926
        %1820 = vmatpush.msra.mxu0 %v925
        %1821 = vmatpush.msra.mxu0 %v924
        %1822 = vmatpush.msra.mxu0 %v923
        %1823 = vmatmul.f32.gmra.mxu0 %v1712
        %v1824 = vpop.f32.mrf.mxu0
        %v1825 = vadd.f32 0.0, %v1824
        %1826 = vmatmul.f32.gmra.mxu0 %v1715
        %v1827 = vpop.f32.mrf.mxu0
        %v1828 = vadd.f32 0.0, %v1827
        %1829 = vmatmul.f32.gmra.mxu0 %v1718
        %v1830 = vpop.f32.mrf.mxu0
        %v1831 = vadd.f32 0.0, %v1830
        %1832 = vmatmul.f32.gmra.mxu0 %v1721
        %v1833 = vpop.f32.mrf.mxu0
        %v1834 = vadd.f32 0.0, %v1833
        %1835 = vmatmul.f32.gmra.mxu0 %v1724
        %v1836 = vpop.f32.mrf.mxu0
        %v1837 = vadd.f32 0.0, %v1836
        %1838 = vmatmul.f32.gmra.mxu0 %v1727
        %v1839 = vpop.f32.mrf.mxu0
        %v1840 = vadd.f32 0.0, %v1839
        %1841 = vmatmul.f32.gmra.mxu0 %v1730
        %v1842 = vpop.f32.mrf.mxu0
        %v1843 = vadd.f32 0.0, %v1842
        %1844 = vmatmul.f32.gmra.mxu0 %v1733
        %v1845 = vpop.f32.mrf.mxu0
        %v1846 = vadd.f32 0.0, %v1845
        %1847 = vmatmul.f32.gmra.mxu0 %v1736
        %v1848 = vpop.f32.mrf.mxu0
        %v1849 = vadd.f32 0.0, %v1848
        %1850 = vmatmul.f32.gmra.mxu0 %v1739
        %v1851 = vpop.f32.mrf.mxu0
        %v1852 = vadd.f32 0.0, %v1851
        %1853 = vmatmul.f32.gmra.mxu0 %v1742
        %v1854 = vpop.f32.mrf.mxu0
        %v1855 = vadd.f32 0.0, %v1854
        %1856 = vmatmul.f32.gmra.mxu0 %v1745
        %v1857 = vpop.f32.mrf.mxu0
        %v1858 = vadd.f32 0.0, %v1857
        %1859 = vmatmul.f32.gmra.mxu0 %v1748
        %v1860 = vpop.f32.mrf.mxu0
        %v1861 = vadd.f32 0.0, %v1860
        %1862 = vmatmul.f32.gmra.mxu0 %v1751
        %v1863 = vpop.f32.mrf.mxu0
        %v1864 = vadd.f32 0.0, %v1863
        %1865 = vmatmul.f32.gmra.mxu0 %v1754
        %v1866 = vpop.f32.mrf.mxu0
        %v1867 = vadd.f32 0.0, %v1866
        %1868 = vmatmul.f32.gmra.mxu0 %v1757
        %v1869 = vpop.f32.mrf.mxu0
        %v1870 = vadd.f32 0.0, %v1869
        %1871 = vmatmul.f32.gmra.mxu0 %v1760
        %v1872 = vpop.f32.mrf.mxu0
        %v1873 = vadd.f32 0.0, %v1872
        %1874 = vmatmul.f32.gmra.mxu0 %v1763
        %v1875 = vpop.f32.mrf.mxu0
        %v1876 = vadd.f32 0.0, %v1875
        %1877 = vmatmul.f32.gmra.mxu0 %v1766
        %v1878 = vpop.f32.mrf.mxu0
        %v1879 = vadd.f32 0.0, %v1878
        %1880 = vmatmul.f32.gmra.mxu0 %v1769
        %v1881 = vpop.f32.mrf.mxu0
        %v1882 = vadd.f32 0.0, %v1881
        %1883 = vmatmul.f32.gmra.mxu0 %v1772
        %v1884 = vpop.f32.mrf.mxu0
        %v1885 = vadd.f32 0.0, %v1884
        %1886 = vmatmul.f32.gmra.mxu0 %v1775
        %v1887 = vpop.f32.mrf.mxu0
        %v1888 = vadd.f32 0.0, %v1887
        %1889 = vmatmul.f32.gmra.mxu0 %v1778
        %v1890 = vpop.f32.mrf.mxu0
        %v1891 = vadd.f32 0.0, %v1890
        %1892 = vmatmul.f32.gmra.mxu0 %v1781
        %v1893 = vpop.f32.mrf.mxu0
        %v1894 = vadd.f32 0.0, %v1893
        %1895 = vmatmul.f32.gmra.mxu0 %v1784
        %v1896 = vpop.f32.mrf.mxu0
        %v1897 = vadd.f32 0.0, %v1896
        %1898 = vmatmul.f32.gmra.mxu0 %v1787
        %v1899 = vpop.f32.mrf.mxu0
        %v1900 = vadd.f32 0.0, %v1899
        %1901 = vmatmul.f32.gmra.mxu0 %v1790
        %v1902 = vpop.f32.mrf.mxu0
        %v1903 = vadd.f32 0.0, %v1902
        %1904 = vmatmul.f32.gmra.mxu0 %v1793
        %v1905 = vpop.f32.mrf.mxu0
        %v1906 = vadd.f32 0.0, %v1905
        %1907 = vmatmul.f32.gmra.mxu0 %v1796
        %v1908 = vpop.f32.mrf.mxu0
        %v1909 = vadd.f32 0.0, %v1908
        %1910 = vmatmul.f32.gmra.mxu0 %v1799
        %v1911 = vpop.f32.mrf.mxu0
        %v1912 = vadd.f32 0.0, %v1911
        %1913 = vmatmul.f32.gmra.mxu0 %v1802
        %v1914 = vpop.f32.mrf.mxu0
        %v1915 = vadd.f32 0.0, %v1914
        %1916 = vmatmul.f32.gmra.mxu0 %v1805
        %v1917 = vpop.f32.mrf.mxu0
        %v1918 = vadd.f32 0.0, %v1917
        %1919 = vdwg.mxu0
        %v1920 = vadd.f32 %v1677, %v1825
        %v1921 = vadd.f32 %v1677, %v1828
        %v1922 = vadd.f32 %v1677, %v1831
        %v1923 = vadd.f32 %v1677, %v1834
        %v1924 = vadd.f32 %v1677, %v1837
        %v1925 = vadd.f32 %v1677, %v1840
        %v1926 = vadd.f32 %v1677, %v1843
        %v1927 = vadd.f32 %v1677, %v1846
        %v1928 = vadd.f32 %v1677, %v1849
        %v1929 = vadd.f32 %v1677, %v1852
        %v1930 = vadd.f32 %v1677, %v1855
        %v1931 = vadd.f32 %v1677, %v1858
        %v1932 = vadd.f32 %v1677, %v1861
        %v1933 = vadd.f32 %v1677, %v1864
        %v1934 = vadd.f32 %v1677, %v1867
        %v1935 = vadd.f32 %v1677, %v1870
        %v1936 = vadd.f32 %v1677, %v1873
        %v1937 = vadd.f32 %v1677, %v1876
        %v1938 = vadd.f32 %v1677, %v1879
        %v1939 = vadd.f32 %v1677, %v1882
        %v1940 = vadd.f32 %v1677, %v1885
        %v1941 = vadd.f32 %v1677, %v1888
        %v1942 = vadd.f32 %v1677, %v1891
        %v1943 = vadd.f32 %v1677, %v1894
        %v1944 = vadd.f32 %v1677, %v1897
        %v1945 = vadd.f32 %v1677, %v1900
        %v1946 = vadd.f32 %v1677, %v1903
        %v1947 = vadd.f32 %v1677, %v1906
        %v1948 = vadd.f32 %v1677, %v1909
        %v1949 = vadd.f32 %v1677, %v1912
        %v1950 = vadd.f32 %v1677, %v1915
        %v1951 = vadd.f32 %v1677, %v1918
        %v1952 = vld [vmem:[#allocation5 + $0x1] sm:$0xff]
        %v1953 = vld [vmem:[#allocation5 + $0x11] sm:$0xff]
        %v1954 = vld [vmem:[#allocation5 + $0x21] sm:$0xff]
        %v1955 = vld [vmem:[#allocation5 + $0x31] sm:$0xff]
        %v1956 = vld [vmem:[#allocation5 + $0x41] sm:$0xff]
        %v1957 = vld [vmem:[#allocation5 + $0x51] sm:$0xff]
        %v1958 = vld [vmem:[#allocation5 + $0x61] sm:$0xff]
        %v1959 = vld [vmem:[#allocation5 + $0x71] sm:$0xff]
        %v1960 = vld [vmem:[#allocation5 + $0xa1] sm:$0xff]
        %v1961 = vld [vmem:[#allocation5 + $0xb1] sm:$0xff]
        %v1962 = vld [vmem:[#allocation5 + $0xc1] sm:$0xff]
        %v1963 = vld [vmem:[#allocation5 + $0xd1] sm:$0xff]
        %v1964 = vld [vmem:[#allocation5 + $0xe1] sm:$0xff]
        %v1965 = vld [vmem:[#allocation5 + $0xf1] sm:$0xff]
        %v1966 = vld [vmem:[#allocation5 + $0x101] sm:$0xff]
        %v1967 = vld [vmem:[#allocation5 + $0x111] sm:$0xff]
        %v1968 = vld [vmem:[#allocation5 + $0x141] sm:$0xff]
        %v1969 = vld [vmem:[#allocation5 + $0x151] sm:$0xff]
        %v1970 = vld [vmem:[#allocation5 + $0x161] sm:$0xff]
        %v1971 = vld [vmem:[#allocation5 + $0x171] sm:$0xff]
        %v1972 = vld [vmem:[#allocation5 + $0x181] sm:$0xff]
        %v1973 = vld [vmem:[#allocation5 + $0x191] sm:$0xff]
        %v1974 = vld [vmem:[#allocation5 + $0x1a1] sm:$0xff]
        %v1975 = vld [vmem:[#allocation5 + $0x1b1] sm:$0xff]
        %v1976 = vld [vmem:[#allocation5 + $0x1e1] sm:$0xff]
        %v1977 = vld [vmem:[#allocation5 + $0x1f1] sm:$0xff]
        %v1978 = vld [vmem:[#allocation5 + $0x201] sm:$0xff]
        %v1979 = vld [vmem:[#allocation5 + $0x211] sm:$0xff]
        %v1980 = vld [vmem:[#allocation5 + $0x221] sm:$0xff]
        %v1981 = vld [vmem:[#allocation5 + $0x231] sm:$0xff]
        %v1982 = vld [vmem:[#allocation5 + $0x241] sm:$0xff]
        %v1983 = vld [vmem:[#allocation5 + $0x251] sm:$0xff]
        %v1985 = vsel %vm1322, %v1952, 0
        %v1988 = vsel %vm1322, %v1953, 0
        %v1991 = vsel %vm1322, %v1954, 0
        %v1994 = vsel %vm1322, %v1955, 0
        %v1997 = vsel %vm1322, %v1956, 0
        %v2000 = vsel %vm1322, %v1957, 0
        %v2003 = vsel %vm1322, %v1958, 0
        %v2006 = vsel %vm1322, %v1959, 0
        %v2009 = vsel %vm1322, %v1960, 0
        %v2012 = vsel %vm1322, %v1961, 0
        %v2015 = vsel %vm1322, %v1962, 0
        %v2018 = vsel %vm1322, %v1963, 0
        %v2021 = vsel %vm1322, %v1964, 0
        %v2024 = vsel %vm1322, %v1965, 0
        %v2027 = vsel %vm1322, %v1966, 0
        %v2030 = vsel %vm1322, %v1967, 0
        %v2033 = vsel %vm1322, %v1968, 0
        %v2036 = vsel %vm1322, %v1969, 0
        %v2039 = vsel %vm1322, %v1970, 0
        %v2042 = vsel %vm1322, %v1971, 0
        %v2045 = vsel %vm1322, %v1972, 0
        %v2048 = vsel %vm1322, %v1973, 0
        %v2051 = vsel %vm1322, %v1974, 0
        %v2054 = vsel %vm1322, %v1975, 0
        %v2057 = vsel %vm1322, %v1976, 0
        %v2060 = vsel %vm1322, %v1977, 0
        %v2063 = vsel %vm1322, %v1978, 0
        %v2066 = vsel %vm1322, %v1979, 0
        %v2069 = vsel %vm1322, %v1980, 0
        %v2072 = vsel %vm1322, %v1981, 0
        %v2075 = vsel %vm1322, %v1982, 0
        %v2078 = vsel %vm1322, %v1983, 0
        %2080 = vmatpush.msra.mxu0 0.0
        %2081 = vmatpush.msra.mxu0 0.0
        %2082 = vmatpush.msra.mxu0 0.0
        %2083 = vmatpush.msra.mxu0 0.0
        %2084 = vmatpush.msra.mxu0 0.0
        %2085 = vmatpush.msra.mxu0 0.0
        %2086 = vmatpush.msra.mxu0 0.0
        %2087 = vmatpush.msra.mxu0 0.0
        %2088 = vmatpush.msra.mxu0 0.0
        %2089 = vmatpush.msra.mxu0 0.0
        %2090 = vmatpush.msra.mxu0 0.0
        %2091 = vmatpush.msra.mxu0 0.0
        %2092 = vmatpush.msra.mxu0 %v930
        %2093 = vmatpush.msra.mxu0 %v929
        %2094 = vmatpush.msra.mxu0 %v928
        %2095 = vmatpush.msra.mxu0 %v927
        %2096 = vmatmul.f32.gmra.mxu0 %v1985
        %v2097 = vpop.f32.mrf.mxu0
        %v2098 = vadd.f32 0.0, %v2097
        %2099 = vmatmul.f32.gmra.mxu0 %v1988
        %v2100 = vpop.f32.mrf.mxu0
        %v2101 = vadd.f32 0.0, %v2100
        %2102 = vmatmul.f32.gmra.mxu0 %v1991
        %v2103 = vpop.f32.mrf.mxu0
        %v2104 = vadd.f32 0.0, %v2103
        %2105 = vmatmul.f32.gmra.mxu0 %v1994
        %v2106 = vpop.f32.mrf.mxu0
        %v2107 = vadd.f32 0.0, %v2106
        %2108 = vmatmul.f32.gmra.mxu0 %v1997
        %v2109 = vpop.f32.mrf.mxu0
        %v2110 = vadd.f32 0.0, %v2109
        %2111 = vmatmul.f32.gmra.mxu0 %v2000
        %v2112 = vpop.f32.mrf.mxu0
        %v2113 = vadd.f32 0.0, %v2112
        %2114 = vmatmul.f32.gmra.mxu0 %v2003
        %v2115 = vpop.f32.mrf.mxu0
        %v2116 = vadd.f32 0.0, %v2115
        %2117 = vmatmul.f32.gmra.mxu0 %v2006
        %v2118 = vpop.f32.mrf.mxu0
        %v2119 = vadd.f32 0.0, %v2118
        %2120 = vmatmul.f32.gmra.mxu0 %v2009
        %v2121 = vpop.f32.mrf.mxu0
        %v2122 = vadd.f32 0.0, %v2121
        %2123 = vmatmul.f32.gmra.mxu0 %v2012
        %v2124 = vpop.f32.mrf.mxu0
        %v2125 = vadd.f32 0.0, %v2124
        %2126 = vmatmul.f32.gmra.mxu0 %v2015
        %v2127 = vpop.f32.mrf.mxu0
        %v2128 = vadd.f32 0.0, %v2127
        %2129 = vmatmul.f32.gmra.mxu0 %v2018
        %v2130 = vpop.f32.mrf.mxu0
        %v2131 = vadd.f32 0.0, %v2130
        %2132 = vmatmul.f32.gmra.mxu0 %v2021
        %v2133 = vpop.f32.mrf.mxu0
        %v2134 = vadd.f32 0.0, %v2133
        %2135 = vmatmul.f32.gmra.mxu0 %v2024
        %v2136 = vpop.f32.mrf.mxu0
        %v2137 = vadd.f32 0.0, %v2136
        %2138 = vmatmul.f32.gmra.mxu0 %v2027
        %v2139 = vpop.f32.mrf.mxu0
        %v2140 = vadd.f32 0.0, %v2139
        %2141 = vmatmul.f32.gmra.mxu0 %v2030
        %v2142 = vpop.f32.mrf.mxu0
        %v2143 = vadd.f32 0.0, %v2142
        %2144 = vmatmul.f32.gmra.mxu0 %v2033
        %v2145 = vpop.f32.mrf.mxu0
        %v2146 = vadd.f32 0.0, %v2145
        %2147 = vmatmul.f32.gmra.mxu0 %v2036
        %v2148 = vpop.f32.mrf.mxu0
        %v2149 = vadd.f32 0.0, %v2148
        %2150 = vmatmul.f32.gmra.mxu0 %v2039
        %v2151 = vpop.f32.mrf.mxu0
        %v2152 = vadd.f32 0.0, %v2151
        %2153 = vmatmul.f32.gmra.mxu0 %v2042
        %v2154 = vpop.f32.mrf.mxu0
        %v2155 = vadd.f32 0.0, %v2154
        %2156 = vmatmul.f32.gmra.mxu0 %v2045
        %v2157 = vpop.f32.mrf.mxu0
        %v2158 = vadd.f32 0.0, %v2157
        %2159 = vmatmul.f32.gmra.mxu0 %v2048
        %v2160 = vpop.f32.mrf.mxu0
        %v2161 = vadd.f32 0.0, %v2160
        %2162 = vmatmul.f32.gmra.mxu0 %v2051
        %v2163 = vpop.f32.mrf.mxu0
        %v2164 = vadd.f32 0.0, %v2163
        %2165 = vmatmul.f32.gmra.mxu0 %v2054
        %v2166 = vpop.f32.mrf.mxu0
        %v2167 = vadd.f32 0.0, %v2166
        %2168 = vmatmul.f32.gmra.mxu0 %v2057
        %v2169 = vpop.f32.mrf.mxu0
        %v2170 = vadd.f32 0.0, %v2169
        %2171 = vmatmul.f32.gmra.mxu0 %v2060
        %v2172 = vpop.f32.mrf.mxu0
        %v2173 = vadd.f32 0.0, %v2172
        %2174 = vmatmul.f32.gmra.mxu0 %v2063
        %v2175 = vpop.f32.mrf.mxu0
        %v2176 = vadd.f32 0.0, %v2175
        %2177 = vmatmul.f32.gmra.mxu0 %v2066
        %v2178 = vpop.f32.mrf.mxu0
        %v2179 = vadd.f32 0.0, %v2178
        %2180 = vmatmul.f32.gmra.mxu0 %v2069
        %v2181 = vpop.f32.mrf.mxu0
        %v2182 = vadd.f32 0.0, %v2181
        %2183 = vmatmul.f32.gmra.mxu0 %v2072
        %v2184 = vpop.f32.mrf.mxu0
        %v2185 = vadd.f32 0.0, %v2184
        %2186 = vmatmul.f32.gmra.mxu0 %v2075
        %v2187 = vpop.f32.mrf.mxu0
        %v2188 = vadd.f32 0.0, %v2187
        %2189 = vmatmul.f32.gmra.mxu0 %v2078
        %v2190 = vpop.f32.mrf.mxu0
        %v2191 = vadd.f32 0.0, %v2190
        %2192 = vdwg.mxu0
        %v2193 = vadd.f32 %v1920, %v2098
        %v2194 = vadd.f32 %v1921, %v2101
        %v2195 = vadd.f32 %v1922, %v2104
        %v2196 = vadd.f32 %v1923, %v2107
        %v2197 = vadd.f32 %v1924, %v2110
        %v2198 = vadd.f32 %v1925, %v2113
        %v2199 = vadd.f32 %v1926, %v2116
        %v2200 = vadd.f32 %v1927, %v2119
        %v2201 = vadd.f32 %v1928, %v2122
        %v2202 = vadd.f32 %v1929, %v2125
        %v2203 = vadd.f32 %v1930, %v2128
        %v2204 = vadd.f32 %v1931, %v2131
        %v2205 = vadd.f32 %v1932, %v2134
        %v2206 = vadd.f32 %v1933, %v2137
        %v2207 = vadd.f32 %v1934, %v2140
        %v2208 = vadd.f32 %v1935, %v2143
        %v2209 = vadd.f32 %v1936, %v2146
        %v2210 = vadd.f32 %v1937, %v2149
        %v2211 = vadd.f32 %v1938, %v2152
        %v2212 = vadd.f32 %v1939, %v2155
        %v2213 = vadd.f32 %v1940, %v2158
        %v2214 = vadd.f32 %v1941, %v2161
        %v2215 = vadd.f32 %v1942, %v2164
        %v2216 = vadd.f32 %v1943, %v2167
        %v2217 = vadd.f32 %v1944, %v2170
        %v2218 = vadd.f32 %v1945, %v2173
        %v2219 = vadd.f32 %v1946, %v2176
        %v2220 = vadd.f32 %v1947, %v2179
        %v2221 = vadd.f32 %v1948, %v2182
        %v2222 = vadd.f32 %v1949, %v2185
        %v2223 = vadd.f32 %v1950, %v2188
        %v2224 = vadd.f32 %v1951, %v2191
        %v2225 = vld [vmem:[#allocation5 + $0x2] sm:$0xff]
        %v2226 = vld [vmem:[#allocation5 + $0x12] sm:$0xff]
        %v2227 = vld [vmem:[#allocation5 + $0x22] sm:$0xff]
        %v2228 = vld [vmem:[#allocation5 + $0x32] sm:$0xff]
        %v2229 = vld [vmem:[#allocation5 + $0x42] sm:$0xff]
        %v2230 = vld [vmem:[#allocation5 + $0x52] sm:$0xff]
        %v2231 = vld [vmem:[#allocation5 + $0x62] sm:$0xff]
        %v2232 = vld [vmem:[#allocation5 + $0x72] sm:$0xff]
        %v2233 = vld [vmem:[#allocation5 + $0xa2] sm:$0xff]
        %v2234 = vld [vmem:[#allocation5 + $0xb2] sm:$0xff]
        %v2235 = vld [vmem:[#allocation5 + $0xc2] sm:$0xff]
        %v2236 = vld [vmem:[#allocation5 + $0xd2] sm:$0xff]
        %v2237 = vld [vmem:[#allocation5 + $0xe2] sm:$0xff]
        %v2238 = vld [vmem:[#allocation5 + $0xf2] sm:$0xff]
        %v2239 = vld [vmem:[#allocation5 + $0x102] sm:$0xff]
        %v2240 = vld [vmem:[#allocation5 + $0x112] sm:$0xff]
        %v2241 = vld [vmem:[#allocation5 + $0x142] sm:$0xff]
        %v2242 = vld [vmem:[#allocation5 + $0x152] sm:$0xff]
        %v2243 = vld [vmem:[#allocation5 + $0x162] sm:$0xff]
        %v2244 = vld [vmem:[#allocation5 + $0x172] sm:$0xff]
        %v2245 = vld [vmem:[#allocation5 + $0x182] sm:$0xff]
        %v2246 = vld [vmem:[#allocation5 + $0x192] sm:$0xff]
        %v2247 = vld [vmem:[#allocation5 + $0x1a2] sm:$0xff]
        %v2248 = vld [vmem:[#allocation5 + $0x1b2] sm:$0xff]
        %v2249 = vld [vmem:[#allocation5 + $0x1e2] sm:$0xff]
        %v2250 = vld [vmem:[#allocation5 + $0x1f2] sm:$0xff]
        %v2251 = vld [vmem:[#allocation5 + $0x202] sm:$0xff]
        %v2252 = vld [vmem:[#allocation5 + $0x212] sm:$0xff]
        %v2253 = vld [vmem:[#allocation5 + $0x222] sm:$0xff]
        %v2254 = vld [vmem:[#allocation5 + $0x232] sm:$0xff]
        %v2255 = vld [vmem:[#allocation5 + $0x242] sm:$0xff]
        %v2256 = vld [vmem:[#allocation5 + $0x252] sm:$0xff]
        %v2258 = vsel %vm1322, %v2225, 0
        %v2261 = vsel %vm1322, %v2226, 0
        %v2264 = vsel %vm1322, %v2227, 0
        %v2267 = vsel %vm1322, %v2228, 0
        %v2270 = vsel %vm1322, %v2229, 0
        %v2273 = vsel %vm1322, %v2230, 0
        %v2276 = vsel %vm1322, %v2231, 0
        %v2279 = vsel %vm1322, %v2232, 0
        %v2282 = vsel %vm1322, %v2233, 0
        %v2285 = vsel %vm1322, %v2234, 0
        %v2288 = vsel %vm1322, %v2235, 0
        %v2291 = vsel %vm1322, %v2236, 0
        %v2294 = vsel %vm1322, %v2237, 0
        %v2297 = vsel %vm1322, %v2238, 0
        %v2300 = vsel %vm1322, %v2239, 0
        %v2303 = vsel %vm1322, %v2240, 0
        %v2306 = vsel %vm1322, %v2241, 0
        %v2309 = vsel %vm1322, %v2242, 0
        %v2312 = vsel %vm1322, %v2243, 0
        %v2315 = vsel %vm1322, %v2244, 0
        %v2318 = vsel %vm1322, %v2245, 0
        %v2321 = vsel %vm1322, %v2246, 0
        %v2324 = vsel %vm1322, %v2247, 0
        %v2327 = vsel %vm1322, %v2248, 0
        %v2330 = vsel %vm1322, %v2249, 0
        %v2333 = vsel %vm1322, %v2250, 0
        %v2336 = vsel %vm1322, %v2251, 0
        %v2339 = vsel %vm1322, %v2252, 0
        %v2342 = vsel %vm1322, %v2253, 0
        %v2345 = vsel %vm1322, %v2254, 0
        %v2348 = vsel %vm1322, %v2255, 0
        %v2351 = vsel %vm1322, %v2256, 0
        %2353 = vmatpush.msra.mxu0 0.0
        %2354 = vmatpush.msra.mxu0 0.0
        %2355 = vmatpush.msra.mxu0 0.0
        %2356 = vmatpush.msra.mxu0 0.0
        %2357 = vmatpush.msra.mxu0 0.0
        %2358 = vmatpush.msra.mxu0 0.0
        %2359 = vmatpush.msra.mxu0 0.0
        %2360 = vmatpush.msra.mxu0 0.0
        %2361 = vmatpush.msra.mxu0 0.0
        %2362 = vmatpush.msra.mxu0 0.0
        %2363 = vmatpush.msra.mxu0 0.0
        %2364 = vmatpush.msra.mxu0 0.0
        %2365 = vmatpush.msra.mxu0 %v934
        %2366 = vmatpush.msra.mxu0 %v933
        %2367 = vmatpush.msra.mxu0 %v932
        %2368 = vmatpush.msra.mxu0 %v931
        %2369 = vmatmul.f32.gmra.mxu0 %v2258
        %v2370 = vpop.f32.mrf.mxu0
        %v2371 = vadd.f32 0.0, %v2370
        %2372 = vmatmul.f32.gmra.mxu0 %v2261
        %v2373 = vpop.f32.mrf.mxu0
        %v2374 = vadd.f32 0.0, %v2373
        %2375 = vmatmul.f32.gmra.mxu0 %v2264
        %v2376 = vpop.f32.mrf.mxu0
        %v2377 = vadd.f32 0.0, %v2376
        %2378 = vmatmul.f32.gmra.mxu0 %v2267
        %v2379 = vpop.f32.mrf.mxu0
        %v2380 = vadd.f32 0.0, %v2379
        %2381 = vmatmul.f32.gmra.mxu0 %v2270
        %v2382 = vpop.f32.mrf.mxu0
        %v2383 = vadd.f32 0.0, %v2382
        %2384 = vmatmul.f32.gmra.mxu0 %v2273
        %v2385 = vpop.f32.mrf.mxu0
        %v2386 = vadd.f32 0.0, %v2385
        %2387 = vmatmul.f32.gmra.mxu0 %v2276
        %v2388 = vpop.f32.mrf.mxu0
        %v2389 = vadd.f32 0.0, %v2388
        %2390 = vmatmul.f32.gmra.mxu0 %v2279
        %v2391 = vpop.f32.mrf.mxu0
        %v2392 = vadd.f32 0.0, %v2391
        %2393 = vmatmul.f32.gmra.mxu0 %v2282
        %v2394 = vpop.f32.mrf.mxu0
        %v2395 = vadd.f32 0.0, %v2394
        %2396 = vmatmul.f32.gmra.mxu0 %v2285
        %v2397 = vpop.f32.mrf.mxu0
        %v2398 = vadd.f32 0.0, %v2397
        %2399 = vmatmul.f32.gmra.mxu0 %v2288
        %v2400 = vpop.f32.mrf.mxu0
        %v2401 = vadd.f32 0.0, %v2400
        %2402 = vmatmul.f32.gmra.mxu0 %v2291
        %v2403 = vpop.f32.mrf.mxu0
        %v2404 = vadd.f32 0.0, %v2403
        %2405 = vmatmul.f32.gmra.mxu0 %v2294
        %v2406 = vpop.f32.mrf.mxu0
        %v2407 = vadd.f32 0.0, %v2406
        %2408 = vmatmul.f32.gmra.mxu0 %v2297
        %v2409 = vpop.f32.mrf.mxu0
        %v2410 = vadd.f32 0.0, %v2409
        %2411 = vmatmul.f32.gmra.mxu0 %v2300
        %v2412 = vpop.f32.mrf.mxu0
        %v2413 = vadd.f32 0.0, %v2412
        %2414 = vmatmul.f32.gmra.mxu0 %v2303
        %v2415 = vpop.f32.mrf.mxu0
        %v2416 = vadd.f32 0.0, %v2415
        %2417 = vmatmul.f32.gmra.mxu0 %v2306
        %v2418 = vpop.f32.mrf.mxu0
        %v2419 = vadd.f32 0.0, %v2418
        %2420 = vmatmul.f32.gmra.mxu0 %v2309
        %v2421 = vpop.f32.mrf.mxu0
        %v2422 = vadd.f32 0.0, %v2421
        %2423 = vmatmul.f32.gmra.mxu0 %v2312
        %v2424 = vpop.f32.mrf.mxu0
        %v2425 = vadd.f32 0.0, %v2424
        %2426 = vmatmul.f32.gmra.mxu0 %v2315
        %v2427 = vpop.f32.mrf.mxu0
        %v2428 = vadd.f32 0.0, %v2427
        %2429 = vmatmul.f32.gmra.mxu0 %v2318
        %v2430 = vpop.f32.mrf.mxu0
        %v2431 = vadd.f32 0.0, %v2430
        %2432 = vmatmul.f32.gmra.mxu0 %v2321
        %v2433 = vpop.f32.mrf.mxu0
        %v2434 = vadd.f32 0.0, %v2433
        %2435 = vmatmul.f32.gmra.mxu0 %v2324
        %v2436 = vpop.f32.mrf.mxu0
        %v2437 = vadd.f32 0.0, %v2436
        %2438 = vmatmul.f32.gmra.mxu0 %v2327
        %v2439 = vpop.f32.mrf.mxu0
        %v2440 = vadd.f32 0.0, %v2439
        %2441 = vmatmul.f32.gmra.mxu0 %v2330
        %v2442 = vpop.f32.mrf.mxu0
        %v2443 = vadd.f32 0.0, %v2442
        %2444 = vmatmul.f32.gmra.mxu0 %v2333
        %v2445 = vpop.f32.mrf.mxu0
        %v2446 = vadd.f32 0.0, %v2445
        %2447 = vmatmul.f32.gmra.mxu0 %v2336
        %v2448 = vpop.f32.mrf.mxu0
        %v2449 = vadd.f32 0.0, %v2448
        %2450 = vmatmul.f32.gmra.mxu0 %v2339
        %v2451 = vpop.f32.mrf.mxu0
        %v2452 = vadd.f32 0.0, %v2451
        %2453 = vmatmul.f32.gmra.mxu0 %v2342
        %v2454 = vpop.f32.mrf.mxu0
        %v2455 = vadd.f32 0.0, %v2454
        %2456 = vmatmul.f32.gmra.mxu0 %v2345
        %v2457 = vpop.f32.mrf.mxu0
        %v2458 = vadd.f32 0.0, %v2457
        %2459 = vmatmul.f32.gmra.mxu0 %v2348
        %v2460 = vpop.f32.mrf.mxu0
        %v2461 = vadd.f32 0.0, %v2460
        %2462 = vmatmul.f32.gmra.mxu0 %v2351
        %v2463 = vpop.f32.mrf.mxu0
        %v2464 = vadd.f32 0.0, %v2463
        %2465 = vdwg.mxu0
        %v2466 = vadd.f32 %v2193, %v2371
        %v2467 = vadd.f32 %v2194, %v2374
        %v2468 = vadd.f32 %v2195, %v2377
        %v2469 = vadd.f32 %v2196, %v2380
        %v2470 = vadd.f32 %v2197, %v2383
        %v2471 = vadd.f32 %v2198, %v2386
        %v2472 = vadd.f32 %v2199, %v2389
        %v2473 = vadd.f32 %v2200, %v2392
        %v2474 = vadd.f32 %v2201, %v2395
        %v2475 = vadd.f32 %v2202, %v2398
        %v2476 = vadd.f32 %v2203, %v2401
        %v2477 = vadd.f32 %v2204, %v2404
        %v2478 = vadd.f32 %v2205, %v2407
        %v2479 = vadd.f32 %v2206, %v2410
        %v2480 = vadd.f32 %v2207, %v2413
        %v2481 = vadd.f32 %v2208, %v2416
        %v2482 = vadd.f32 %v2209, %v2419
        %v2483 = vadd.f32 %v2210, %v2422
        %v2484 = vadd.f32 %v2211, %v2425
        %v2485 = vadd.f32 %v2212, %v2428
        %v2486 = vadd.f32 %v2213, %v2431
        %v2487 = vadd.f32 %v2214, %v2434
        %v2488 = vadd.f32 %v2215, %v2437
        %v2489 = vadd.f32 %v2216, %v2440
        %v2490 = vadd.f32 %v2217, %v2443
        %v2491 = vadd.f32 %v2218, %v2446
        %v2492 = vadd.f32 %v2219, %v2449
        %v2493 = vadd.f32 %v2220, %v2452
        %v2494 = vadd.f32 %v2221, %v2455
        %v2495 = vadd.f32 %v2222, %v2458
        %v2496 = vadd.f32 %v2223, %v2461
        %v2497 = vadd.f32 %v2224, %v2464
        %v2498 = vld [vmem:[%s1643] sm:$0xff]
        %v2499 = vld [vmem:[%s1643 + $0x10] sm:$0xff]
        %v2500 = vld [vmem:[%s1643 + $0x20] sm:$0xff]
        %v2501 = vld [vmem:[%s1643 + $0x30] sm:$0xff]
        %v2502 = vld [vmem:[%s1643 + $0x40] sm:$0xff]
        %v2503 = vld [vmem:[%s1643 + $0x50] sm:$0xff]
        %v2504 = vld [vmem:[%s1643 + $0x60] sm:$0xff]
        %v2505 = vld [vmem:[%s1643 + $0x70] sm:$0xff]
        %v2506 = vld [vmem:[%s1643 + $0xa0] sm:$0xff]
        %v2507 = vld [vmem:[%s1643 + $0xb0] sm:$0xff]
        %v2508 = vld [vmem:[%s1643 + $0xc0] sm:$0xff]
        %v2509 = vld [vmem:[%s1643 + $0xd0] sm:$0xff]
        %v2510 = vld [vmem:[%s1643 + $0xe0] sm:$0xff]
        %v2511 = vld [vmem:[%s1643 + $0xf0] sm:$0xff]
        %v2512 = vld [vmem:[%s1643 + $0x100] sm:$0xff]
        %v2513 = vld [vmem:[%s1643 + $0x110] sm:$0xff]
        %v2514 = vld [vmem:[%s1643 + $0x140] sm:$0xff]
        %v2515 = vld [vmem:[%s1643 + $0x150] sm:$0xff]
        %v2516 = vld [vmem:[%s1643 + $0x160] sm:$0xff]
        %v2517 = vld [vmem:[%s1643 + $0x170] sm:$0xff]
        %v2518 = vld [vmem:[%s1643 + $0x180] sm:$0xff]
        %v2519 = vld [vmem:[%s1643 + $0x190] sm:$0xff]
        %v2520 = vld [vmem:[%s1643 + $0x1a0] sm:$0xff]
        %v2521 = vld [vmem:[%s1643 + $0x1b0] sm:$0xff]
        %v2522 = vld [vmem:[%s1643 + $0x1e0] sm:$0xff]
        %v2523 = vld [vmem:[%s1643 + $0x1f0] sm:$0xff]
        %v2524 = vld [vmem:[%s1643 + $0x200] sm:$0xff]
        %v2525 = vld [vmem:[%s1643 + $0x210] sm:$0xff]
        %v2526 = vld [vmem:[%s1643 + $0x220] sm:$0xff]
        %v2527 = vld [vmem:[%s1643 + $0x230] sm:$0xff]
        %v2528 = vld [vmem:[%s1643 + $0x240] sm:$0xff]
        %v2529 = vld [vmem:[%s1643 + $0x250] sm:$0xff]
        %v2531 = vsel %vm1322, %v2498, 0
        %v2534 = vsel %vm1322, %v2499, 0
        %v2537 = vsel %vm1322, %v2500, 0
        %v2540 = vsel %vm1322, %v2501, 0
        %v2543 = vsel %vm1322, %v2502, 0
        %v2546 = vsel %vm1322, %v2503, 0
        %v2549 = vsel %vm1322, %v2504, 0
        %v2552 = vsel %vm1322, %v2505, 0
        %v2555 = vsel %vm1322, %v2506, 0
        %v2558 = vsel %vm1322, %v2507, 0
        %v2561 = vsel %vm1322, %v2508, 0
        %v2564 = vsel %vm1322, %v2509, 0
        %v2567 = vsel %vm1322, %v2510, 0
        %v2570 = vsel %vm1322, %v2511, 0
        %v2573 = vsel %vm1322, %v2512, 0
        %v2576 = vsel %vm1322, %v2513, 0
        %v2579 = vsel %vm1322, %v2514, 0
        %v2582 = vsel %vm1322, %v2515, 0
        %v2585 = vsel %vm1322, %v2516, 0
        %v2588 = vsel %vm1322, %v2517, 0
        %v2591 = vsel %vm1322, %v2518, 0
        %v2594 = vsel %vm1322, %v2519, 0
        %v2597 = vsel %vm1322, %v2520, 0
        %v2600 = vsel %vm1322, %v2521, 0
        %v2603 = vsel %vm1322, %v2522, 0
        %v2606 = vsel %vm1322, %v2523, 0
        %v2609 = vsel %vm1322, %v2524, 0
        %v2612 = vsel %vm1322, %v2525, 0
        %v2615 = vsel %vm1322, %v2526, 0
        %v2618 = vsel %vm1322, %v2527, 0
        %v2621 = vsel %vm1322, %v2528, 0
        %v2624 = vsel %vm1322, %v2529, 0
        %2626 = vmatpush.msra.mxu0 0.0
        %2627 = vmatpush.msra.mxu0 0.0
        %2628 = vmatpush.msra.mxu0 0.0
        %2629 = vmatpush.msra.mxu0 0.0
        %2630 = vmatpush.msra.mxu0 0.0
        %2631 = vmatpush.msra.mxu0 0.0
        %2632 = vmatpush.msra.mxu0 0.0
        %2633 = vmatpush.msra.mxu0 0.0
        %2634 = vmatpush.msra.mxu0 0.0
        %2635 = vmatpush.msra.mxu0 0.0
        %2636 = vmatpush.msra.mxu0 0.0
        %2637 = vmatpush.msra.mxu0 0.0
        %2638 = vmatpush.msra.mxu0 %v938
        %2639 = vmatpush.msra.mxu0 %v937
        %2640 = vmatpush.msra.mxu0 %v936
        %2641 = vmatpush.msra.mxu0 %v935
        %2642 = vmatmul.f32.gmra.mxu0 %v2531
        %v2643 = vpop.f32.mrf.mxu0
        %v2644 = vadd.f32 0.0, %v2643
        %2645 = vmatmul.f32.gmra.mxu0 %v2534
        %v2646 = vpop.f32.mrf.mxu0
        %v2647 = vadd.f32 0.0, %v2646
        %2648 = vmatmul.f32.gmra.mxu0 %v2537
        %v2649 = vpop.f32.mrf.mxu0
        %v2650 = vadd.f32 0.0, %v2649
        %2651 = vmatmul.f32.gmra.mxu0 %v2540
        %v2652 = vpop.f32.mrf.mxu0
        %v2653 = vadd.f32 0.0, %v2652
        %2654 = vmatmul.f32.gmra.mxu0 %v2543
        %v2655 = vpop.f32.mrf.mxu0
        %v2656 = vadd.f32 0.0, %v2655
        %2657 = vmatmul.f32.gmra.mxu0 %v2546
        %v2658 = vpop.f32.mrf.mxu0
        %v2659 = vadd.f32 0.0, %v2658
        %2660 = vmatmul.f32.gmra.mxu0 %v2549
        %v2661 = vpop.f32.mrf.mxu0
        %v2662 = vadd.f32 0.0, %v2661
        %2663 = vmatmul.f32.gmra.mxu0 %v2552
        %v2664 = vpop.f32.mrf.mxu0
        %v2665 = vadd.f32 0.0, %v2664
        %2666 = vmatmul.f32.gmra.mxu0 %v2555
        %v2667 = vpop.f32.mrf.mxu0
        %v2668 = vadd.f32 0.0, %v2667
        %2669 = vmatmul.f32.gmra.mxu0 %v2558
        %v2670 = vpop.f32.mrf.mxu0
        %v2671 = vadd.f32 0.0, %v2670
        %2672 = vmatmul.f32.gmra.mxu0 %v2561
        %v2673 = vpop.f32.mrf.mxu0
        %v2674 = vadd.f32 0.0, %v2673
        %2675 = vmatmul.f32.gmra.mxu0 %v2564
        %v2676 = vpop.f32.mrf.mxu0
        %v2677 = vadd.f32 0.0, %v2676
        %2678 = vmatmul.f32.gmra.mxu0 %v2567
        %v2679 = vpop.f32.mrf.mxu0
        %v2680 = vadd.f32 0.0, %v2679
        %2681 = vmatmul.f32.gmra.mxu0 %v2570
        %v2682 = vpop.f32.mrf.mxu0
        %v2683 = vadd.f32 0.0, %v2682
        %2684 = vmatmul.f32.gmra.mxu0 %v2573
        %v2685 = vpop.f32.mrf.mxu0
        %v2686 = vadd.f32 0.0, %v2685
        %2687 = vmatmul.f32.gmra.mxu0 %v2576
        %v2688 = vpop.f32.mrf.mxu0
        %v2689 = vadd.f32 0.0, %v2688
        %2690 = vmatmul.f32.gmra.mxu0 %v2579
        %v2691 = vpop.f32.mrf.mxu0
        %v2692 = vadd.f32 0.0, %v2691
        %2693 = vmatmul.f32.gmra.mxu0 %v2582
        %v2694 = vpop.f32.mrf.mxu0
        %v2695 = vadd.f32 0.0, %v2694
        %2696 = vmatmul.f32.gmra.mxu0 %v2585
        %v2697 = vpop.f32.mrf.mxu0
        %v2698 = vadd.f32 0.0, %v2697
        %2699 = vmatmul.f32.gmra.mxu0 %v2588
        %v2700 = vpop.f32.mrf.mxu0
        %v2701 = vadd.f32 0.0, %v2700
        %2702 = vmatmul.f32.gmra.mxu0 %v2591
        %v2703 = vpop.f32.mrf.mxu0
        %v2704 = vadd.f32 0.0, %v2703
        %2705 = vmatmul.f32.gmra.mxu0 %v2594
        %v2706 = vpop.f32.mrf.mxu0
        %v2707 = vadd.f32 0.0, %v2706
        %2708 = vmatmul.f32.gmra.mxu0 %v2597
        %v2709 = vpop.f32.mrf.mxu0
        %v2710 = vadd.f32 0.0, %v2709
        %2711 = vmatmul.f32.gmra.mxu0 %v2600
        %v2712 = vpop.f32.mrf.mxu0
        %v2713 = vadd.f32 0.0, %v2712
        %2714 = vmatmul.f32.gmra.mxu0 %v2603
        %v2715 = vpop.f32.mrf.mxu0
        %v2716 = vadd.f32 0.0, %v2715
        %2717 = vmatmul.f32.gmra.mxu0 %v2606
        %v2718 = vpop.f32.mrf.mxu0
        %v2719 = vadd.f32 0.0, %v2718
        %2720 = vmatmul.f32.gmra.mxu0 %v2609
        %v2721 = vpop.f32.mrf.mxu0
        %v2722 = vadd.f32 0.0, %v2721
        %2723 = vmatmul.f32.gmra.mxu0 %v2612
        %v2724 = vpop.f32.mrf.mxu0
        %v2725 = vadd.f32 0.0, %v2724
        %2726 = vmatmul.f32.gmra.mxu0 %v2615
        %v2727 = vpop.f32.mrf.mxu0
        %v2728 = vadd.f32 0.0, %v2727
        %2729 = vmatmul.f32.gmra.mxu0 %v2618
        %v2730 = vpop.f32.mrf.mxu0
        %v2731 = vadd.f32 0.0, %v2730
        %2732 = vmatmul.f32.gmra.mxu0 %v2621
        %v2733 = vpop.f32.mrf.mxu0
        %v2734 = vadd.f32 0.0, %v2733
        %2735 = vmatmul.f32.gmra.mxu0 %v2624
        %v2736 = vpop.f32.mrf.mxu0
        %v2737 = vadd.f32 0.0, %v2736
        %2738 = vdwg.mxu0
        %v2739 = vadd.f32 %v2466, %v2644
        %v2740 = vadd.f32 %v2467, %v2647
        %v2741 = vadd.f32 %v2468, %v2650
        %v2742 = vadd.f32 %v2469, %v2653
        %v2743 = vadd.f32 %v2470, %v2656
        %v2744 = vadd.f32 %v2471, %v2659
        %v2745 = vadd.f32 %v2472, %v2662
        %v2746 = vadd.f32 %v2473, %v2665
        %v2747 = vadd.f32 %v2474, %v2668
        %v2748 = vadd.f32 %v2475, %v2671
        %v2749 = vadd.f32 %v2476, %v2674
        %v2750 = vadd.f32 %v2477, %v2677
        %v2751 = vadd.f32 %v2478, %v2680
        %v2752 = vadd.f32 %v2479, %v2683
        %v2753 = vadd.f32 %v2480, %v2686
        %v2754 = vadd.f32 %v2481, %v2689
        %v2755 = vadd.f32 %v2482, %v2692
        %v2756 = vadd.f32 %v2483, %v2695
        %v2757 = vadd.f32 %v2484, %v2698
        %v2758 = vadd.f32 %v2485, %v2701
        %v2759 = vadd.f32 %v2486, %v2704
        %v2760 = vadd.f32 %v2487, %v2707
        %v2761 = vadd.f32 %v2488, %v2710
        %v2762 = vadd.f32 %v2489, %v2713
        %v2763 = vadd.f32 %v2490, %v2716
        %v2764 = vadd.f32 %v2491, %v2719
        %v2765 = vadd.f32 %v2492, %v2722
        %v2766 = vadd.f32 %v2493, %v2725
        %v2767 = vadd.f32 %v2494, %v2728
        %v2768 = vadd.f32 %v2495, %v2731
        %v2769 = vadd.f32 %v2496, %v2734
        %v2770 = vadd.f32 %v2497, %v2737
        %v2771 = vld [vmem:[%s1643 + $0x1] sm:$0xff]
        %v2772 = vld [vmem:[%s1643 + $0x11] sm:$0xff]
        %v2773 = vld [vmem:[%s1643 + $0x21] sm:$0xff]
        %v2774 = vld [vmem:[%s1643 + $0x31] sm:$0xff]
        %v2775 = vld [vmem:[%s1643 + $0x41] sm:$0xff]
        %v2776 = vld [vmem:[%s1643 + $0x51] sm:$0xff]
        %v2777 = vld [vmem:[%s1643 + $0x61] sm:$0xff]
        %v2778 = vld [vmem:[%s1643 + $0x71] sm:$0xff]
        %v2779 = vld [vmem:[%s1643 + $0xa1] sm:$0xff]
        %v2780 = vld [vmem:[%s1643 + $0xb1] sm:$0xff]
        %v2781 = vld [vmem:[%s1643 + $0xc1] sm:$0xff]
        %v2782 = vld [vmem:[%s1643 + $0xd1] sm:$0xff]
        %v2783 = vld [vmem:[%s1643 + $0xe1] sm:$0xff]
        %v2784 = vld [vmem:[%s1643 + $0xf1] sm:$0xff]
        %v2785 = vld [vmem:[%s1643 + $0x101] sm:$0xff]
        %v2786 = vld [vmem:[%s1643 + $0x111] sm:$0xff]
        %v2787 = vld [vmem:[%s1643 + $0x141] sm:$0xff]
        %v2788 = vld [vmem:[%s1643 + $0x151] sm:$0xff]
        %v2789 = vld [vmem:[%s1643 + $0x161] sm:$0xff]
        %v2790 = vld [vmem:[%s1643 + $0x171] sm:$0xff]
        %v2791 = vld [vmem:[%s1643 + $0x181] sm:$0xff]
        %v2792 = vld [vmem:[%s1643 + $0x191] sm:$0xff]
        %v2793 = vld [vmem:[%s1643 + $0x1a1] sm:$0xff]
        %v2794 = vld [vmem:[%s1643 + $0x1b1] sm:$0xff]
        %v2795 = vld [vmem:[%s1643 + $0x1e1] sm:$0xff]
        %v2796 = vld [vmem:[%s1643 + $0x1f1] sm:$0xff]
        %v2797 = vld [vmem:[%s1643 + $0x201] sm:$0xff]
        %v2798 = vld [vmem:[%s1643 + $0x211] sm:$0xff]
        %v2799 = vld [vmem:[%s1643 + $0x221] sm:$0xff]
        %v2800 = vld [vmem:[%s1643 + $0x231] sm:$0xff]
        %v2801 = vld [vmem:[%s1643 + $0x241] sm:$0xff]
        %v2802 = vld [vmem:[%s1643 + $0x251] sm:$0xff]
        %v2804 = vsel %vm1322, %v2771, 0
        %v2807 = vsel %vm1322, %v2772, 0
        %v2810 = vsel %vm1322, %v2773, 0
        %v2813 = vsel %vm1322, %v2774, 0
        %v2816 = vsel %vm1322, %v2775, 0
        %v2819 = vsel %vm1322, %v2776, 0
        %v2822 = vsel %vm1322, %v2777, 0
        %v2825 = vsel %vm1322, %v2778, 0
        %v2828 = vsel %vm1322, %v2779, 0
        %v2831 = vsel %vm1322, %v2780, 0
        %v2834 = vsel %vm1322, %v2781, 0
        %v2837 = vsel %vm1322, %v2782, 0
        %v2840 = vsel %vm1322, %v2783, 0
        %v2843 = vsel %vm1322, %v2784, 0
        %v2846 = vsel %vm1322, %v2785, 0
        %v2849 = vsel %vm1322, %v2786, 0
        %v2852 = vsel %vm1322, %v2787, 0
        %v2855 = vsel %vm1322, %v2788, 0
        %v2858 = vsel %vm1322, %v2789, 0
        %v2861 = vsel %vm1322, %v2790, 0
        %v2864 = vsel %vm1322, %v2791, 0
        %v2867 = vsel %vm1322, %v2792, 0
        %v2870 = vsel %vm1322, %v2793, 0
        %v2873 = vsel %vm1322, %v2794, 0
        %v2876 = vsel %vm1322, %v2795, 0
        %v2879 = vsel %vm1322, %v2796, 0
        %v2882 = vsel %vm1322, %v2797, 0
        %v2885 = vsel %vm1322, %v2798, 0
        %v2888 = vsel %vm1322, %v2799, 0
        %v2891 = vsel %vm1322, %v2800, 0
        %v2894 = vsel %vm1322, %v2801, 0
        %v2897 = vsel %vm1322, %v2802, 0
        %2899 = vmatpush.msra.mxu0 0.0
        %2900 = vmatpush.msra.mxu0 0.0
        %2901 = vmatpush.msra.mxu0 0.0
        %2902 = vmatpush.msra.mxu0 0.0
        %2903 = vmatpush.msra.mxu0 0.0
        %2904 = vmatpush.msra.mxu0 0.0
        %2905 = vmatpush.msra.mxu0 0.0
        %2906 = vmatpush.msra.mxu0 0.0
        %2907 = vmatpush.msra.mxu0 0.0
        %2908 = vmatpush.msra.mxu0 0.0
        %2909 = vmatpush.msra.mxu0 0.0
        %2910 = vmatpush.msra.mxu0 0.0
        %2911 = vmatpush.msra.mxu0 %v942
        %2912 = vmatpush.msra.mxu0 %v941
        %2913 = vmatpush.msra.mxu0 %v940
        %2914 = vmatpush.msra.mxu0 %v939
        %2915 = vmatmul.f32.gmra.mxu0 %v2804
        %v2916 = vpop.f32.mrf.mxu0
        %v2917 = vadd.f32 0.0, %v2916
        %2918 = vmatmul.f32.gmra.mxu0 %v2807
        %v2919 = vpop.f32.mrf.mxu0
        %v2920 = vadd.f32 0.0, %v2919
        %2921 = vmatmul.f32.gmra.mxu0 %v2810
        %v2922 = vpop.f32.mrf.mxu0
        %v2923 = vadd.f32 0.0, %v2922
        %2924 = vmatmul.f32.gmra.mxu0 %v2813
        %v2925 = vpop.f32.mrf.mxu0
        %v2926 = vadd.f32 0.0, %v2925
        %2927 = vmatmul.f32.gmra.mxu0 %v2816
        %v2928 = vpop.f32.mrf.mxu0
        %v2929 = vadd.f32 0.0, %v2928
        %2930 = vmatmul.f32.gmra.mxu0 %v2819
        %v2931 = vpop.f32.mrf.mxu0
        %v2932 = vadd.f32 0.0, %v2931
        %2933 = vmatmul.f32.gmra.mxu0 %v2822
        %v2934 = vpop.f32.mrf.mxu0
        %v2935 = vadd.f32 0.0, %v2934
        %2936 = vmatmul.f32.gmra.mxu0 %v2825
        %v2937 = vpop.f32.mrf.mxu0
        %v2938 = vadd.f32 0.0, %v2937
        %2939 = vmatmul.f32.gmra.mxu0 %v2828
        %v2940 = vpop.f32.mrf.mxu0
        %v2941 = vadd.f32 0.0, %v2940
        %2942 = vmatmul.f32.gmra.mxu0 %v2831
        %v2943 = vpop.f32.mrf.mxu0
        %v2944 = vadd.f32 0.0, %v2943
        %2945 = vmatmul.f32.gmra.mxu0 %v2834
        %v2946 = vpop.f32.mrf.mxu0
        %v2947 = vadd.f32 0.0, %v2946
        %2948 = vmatmul.f32.gmra.mxu0 %v2837
        %v2949 = vpop.f32.mrf.mxu0
        %v2950 = vadd.f32 0.0, %v2949
        %2951 = vmatmul.f32.gmra.mxu0 %v2840
        %v2952 = vpop.f32.mrf.mxu0
        %v2953 = vadd.f32 0.0, %v2952
        %2954 = vmatmul.f32.gmra.mxu0 %v2843
        %v2955 = vpop.f32.mrf.mxu0
        %v2956 = vadd.f32 0.0, %v2955
        %2957 = vmatmul.f32.gmra.mxu0 %v2846
        %v2958 = vpop.f32.mrf.mxu0
        %v2959 = vadd.f32 0.0, %v2958
        %2960 = vmatmul.f32.gmra.mxu0 %v2849
        %v2961 = vpop.f32.mrf.mxu0
        %v2962 = vadd.f32 0.0, %v2961
        %2963 = vmatmul.f32.gmra.mxu0 %v2852
        %v2964 = vpop.f32.mrf.mxu0
        %v2965 = vadd.f32 0.0, %v2964
        %2966 = vmatmul.f32.gmra.mxu0 %v2855
        %v2967 = vpop.f32.mrf.mxu0
        %v2968 = vadd.f32 0.0, %v2967
        %2969 = vmatmul.f32.gmra.mxu0 %v2858
        %v2970 = vpop.f32.mrf.mxu0
        %v2971 = vadd.f32 0.0, %v2970
        %2972 = vmatmul.f32.gmra.mxu0 %v2861
        %v2973 = vpop.f32.mrf.mxu0
        %v2974 = vadd.f32 0.0, %v2973
        %2975 = vmatmul.f32.gmra.mxu0 %v2864
        %v2976 = vpop.f32.mrf.mxu0
        %v2977 = vadd.f32 0.0, %v2976
        %2978 = vmatmul.f32.gmra.mxu0 %v2867
        %v2979 = vpop.f32.mrf.mxu0
        %v2980 = vadd.f32 0.0, %v2979
        %2981 = vmatmul.f32.gmra.mxu0 %v2870
        %v2982 = vpop.f32.mrf.mxu0
        %v2983 = vadd.f32 0.0, %v2982
        %2984 = vmatmul.f32.gmra.mxu0 %v2873
        %v2985 = vpop.f32.mrf.mxu0
        %v2986 = vadd.f32 0.0, %v2985
        %2987 = vmatmul.f32.gmra.mxu0 %v2876
        %v2988 = vpop.f32.mrf.mxu0
        %v2989 = vadd.f32 0.0, %v2988
        %2990 = vmatmul.f32.gmra.mxu0 %v2879
        %v2991 = vpop.f32.mrf.mxu0
        %v2992 = vadd.f32 0.0, %v2991
        %2993 = vmatmul.f32.gmra.mxu0 %v2882
        %v2994 = vpop.f32.mrf.mxu0
        %v2995 = vadd.f32 0.0, %v2994
        %2996 = vmatmul.f32.gmra.mxu0 %v2885
        %v2997 = vpop.f32.mrf.mxu0
        %v2998 = vadd.f32 0.0, %v2997
        %2999 = vmatmul.f32.gmra.mxu0 %v2888
        %v3000 = vpop.f32.mrf.mxu0
        %v3001 = vadd.f32 0.0, %v3000
        %3002 = vmatmul.f32.gmra.mxu0 %v2891
        %v3003 = vpop.f32.mrf.mxu0
        %v3004 = vadd.f32 0.0, %v3003
        %3005 = vmatmul.f32.gmra.mxu0 %v2894
        %v3006 = vpop.f32.mrf.mxu0
        %v3007 = vadd.f32 0.0, %v3006
        %3008 = vmatmul.f32.gmra.mxu0 %v2897
        %v3009 = vpop.f32.mrf.mxu0
        %v3010 = vadd.f32 0.0, %v3009
        %3011 = vdwg.mxu0
        %v3012 = vadd.f32 %v2739, %v2917
        %v3013 = vadd.f32 %v2740, %v2920
        %v3014 = vadd.f32 %v2741, %v2923
        %v3015 = vadd.f32 %v2742, %v2926
        %v3016 = vadd.f32 %v2743, %v2929
        %v3017 = vadd.f32 %v2744, %v2932
        %v3018 = vadd.f32 %v2745, %v2935
        %v3019 = vadd.f32 %v2746, %v2938
        %v3020 = vadd.f32 %v2747, %v2941
        %v3021 = vadd.f32 %v2748, %v2944
        %v3022 = vadd.f32 %v2749, %v2947
        %v3023 = vadd.f32 %v2750, %v2950
        %v3024 = vadd.f32 %v2751, %v2953
        %v3025 = vadd.f32 %v2752, %v2956
        %v3026 = vadd.f32 %v2753, %v2959
        %v3027 = vadd.f32 %v2754, %v2962
        %v3028 = vadd.f32 %v2755, %v2965
        %v3029 = vadd.f32 %v2756, %v2968
        %v3030 = vadd.f32 %v2757, %v2971
        %v3031 = vadd.f32 %v2758, %v2974
        %v3032 = vadd.f32 %v2759, %v2977
        %v3033 = vadd.f32 %v2760, %v2980
        %v3034 = vadd.f32 %v2761, %v2983
        %v3035 = vadd.f32 %v2762, %v2986
        %v3036 = vadd.f32 %v2763, %v2989
        %v3037 = vadd.f32 %v2764, %v2992
        %v3038 = vadd.f32 %v2765, %v2995
        %v3039 = vadd.f32 %v2766, %v2998
        %v3040 = vadd.f32 %v2767, %v3001
        %v3041 = vadd.f32 %v2768, %v3004
        %v3042 = vadd.f32 %v2769, %v3007
        %v3043 = vadd.f32 %v2770, %v3010
        %v3044 = vld [vmem:[%s1643 + $0x2] sm:$0xff]
        %v3045 = vld [vmem:[%s1643 + $0x12] sm:$0xff]
        %v3046 = vld [vmem:[%s1643 + $0x22] sm:$0xff]
        %v3047 = vld [vmem:[%s1643 + $0x32] sm:$0xff]
        %v3048 = vld [vmem:[%s1643 + $0x42] sm:$0xff]
        %v3049 = vld [vmem:[%s1643 + $0x52] sm:$0xff]
        %v3050 = vld [vmem:[%s1643 + $0x62] sm:$0xff]
        %v3051 = vld [vmem:[%s1643 + $0x72] sm:$0xff]
        %v3052 = vld [vmem:[%s1643 + $0xa2] sm:$0xff]
        %v3053 = vld [vmem:[%s1643 + $0xb2] sm:$0xff]
        %v3054 = vld [vmem:[%s1643 + $0xc2] sm:$0xff]
        %v3055 = vld [vmem:[%s1643 + $0xd2] sm:$0xff]
        %v3056 = vld [vmem:[%s1643 + $0xe2] sm:$0xff]
        %v3057 = vld [vmem:[%s1643 + $0xf2] sm:$0xff]
        %v3058 = vld [vmem:[%s1643 + $0x102] sm:$0xff]
        %v3059 = vld [vmem:[%s1643 + $0x112] sm:$0xff]
        %v3060 = vld [vmem:[%s1643 + $0x142] sm:$0xff]
        %v3061 = vld [vmem:[%s1643 + $0x152] sm:$0xff]
        %v3062 = vld [vmem:[%s1643 + $0x162] sm:$0xff]
        %v3063 = vld [vmem:[%s1643 + $0x172] sm:$0xff]
        %v3064 = vld [vmem:[%s1643 + $0x182] sm:$0xff]
        %v3065 = vld [vmem:[%s1643 + $0x192] sm:$0xff]
        %v3066 = vld [vmem:[%s1643 + $0x1a2] sm:$0xff]
        %v3067 = vld [vmem:[%s1643 + $0x1b2] sm:$0xff]
        %v3068 = vld [vmem:[%s1643 + $0x1e2] sm:$0xff]
        %v3069 = vld [vmem:[%s1643 + $0x1f2] sm:$0xff]
        %v3070 = vld [vmem:[%s1643 + $0x202] sm:$0xff]
        %v3071 = vld [vmem:[%s1643 + $0x212] sm:$0xff]
        %v3072 = vld [vmem:[%s1643 + $0x222] sm:$0xff]
        %v3073 = vld [vmem:[%s1643 + $0x232] sm:$0xff]
        %v3074 = vld [vmem:[%s1643 + $0x242] sm:$0xff]
        %v3075 = vld [vmem:[%s1643 + $0x252] sm:$0xff]
        %v3077 = vsel %vm1322, %v3044, 0
        %v3080 = vsel %vm1322, %v3045, 0
        %v3083 = vsel %vm1322, %v3046, 0
        %v3086 = vsel %vm1322, %v3047, 0
        %v3089 = vsel %vm1322, %v3048, 0
        %v3092 = vsel %vm1322, %v3049, 0
        %v3095 = vsel %vm1322, %v3050, 0
        %v3098 = vsel %vm1322, %v3051, 0
        %v3101 = vsel %vm1322, %v3052, 0
        %v3104 = vsel %vm1322, %v3053, 0
        %v3107 = vsel %vm1322, %v3054, 0
        %v3110 = vsel %vm1322, %v3055, 0
        %v3113 = vsel %vm1322, %v3056, 0
        %v3116 = vsel %vm1322, %v3057, 0
        %v3119 = vsel %vm1322, %v3058, 0
        %v3122 = vsel %vm1322, %v3059, 0
        %v3125 = vsel %vm1322, %v3060, 0
        %v3128 = vsel %vm1322, %v3061, 0
        %v3131 = vsel %vm1322, %v3062, 0
        %v3134 = vsel %vm1322, %v3063, 0
        %v3137 = vsel %vm1322, %v3064, 0
        %v3140 = vsel %vm1322, %v3065, 0
        %v3143 = vsel %vm1322, %v3066, 0
        %v3146 = vsel %vm1322, %v3067, 0
        %v3149 = vsel %vm1322, %v3068, 0
        %v3152 = vsel %vm1322, %v3069, 0
        %v3155 = vsel %vm1322, %v3070, 0
        %v3158 = vsel %vm1322, %v3071, 0
        %v3161 = vsel %vm1322, %v3072, 0
        %v3164 = vsel %vm1322, %v3073, 0
        %v3167 = vsel %vm1322, %v3074, 0
        %v3170 = vsel %vm1322, %v3075, 0
        %3172 = vmatpush.msra.mxu0 0.0
        %3173 = vmatpush.msra.mxu0 0.0
        %3174 = vmatpush.msra.mxu0 0.0
        %3175 = vmatpush.msra.mxu0 0.0
        %3176 = vmatpush.msra.mxu0 0.0
        %3177 = vmatpush.msra.mxu0 0.0
        %3178 = vmatpush.msra.mxu0 0.0
        %3179 = vmatpush.msra.mxu0 0.0
        %3180 = vmatpush.msra.mxu0 0.0
        %3181 = vmatpush.msra.mxu0 0.0
        %3182 = vmatpush.msra.mxu0 0.0
        %3183 = vmatpush.msra.mxu0 0.0
        %3184 = vmatpush.msra.mxu0 %v946
        %3185 = vmatpush.msra.mxu0 %v945
        %3186 = vmatpush.msra.mxu0 %v944
        %3187 = vmatpush.msra.mxu0 %v943
        %3188 = vmatmul.f32.gmra.mxu0 %v3077
        %v3189 = vpop.f32.mrf.mxu0
        %v3190 = vadd.f32 0.0, %v3189
        %3191 = vmatmul.f32.gmra.mxu0 %v3080
        %v3192 = vpop.f32.mrf.mxu0
        %v3193 = vadd.f32 0.0, %v3192
        %3194 = vmatmul.f32.gmra.mxu0 %v3083
        %v3195 = vpop.f32.mrf.mxu0
        %v3196 = vadd.f32 0.0, %v3195
        %3197 = vmatmul.f32.gmra.mxu0 %v3086
        %v3198 = vpop.f32.mrf.mxu0
        %v3199 = vadd.f32 0.0, %v3198
        %3200 = vmatmul.f32.gmra.mxu0 %v3089
        %v3201 = vpop.f32.mrf.mxu0
        %v3202 = vadd.f32 0.0, %v3201
        %3203 = vmatmul.f32.gmra.mxu0 %v3092
        %v3204 = vpop.f32.mrf.mxu0
        %v3205 = vadd.f32 0.0, %v3204
        %3206 = vmatmul.f32.gmra.mxu0 %v3095
        %v3207 = vpop.f32.mrf.mxu0
        %v3208 = vadd.f32 0.0, %v3207
        %3209 = vmatmul.f32.gmra.mxu0 %v3098
        %v3210 = vpop.f32.mrf.mxu0
        %v3211 = vadd.f32 0.0, %v3210
        %3212 = vmatmul.f32.gmra.mxu0 %v3101
        %v3213 = vpop.f32.mrf.mxu0
        %v3214 = vadd.f32 0.0, %v3213
        %3215 = vmatmul.f32.gmra.mxu0 %v3104
        %v3216 = vpop.f32.mrf.mxu0
        %v3217 = vadd.f32 0.0, %v3216
        %3218 = vmatmul.f32.gmra.mxu0 %v3107
        %v3219 = vpop.f32.mrf.mxu0
        %v3220 = vadd.f32 0.0, %v3219
        %3221 = vmatmul.f32.gmra.mxu0 %v3110
        %v3222 = vpop.f32.mrf.mxu0
        %v3223 = vadd.f32 0.0, %v3222
        %3224 = vmatmul.f32.gmra.mxu0 %v3113
        %v3225 = vpop.f32.mrf.mxu0
        %v3226 = vadd.f32 0.0, %v3225
        %3227 = vmatmul.f32.gmra.mxu0 %v3116
        %v3228 = vpop.f32.mrf.mxu0
        %v3229 = vadd.f32 0.0, %v3228
        %3230 = vmatmul.f32.gmra.mxu0 %v3119
        %v3231 = vpop.f32.mrf.mxu0
        %v3232 = vadd.f32 0.0, %v3231
        %3233 = vmatmul.f32.gmra.mxu0 %v3122
        %v3234 = vpop.f32.mrf.mxu0
        %v3235 = vadd.f32 0.0, %v3234
        %3236 = vmatmul.f32.gmra.mxu0 %v3125
        %v3237 = vpop.f32.mrf.mxu0
        %v3238 = vadd.f32 0.0, %v3237
        %3239 = vmatmul.f32.gmra.mxu0 %v3128
        %v3240 = vpop.f32.mrf.mxu0
        %v3241 = vadd.f32 0.0, %v3240
        %3242 = vmatmul.f32.gmra.mxu0 %v3131
        %v3243 = vpop.f32.mrf.mxu0
        %v3244 = vadd.f32 0.0, %v3243
        %3245 = vmatmul.f32.gmra.mxu0 %v3134
        %v3246 = vpop.f32.mrf.mxu0
        %v3247 = vadd.f32 0.0, %v3246
        %3248 = vmatmul.f32.gmra.mxu0 %v3137
        %v3249 = vpop.f32.mrf.mxu0
        %v3250 = vadd.f32 0.0, %v3249
        %3251 = vmatmul.f32.gmra.mxu0 %v3140
        %v3252 = vpop.f32.mrf.mxu0
        %v3253 = vadd.f32 0.0, %v3252
        %3254 = vmatmul.f32.gmra.mxu0 %v3143
        %v3255 = vpop.f32.mrf.mxu0
        %v3256 = vadd.f32 0.0, %v3255
        %3257 = vmatmul.f32.gmra.mxu0 %v3146
        %v3258 = vpop.f32.mrf.mxu0
        %v3259 = vadd.f32 0.0, %v3258
        %3260 = vmatmul.f32.gmra.mxu0 %v3149
        %v3261 = vpop.f32.mrf.mxu0
        %v3262 = vadd.f32 0.0, %v3261
        %3263 = vmatmul.f32.gmra.mxu0 %v3152
        %v3264 = vpop.f32.mrf.mxu0
        %v3265 = vadd.f32 0.0, %v3264
        %3266 = vmatmul.f32.gmra.mxu0 %v3155
        %v3267 = vpop.f32.mrf.mxu0
        %v3268 = vadd.f32 0.0, %v3267
        %3269 = vmatmul.f32.gmra.mxu0 %v3158
        %v3270 = vpop.f32.mrf.mxu0
        %v3271 = vadd.f32 0.0, %v3270
        %3272 = vmatmul.f32.gmra.mxu0 %v3161
        %v3273 = vpop.f32.mrf.mxu0
        %v3274 = vadd.f32 0.0, %v3273
        %3275 = vmatmul.f32.gmra.mxu0 %v3164
        %v3276 = vpop.f32.mrf.mxu0
        %v3277 = vadd.f32 0.0, %v3276
        %3278 = vmatmul.f32.gmra.mxu0 %v3167
        %v3279 = vpop.f32.mrf.mxu0
        %v3280 = vadd.f32 0.0, %v3279
        %3281 = vmatmul.f32.gmra.mxu0 %v3170
        %v3282 = vpop.f32.mrf.mxu0
        %v3283 = vadd.f32 0.0, %v3282
        %3284 = vdwg.mxu0
        %v3285 = vadd.f32 %v3012, %v3190
        %v3286 = vadd.f32 %v3013, %v3193
        %v3287 = vadd.f32 %v3014, %v3196
        %v3288 = vadd.f32 %v3015, %v3199
        %v3289 = vadd.f32 %v3016, %v3202
        %v3290 = vadd.f32 %v3017, %v3205
        %v3291 = vadd.f32 %v3018, %v3208
        %v3292 = vadd.f32 %v3019, %v3211
        %v3293 = vadd.f32 %v3020, %v3214
        %v3294 = vadd.f32 %v3021, %v3217
        %v3295 = vadd.f32 %v3022, %v3220
        %v3296 = vadd.f32 %v3023, %v3223
        %v3297 = vadd.f32 %v3024, %v3226
        %v3298 = vadd.f32 %v3025, %v3229
        %v3299 = vadd.f32 %v3026, %v3232
        %v3300 = vadd.f32 %v3027, %v3235
        %v3301 = vadd.f32 %v3028, %v3238
        %v3302 = vadd.f32 %v3029, %v3241
        %v3303 = vadd.f32 %v3030, %v3244
        %v3304 = vadd.f32 %v3031, %v3247
        %v3305 = vadd.f32 %v3032, %v3250
        %v3306 = vadd.f32 %v3033, %v3253
        %v3307 = vadd.f32 %v3034, %v3256
        %v3308 = vadd.f32 %v3035, %v3259
        %v3309 = vadd.f32 %v3036, %v3262
        %v3310 = vadd.f32 %v3037, %v3265
        %v3311 = vadd.f32 %v3038, %v3268
        %v3312 = vadd.f32 %v3039, %v3271
        %v3313 = vadd.f32 %v3040, %v3274
        %v3314 = vadd.f32 %v3041, %v3277
        %v3315 = vadd.f32 %v3042, %v3280
        %v3316 = vadd.f32 %v3043, %v3283
        %s3317 = scalar_lea.vmem [#allocation5], 32
        %v3318 = vld [vmem:[%s3317] sm:$0xff]
        %v3319 = vld [vmem:[%s3317 + $0x10] sm:$0xff]
        %v3320 = vld [vmem:[%s3317 + $0x20] sm:$0xff]
        %v3321 = vld [vmem:[%s3317 + $0x30] sm:$0xff]
        %v3322 = vld [vmem:[%s3317 + $0x40] sm:$0xff]
        %v3323 = vld [vmem:[%s3317 + $0x50] sm:$0xff]
        %v3324 = vld [vmem:[%s3317 + $0x60] sm:$0xff]
        %v3325 = vld [vmem:[%s3317 + $0x70] sm:$0xff]
        %v3326 = vld [vmem:[%s3317 + $0xa0] sm:$0xff]
        %v3327 = vld [vmem:[%s3317 + $0xb0] sm:$0xff]
        %v3328 = vld [vmem:[%s3317 + $0xc0] sm:$0xff]
        %v3329 = vld [vmem:[%s3317 + $0xd0] sm:$0xff]
        %v3330 = vld [vmem:[%s3317 + $0xe0] sm:$0xff]
        %v3331 = vld [vmem:[%s3317 + $0xf0] sm:$0xff]
        %v3332 = vld [vmem:[%s3317 + $0x100] sm:$0xff]
        %v3333 = vld [vmem:[%s3317 + $0x110] sm:$0xff]
        %v3334 = vld [vmem:[%s3317 + $0x140] sm:$0xff]
        %v3335 = vld [vmem:[%s3317 + $0x150] sm:$0xff]
        %v3336 = vld [vmem:[%s3317 + $0x160] sm:$0xff]
        %v3337 = vld [vmem:[%s3317 + $0x170] sm:$0xff]
        %v3338 = vld [vmem:[%s3317 + $0x180] sm:$0xff]
        %v3339 = vld [vmem:[%s3317 + $0x190] sm:$0xff]
        %v3340 = vld [vmem:[%s3317 + $0x1a0] sm:$0xff]
        %v3341 = vld [vmem:[%s3317 + $0x1b0] sm:$0xff]
        %v3342 = vld [vmem:[%s3317 + $0x1e0] sm:$0xff]
        %v3343 = vld [vmem:[%s3317 + $0x1f0] sm:$0xff]
        %v3344 = vld [vmem:[%s3317 + $0x200] sm:$0xff]
        %v3345 = vld [vmem:[%s3317 + $0x210] sm:$0xff]
        %v3346 = vld [vmem:[%s3317 + $0x220] sm:$0xff]
        %v3347 = vld [vmem:[%s3317 + $0x230] sm:$0xff]
        %v3348 = vld [vmem:[%s3317 + $0x240] sm:$0xff]
        %v3349 = vld [vmem:[%s3317 + $0x250] sm:$0xff]
        %v3351 = vsel %vm1322, %v3318, 0
        %v3354 = vsel %vm1322, %v3319, 0
        %v3357 = vsel %vm1322, %v3320, 0
        %v3360 = vsel %vm1322, %v3321, 0
        %v3363 = vsel %vm1322, %v3322, 0
        %v3366 = vsel %vm1322, %v3323, 0
        %v3369 = vsel %vm1322, %v3324, 0
        %v3372 = vsel %vm1322, %v3325, 0
        %v3375 = vsel %vm1322, %v3326, 0
        %v3378 = vsel %vm1322, %v3327, 0
        %v3381 = vsel %vm1322, %v3328, 0
        %v3384 = vsel %vm1322, %v3329, 0
        %v3387 = vsel %vm1322, %v3330, 0
        %v3390 = vsel %vm1322, %v3331, 0
        %v3393 = vsel %vm1322, %v3332, 0
        %v3396 = vsel %vm1322, %v3333, 0
        %v3399 = vsel %vm1322, %v3334, 0
        %v3402 = vsel %vm1322, %v3335, 0
        %v3405 = vsel %vm1322, %v3336, 0
        %v3408 = vsel %vm1322, %v3337, 0
        %v3411 = vsel %vm1322, %v3338, 0
        %v3414 = vsel %vm1322, %v3339, 0
        %v3417 = vsel %vm1322, %v3340, 0
        %v3420 = vsel %vm1322, %v3341, 0
        %v3423 = vsel %vm1322, %v3342, 0
        %v3426 = vsel %vm1322, %v3343, 0
        %v3429 = vsel %vm1322, %v3344, 0
        %v3432 = vsel %vm1322, %v3345, 0
        %v3435 = vsel %vm1322, %v3346, 0
        %v3438 = vsel %vm1322, %v3347, 0
        %v3441 = vsel %vm1322, %v3348, 0
        %v3444 = vsel %vm1322, %v3349, 0
        %3446 = vmatpush.msra.mxu0 0.0
        %3447 = vmatpush.msra.mxu0 0.0
        %3448 = vmatpush.msra.mxu0 0.0
        %3449 = vmatpush.msra.mxu0 0.0
        %3450 = vmatpush.msra.mxu0 0.0
        %3451 = vmatpush.msra.mxu0 0.0
        %3452 = vmatpush.msra.mxu0 0.0
        %3453 = vmatpush.msra.mxu0 0.0
        %3454 = vmatpush.msra.mxu0 0.0
        %3455 = vmatpush.msra.mxu0 0.0
        %3456 = vmatpush.msra.mxu0 0.0
        %3457 = vmatpush.msra.mxu0 0.0
        %3458 = vmatpush.msra.mxu0 %v950
        %3459 = vmatpush.msra.mxu0 %v949
        %3460 = vmatpush.msra.mxu0 %v948
        %3461 = vmatpush.msra.mxu0 %v947
        %3462 = vmatmul.f32.gmra.mxu0 %v3351
        %v3463 = vpop.f32.mrf.mxu0
        %v3464 = vadd.f32 0.0, %v3463
        %3465 = vmatmul.f32.gmra.mxu0 %v3354
        %v3466 = vpop.f32.mrf.mxu0
        %v3467 = vadd.f32 0.0, %v3466
        %3468 = vmatmul.f32.gmra.mxu0 %v3357
        %v3469 = vpop.f32.mrf.mxu0
        %v3470 = vadd.f32 0.0, %v3469
        %3471 = vmatmul.f32.gmra.mxu0 %v3360
        %v3472 = vpop.f32.mrf.mxu0
        %v3473 = vadd.f32 0.0, %v3472
        %3474 = vmatmul.f32.gmra.mxu0 %v3363
        %v3475 = vpop.f32.mrf.mxu0
        %v3476 = vadd.f32 0.0, %v3475
        %3477 = vmatmul.f32.gmra.mxu0 %v3366
        %v3478 = vpop.f32.mrf.mxu0
        %v3479 = vadd.f32 0.0, %v3478
        %3480 = vmatmul.f32.gmra.mxu0 %v3369
        %v3481 = vpop.f32.mrf.mxu0
        %v3482 = vadd.f32 0.0, %v3481
        %3483 = vmatmul.f32.gmra.mxu0 %v3372
        %v3484 = vpop.f32.mrf.mxu0
        %v3485 = vadd.f32 0.0, %v3484
        %3486 = vmatmul.f32.gmra.mxu0 %v3375
        %v3487 = vpop.f32.mrf.mxu0
        %v3488 = vadd.f32 0.0, %v3487
        %3489 = vmatmul.f32.gmra.mxu0 %v3378
        %v3490 = vpop.f32.mrf.mxu0
        %v3491 = vadd.f32 0.0, %v3490
        %3492 = vmatmul.f32.gmra.mxu0 %v3381
        %v3493 = vpop.f32.mrf.mxu0
        %v3494 = vadd.f32 0.0, %v3493
        %3495 = vmatmul.f32.gmra.mxu0 %v3384
        %v3496 = vpop.f32.mrf.mxu0
        %v3497 = vadd.f32 0.0, %v3496
        %3498 = vmatmul.f32.gmra.mxu0 %v3387
        %v3499 = vpop.f32.mrf.mxu0
        %v3500 = vadd.f32 0.0, %v3499
        %3501 = vmatmul.f32.gmra.mxu0 %v3390
        %v3502 = vpop.f32.mrf.mxu0
        %v3503 = vadd.f32 0.0, %v3502
        %3504 = vmatmul.f32.gmra.mxu0 %v3393
        %v3505 = vpop.f32.mrf.mxu0
        %v3506 = vadd.f32 0.0, %v3505
        %3507 = vmatmul.f32.gmra.mxu0 %v3396
        %v3508 = vpop.f32.mrf.mxu0
        %v3509 = vadd.f32 0.0, %v3508
        %3510 = vmatmul.f32.gmra.mxu0 %v3399
        %v3511 = vpop.f32.mrf.mxu0
        %v3512 = vadd.f32 0.0, %v3511
        %3513 = vmatmul.f32.gmra.mxu0 %v3402
        %v3514 = vpop.f32.mrf.mxu0
        %v3515 = vadd.f32 0.0, %v3514
        %3516 = vmatmul.f32.gmra.mxu0 %v3405
        %v3517 = vpop.f32.mrf.mxu0
        %v3518 = vadd.f32 0.0, %v3517
        %3519 = vmatmul.f32.gmra.mxu0 %v3408
        %v3520 = vpop.f32.mrf.mxu0
        %v3521 = vadd.f32 0.0, %v3520
        %3522 = vmatmul.f32.gmra.mxu0 %v3411
        %v3523 = vpop.f32.mrf.mxu0
        %v3524 = vadd.f32 0.0, %v3523
        %3525 = vmatmul.f32.gmra.mxu0 %v3414
        %v3526 = vpop.f32.mrf.mxu0
        %v3527 = vadd.f32 0.0, %v3526
        %3528 = vmatmul.f32.gmra.mxu0 %v3417
        %v3529 = vpop.f32.mrf.mxu0
        %v3530 = vadd.f32 0.0, %v3529
        %3531 = vmatmul.f32.gmra.mxu0 %v3420
        %v3532 = vpop.f32.mrf.mxu0
        %v3533 = vadd.f32 0.0, %v3532
        %3534 = vmatmul.f32.gmra.mxu0 %v3423
        %v3535 = vpop.f32.mrf.mxu0
        %v3536 = vadd.f32 0.0, %v3535
        %3537 = vmatmul.f32.gmra.mxu0 %v3426
        %v3538 = vpop.f32.mrf.mxu0
        %v3539 = vadd.f32 0.0, %v3538
        %3540 = vmatmul.f32.gmra.mxu0 %v3429
        %v3541 = vpop.f32.mrf.mxu0
        %v3542 = vadd.f32 0.0, %v3541
        %3543 = vmatmul.f32.gmra.mxu0 %v3432
        %v3544 = vpop.f32.mrf.mxu0
        %v3545 = vadd.f32 0.0, %v3544
        %3546 = vmatmul.f32.gmra.mxu0 %v3435
        %v3547 = vpop.f32.mrf.mxu0
        %v3548 = vadd.f32 0.0, %v3547
        %3549 = vmatmul.f32.gmra.mxu0 %v3438
        %v3550 = vpop.f32.mrf.mxu0
        %v3551 = vadd.f32 0.0, %v3550
        %3552 = vmatmul.f32.gmra.mxu0 %v3441
        %v3553 = vpop.f32.mrf.mxu0
        %v3554 = vadd.f32 0.0, %v3553
        %3555 = vmatmul.f32.gmra.mxu0 %v3444
        %v3556 = vpop.f32.mrf.mxu0
        %v3557 = vadd.f32 0.0, %v3556
        %3558 = vdwg.mxu0
        %v3559 = vadd.f32 %v3285, %v3464
        %v3560 = vadd.f32 %v3286, %v3467
        %v3561 = vadd.f32 %v3287, %v3470
        %v3562 = vadd.f32 %v3288, %v3473
        %v3563 = vadd.f32 %v3289, %v3476
        %v3564 = vadd.f32 %v3290, %v3479
        %v3565 = vadd.f32 %v3291, %v3482
        %v3566 = vadd.f32 %v3292, %v3485
        %v3567 = vadd.f32 %v3293, %v3488
        %v3568 = vadd.f32 %v3294, %v3491
        %v3569 = vadd.f32 %v3295, %v3494
        %v3570 = vadd.f32 %v3296, %v3497
        %v3571 = vadd.f32 %v3297, %v3500
        %v3572 = vadd.f32 %v3298, %v3503
        %v3573 = vadd.f32 %v3299, %v3506
        %v3574 = vadd.f32 %v3300, %v3509
        %v3575 = vadd.f32 %v3301, %v3512
        %v3576 = vadd.f32 %v3302, %v3515
        %v3577 = vadd.f32 %v3303, %v3518
        %v3578 = vadd.f32 %v3304, %v3521
        %v3579 = vadd.f32 %v3305, %v3524
        %v3580 = vadd.f32 %v3306, %v3527
        %v3581 = vadd.f32 %v3307, %v3530
        %v3582 = vadd.f32 %v3308, %v3533
        %v3583 = vadd.f32 %v3309, %v3536
        %v3584 = vadd.f32 %v3310, %v3539
        %v3585 = vadd.f32 %v3311, %v3542
        %v3586 = vadd.f32 %v3312, %v3545
        %v3587 = vadd.f32 %v3313, %v3548
        %v3588 = vadd.f32 %v3314, %v3551
        %v3589 = vadd.f32 %v3315, %v3554
        %v3590 = vadd.f32 %v3316, %v3557
        %v3591 = vld [vmem:[%s3317 + $0x1] sm:$0xff]
        %v3592 = vld [vmem:[%s3317 + $0x11] sm:$0xff]
        %v3593 = vld [vmem:[%s3317 + $0x21] sm:$0xff]
        %v3594 = vld [vmem:[%s3317 + $0x31] sm:$0xff]
        %v3595 = vld [vmem:[%s3317 + $0x41] sm:$0xff]
        %v3596 = vld [vmem:[%s3317 + $0x51] sm:$0xff]
        %v3597 = vld [vmem:[%s3317 + $0x61] sm:$0xff]
        %v3598 = vld [vmem:[%s3317 + $0x71] sm:$0xff]
        %v3599 = vld [vmem:[%s3317 + $0xa1] sm:$0xff]
        %v3600 = vld [vmem:[%s3317 + $0xb1] sm:$0xff]
        %v3601 = vld [vmem:[%s3317 + $0xc1] sm:$0xff]
        %v3602 = vld [vmem:[%s3317 + $0xd1] sm:$0xff]
        %v3603 = vld [vmem:[%s3317 + $0xe1] sm:$0xff]
        %v3604 = vld [vmem:[%s3317 + $0xf1] sm:$0xff]
        %v3605 = vld [vmem:[%s3317 + $0x101] sm:$0xff]
        %v3606 = vld [vmem:[%s3317 + $0x111] sm:$0xff]
        %v3607 = vld [vmem:[%s3317 + $0x141] sm:$0xff]
        %v3608 = vld [vmem:[%s3317 + $0x151] sm:$0xff]
        %v3609 = vld [vmem:[%s3317 + $0x161] sm:$0xff]
        %v3610 = vld [vmem:[%s3317 + $0x171] sm:$0xff]
        %v3611 = vld [vmem:[%s3317 + $0x181] sm:$0xff]
        %v3612 = vld [vmem:[%s3317 + $0x191] sm:$0xff]
        %v3613 = vld [vmem:[%s3317 + $0x1a1] sm:$0xff]
        %v3614 = vld [vmem:[%s3317 + $0x1b1] sm:$0xff]
        %v3615 = vld [vmem:[%s3317 + $0x1e1] sm:$0xff]
        %v3616 = vld [vmem:[%s3317 + $0x1f1] sm:$0xff]
        %v3617 = vld [vmem:[%s3317 + $0x201] sm:$0xff]
        %v3618 = vld [vmem:[%s3317 + $0x211] sm:$0xff]
        %v3619 = vld [vmem:[%s3317 + $0x221] sm:$0xff]
        %v3620 = vld [vmem:[%s3317 + $0x231] sm:$0xff]
        %v3621 = vld [vmem:[%s3317 + $0x241] sm:$0xff]
        %v3622 = vld [vmem:[%s3317 + $0x251] sm:$0xff]
        %v3624 = vsel %vm1322, %v3591, 0
        %v3627 = vsel %vm1322, %v3592, 0
        %v3630 = vsel %vm1322, %v3593, 0
        %v3633 = vsel %vm1322, %v3594, 0
        %v3636 = vsel %vm1322, %v3595, 0
        %v3639 = vsel %vm1322, %v3596, 0
        %v3642 = vsel %vm1322, %v3597, 0
        %v3645 = vsel %vm1322, %v3598, 0
        %v3648 = vsel %vm1322, %v3599, 0
        %v3651 = vsel %vm1322, %v3600, 0
        %v3654 = vsel %vm1322, %v3601, 0
        %v3657 = vsel %vm1322, %v3602, 0
        %v3660 = vsel %vm1322, %v3603, 0
        %v3663 = vsel %vm1322, %v3604, 0
        %v3666 = vsel %vm1322, %v3605, 0
        %v3669 = vsel %vm1322, %v3606, 0
        %v3672 = vsel %vm1322, %v3607, 0
        %v3675 = vsel %vm1322, %v3608, 0
        %v3678 = vsel %vm1322, %v3609, 0
        %v3681 = vsel %vm1322, %v3610, 0
        %v3684 = vsel %vm1322, %v3611, 0
        %v3687 = vsel %vm1322, %v3612, 0
        %v3690 = vsel %vm1322, %v3613, 0
        %v3693 = vsel %vm1322, %v3614, 0
        %v3696 = vsel %vm1322, %v3615, 0
        %v3699 = vsel %vm1322, %v3616, 0
        %v3702 = vsel %vm1322, %v3617, 0
        %v3705 = vsel %vm1322, %v3618, 0
        %v3708 = vsel %vm1322, %v3619, 0
        %v3711 = vsel %vm1322, %v3620, 0
        %v3714 = vsel %vm1322, %v3621, 0
        %v3717 = vsel %vm1322, %v3622, 0
        %3719 = vmatpush.msra.mxu0 0.0
        %3720 = vmatpush.msra.mxu0 0.0
        %3721 = vmatpush.msra.mxu0 0.0
        %3722 = vmatpush.msra.mxu0 0.0
        %3723 = vmatpush.msra.mxu0 0.0
        %3724 = vmatpush.msra.mxu0 0.0
        %3725 = vmatpush.msra.mxu0 0.0
        %3726 = vmatpush.msra.mxu0 0.0
        %3727 = vmatpush.msra.mxu0 0.0
        %3728 = vmatpush.msra.mxu0 0.0
        %3729 = vmatpush.msra.mxu0 0.0
        %3730 = vmatpush.msra.mxu0 0.0
        %3731 = vmatpush.msra.mxu0 %v954
        %3732 = vmatpush.msra.mxu0 %v953
        %3733 = vmatpush.msra.mxu0 %v952
        %3734 = vmatpush.msra.mxu0 %v951
        %3735 = vmatmul.f32.gmra.mxu0 %v3624
        %v3736 = vpop.f32.mrf.mxu0
        %v3737 = vadd.f32 0.0, %v3736
        %3738 = vmatmul.f32.gmra.mxu0 %v3627
        %v3739 = vpop.f32.mrf.mxu0
        %v3740 = vadd.f32 0.0, %v3739
        %3741 = vmatmul.f32.gmra.mxu0 %v3630
        %v3742 = vpop.f32.mrf.mxu0
        %v3743 = vadd.f32 0.0, %v3742
        %3744 = vmatmul.f32.gmra.mxu0 %v3633
        %v3745 = vpop.f32.mrf.mxu0
        %v3746 = vadd.f32 0.0, %v3745
        %3747 = vmatmul.f32.gmra.mxu0 %v3636
        %v3748 = vpop.f32.mrf.mxu0
        %v3749 = vadd.f32 0.0, %v3748
        %3750 = vmatmul.f32.gmra.mxu0 %v3639
        %v3751 = vpop.f32.mrf.mxu0
        %v3752 = vadd.f32 0.0, %v3751
        %3753 = vmatmul.f32.gmra.mxu0 %v3642
        %v3754 = vpop.f32.mrf.mxu0
        %v3755 = vadd.f32 0.0, %v3754
        %3756 = vmatmul.f32.gmra.mxu0 %v3645
        %v3757 = vpop.f32.mrf.mxu0
        %v3758 = vadd.f32 0.0, %v3757
        %3759 = vmatmul.f32.gmra.mxu0 %v3648
        %v3760 = vpop.f32.mrf.mxu0
        %v3761 = vadd.f32 0.0, %v3760
        %3762 = vmatmul.f32.gmra.mxu0 %v3651
        %v3763 = vpop.f32.mrf.mxu0
        %v3764 = vadd.f32 0.0, %v3763
        %3765 = vmatmul.f32.gmra.mxu0 %v3654
        %v3766 = vpop.f32.mrf.mxu0
        %v3767 = vadd.f32 0.0, %v3766
        %3768 = vmatmul.f32.gmra.mxu0 %v3657
        %v3769 = vpop.f32.mrf.mxu0
        %v3770 = vadd.f32 0.0, %v3769
        %3771 = vmatmul.f32.gmra.mxu0 %v3660
        %v3772 = vpop.f32.mrf.mxu0
        %v3773 = vadd.f32 0.0, %v3772
        %3774 = vmatmul.f32.gmra.mxu0 %v3663
        %v3775 = vpop.f32.mrf.mxu0
        %v3776 = vadd.f32 0.0, %v3775
        %3777 = vmatmul.f32.gmra.mxu0 %v3666
        %v3778 = vpop.f32.mrf.mxu0
        %v3779 = vadd.f32 0.0, %v3778
        %3780 = vmatmul.f32.gmra.mxu0 %v3669
        %v3781 = vpop.f32.mrf.mxu0
        %v3782 = vadd.f32 0.0, %v3781
        %3783 = vmatmul.f32.gmra.mxu0 %v3672
        %v3784 = vpop.f32.mrf.mxu0
        %v3785 = vadd.f32 0.0, %v3784
        %3786 = vmatmul.f32.gmra.mxu0 %v3675
        %v3787 = vpop.f32.mrf.mxu0
        %v3788 = vadd.f32 0.0, %v3787
        %3789 = vmatmul.f32.gmra.mxu0 %v3678
        %v3790 = vpop.f32.mrf.mxu0
        %v3791 = vadd.f32 0.0, %v3790
        %3792 = vmatmul.f32.gmra.mxu0 %v3681
        %v3793 = vpop.f32.mrf.mxu0
        %v3794 = vadd.f32 0.0, %v3793
        %3795 = vmatmul.f32.gmra.mxu0 %v3684
        %v3796 = vpop.f32.mrf.mxu0
        %v3797 = vadd.f32 0.0, %v3796
        %3798 = vmatmul.f32.gmra.mxu0 %v3687
        %v3799 = vpop.f32.mrf.mxu0
        %v3800 = vadd.f32 0.0, %v3799
        %3801 = vmatmul.f32.gmra.mxu0 %v3690
        %v3802 = vpop.f32.mrf.mxu0
        %v3803 = vadd.f32 0.0, %v3802
        %3804 = vmatmul.f32.gmra.mxu0 %v3693
        %v3805 = vpop.f32.mrf.mxu0
        %v3806 = vadd.f32 0.0, %v3805
        %3807 = vmatmul.f32.gmra.mxu0 %v3696
        %v3808 = vpop.f32.mrf.mxu0
        %v3809 = vadd.f32 0.0, %v3808
        %3810 = vmatmul.f32.gmra.mxu0 %v3699
        %v3811 = vpop.f32.mrf.mxu0
        %v3812 = vadd.f32 0.0, %v3811
        %3813 = vmatmul.f32.gmra.mxu0 %v3702
        %v3814 = vpop.f32.mrf.mxu0
        %v3815 = vadd.f32 0.0, %v3814
        %3816 = vmatmul.f32.gmra.mxu0 %v3705
        %v3817 = vpop.f32.mrf.mxu0
        %v3818 = vadd.f32 0.0, %v3817
        %3819 = vmatmul.f32.gmra.mxu0 %v3708
        %v3820 = vpop.f32.mrf.mxu0
        %v3821 = vadd.f32 0.0, %v3820
        %3822 = vmatmul.f32.gmra.mxu0 %v3711
        %v3823 = vpop.f32.mrf.mxu0
        %v3824 = vadd.f32 0.0, %v3823
        %3825 = vmatmul.f32.gmra.mxu0 %v3714
        %v3826 = vpop.f32.mrf.mxu0
        %v3827 = vadd.f32 0.0, %v3826
        %3828 = vmatmul.f32.gmra.mxu0 %v3717
        %v3829 = vpop.f32.mrf.mxu0
        %v3830 = vadd.f32 0.0, %v3829
        %3831 = vdwg.mxu0
        %v3832 = vadd.f32 %v3559, %v3737
        %v3833 = vadd.f32 %v3560, %v3740
        %v3834 = vadd.f32 %v3561, %v3743
        %v3835 = vadd.f32 %v3562, %v3746
        %v3836 = vadd.f32 %v3563, %v3749
        %v3837 = vadd.f32 %v3564, %v3752
        %v3838 = vadd.f32 %v3565, %v3755
        %v3839 = vadd.f32 %v3566, %v3758
        %v3840 = vadd.f32 %v3567, %v3761
        %v3841 = vadd.f32 %v3568, %v3764
        %v3842 = vadd.f32 %v3569, %v3767
        %v3843 = vadd.f32 %v3570, %v3770
        %v3844 = vadd.f32 %v3571, %v3773
        %v3845 = vadd.f32 %v3572, %v3776
        %v3846 = vadd.f32 %v3573, %v3779
        %v3847 = vadd.f32 %v3574, %v3782
        %v3848 = vadd.f32 %v3575, %v3785
        %v3849 = vadd.f32 %v3576, %v3788
        %v3850 = vadd.f32 %v3577, %v3791
        %v3851 = vadd.f32 %v3578, %v3794
        %v3852 = vadd.f32 %v3579, %v3797
        %v3853 = vadd.f32 %v3580, %v3800
        %v3854 = vadd.f32 %v3581, %v3803
        %v3855 = vadd.f32 %v3582, %v3806
        %v3856 = vadd.f32 %v3583, %v3809
        %v3857 = vadd.f32 %v3584, %v3812
        %v3858 = vadd.f32 %v3585, %v3815
        %v3859 = vadd.f32 %v3586, %v3818
        %v3860 = vadd.f32 %v3587, %v3821
        %v3861 = vadd.f32 %v3588, %v3824
        %v3862 = vadd.f32 %v3589, %v3827
        %v3863 = vadd.f32 %v3590, %v3830
        %v3864 = vld [vmem:[%s3317 + $0x2] sm:$0xff]
        %v3865 = vld [vmem:[%s3317 + $0x12] sm:$0xff]
        %v3866 = vld [vmem:[%s3317 + $0x22] sm:$0xff]
        %v3867 = vld [vmem:[%s3317 + $0x32] sm:$0xff]
        %v3868 = vld [vmem:[%s3317 + $0x42] sm:$0xff]
        %v3869 = vld [vmem:[%s3317 + $0x52] sm:$0xff]
        %v3870 = vld [vmem:[%s3317 + $0x62] sm:$0xff]
        %v3871 = vld [vmem:[%s3317 + $0x72] sm:$0xff]
        %v3872 = vld [vmem:[%s3317 + $0xa2] sm:$0xff]
        %v3873 = vld [vmem:[%s3317 + $0xb2] sm:$0xff]
        %v3874 = vld [vmem:[%s3317 + $0xc2] sm:$0xff]
        %v3875 = vld [vmem:[%s3317 + $0xd2] sm:$0xff]
        %v3876 = vld [vmem:[%s3317 + $0xe2] sm:$0xff]
        %v3877 = vld [vmem:[%s3317 + $0xf2] sm:$0xff]
        %v3878 = vld [vmem:[%s3317 + $0x102] sm:$0xff]
        %v3879 = vld [vmem:[%s3317 + $0x112] sm:$0xff]
        %v3880 = vld [vmem:[%s3317 + $0x142] sm:$0xff]
        %v3881 = vld [vmem:[%s3317 + $0x152] sm:$0xff]
        %v3882 = vld [vmem:[%s3317 + $0x162] sm:$0xff]
        %v3883 = vld [vmem:[%s3317 + $0x172] sm:$0xff]
        %v3884 = vld [vmem:[%s3317 + $0x182] sm:$0xff]
        %v3885 = vld [vmem:[%s3317 + $0x192] sm:$0xff]
        %v3886 = vld [vmem:[%s3317 + $0x1a2] sm:$0xff]
        %v3887 = vld [vmem:[%s3317 + $0x1b2] sm:$0xff]
        %v3888 = vld [vmem:[%s3317 + $0x1e2] sm:$0xff]
        %v3889 = vld [vmem:[%s3317 + $0x1f2] sm:$0xff]
        %v3890 = vld [vmem:[%s3317 + $0x202] sm:$0xff]
        %v3891 = vld [vmem:[%s3317 + $0x212] sm:$0xff]
        %v3892 = vld [vmem:[%s3317 + $0x222] sm:$0xff]
        %v3893 = vld [vmem:[%s3317 + $0x232] sm:$0xff]
        %v3894 = vld [vmem:[%s3317 + $0x242] sm:$0xff]
        %v3895 = vld [vmem:[%s3317 + $0x252] sm:$0xff]
        %v3897 = vsel %vm1322, %v3864, 0
        %v3900 = vsel %vm1322, %v3865, 0
        %v3903 = vsel %vm1322, %v3866, 0
        %v3906 = vsel %vm1322, %v3867, 0
        %v3909 = vsel %vm1322, %v3868, 0
        %v3912 = vsel %vm1322, %v3869, 0
        %v3915 = vsel %vm1322, %v3870, 0
        %v3918 = vsel %vm1322, %v3871, 0
        %v3921 = vsel %vm1322, %v3872, 0
        %v3924 = vsel %vm1322, %v3873, 0
        %v3927 = vsel %vm1322, %v3874, 0
        %v3930 = vsel %vm1322, %v3875, 0
        %v3933 = vsel %vm1322, %v3876, 0
        %v3936 = vsel %vm1322, %v3877, 0
        %v3939 = vsel %vm1322, %v3878, 0
        %v3942 = vsel %vm1322, %v3879, 0
        %v3945 = vsel %vm1322, %v3880, 0
        %v3948 = vsel %vm1322, %v3881, 0
        %v3951 = vsel %vm1322, %v3882, 0
        %v3954 = vsel %vm1322, %v3883, 0
        %v3957 = vsel %vm1322, %v3884, 0
        %v3960 = vsel %vm1322, %v3885, 0
        %v3963 = vsel %vm1322, %v3886, 0
        %v3966 = vsel %vm1322, %v3887, 0
        %v3969 = vsel %vm1322, %v3888, 0
        %v3972 = vsel %vm1322, %v3889, 0
        %v3975 = vsel %vm1322, %v3890, 0
        %v3978 = vsel %vm1322, %v3891, 0
        %v3981 = vsel %vm1322, %v3892, 0
        %v3984 = vsel %vm1322, %v3893, 0
        %v3987 = vsel %vm1322, %v3894, 0
        %v3990 = vsel %vm1322, %v3895, 0
        %3992 = vmatpush.msra.mxu0 0.0
        %3993 = vmatpush.msra.mxu0 0.0
        %3994 = vmatpush.msra.mxu0 0.0
        %3995 = vmatpush.msra.mxu0 0.0
        %3996 = vmatpush.msra.mxu0 0.0
        %3997 = vmatpush.msra.mxu0 0.0
        %3998 = vmatpush.msra.mxu0 0.0
        %3999 = vmatpush.msra.mxu0 0.0
        %4000 = vmatpush.msra.mxu0 0.0
        %4001 = vmatpush.msra.mxu0 0.0
        %4002 = vmatpush.msra.mxu0 0.0
        %4003 = vmatpush.msra.mxu0 0.0
        %4004 = vmatpush.msra.mxu0 %v958
        %4005 = vmatpush.msra.mxu0 %v957
        %4006 = vmatpush.msra.mxu0 %v956
        %4007 = vmatpush.msra.mxu0 %v955
        %4008 = vmatmul.f32.gmra.mxu0 %v3897
        %v4009 = vpop.f32.mrf.mxu0
        %v4010 = vadd.f32 0.0, %v4009
        %4011 = vmatmul.f32.gmra.mxu0 %v3900
        %v4012 = vpop.f32.mrf.mxu0
        %v4013 = vadd.f32 0.0, %v4012
        %4014 = vmatmul.f32.gmra.mxu0 %v3903
        %v4015 = vpop.f32.mrf.mxu0
        %v4016 = vadd.f32 0.0, %v4015
        %4017 = vmatmul.f32.gmra.mxu0 %v3906
        %v4018 = vpop.f32.mrf.mxu0
        %v4019 = vadd.f32 0.0, %v4018
        %4020 = vmatmul.f32.gmra.mxu0 %v3909
        %v4021 = vpop.f32.mrf.mxu0
        %v4022 = vadd.f32 0.0, %v4021
        %4023 = vmatmul.f32.gmra.mxu0 %v3912
        %v4024 = vpop.f32.mrf.mxu0
        %v4025 = vadd.f32 0.0, %v4024
        %4026 = vmatmul.f32.gmra.mxu0 %v3915
        %v4027 = vpop.f32.mrf.mxu0
        %v4028 = vadd.f32 0.0, %v4027
        %4029 = vmatmul.f32.gmra.mxu0 %v3918
        %v4030 = vpop.f32.mrf.mxu0
        %v4031 = vadd.f32 0.0, %v4030
        %4032 = vmatmul.f32.gmra.mxu0 %v3921
        %v4033 = vpop.f32.mrf.mxu0
        %v4034 = vadd.f32 0.0, %v4033
        %4035 = vmatmul.f32.gmra.mxu0 %v3924
        %v4036 = vpop.f32.mrf.mxu0
        %v4037 = vadd.f32 0.0, %v4036
        %4038 = vmatmul.f32.gmra.mxu0 %v3927
        %v4039 = vpop.f32.mrf.mxu0
        %v4040 = vadd.f32 0.0, %v4039
        %4041 = vmatmul.f32.gmra.mxu0 %v3930
        %v4042 = vpop.f32.mrf.mxu0
        %v4043 = vadd.f32 0.0, %v4042
        %4044 = vmatmul.f32.gmra.mxu0 %v3933
        %v4045 = vpop.f32.mrf.mxu0
        %v4046 = vadd.f32 0.0, %v4045
        %4047 = vmatmul.f32.gmra.mxu0 %v3936
        %v4048 = vpop.f32.mrf.mxu0
        %v4049 = vadd.f32 0.0, %v4048
        %4050 = vmatmul.f32.gmra.mxu0 %v3939
        %v4051 = vpop.f32.mrf.mxu0
        %v4052 = vadd.f32 0.0, %v4051
        %4053 = vmatmul.f32.gmra.mxu0 %v3942
        %v4054 = vpop.f32.mrf.mxu0
        %v4055 = vadd.f32 0.0, %v4054
        %4056 = vmatmul.f32.gmra.mxu0 %v3945
        %v4057 = vpop.f32.mrf.mxu0
        %v4058 = vadd.f32 0.0, %v4057
        %4059 = vmatmul.f32.gmra.mxu0 %v3948
        %v4060 = vpop.f32.mrf.mxu0
        %v4061 = vadd.f32 0.0, %v4060
        %4062 = vmatmul.f32.gmra.mxu0 %v3951
        %v4063 = vpop.f32.mrf.mxu0
        %v4064 = vadd.f32 0.0, %v4063
        %4065 = vmatmul.f32.gmra.mxu0 %v3954
        %v4066 = vpop.f32.mrf.mxu0
        %v4067 = vadd.f32 0.0, %v4066
        %4068 = vmatmul.f32.gmra.mxu0 %v3957
        %v4069 = vpop.f32.mrf.mxu0
        %v4070 = vadd.f32 0.0, %v4069
        %4071 = vmatmul.f32.gmra.mxu0 %v3960
        %v4072 = vpop.f32.mrf.mxu0
        %v4073 = vadd.f32 0.0, %v4072
        %4074 = vmatmul.f32.gmra.mxu0 %v3963
        %v4075 = vpop.f32.mrf.mxu0
        %v4076 = vadd.f32 0.0, %v4075
        %4077 = vmatmul.f32.gmra.mxu0 %v3966
        %v4078 = vpop.f32.mrf.mxu0
        %v4079 = vadd.f32 0.0, %v4078
        %4080 = vmatmul.f32.gmra.mxu0 %v3969
        %v4081 = vpop.f32.mrf.mxu0
        %v4082 = vadd.f32 0.0, %v4081
        %4083 = vmatmul.f32.gmra.mxu0 %v3972
        %v4084 = vpop.f32.mrf.mxu0
        %v4085 = vadd.f32 0.0, %v4084
        %4086 = vmatmul.f32.gmra.mxu0 %v3975
        %v4087 = vpop.f32.mrf.mxu0
        %v4088 = vadd.f32 0.0, %v4087
        %4089 = vmatmul.f32.gmra.mxu0 %v3978
        %v4090 = vpop.f32.mrf.mxu0
        %v4091 = vadd.f32 0.0, %v4090
        %4092 = vmatmul.f32.gmra.mxu0 %v3981
        %v4093 = vpop.f32.mrf.mxu0
        %v4094 = vadd.f32 0.0, %v4093
        %4095 = vmatmul.f32.gmra.mxu0 %v3984
        %v4096 = vpop.f32.mrf.mxu0
        %v4097 = vadd.f32 0.0, %v4096
        %4098 = vmatmul.f32.gmra.mxu0 %v3987
        %v4099 = vpop.f32.mrf.mxu0
        %v4100 = vadd.f32 0.0, %v4099
        %4101 = vmatmul.f32.gmra.mxu0 %v3990
        %v4102 = vpop.f32.mrf.mxu0
        %v4103 = vadd.f32 0.0, %v4102
        %4104 = vdwg.mxu0
        %v4105 = vadd.f32 %v3832, %v4010
        %v4106 = vadd.f32 %v3833, %v4013
        %v4107 = vadd.f32 %v3834, %v4016
        %v4108 = vadd.f32 %v3835, %v4019
        %v4109 = vadd.f32 %v3836, %v4022
        %v4110 = vadd.f32 %v3837, %v4025
        %v4111 = vadd.f32 %v3838, %v4028
        %v4112 = vadd.f32 %v3839, %v4031
        %v4113 = vadd.f32 %v3840, %v4034
        %v4114 = vadd.f32 %v3841, %v4037
        %v4115 = vadd.f32 %v3842, %v4040
        %v4116 = vadd.f32 %v3843, %v4043
        %v4117 = vadd.f32 %v3844, %v4046
        %v4118 = vadd.f32 %v3845, %v4049
        %v4119 = vadd.f32 %v3846, %v4052
        %v4120 = vadd.f32 %v3847, %v4055
        %v4121 = vadd.f32 %v3848, %v4058
        %v4122 = vadd.f32 %v3849, %v4061
        %v4123 = vadd.f32 %v3850, %v4064
        %v4124 = vadd.f32 %v3851, %v4067
        %v4125 = vadd.f32 %v3852, %v4070
        %v4126 = vadd.f32 %v3853, %v4073
        %v4127 = vadd.f32 %v3854, %v4076
        %v4128 = vadd.f32 %v3855, %v4079
        %v4129 = vadd.f32 %v3856, %v4082
        %v4130 = vadd.f32 %v3857, %v4085
        %v4131 = vadd.f32 %v3858, %v4088
        %v4132 = vadd.f32 %v3859, %v4091
        %v4133 = vadd.f32 %v3860, %v4094
        %v4134 = vadd.f32 %v3861, %v4097
        %v4135 = vadd.f32 %v3862, %v4100
        %v4136 = vadd.f32 %v3863, %v4103
        %v4137 = vld [vmem:[#allocation3] sm:$0xff]
        %v4138 = vld [vmem:[#allocation3 + $0x8] sm:$0xff]
        %v4139 = vld [vmem:[#allocation3 + $0x10] sm:$0xff]
        %v4140 = vld [vmem:[#allocation3 + $0x18] sm:$0xff]
        %v4141 = vld [vmem:[#allocation3 + $0x20] sm:$0xff]
        %v4142 = vld [vmem:[#allocation3 + $0x28] sm:$0xff]
        %v4143 = vld [vmem:[#allocation3 + $0x30] sm:$0xff]
        %v4144 = vld [vmem:[#allocation3 + $0x38] sm:$0xff]
        %v4145 = vld [vmem:[#allocation3 + $0x40] sm:$0xff]
        %v4146 = vld [vmem:[#allocation3 + $0x48] sm:$0xff]
        %v4147 = vld [vmem:[#allocation3 + $0x50] sm:$0xff]
        %v4148 = vld [vmem:[#allocation3 + $0x58] sm:$0xff]
        %v4149 = vld [vmem:[#allocation3 + $0x60] sm:$0xff]
        %v4150 = vld [vmem:[#allocation3 + $0x68] sm:$0xff]
        %v4151 = vld [vmem:[#allocation3 + $0x70] sm:$0xff]
        %v4152 = vld [vmem:[#allocation3 + $0x78] sm:$0xff]
        %v4153 = vld [vmem:[#allocation3 + $0x80] sm:$0xff]
        %v4154 = vld [vmem:[#allocation3 + $0x88] sm:$0xff]
        %v4155 = vld [vmem:[#allocation3 + $0x90] sm:$0xff]
        %v4156 = vld [vmem:[#allocation3 + $0x98] sm:$0xff]
        %v4157 = vld [vmem:[#allocation3 + $0xa0] sm:$0xff]
        %v4158 = vld [vmem:[#allocation3 + $0xa8] sm:$0xff]
        %v4159 = vld [vmem:[#allocation3 + $0xb0] sm:$0xff]
        %v4160 = vld [vmem:[#allocation3 + $0xb8] sm:$0xff]
        %v4161 = vld [vmem:[#allocation3 + $0xc0] sm:$0xff]
        %v4162 = vld [vmem:[#allocation3 + $0xc8] sm:$0xff]
        %v4163 = vld [vmem:[#allocation3 + $0xd0] sm:$0xff]
        %v4164 = vld [vmem:[#allocation3 + $0xd8] sm:$0xff]
        %v4165 = vld [vmem:[#allocation3 + $0xe0] sm:$0xff]
        %v4166 = vld [vmem:[#allocation3 + $0xe8] sm:$0xff]
        %v4167 = vld [vmem:[#allocation3 + $0xf0] sm:$0xff]
        %v4168 = vld [vmem:[#allocation3 + $0xf8] sm:$0xff]
        %v4169 = vadd.f32 %v4137, %v4105
        %v4170 = vadd.f32 %v4138, %v4106
        %v4171 = vadd.f32 %v4139, %v4107
        %v4172 = vadd.f32 %v4140, %v4108
        %v4173 = vadd.f32 %v4141, %v4109
        %v4174 = vadd.f32 %v4142, %v4110
        %v4175 = vadd.f32 %v4143, %v4111
        %v4176 = vadd.f32 %v4144, %v4112
        %v4177 = vadd.f32 %v4145, %v4113
        %v4178 = vadd.f32 %v4146, %v4114
        %v4179 = vadd.f32 %v4147, %v4115
        %v4180 = vadd.f32 %v4148, %v4116
        %v4181 = vadd.f32 %v4149, %v4117
        %v4182 = vadd.f32 %v4150, %v4118
        %v4183 = vadd.f32 %v4151, %v4119
        %v4184 = vadd.f32 %v4152, %v4120
        %v4185 = vadd.f32 %v4153, %v4121
        %v4186 = vadd.f32 %v4154, %v4122
        %v4187 = vadd.f32 %v4155, %v4123
        %v4188 = vadd.f32 %v4156, %v4124
        %v4189 = vadd.f32 %v4157, %v4125
        %v4190 = vadd.f32 %v4158, %v4126
        %v4191 = vadd.f32 %v4159, %v4127
        %v4192 = vadd.f32 %v4160, %v4128
        %v4193 = vadd.f32 %v4161, %v4129
        %v4194 = vadd.f32 %v4162, %v4130
        %v4195 = vadd.f32 %v4163, %v4131
        %v4196 = vadd.f32 %v4164, %v4132
        %v4197 = vadd.f32 %v4165, %v4133
        %v4198 = vadd.f32 %v4166, %v4134
        %v4199 = vadd.f32 %v4167, %v4135
        %v4200 = vadd.f32 %v4168, %v4136
        %vm4201 = vcmp.ge.f32.partialorder %v4169, 1.0
        %vm4202 = vcmp.ge.f32.partialorder %v4170, 1.0
        %vm4203 = vcmp.ge.f32.partialorder %v4171, 1.0
        %vm4204 = vcmp.ge.f32.partialorder %v4172, 1.0
        %vm4205 = vcmp.ge.f32.partialorder %v4173, 1.0
        %vm4206 = vcmp.ge.f32.partialorder %v4174, 1.0
        %vm4207 = vcmp.ge.f32.partialorder %v4175, 1.0
        %vm4208 = vcmp.ge.f32.partialorder %v4176, 1.0
        %vm4209 = vcmp.ge.f32.partialorder %v4177, 1.0
        %vm4210 = vcmp.ge.f32.partialorder %v4178, 1.0
        %vm4211 = vcmp.ge.f32.partialorder %v4179, 1.0
        %vm4212 = vcmp.ge.f32.partialorder %v4180, 1.0
        %vm4213 = vcmp.ge.f32.partialorder %v4181, 1.0
        %vm4214 = vcmp.ge.f32.partialorder %v4182, 1.0
        %vm4215 = vcmp.ge.f32.partialorder %v4183, 1.0
        %vm4216 = vcmp.ge.f32.partialorder %v4184, 1.0
        %vm4217 = vcmp.ge.f32.partialorder %v4185, 1.0
        %vm4218 = vcmp.ge.f32.partialorder %v4186, 1.0
        %vm4219 = vcmp.ge.f32.partialorder %v4187, 1.0
        %vm4220 = vcmp.ge.f32.partialorder %v4188, 1.0
        %vm4221 = vcmp.ge.f32.partialorder %v4189, 1.0
        %vm4222 = vcmp.ge.f32.partialorder %v4190, 1.0
        %vm4223 = vcmp.ge.f32.partialorder %v4191, 1.0
        %vm4224 = vcmp.ge.f32.partialorder %v4192, 1.0
        %vm4225 = vcmp.ge.f32.partialorder %v4193, 1.0
        %vm4226 = vcmp.ge.f32.partialorder %v4194, 1.0
        %vm4227 = vcmp.ge.f32.partialorder %v4195, 1.0
        %vm4228 = vcmp.ge.f32.partialorder %v4196, 1.0
        %vm4229 = vcmp.ge.f32.partialorder %v4197, 1.0
        %vm4230 = vcmp.ge.f32.partialorder %v4198, 1.0
        %vm4231 = vcmp.ge.f32.partialorder %v4199, 1.0
        %vm4232 = vcmp.ge.f32.partialorder %v4200, 1.0
        %v4233 = vsel %vm4201, 1, 0
        %v4234 = vsel %vm4202, 1, 0
        %v4235 = vsel %vm4203, 1, 0
        %v4236 = vsel %vm4204, 1, 0
        %v4237 = vsel %vm4205, 1, 0
        %v4238 = vsel %vm4206, 1, 0
        %v4239 = vsel %vm4207, 1, 0
        %v4240 = vsel %vm4208, 1, 0
        %v4241 = vsel %vm4209, 1, 0
        %v4242 = vsel %vm4210, 1, 0
        %v4243 = vsel %vm4211, 1, 0
        %v4244 = vsel %vm4212, 1, 0
        %v4245 = vsel %vm4213, 1, 0
        %v4246 = vsel %vm4214, 1, 0
        %v4247 = vsel %vm4215, 1, 0
        %v4248 = vsel %vm4216, 1, 0
        %v4249 = vsel %vm4217, 1, 0
        %v4250 = vsel %vm4218, 1, 0
        %v4251 = vsel %vm4219, 1, 0
        %v4252 = vsel %vm4220, 1, 0
        %v4253 = vsel %vm4221, 1, 0
        %v4254 = vsel %vm4222, 1, 0
        %v4255 = vsel %vm4223, 1, 0
        %v4256 = vsel %vm4224, 1, 0
        %v4257 = vsel %vm4225, 1, 0
        %v4258 = vsel %vm4226, 1, 0
        %v4259 = vsel %vm4227, 1, 0
        %v4260 = vsel %vm4228, 1, 0
        %v4261 = vsel %vm4229, 1, 0
        %v4262 = vsel %vm4230, 1, 0
        %v4263 = vsel %vm4231, 1, 0
        %v4264 = vsel %vm4232, 1, 0
        %v4265 = vcvt.s32.f32 %v4233
        %v4266 = vcvt.s32.f32 %v4234
        %v4267 = vcvt.s32.f32 %v4235
        %v4268 = vcvt.s32.f32 %v4236
        %v4269 = vcvt.s32.f32 %v4237
        %v4270 = vcvt.s32.f32 %v4238
        %v4271 = vcvt.s32.f32 %v4239
        %v4272 = vcvt.s32.f32 %v4240
        %v4273 = vcvt.s32.f32 %v4241
        %v4274 = vcvt.s32.f32 %v4242
        %v4275 = vcvt.s32.f32 %v4243
        %v4276 = vcvt.s32.f32 %v4244
        %v4277 = vcvt.s32.f32 %v4245
        %v4278 = vcvt.s32.f32 %v4246
        %v4279 = vcvt.s32.f32 %v4247
        %v4280 = vcvt.s32.f32 %v4248
        %v4281 = vcvt.s32.f32 %v4249
        %v4282 = vcvt.s32.f32 %v4250
        %v4283 = vcvt.s32.f32 %v4251
        %v4284 = vcvt.s32.f32 %v4252
        %v4285 = vcvt.s32.f32 %v4253
        %v4286 = vcvt.s32.f32 %v4254
        %v4287 = vcvt.s32.f32 %v4255
        %v4288 = vcvt.s32.f32 %v4256
        %v4289 = vcvt.s32.f32 %v4257
        %v4290 = vcvt.s32.f32 %v4258
        %v4291 = vcvt.s32.f32 %v4259
        %v4292 = vcvt.s32.f32 %v4260
        %v4293 = vcvt.s32.f32 %v4261
        %v4294 = vcvt.s32.f32 %v4262
        %v4295 = vcvt.s32.f32 %v4263
        %v4296 = vcvt.s32.f32 %v4264
        %v4297 = vsel %vm4201, 0.0, %v4169
        %v4298 = vsel %vm4202, 0.0, %v4170
        %v4299 = vsel %vm4203, 0.0, %v4171
        %v4300 = vsel %vm4204, 0.0, %v4172
        %v4301 = vsel %vm4205, 0.0, %v4173
        %v4302 = vsel %vm4206, 0.0, %v4174
        %v4303 = vsel %vm4207, 0.0, %v4175
        %v4304 = vsel %vm4208, 0.0, %v4176
        %v4305 = vsel %vm4209, 0.0, %v4177
        %v4306 = vsel %vm4210, 0.0, %v4178
        %v4307 = vsel %vm4211, 0.0, %v4179
        %v4308 = vsel %vm4212, 0.0, %v4180
        %v4309 = vsel %vm4213, 0.0, %v4181
        %v4310 = vsel %vm4214, 0.0, %v4182
        %v4311 = vsel %vm4215, 0.0, %v4183
        %v4312 = vsel %vm4216, 0.0, %v4184
        %v4313 = vsel %vm4217, 0.0, %v4185
        %v4314 = vsel %vm4218, 0.0, %v4186
        %v4315 = vsel %vm4219, 0.0, %v4187
        %v4316 = vsel %vm4220, 0.0, %v4188
        %v4317 = vsel %vm4221, 0.0, %v4189
        %v4318 = vsel %vm4222, 0.0, %v4190
        %v4319 = vsel %vm4223, 0.0, %v4191
        %v4320 = vsel %vm4224, 0.0, %v4192
        %v4321 = vsel %vm4225, 0.0, %v4193
        %v4322 = vsel %vm4226, 0.0, %v4194
        %v4323 = vsel %vm4227, 0.0, %v4195
        %v4324 = vsel %vm4228, 0.0, %v4196
        %v4325 = vsel %vm4229, 0.0, %v4197
        %v4326 = vsel %vm4230, 0.0, %v4198
        %v4327 = vsel %vm4231, 0.0, %v4199
        %v4328 = vsel %vm4232, 0.0, %v4200
        %4329 = vst.msk [vmem:[#allocation3] sm:$0xff] %vm1322, %v4297
        %4330 = vst.msk [vmem:[#allocation3 + $0x8] sm:$0xff] %vm1322, %v4298
        %4331 = vst.msk [vmem:[#allocation3 + $0x10] sm:$0xff] %vm1322, %v4299
        %4332 = vst.msk [vmem:[#allocation3 + $0x18] sm:$0xff] %vm1322, %v4300
        %4333 = vst.msk [vmem:[#allocation3 + $0x20] sm:$0xff] %vm1322, %v4301
        %4334 = vst.msk [vmem:[#allocation3 + $0x28] sm:$0xff] %vm1322, %v4302
        %4335 = vst.msk [vmem:[#allocation3 + $0x30] sm:$0xff] %vm1322, %v4303
        %4336 = vst.msk [vmem:[#allocation3 + $0x38] sm:$0xff] %vm1322, %v4304
        %4337 = vst.msk [vmem:[#allocation3 + $0x40] sm:$0xff] %vm1322, %v4305
        %4338 = vst.msk [vmem:[#allocation3 + $0x48] sm:$0xff] %vm1322, %v4306
        %4339 = vst.msk [vmem:[#allocation3 + $0x50] sm:$0xff] %vm1322, %v4307
        %4340 = vst.msk [vmem:[#allocation3 + $0x58] sm:$0xff] %vm1322, %v4308
        %4341 = vst.msk [vmem:[#allocation3 + $0x60] sm:$0xff] %vm1322, %v4309
        %4342 = vst.msk [vmem:[#allocation3 + $0x68] sm:$0xff] %vm1322, %v4310
        %4343 = vst.msk [vmem:[#allocation3 + $0x70] sm:$0xff] %vm1322, %v4311
        %4344 = vst.msk [vmem:[#allocation3 + $0x78] sm:$0xff] %vm1322, %v4312
        %4345 = vst.msk [vmem:[#allocation3 + $0x80] sm:$0xff] %vm1322, %v4313
        %4346 = vst.msk [vmem:[#allocation3 + $0x88] sm:$0xff] %vm1322, %v4314
        %4347 = vst.msk [vmem:[#allocation3 + $0x90] sm:$0xff] %vm1322, %v4315
        %4348 = vst.msk [vmem:[#allocation3 + $0x98] sm:$0xff] %vm1322, %v4316
        %4349 = vst.msk [vmem:[#allocation3 + $0xa0] sm:$0xff] %vm1322, %v4317
        %4350 = vst.msk [vmem:[#allocation3 + $0xa8] sm:$0xff] %vm1322, %v4318
        %4351 = vst.msk [vmem:[#allocation3 + $0xb0] sm:$0xff] %vm1322, %v4319
        %4352 = vst.msk [vmem:[#allocation3 + $0xb8] sm:$0xff] %vm1322, %v4320
        %4353 = vst.msk [vmem:[#allocation3 + $0xc0] sm:$0xff] %vm1322, %v4321
        %4354 = vst.msk [vmem:[#allocation3 + $0xc8] sm:$0xff] %vm1322, %v4322
        %4355 = vst.msk [vmem:[#allocation3 + $0xd0] sm:$0xff] %vm1322, %v4323
        %4356 = vst.msk [vmem:[#allocation3 + $0xd8] sm:$0xff] %vm1322, %v4324
        %4357 = vst.msk [vmem:[#allocation3 + $0xe0] sm:$0xff] %vm1322, %v4325
        %4358 = vst.msk [vmem:[#allocation3 + $0xe8] sm:$0xff] %vm1322, %v4326
        %4359 = vst.msk [vmem:[#allocation3 + $0xf0] sm:$0xff] %vm1322, %v4327
        %4360 = vst.msk [vmem:[#allocation3 + $0xf8] sm:$0xff] %vm1322, %v4328
        %v4362 = vperm.slane %v964, 0
        %v4365 = vsel %vm1322, %v4265, 0
        %v4368 = vsel %vm1322, %v4266, 0
        %v4371 = vsel %vm1322, %v4267, 0
        %v4374 = vsel %vm1322, %v4268, 0
        %v4377 = vsel %vm1322, %v4269, 0
        %v4380 = vsel %vm1322, %v4270, 0
        %v4383 = vsel %vm1322, %v4271, 0
        %v4386 = vsel %vm1322, %v4272, 0
        %v4389 = vsel %vm1322, %v4273, 0
        %v4392 = vsel %vm1322, %v4274, 0
        %v4395 = vsel %vm1322, %v4275, 0
        %v4398 = vsel %vm1322, %v4276, 0
        %v4401 = vsel %vm1322, %v4277, 0
        %v4404 = vsel %vm1322, %v4278, 0
        %v4407 = vsel %vm1322, %v4279, 0
        %v4410 = vsel %vm1322, %v4280, 0
        %v4413 = vsel %vm1322, %v4281, 0
        %v4416 = vsel %vm1322, %v4282, 0
        %v4419 = vsel %vm1322, %v4283, 0
        %v4422 = vsel %vm1322, %v4284, 0
        %v4425 = vsel %vm1322, %v4285, 0
        %v4428 = vsel %vm1322, %v4286, 0
        %v4431 = vsel %vm1322, %v4287, 0
        %v4434 = vsel %vm1322, %v4288, 0
        %v4437 = vsel %vm1322, %v4289, 0
        %v4440 = vsel %vm1322, %v4290, 0
        %v4443 = vsel %vm1322, %v4291, 0
        %v4446 = vsel %vm1322, %v4292, 0
        %v4449 = vsel %vm1322, %v4293, 0
        %v4452 = vsel %vm1322, %v4294, 0
        %v4455 = vsel %vm1322, %v4295, 0
        %v4458 = vsel %vm1322, %v4296, 0
        %4460 = vmatpush.msra.mxu0 0.0
        %4461 = vmatpush.msra.mxu0 0.0
        %4462 = vmatpush.msra.mxu0 0.0
        %4463 = vmatpush.msra.mxu0 0.0
        %4464 = vmatpush.msra.mxu0 0.0
        %4465 = vmatpush.msra.mxu0 0.0
        %4466 = vmatpush.msra.mxu0 0.0
        %4467 = vmatpush.msra.mxu0 0.0
        %4468 = vmatpush.msra.mxu0 0.0
        %4469 = vmatpush.msra.mxu0 0.0
        %4470 = vmatpush.msra.mxu0 0.0
        %4471 = vmatpush.msra.mxu0 0.0
        %4472 = vmatpush.msra.mxu0 %v962
        %4473 = vmatpush.msra.mxu0 %v961
        %4474 = vmatpush.msra.mxu0 %v960
        %4475 = vmatpush.msra.mxu0 %v959
        %4476 = vmatmul.f32.gmra.mxu0 %v4365
        %v4477 = vpop.f32.mrf.mxu0
        %v4478 = vadd.f32 %v4362, %v4477
        %4479 = vmatmul.f32.gmra.mxu0 %v4368
        %v4480 = vpop.f32.mrf.mxu0
        %v4481 = vadd.f32 %v4362, %v4480
        %4482 = vmatmul.f32.gmra.mxu0 %v4371
        %v4483 = vpop.f32.mrf.mxu0
        %v4484 = vadd.f32 %v4362, %v4483
        %4485 = vmatmul.f32.gmra.mxu0 %v4374
        %v4486 = vpop.f32.mrf.mxu0
        %v4487 = vadd.f32 %v4362, %v4486
        %4488 = vmatmul.f32.gmra.mxu0 %v4377
        %v4489 = vpop.f32.mrf.mxu0
        %v4490 = vadd.f32 %v4362, %v4489
        %4491 = vmatmul.f32.gmra.mxu0 %v4380
        %v4492 = vpop.f32.mrf.mxu0
        %v4493 = vadd.f32 %v4362, %v4492
        %4494 = vmatmul.f32.gmra.mxu0 %v4383
        %v4495 = vpop.f32.mrf.mxu0
        %v4496 = vadd.f32 %v4362, %v4495
        %4497 = vmatmul.f32.gmra.mxu0 %v4386
        %v4498 = vpop.f32.mrf.mxu0
        %v4499 = vadd.f32 %v4362, %v4498
        %4500 = vmatmul.f32.gmra.mxu0 %v4389
        %v4501 = vpop.f32.mrf.mxu0
        %v4502 = vadd.f32 %v4362, %v4501
        %4503 = vmatmul.f32.gmra.mxu0 %v4392
        %v4504 = vpop.f32.mrf.mxu0
        %v4505 = vadd.f32 %v4362, %v4504
        %4506 = vmatmul.f32.gmra.mxu0 %v4395
        %v4507 = vpop.f32.mrf.mxu0
        %v4508 = vadd.f32 %v4362, %v4507
        %4509 = vmatmul.f32.gmra.mxu0 %v4398
        %v4510 = vpop.f32.mrf.mxu0
        %v4511 = vadd.f32 %v4362, %v4510
        %4512 = vmatmul.f32.gmra.mxu0 %v4401
        %v4513 = vpop.f32.mrf.mxu0
        %v4514 = vadd.f32 %v4362, %v4513
        %4515 = vmatmul.f32.gmra.mxu0 %v4404
        %v4516 = vpop.f32.mrf.mxu0
        %v4517 = vadd.f32 %v4362, %v4516
        %4518 = vmatmul.f32.gmra.mxu0 %v4407
        %v4519 = vpop.f32.mrf.mxu0
        %v4520 = vadd.f32 %v4362, %v4519
        %4521 = vmatmul.f32.gmra.mxu0 %v4410
        %v4522 = vpop.f32.mrf.mxu0
        %v4523 = vadd.f32 %v4362, %v4522
        %4524 = vmatmul.f32.gmra.mxu0 %v4413
        %v4525 = vpop.f32.mrf.mxu0
        %v4526 = vadd.f32 %v4362, %v4525
        %4527 = vmatmul.f32.gmra.mxu0 %v4416
        %v4528 = vpop.f32.mrf.mxu0
        %v4529 = vadd.f32 %v4362, %v4528
        %4530 = vmatmul.f32.gmra.mxu0 %v4419
        %v4531 = vpop.f32.mrf.mxu0
        %v4532 = vadd.f32 %v4362, %v4531
        %4533 = vmatmul.f32.gmra.mxu0 %v4422
        %v4534 = vpop.f32.mrf.mxu0
        %v4535 = vadd.f32 %v4362, %v4534
        %4536 = vmatmul.f32.gmra.mxu0 %v4425
        %v4537 = vpop.f32.mrf.mxu0
        %v4538 = vadd.f32 %v4362, %v4537
        %4539 = vmatmul.f32.gmra.mxu0 %v4428
        %v4540 = vpop.f32.mrf.mxu0
        %v4541 = vadd.f32 %v4362, %v4540
        %4542 = vmatmul.f32.gmra.mxu0 %v4431
        %v4543 = vpop.f32.mrf.mxu0
        %v4544 = vadd.f32 %v4362, %v4543
        %4545 = vmatmul.f32.gmra.mxu0 %v4434
        %v4546 = vpop.f32.mrf.mxu0
        %v4547 = vadd.f32 %v4362, %v4546
        %4548 = vmatmul.f32.gmra.mxu0 %v4437
        %v4549 = vpop.f32.mrf.mxu0
        %v4550 = vadd.f32 %v4362, %v4549
        %4551 = vmatmul.f32.gmra.mxu0 %v4440
        %v4552 = vpop.f32.mrf.mxu0
        %v4553 = vadd.f32 %v4362, %v4552
        %4554 = vmatmul.f32.gmra.mxu0 %v4443
        %v4555 = vpop.f32.mrf.mxu0
        %v4556 = vadd.f32 %v4362, %v4555
        %4557 = vmatmul.f32.gmra.mxu0 %v4446
        %v4558 = vpop.f32.mrf.mxu0
        %v4559 = vadd.f32 %v4362, %v4558
        %4560 = vmatmul.f32.gmra.mxu0 %v4449
        %v4561 = vpop.f32.mrf.mxu0
        %v4562 = vadd.f32 %v4362, %v4561
        %4563 = vmatmul.f32.gmra.mxu0 %v4452
        %v4564 = vpop.f32.mrf.mxu0
        %v4565 = vadd.f32 %v4362, %v4564
        %4566 = vmatmul.f32.gmra.mxu0 %v4455
        %v4567 = vpop.f32.mrf.mxu0
        %v4568 = vadd.f32 %v4362, %v4567
        %4569 = vmatmul.f32.gmra.mxu0 %v4458
        %v4570 = vpop.f32.mrf.mxu0
        %v4571 = vadd.f32 %v4362, %v4570
        %4572 = vdwg.mxu0
        %v4573 = vld [vmem:[#allocation4] sm:$0xff]
        %v4574 = vld [vmem:[#allocation4 + $0x8] sm:$0xff]
        %v4575 = vld [vmem:[#allocation4 + $0x10] sm:$0xff]
        %v4576 = vld [vmem:[#allocation4 + $0x18] sm:$0xff]
        %v4577 = vld [vmem:[#allocation4 + $0x20] sm:$0xff]
        %v4578 = vld [vmem:[#allocation4 + $0x28] sm:$0xff]
        %v4579 = vld [vmem:[#allocation4 + $0x30] sm:$0xff]
        %v4580 = vld [vmem:[#allocation4 + $0x38] sm:$0xff]
        %v4581 = vld [vmem:[#allocation4 + $0x40] sm:$0xff]
        %v4582 = vld [vmem:[#allocation4 + $0x48] sm:$0xff]
        %v4583 = vld [vmem:[#allocation4 + $0x50] sm:$0xff]
        %v4584 = vld [vmem:[#allocation4 + $0x58] sm:$0xff]
        %v4585 = vld [vmem:[#allocation4 + $0x60] sm:$0xff]
        %v4586 = vld [vmem:[#allocation4 + $0x68] sm:$0xff]
        %v4587 = vld [vmem:[#allocation4 + $0x70] sm:$0xff]
        %v4588 = vld [vmem:[#allocation4 + $0x78] sm:$0xff]
        %v4589 = vld [vmem:[#allocation4 + $0x80] sm:$0xff]
        %v4590 = vld [vmem:[#allocation4 + $0x88] sm:$0xff]
        %v4591 = vld [vmem:[#allocation4 + $0x90] sm:$0xff]
        %v4592 = vld [vmem:[#allocation4 + $0x98] sm:$0xff]
        %v4593 = vld [vmem:[#allocation4 + $0xa0] sm:$0xff]
        %v4594 = vld [vmem:[#allocation4 + $0xa8] sm:$0xff]
        %v4595 = vld [vmem:[#allocation4 + $0xb0] sm:$0xff]
        %v4596 = vld [vmem:[#allocation4 + $0xb8] sm:$0xff]
        %v4597 = vld [vmem:[#allocation4 + $0xc0] sm:$0xff]
        %v4598 = vld [vmem:[#allocation4 + $0xc8] sm:$0xff]
        %v4599 = vld [vmem:[#allocation4 + $0xd0] sm:$0xff]
        %v4600 = vld [vmem:[#allocation4 + $0xd8] sm:$0xff]
        %v4601 = vld [vmem:[#allocation4 + $0xe0] sm:$0xff]
        %v4602 = vld [vmem:[#allocation4 + $0xe8] sm:$0xff]
        %v4603 = vld [vmem:[#allocation4 + $0xf0] sm:$0xff]
        %v4604 = vld [vmem:[#allocation4 + $0xf8] sm:$0xff]
        %v4605 = vadd.f32 %v4573, %v4478
        %v4606 = vadd.f32 %v4574, %v4481
        %v4607 = vadd.f32 %v4575, %v4484
        %v4608 = vadd.f32 %v4576, %v4487
        %v4609 = vadd.f32 %v4577, %v4490
        %v4610 = vadd.f32 %v4578, %v4493
        %v4611 = vadd.f32 %v4579, %v4496
        %v4612 = vadd.f32 %v4580, %v4499
        %v4613 = vadd.f32 %v4581, %v4502
        %v4614 = vadd.f32 %v4582, %v4505
        %v4615 = vadd.f32 %v4583, %v4508
        %v4616 = vadd.f32 %v4584, %v4511
        %v4617 = vadd.f32 %v4585, %v4514
        %v4618 = vadd.f32 %v4586, %v4517
        %v4619 = vadd.f32 %v4587, %v4520
        %v4620 = vadd.f32 %v4588, %v4523
        %v4621 = vadd.f32 %v4589, %v4526
        %v4622 = vadd.f32 %v4590, %v4529
        %v4623 = vadd.f32 %v4591, %v4532
        %v4624 = vadd.f32 %v4592, %v4535
        %v4625 = vadd.f32 %v4593, %v4538
        %v4626 = vadd.f32 %v4594, %v4541
        %v4627 = vadd.f32 %v4595, %v4544
        %v4628 = vadd.f32 %v4596, %v4547
        %v4629 = vadd.f32 %v4597, %v4550
        %v4630 = vadd.f32 %v4598, %v4553
        %v4631 = vadd.f32 %v4599, %v4556
        %v4632 = vadd.f32 %v4600, %v4559
        %v4633 = vadd.f32 %v4601, %v4562
        %v4634 = vadd.f32 %v4602, %v4565
        %v4635 = vadd.f32 %v4603, %v4568
        %v4636 = vadd.f32 %v4604, %v4571
        %vm4637 = vcmp.ge.f32.partialorder %v4605, 1.0
        %vm4638 = vcmp.ge.f32.partialorder %v4606, 1.0
        %vm4639 = vcmp.ge.f32.partialorder %v4607, 1.0
        %vm4640 = vcmp.ge.f32.partialorder %v4608, 1.0
        %vm4641 = vcmp.ge.f32.partialorder %v4609, 1.0
        %vm4642 = vcmp.ge.f32.partialorder %v4610, 1.0
        %vm4643 = vcmp.ge.f32.partialorder %v4611, 1.0
        %vm4644 = vcmp.ge.f32.partialorder %v4612, 1.0
        %vm4645 = vcmp.ge.f32.partialorder %v4613, 1.0
        %vm4646 = vcmp.ge.f32.partialorder %v4614, 1.0
        %vm4647 = vcmp.ge.f32.partialorder %v4615, 1.0
        %vm4648 = vcmp.ge.f32.partialorder %v4616, 1.0
        %vm4649 = vcmp.ge.f32.partialorder %v4617, 1.0
        %vm4650 = vcmp.ge.f32.partialorder %v4618, 1.0
        %vm4651 = vcmp.ge.f32.partialorder %v4619, 1.0
        %vm4652 = vcmp.ge.f32.partialorder %v4620, 1.0
        %vm4653 = vcmp.ge.f32.partialorder %v4621, 1.0
        %vm4654 = vcmp.ge.f32.partialorder %v4622, 1.0
        %vm4655 = vcmp.ge.f32.partialorder %v4623, 1.0
        %vm4656 = vcmp.ge.f32.partialorder %v4624, 1.0
        %vm4657 = vcmp.ge.f32.partialorder %v4625, 1.0
        %vm4658 = vcmp.ge.f32.partialorder %v4626, 1.0
        %vm4659 = vcmp.ge.f32.partialorder %v4627, 1.0
        %vm4660 = vcmp.ge.f32.partialorder %v4628, 1.0
        %vm4661 = vcmp.ge.f32.partialorder %v4629, 1.0
        %vm4662 = vcmp.ge.f32.partialorder %v4630, 1.0
        %vm4663 = vcmp.ge.f32.partialorder %v4631, 1.0
        %vm4664 = vcmp.ge.f32.partialorder %v4632, 1.0
        %vm4665 = vcmp.ge.f32.partialorder %v4633, 1.0
        %vm4666 = vcmp.ge.f32.partialorder %v4634, 1.0
        %vm4667 = vcmp.ge.f32.partialorder %v4635, 1.0
        %vm4668 = vcmp.ge.f32.partialorder %v4636, 1.0
        %v4669 = vsel %vm4637, 1, 0
        %v4670 = vsel %vm4638, 1, 0
        %v4671 = vsel %vm4639, 1, 0
        %v4672 = vsel %vm4640, 1, 0
        %v4673 = vsel %vm4641, 1, 0
        %v4674 = vsel %vm4642, 1, 0
        %v4675 = vsel %vm4643, 1, 0
        %v4676 = vsel %vm4644, 1, 0
        %v4677 = vsel %vm4645, 1, 0
        %v4678 = vsel %vm4646, 1, 0
        %v4679 = vsel %vm4647, 1, 0
        %v4680 = vsel %vm4648, 1, 0
        %v4681 = vsel %vm4649, 1, 0
        %v4682 = vsel %vm4650, 1, 0
        %v4683 = vsel %vm4651, 1, 0
        %v4684 = vsel %vm4652, 1, 0
        %v4685 = vsel %vm4653, 1, 0
        %v4686 = vsel %vm4654, 1, 0
        %v4687 = vsel %vm4655, 1, 0
        %v4688 = vsel %vm4656, 1, 0
        %v4689 = vsel %vm4657, 1, 0
        %v4690 = vsel %vm4658, 1, 0
        %v4691 = vsel %vm4659, 1, 0
        %v4692 = vsel %vm4660, 1, 0
        %v4693 = vsel %vm4661, 1, 0
        %v4694 = vsel %vm4662, 1, 0
        %v4695 = vsel %vm4663, 1, 0
        %v4696 = vsel %vm4664, 1, 0
        %v4697 = vsel %vm4665, 1, 0
        %v4698 = vsel %vm4666, 1, 0
        %v4699 = vsel %vm4667, 1, 0
        %v4700 = vsel %vm4668, 1, 0
        %v4701 = vcvt.s32.f32 %v4669
        %v4702 = vcvt.s32.f32 %v4670
        %v4703 = vcvt.s32.f32 %v4671
        %v4704 = vcvt.s32.f32 %v4672
        %v4705 = vcvt.s32.f32 %v4673
        %v4706 = vcvt.s32.f32 %v4674
        %v4707 = vcvt.s32.f32 %v4675
        %v4708 = vcvt.s32.f32 %v4676
        %v4709 = vcvt.s32.f32 %v4677
        %v4710 = vcvt.s32.f32 %v4678
        %v4711 = vcvt.s32.f32 %v4679
        %v4712 = vcvt.s32.f32 %v4680
        %v4713 = vcvt.s32.f32 %v4681
        %v4714 = vcvt.s32.f32 %v4682
        %v4715 = vcvt.s32.f32 %v4683
        %v4716 = vcvt.s32.f32 %v4684
        %v4717 = vcvt.s32.f32 %v4685
        %v4718 = vcvt.s32.f32 %v4686
        %v4719 = vcvt.s32.f32 %v4687
        %v4720 = vcvt.s32.f32 %v4688
        %v4721 = vcvt.s32.f32 %v4689
        %v4722 = vcvt.s32.f32 %v4690
        %v4723 = vcvt.s32.f32 %v4691
        %v4724 = vcvt.s32.f32 %v4692
        %v4725 = vcvt.s32.f32 %v4693
        %v4726 = vcvt.s32.f32 %v4694
        %v4727 = vcvt.s32.f32 %v4695
        %v4728 = vcvt.s32.f32 %v4696
        %v4729 = vcvt.s32.f32 %v4697
        %v4730 = vcvt.s32.f32 %v4698
        %v4731 = vcvt.s32.f32 %v4699
        %v4732 = vcvt.s32.f32 %v4700
        %v4733 = vsel %vm4637, 0.0, %v4605
        %v4734 = vsel %vm4638, 0.0, %v4606
        %v4735 = vsel %vm4639, 0.0, %v4607
        %v4736 = vsel %vm4640, 0.0, %v4608
        %v4737 = vsel %vm4641, 0.0, %v4609
        %v4738 = vsel %vm4642, 0.0, %v4610
        %v4739 = vsel %vm4643, 0.0, %v4611
        %v4740 = vsel %vm4644, 0.0, %v4612
        %v4741 = vsel %vm4645, 0.0, %v4613
        %v4742 = vsel %vm4646, 0.0, %v4614
        %v4743 = vsel %vm4647, 0.0, %v4615
        %v4744 = vsel %vm4648, 0.0, %v4616
        %v4745 = vsel %vm4649, 0.0, %v4617
        %v4746 = vsel %vm4650, 0.0, %v4618
        %v4747 = vsel %vm4651, 0.0, %v4619
        %v4748 = vsel %vm4652, 0.0, %v4620
        %v4749 = vsel %vm4653, 0.0, %v4621
        %v4750 = vsel %vm4654, 0.0, %v4622
        %v4751 = vsel %vm4655, 0.0, %v4623
        %v4752 = vsel %vm4656, 0.0, %v4624
        %v4753 = vsel %vm4657, 0.0, %v4625
        %v4754 = vsel %vm4658, 0.0, %v4626
        %v4755 = vsel %vm4659, 0.0, %v4627
        %v4756 = vsel %vm4660, 0.0, %v4628
        %v4757 = vsel %vm4661, 0.0, %v4629
        %v4758 = vsel %vm4662, 0.0, %v4630
        %v4759 = vsel %vm4663, 0.0, %v4631
        %v4760 = vsel %vm4664, 0.0, %v4632
        %v4761 = vsel %vm4665, 0.0, %v4633
        %v4762 = vsel %vm4666, 0.0, %v4634
        %v4763 = vsel %vm4667, 0.0, %v4635
        %v4764 = vsel %vm4668, 0.0, %v4636
        %4765 = vst [vmem:[#allocation4] sm:$0xff] %v4733
        %4766 = vst [vmem:[#allocation4 + $0x8] sm:$0xff] %v4734
        %4767 = vst [vmem:[#allocation4 + $0x10] sm:$0xff] %v4735
        %4768 = vst [vmem:[#allocation4 + $0x18] sm:$0xff] %v4736
        %4769 = vst [vmem:[#allocation4 + $0x20] sm:$0xff] %v4737
        %4770 = vst [vmem:[#allocation4 + $0x28] sm:$0xff] %v4738
        %4771 = vst [vmem:[#allocation4 + $0x30] sm:$0xff] %v4739
        %4772 = vst [vmem:[#allocation4 + $0x38] sm:$0xff] %v4740
        %4773 = vst [vmem:[#allocation4 + $0x40] sm:$0xff] %v4741
        %4774 = vst [vmem:[#allocation4 + $0x48] sm:$0xff] %v4742
        %4775 = vst [vmem:[#allocation4 + $0x50] sm:$0xff] %v4743
        %4776 = vst [vmem:[#allocation4 + $0x58] sm:$0xff] %v4744
        %4777 = vst [vmem:[#allocation4 + $0x60] sm:$0xff] %v4745
        %4778 = vst [vmem:[#allocation4 + $0x68] sm:$0xff] %v4746
        %4779 = vst [vmem:[#allocation4 + $0x70] sm:$0xff] %v4747
        %4780 = vst [vmem:[#allocation4 + $0x78] sm:$0xff] %v4748
        %4781 = vst [vmem:[#allocation4 + $0x80] sm:$0xff] %v4749
        %4782 = vst [vmem:[#allocation4 + $0x88] sm:$0xff] %v4750
        %4783 = vst [vmem:[#allocation4 + $0x90] sm:$0xff] %v4751
        %4784 = vst [vmem:[#allocation4 + $0x98] sm:$0xff] %v4752
        %4785 = vst [vmem:[#allocation4 + $0xa0] sm:$0xff] %v4753
        %4786 = vst [vmem:[#allocation4 + $0xa8] sm:$0xff] %v4754
        %4787 = vst [vmem:[#allocation4 + $0xb0] sm:$0xff] %v4755
        %4788 = vst [vmem:[#allocation4 + $0xb8] sm:$0xff] %v4756
        %4789 = vst [vmem:[#allocation4 + $0xc0] sm:$0xff] %v4757
        %4790 = vst [vmem:[#allocation4 + $0xc8] sm:$0xff] %v4758
        %4791 = vst [vmem:[#allocation4 + $0xd0] sm:$0xff] %v4759
        %4792 = vst [vmem:[#allocation4 + $0xd8] sm:$0xff] %v4760
        %4793 = vst [vmem:[#allocation4 + $0xe0] sm:$0xff] %v4761
        %4794 = vst [vmem:[#allocation4 + $0xe8] sm:$0xff] %v4762
        %4795 = vst [vmem:[#allocation4 + $0xf0] sm:$0xff] %v4763
        %4796 = vst [vmem:[#allocation4 + $0xf8] sm:$0xff] %v4764
        %v4797 = vld [vmem:[%s680] sm:$0xf]
        %v4798 = vld [vmem:[%s680 + $0x4] sm:$0xf]
        %v4799 = vld [vmem:[%s680 + $0x8] sm:$0xf]
        %v4800 = vld [vmem:[%s680 + $0xc] sm:$0xf]
        %v4801 = vld [vmem:[%s680 + $0x10] sm:$0xf]
        %v4802 = vld [vmem:[%s680 + $0x14] sm:$0xf]
        %v4803 = vld [vmem:[%s680 + $0x18] sm:$0xf]
        %v4804 = vld [vmem:[%s680 + $0x1c] sm:$0xf]
        %v4805 = vld [vmem:[%s680 + $0x20] sm:$0xf]
        %v4806 = vld [vmem:[%s680 + $0x24] sm:$0xf]
        %v4807 = vld [vmem:[%s680 + $0x28] sm:$0xf]
        %v4808 = vld [vmem:[%s680 + $0x2c] sm:$0xf]
        %v4809 = vld [vmem:[%s680 + $0x30] sm:$0xf]
        %v4810 = vld [vmem:[%s680 + $0x34] sm:$0xf]
        %v4811 = vld [vmem:[%s680 + $0x38] sm:$0xf]
        %v4812 = vld [vmem:[%s680 + $0x3c] sm:$0xf]
        %v4813 = vld [vmem:[%s680 + $0x40] sm:$0xf]
        %v4814 = vld [vmem:[%s680 + $0x44] sm:$0xf]
        %v4815 = vld [vmem:[%s680 + $0x48] sm:$0xf]
        %v4816 = vld [vmem:[%s680 + $0x4c] sm:$0xf]
        %v4817 = vld [vmem:[%s680 + $0x50] sm:$0xf]
        %v4818 = vld [vmem:[%s680 + $0x54] sm:$0xf]
        %v4819 = vld [vmem:[%s680 + $0x58] sm:$0xf]
        %v4820 = vld [vmem:[%s680 + $0x5c] sm:$0xf]
        %v4821 = vld [vmem:[%s680 + $0x60] sm:$0xf]
        %v4822 = vld [vmem:[%s680 + $0x64] sm:$0xf]
        %v4823 = vld [vmem:[%s680 + $0x68] sm:$0xf]
        %v4824 = vld [vmem:[%s680 + $0x6c] sm:$0xf]
        %v4825 = vld [vmem:[%s680 + $0x70] sm:$0xf]
        %v4826 = vld [vmem:[%s680 + $0x74] sm:$0xf]
        %v4827 = vld [vmem:[%s680 + $0x78] sm:$0xf]
        %v4828 = vld [vmem:[%s680 + $0x7c] sm:$0xf]
        %v4829 = vunpack.c.l.bf16 %v4797
        %v4830 = vunpack.c.l.bf16 %v4798
        %v4831 = vunpack.c.l.bf16 %v4799
        %v4832 = vunpack.c.l.bf16 %v4800
        %v4833 = vunpack.c.l.bf16 %v4801
        %v4834 = vunpack.c.l.bf16 %v4802
        %v4835 = vunpack.c.l.bf16 %v4803
        %v4836 = vunpack.c.l.bf16 %v4804
        %v4837 = vunpack.c.l.bf16 %v4805
        %v4838 = vunpack.c.l.bf16 %v4806
        %v4839 = vunpack.c.l.bf16 %v4807
        %v4840 = vunpack.c.l.bf16 %v4808
        %v4841 = vunpack.c.l.bf16 %v4809
        %v4842 = vunpack.c.l.bf16 %v4810
        %v4843 = vunpack.c.l.bf16 %v4811
        %v4844 = vunpack.c.l.bf16 %v4812
        %v4845 = vunpack.c.l.bf16 %v4813
        %v4846 = vunpack.c.l.bf16 %v4814
        %v4847 = vunpack.c.l.bf16 %v4815
        %v4848 = vunpack.c.l.bf16 %v4816
        %v4849 = vunpack.c.l.bf16 %v4817
        %v4850 = vunpack.c.l.bf16 %v4818
        %v4851 = vunpack.c.l.bf16 %v4819
        %v4852 = vunpack.c.l.bf16 %v4820
        %v4853 = vunpack.c.l.bf16 %v4821
        %v4854 = vunpack.c.l.bf16 %v4822
        %v4855 = vunpack.c.l.bf16 %v4823
        %v4856 = vunpack.c.l.bf16 %v4824
        %v4857 = vunpack.c.l.bf16 %v4825
        %v4858 = vunpack.c.l.bf16 %v4826
        %v4859 = vunpack.c.l.bf16 %v4827
        %v4860 = vunpack.c.l.bf16 %v4828
        %v4861 = vld [vmem:[%s688] sm:$0xf]
        %v4862 = vld [vmem:[%s688 + $0x4] sm:$0xf]
        %v4863 = vld [vmem:[%s688 + $0x8] sm:$0xf]
        %v4864 = vld [vmem:[%s688 + $0xc] sm:$0xf]
        %v4865 = vld [vmem:[%s688 + $0x10] sm:$0xf]
        %v4866 = vld [vmem:[%s688 + $0x14] sm:$0xf]
        %v4867 = vld [vmem:[%s688 + $0x18] sm:$0xf]
        %v4868 = vld [vmem:[%s688 + $0x1c] sm:$0xf]
        %v4869 = vld [vmem:[%s688 + $0x20] sm:$0xf]
        %v4870 = vld [vmem:[%s688 + $0x24] sm:$0xf]
        %v4871 = vld [vmem:[%s688 + $0x28] sm:$0xf]
        %v4872 = vld [vmem:[%s688 + $0x2c] sm:$0xf]
        %v4873 = vld [vmem:[%s688 + $0x30] sm:$0xf]
        %v4874 = vld [vmem:[%s688 + $0x34] sm:$0xf]
        %v4875 = vld [vmem:[%s688 + $0x38] sm:$0xf]
        %v4876 = vld [vmem:[%s688 + $0x3c] sm:$0xf]
        %v4877 = vld [vmem:[%s688 + $0x40] sm:$0xf]
        %v4878 = vld [vmem:[%s688 + $0x44] sm:$0xf]
        %v4879 = vld [vmem:[%s688 + $0x48] sm:$0xf]
        %v4880 = vld [vmem:[%s688 + $0x4c] sm:$0xf]
        %v4881 = vld [vmem:[%s688 + $0x50] sm:$0xf]
        %v4882 = vld [vmem:[%s688 + $0x54] sm:$0xf]
        %v4883 = vld [vmem:[%s688 + $0x58] sm:$0xf]
        %v4884 = vld [vmem:[%s688 + $0x5c] sm:$0xf]
        %v4885 = vld [vmem:[%s688 + $0x60] sm:$0xf]
        %v4886 = vld [vmem:[%s688 + $0x64] sm:$0xf]
        %v4887 = vld [vmem:[%s688 + $0x68] sm:$0xf]
        %v4888 = vld [vmem:[%s688 + $0x6c] sm:$0xf]
        %v4889 = vld [vmem:[%s688 + $0x70] sm:$0xf]
        %v4890 = vld [vmem:[%s688 + $0x74] sm:$0xf]
        %v4891 = vld [vmem:[%s688 + $0x78] sm:$0xf]
        %v4892 = vld [vmem:[%s688 + $0x7c] sm:$0xf]
        %v4893 = vunpack.c.l.bf16 %v4861
        %v4894 = vunpack.c.l.bf16 %v4862
        %v4895 = vunpack.c.l.bf16 %v4863
        %v4896 = vunpack.c.l.bf16 %v4864
        %v4897 = vunpack.c.l.bf16 %v4865
        %v4898 = vunpack.c.l.bf16 %v4866
        %v4899 = vunpack.c.l.bf16 %v4867
        %v4900 = vunpack.c.l.bf16 %v4868
        %v4901 = vunpack.c.l.bf16 %v4869
        %v4902 = vunpack.c.l.bf16 %v4870
        %v4903 = vunpack.c.l.bf16 %v4871
        %v4904 = vunpack.c.l.bf16 %v4872
        %v4905 = vunpack.c.l.bf16 %v4873
        %v4906 = vunpack.c.l.bf16 %v4874
        %v4907 = vunpack.c.l.bf16 %v4875
        %v4908 = vunpack.c.l.bf16 %v4876
        %v4909 = vunpack.c.l.bf16 %v4877
        %v4910 = vunpack.c.l.bf16 %v4878
        %v4911 = vunpack.c.l.bf16 %v4879
        %v4912 = vunpack.c.l.bf16 %v4880
        %v4913 = vunpack.c.l.bf16 %v4881
        %v4914 = vunpack.c.l.bf16 %v4882
        %v4915 = vunpack.c.l.bf16 %v4883
        %v4916 = vunpack.c.l.bf16 %v4884
        %v4917 = vunpack.c.l.bf16 %v4885
        %v4918 = vunpack.c.l.bf16 %v4886
        %v4919 = vunpack.c.l.bf16 %v4887
        %v4920 = vunpack.c.l.bf16 %v4888
        %v4921 = vunpack.c.l.bf16 %v4889
        %v4922 = vunpack.c.l.bf16 %v4890
        %v4923 = vunpack.c.l.bf16 %v4891
        %v4924 = vunpack.c.l.bf16 %v4892
        %v4925 = vadd.f32 %v4893, %v4701
        %v4926 = vadd.f32 %v4894, %v4702
        %v4927 = vadd.f32 %v4895, %v4703
        %v4928 = vadd.f32 %v4896, %v4704
        %v4929 = vadd.f32 %v4897, %v4705
        %v4930 = vadd.f32 %v4898, %v4706
        %v4931 = vadd.f32 %v4899, %v4707
        %v4932 = vadd.f32 %v4900, %v4708
        %v4933 = vadd.f32 %v4901, %v4709
        %v4934 = vadd.f32 %v4902, %v4710
        %v4935 = vadd.f32 %v4903, %v4711
        %v4936 = vadd.f32 %v4904, %v4712
        %v4937 = vadd.f32 %v4905, %v4713
        %v4938 = vadd.f32 %v4906, %v4714
        %v4939 = vadd.f32 %v4907, %v4715
        %v4940 = vadd.f32 %v4908, %v4716
        %v4941 = vadd.f32 %v4909, %v4717
        %v4942 = vadd.f32 %v4910, %v4718
        %v4943 = vadd.f32 %v4911, %v4719
        %v4944 = vadd.f32 %v4912, %v4720
        %v4945 = vadd.f32 %v4913, %v4721
        %v4946 = vadd.f32 %v4914, %v4722
        %v4947 = vadd.f32 %v4915, %v4723
        %v4948 = vadd.f32 %v4916, %v4724
        %v4949 = vadd.f32 %v4917, %v4725
        %v4950 = vadd.f32 %v4918, %v4726
        %v4951 = vadd.f32 %v4919, %v4727
        %v4952 = vadd.f32 %v4920, %v4728
        %v4953 = vadd.f32 %v4921, %v4729
        %v4954 = vadd.f32 %v4922, %v4730
        %v4955 = vadd.f32 %v4923, %v4731
        %v4956 = vadd.f32 %v4924, %v4732
        %v4957 = vpack.c.bf16 %v4925, %v4925
        %v4958 = vpack.c.bf16 %v4926, %v4926
        %v4959 = vpack.c.bf16 %v4927, %v4927
        %v4960 = vpack.c.bf16 %v4928, %v4928
        %v4961 = vpack.c.bf16 %v4929, %v4929
        %v4962 = vpack.c.bf16 %v4930, %v4930
        %v4963 = vpack.c.bf16 %v4931, %v4931
        %v4964 = vpack.c.bf16 %v4932, %v4932
        %v4965 = vpack.c.bf16 %v4933, %v4933
        %v4966 = vpack.c.bf16 %v4934, %v4934
        %v4967 = vpack.c.bf16 %v4935, %v4935
        %v4968 = vpack.c.bf16 %v4936, %v4936
        %v4969 = vpack.c.bf16 %v4937, %v4937
        %v4970 = vpack.c.bf16 %v4938, %v4938
        %v4971 = vpack.c.bf16 %v4939, %v4939
        %v4972 = vpack.c.bf16 %v4940, %v4940
        %v4973 = vpack.c.bf16 %v4941, %v4941
        %v4974 = vpack.c.bf16 %v4942, %v4942
        %v4975 = vpack.c.bf16 %v4943, %v4943
        %v4976 = vpack.c.bf16 %v4944, %v4944
        %v4977 = vpack.c.bf16 %v4945, %v4945
        %v4978 = vpack.c.bf16 %v4946, %v4946
        %v4979 = vpack.c.bf16 %v4947, %v4947
        %v4980 = vpack.c.bf16 %v4948, %v4948
        %v4981 = vpack.c.bf16 %v4949, %v4949
        %v4982 = vpack.c.bf16 %v4950, %v4950
        %v4983 = vpack.c.bf16 %v4951, %v4951
        %v4984 = vpack.c.bf16 %v4952, %v4952
        %v4985 = vpack.c.bf16 %v4953, %v4953
        %v4986 = vpack.c.bf16 %v4954, %v4954
        %v4987 = vpack.c.bf16 %v4955, %v4955
        %v4988 = vpack.c.bf16 %v4956, %v4956
        %4989 = vst [vmem:[%s732] sm:$0xf] %v4957
        %4990 = vst [vmem:[%s732 + $0x4] sm:$0xf] %v4958
        %4991 = vst [vmem:[%s732 + $0x8] sm:$0xf] %v4959
        %4992 = vst [vmem:[%s732 + $0xc] sm:$0xf] %v4960
        %4993 = vst [vmem:[%s732 + $0x10] sm:$0xf] %v4961
        %4994 = vst [vmem:[%s732 + $0x14] sm:$0xf] %v4962
        %4995 = vst [vmem:[%s732 + $0x18] sm:$0xf] %v4963
        %4996 = vst [vmem:[%s732 + $0x1c] sm:$0xf] %v4964
        %4997 = vst [vmem:[%s732 + $0x20] sm:$0xf] %v4965
        %4998 = vst [vmem:[%s732 + $0x24] sm:$0xf] %v4966
        %4999 = vst [vmem:[%s732 + $0x28] sm:$0xf] %v4967
        %5000 = vst [vmem:[%s732 + $0x2c] sm:$0xf] %v4968
        %5001 = vst [vmem:[%s732 + $0x30] sm:$0xf] %v4969
        %5002 = vst [vmem:[%s732 + $0x34] sm:$0xf] %v4970
        %5003 = vst [vmem:[%s732 + $0x38] sm:$0xf] %v4971
        %5004 = vst [vmem:[%s732 + $0x3c] sm:$0xf] %v4972
        %5005 = vst [vmem:[%s732 + $0x40] sm:$0xf] %v4973
        %5006 = vst [vmem:[%s732 + $0x44] sm:$0xf] %v4974
        %5007 = vst [vmem:[%s732 + $0x48] sm:$0xf] %v4975
        %5008 = vst [vmem:[%s732 + $0x4c] sm:$0xf] %v4976
        %5009 = vst [vmem:[%s732 + $0x50] sm:$0xf] %v4977
        %5010 = vst [vmem:[%s732 + $0x54] sm:$0xf] %v4978
        %5011 = vst [vmem:[%s732 + $0x58] sm:$0xf] %v4979
        %5012 = vst [vmem:[%s732 + $0x5c] sm:$0xf] %v4980
        %5013 = vst [vmem:[%s732 + $0x60] sm:$0xf] %v4981
        %5014 = vst [vmem:[%s732 + $0x64] sm:$0xf] %v4982
        %5015 = vst [vmem:[%s732 + $0x68] sm:$0xf] %v4983
        %5016 = vst [vmem:[%s732 + $0x6c] sm:$0xf] %v4984
        %5017 = vst [vmem:[%s732 + $0x70] sm:$0xf] %v4985
        %5018 = vst [vmem:[%s732 + $0x74] sm:$0xf] %v4986
        %5019 = vst [vmem:[%s732 + $0x78] sm:$0xf] %v4987
        %5020 = vst [vmem:[%s732 + $0x7c] sm:$0xf] %v4988
        %v5021 = vmul.f32 %v4701, %v4829
        %v5022 = vmul.f32 %v4702, %v4830
        %v5023 = vmul.f32 %v4703, %v4831
        %v5024 = vmul.f32 %v4704, %v4832
        %v5025 = vmul.f32 %v4705, %v4833
        %v5026 = vmul.f32 %v4706, %v4834
        %v5027 = vmul.f32 %v4707, %v4835
        %v5028 = vmul.f32 %v4708, %v4836
        %v5029 = vmul.f32 %v4709, %v4837
        %v5030 = vmul.f32 %v4710, %v4838
        %v5031 = vmul.f32 %v4711, %v4839
        %v5032 = vmul.f32 %v4712, %v4840
        %v5033 = vmul.f32 %v4713, %v4841
        %v5034 = vmul.f32 %v4714, %v4842
        %v5035 = vmul.f32 %v4715, %v4843
        %v5036 = vmul.f32 %v4716, %v4844
        %v5037 = vmul.f32 %v4717, %v4845
        %v5038 = vmul.f32 %v4718, %v4846
        %v5039 = vmul.f32 %v4719, %v4847
        %v5040 = vmul.f32 %v4720, %v4848
        %v5041 = vmul.f32 %v4721, %v4849
        %v5042 = vmul.f32 %v4722, %v4850
        %v5043 = vmul.f32 %v4723, %v4851
        %v5044 = vmul.f32 %v4724, %v4852
        %v5045 = vmul.f32 %v4725, %v4853
        %v5046 = vmul.f32 %v4726, %v4854
        %v5047 = vmul.f32 %v4727, %v4855
        %v5048 = vmul.f32 %v4728, %v4856
        %v5049 = vmul.f32 %v4729, %v4857
        %v5050 = vmul.f32 %v4730, %v4858
        %v5051 = vmul.f32 %v4731, %v4859
        %v5052 = vmul.f32 %v4732, %v4860
        %v5053 = vpack.c.bf16 %v5021, %v5021
        %v5054 = vpack.c.bf16 %v5022, %v5022
        %v5055 = vpack.c.bf16 %v5023, %v5023
        %v5056 = vpack.c.bf16 %v5024, %v5024
        %v5057 = vpack.c.bf16 %v5025, %v5025
        %v5058 = vpack.c.bf16 %v5026, %v5026
        %v5059 = vpack.c.bf16 %v5027, %v5027
        %v5060 = vpack.c.bf16 %v5028, %v5028
        %v5061 = vpack.c.bf16 %v5029, %v5029
        %v5062 = vpack.c.bf16 %v5030, %v5030
        %v5063 = vpack.c.bf16 %v5031, %v5031
        %v5064 = vpack.c.bf16 %v5032, %v5032
        %v5065 = vpack.c.bf16 %v5033, %v5033
        %v5066 = vpack.c.bf16 %v5034, %v5034
        %v5067 = vpack.c.bf16 %v5035, %v5035
        %v5068 = vpack.c.bf16 %v5036, %v5036
        %v5069 = vpack.c.bf16 %v5037, %v5037
        %v5070 = vpack.c.bf16 %v5038, %v5038
        %v5071 = vpack.c.bf16 %v5039, %v5039
        %v5072 = vpack.c.bf16 %v5040, %v5040
        %v5073 = vpack.c.bf16 %v5041, %v5041
        %v5074 = vpack.c.bf16 %v5042, %v5042
        %v5075 = vpack.c.bf16 %v5043, %v5043
        %v5076 = vpack.c.bf16 %v5044, %v5044
        %v5077 = vpack.c.bf16 %v5045, %v5045
        %v5078 = vpack.c.bf16 %v5046, %v5046
        %v5079 = vpack.c.bf16 %v5047, %v5047
        %v5080 = vpack.c.bf16 %v5048, %v5048
        %v5081 = vpack.c.bf16 %v5049, %v5049
        %v5082 = vpack.c.bf16 %v5050, %v5050
        %v5083 = vpack.c.bf16 %v5051, %v5051
        %v5084 = vpack.c.bf16 %v5052, %v5052
        %5085 = vst [vmem:[%s725] sm:$0xf] %v5053
        %5086 = vst [vmem:[%s725 + $0x4] sm:$0xf] %v5054
        %5087 = vst [vmem:[%s725 + $0x8] sm:$0xf] %v5055
        %5088 = vst [vmem:[%s725 + $0xc] sm:$0xf] %v5056
        %5089 = vst [vmem:[%s725 + $0x10] sm:$0xf] %v5057
        %5090 = vst [vmem:[%s725 + $0x14] sm:$0xf] %v5058
        %5091 = vst [vmem:[%s725 + $0x18] sm:$0xf] %v5059
        %5092 = vst [vmem:[%s725 + $0x1c] sm:$0xf] %v5060
        %5093 = vst [vmem:[%s725 + $0x20] sm:$0xf] %v5061
        %5094 = vst [vmem:[%s725 + $0x24] sm:$0xf] %v5062
        %5095 = vst [vmem:[%s725 + $0x28] sm:$0xf] %v5063
        %5096 = vst [vmem:[%s725 + $0x2c] sm:$0xf] %v5064
        %5097 = vst [vmem:[%s725 + $0x30] sm:$0xf] %v5065
        %5098 = vst [vmem:[%s725 + $0x34] sm:$0xf] %v5066
        %5099 = vst [vmem:[%s725 + $0x38] sm:$0xf] %v5067
        %5100 = vst [vmem:[%s725 + $0x3c] sm:$0xf] %v5068
        %5101 = vst [vmem:[%s725 + $0x40] sm:$0xf] %v5069
        %5102 = vst [vmem:[%s725 + $0x44] sm:$0xf] %v5070
        %5103 = vst [vmem:[%s725 + $0x48] sm:$0xf] %v5071
        %5104 = vst [vmem:[%s725 + $0x4c] sm:$0xf] %v5072
        %5105 = vst [vmem:[%s725 + $0x50] sm:$0xf] %v5073
        %5106 = vst [vmem:[%s725 + $0x54] sm:$0xf] %v5074
        %5107 = vst [vmem:[%s725 + $0x58] sm:$0xf] %v5075
        %5108 = vst [vmem:[%s725 + $0x5c] sm:$0xf] %v5076
        %5109 = vst [vmem:[%s725 + $0x60] sm:$0xf] %v5077
        %5110 = vst [vmem:[%s725 + $0x64] sm:$0xf] %v5078
        %5111 = vst [vmem:[%s725 + $0x68] sm:$0xf] %v5079
        %5112 = vst [vmem:[%s725 + $0x6c] sm:$0xf] %v5080
        %5113 = vst [vmem:[%s725 + $0x70] sm:$0xf] %v5081
        %5114 = vst [vmem:[%s725 + $0x74] sm:$0xf] %v5082
        %5115 = vst [vmem:[%s725 + $0x78] sm:$0xf] %v5083
        %5116 = vst [vmem:[%s725 + $0x7c] sm:$0xf] %v5084
        %v5117 = vld [vmem:[#allocation6 + $0x100] sm:$0xff]
        %v5118 = vld [vmem:[#allocation6 + $0x108] sm:$0xff]
        %v5119 = vld [vmem:[#allocation6 + $0x110] sm:$0xff]
        %v5120 = vld [vmem:[#allocation6 + $0x118] sm:$0xff]
        %v5121 = vld [vmem:[#allocation6 + $0x120] sm:$0xff]
        %v5122 = vld [vmem:[#allocation6 + $0x128] sm:$0xff]
        %v5123 = vld [vmem:[#allocation6 + $0x130] sm:$0xff]
        %v5124 = vld [vmem:[#allocation6 + $0x138] sm:$0xff]
        %v5125 = vld [vmem:[#allocation6 + $0x140] sm:$0xff]
        %v5126 = vld [vmem:[#allocation6 + $0x148] sm:$0xff]
        %v5127 = vld [vmem:[#allocation6 + $0x150] sm:$0xff]
        %v5128 = vld [vmem:[#allocation6 + $0x158] sm:$0xff]
        %v5129 = vld [vmem:[#allocation6 + $0x160] sm:$0xff]
        %v5130 = vld [vmem:[#allocation6 + $0x168] sm:$0xff]
        %v5131 = vld [vmem:[#allocation6 + $0x170] sm:$0xff]
        %v5132 = vld [vmem:[#allocation6 + $0x178] sm:$0xff]
        %v5133 = vld [vmem:[#allocation6 + $0x180] sm:$0xff]
        %v5134 = vld [vmem:[#allocation6 + $0x188] sm:$0xff]
        %v5135 = vld [vmem:[#allocation6 + $0x190] sm:$0xff]
        %v5136 = vld [vmem:[#allocation6 + $0x198] sm:$0xff]
        %v5137 = vld [vmem:[#allocation6 + $0x1a0] sm:$0xff]
        %v5138 = vld [vmem:[#allocation6 + $0x1a8] sm:$0xff]
        %v5139 = vld [vmem:[#allocation6 + $0x1b0] sm:$0xff]
        %v5140 = vld [vmem:[#allocation6 + $0x1b8] sm:$0xff]
        %v5141 = vld [vmem:[#allocation6 + $0x1c0] sm:$0xff]
        %v5142 = vld [vmem:[#allocation6 + $0x1c8] sm:$0xff]
        %v5143 = vld [vmem:[#allocation6 + $0x1d0] sm:$0xff]
        %v5144 = vld [vmem:[#allocation6 + $0x1d8] sm:$0xff]
        %v5145 = vld [vmem:[#allocation6 + $0x1e0] sm:$0xff]
        %v5146 = vld [vmem:[#allocation6 + $0x1e8] sm:$0xff]
        %v5147 = vld [vmem:[#allocation6 + $0x1f0] sm:$0xff]
        %v5148 = vld [vmem:[#allocation6 + $0x1f8] sm:$0xff]
        %v5149 = vld [vmem:[#allocation2] sm:$0xff]
        %v5150 = vld [vmem:[#allocation2 + $0x8] sm:$0xff]
        %v5151 = vld [vmem:[#allocation2 + $0x10] sm:$0xff]
        %v5152 = vld [vmem:[#allocation2 + $0x18] sm:$0xff]
        %v5153 = vld [vmem:[#allocation2 + $0x20] sm:$0xff]
        %v5154 = vld [vmem:[#allocation2 + $0x28] sm:$0xff]
        %v5155 = vld [vmem:[#allocation2 + $0x30] sm:$0xff]
        %v5156 = vld [vmem:[#allocation2 + $0x38] sm:$0xff]
        %v5157 = vld [vmem:[#allocation2 + $0x40] sm:$0xff]
        %v5158 = vld [vmem:[#allocation2 + $0x48] sm:$0xff]
        %v5159 = vld [vmem:[#allocation2 + $0x50] sm:$0xff]
        %v5160 = vld [vmem:[#allocation2 + $0x58] sm:$0xff]
        %v5161 = vld [vmem:[#allocation2 + $0x60] sm:$0xff]
        %v5162 = vld [vmem:[#allocation2 + $0x68] sm:$0xff]
        %v5163 = vld [vmem:[#allocation2 + $0x70] sm:$0xff]
        %v5164 = vld [vmem:[#allocation2 + $0x78] sm:$0xff]
        %v5165 = vld [vmem:[#allocation2 + $0x80] sm:$0xff]
        %v5166 = vld [vmem:[#allocation2 + $0x88] sm:$0xff]
        %v5167 = vld [vmem:[#allocation2 + $0x90] sm:$0xff]
        %v5168 = vld [vmem:[#allocation2 + $0x98] sm:$0xff]
        %v5169 = vld [vmem:[#allocation2 + $0xa0] sm:$0xff]
        %v5170 = vld [vmem:[#allocation2 + $0xa8] sm:$0xff]
        %v5171 = vld [vmem:[#allocation2 + $0xb0] sm:$0xff]
        %v5172 = vld [vmem:[#allocation2 + $0xb8] sm:$0xff]
        %v5173 = vld [vmem:[#allocation2 + $0xc0] sm:$0xff]
        %v5174 = vld [vmem:[#allocation2 + $0xc8] sm:$0xff]
        %v5175 = vld [vmem:[#allocation2 + $0xd0] sm:$0xff]
        %v5176 = vld [vmem:[#allocation2 + $0xd8] sm:$0xff]
        %v5177 = vld [vmem:[#allocation2 + $0xe0] sm:$0xff]
        %v5178 = vld [vmem:[#allocation2 + $0xe8] sm:$0xff]
        %v5179 = vld [vmem:[#allocation2 + $0xf0] sm:$0xff]
        %v5180 = vld [vmem:[#allocation2 + $0xf8] sm:$0xff]
        %v5181 = vadd.f32 %v5149, %v5117
        %v5182 = vadd.f32 %v5150, %v5118
        %v5183 = vadd.f32 %v5151, %v5119
        %v5184 = vadd.f32 %v5152, %v5120
        %v5185 = vadd.f32 %v5153, %v5121
        %v5186 = vadd.f32 %v5154, %v5122
        %v5187 = vadd.f32 %v5155, %v5123
        %v5188 = vadd.f32 %v5156, %v5124
        %v5189 = vadd.f32 %v5157, %v5125
        %v5190 = vadd.f32 %v5158, %v5126
        %v5191 = vadd.f32 %v5159, %v5127
        %v5192 = vadd.f32 %v5160, %v5128
        %v5193 = vadd.f32 %v5161, %v5129
        %v5194 = vadd.f32 %v5162, %v5130
        %v5195 = vadd.f32 %v5163, %v5131
        %v5196 = vadd.f32 %v5164, %v5132
        %v5197 = vadd.f32 %v5165, %v5133
        %v5198 = vadd.f32 %v5166, %v5134
        %v5199 = vadd.f32 %v5167, %v5135
        %v5200 = vadd.f32 %v5168, %v5136
        %v5201 = vadd.f32 %v5169, %v5137
        %v5202 = vadd.f32 %v5170, %v5138
        %v5203 = vadd.f32 %v5171, %v5139
        %v5204 = vadd.f32 %v5172, %v5140
        %v5205 = vadd.f32 %v5173, %v5141
        %v5206 = vadd.f32 %v5174, %v5142
        %v5207 = vadd.f32 %v5175, %v5143
        %v5208 = vadd.f32 %v5176, %v5144
        %v5209 = vadd.f32 %v5177, %v5145
        %v5210 = vadd.f32 %v5178, %v5146
        %v5211 = vadd.f32 %v5179, %v5147
        %v5212 = vadd.f32 %v5180, %v5148
        %vm5213 = vcmp.ge.f32.partialorder %v5181, 1.0
        %vm5214 = vcmp.ge.f32.partialorder %v5182, 1.0
        %vm5215 = vcmp.ge.f32.partialorder %v5183, 1.0
        %vm5216 = vcmp.ge.f32.partialorder %v5184, 1.0
        %vm5217 = vcmp.ge.f32.partialorder %v5185, 1.0
        %vm5218 = vcmp.ge.f32.partialorder %v5186, 1.0
        %vm5219 = vcmp.ge.f32.partialorder %v5187, 1.0
        %vm5220 = vcmp.ge.f32.partialorder %v5188, 1.0
        %vm5221 = vcmp.ge.f32.partialorder %v5189, 1.0
        %vm5222 = vcmp.ge.f32.partialorder %v5190, 1.0
        %vm5223 = vcmp.ge.f32.partialorder %v5191, 1.0
        %vm5224 = vcmp.ge.f32.partialorder %v5192, 1.0
        %vm5225 = vcmp.ge.f32.partialorder %v5193, 1.0
        %vm5226 = vcmp.ge.f32.partialorder %v5194, 1.0
        %vm5227 = vcmp.ge.f32.partialorder %v5195, 1.0
        %vm5228 = vcmp.ge.f32.partialorder %v5196, 1.0
        %vm5229 = vcmp.ge.f32.partialorder %v5197, 1.0
        %vm5230 = vcmp.ge.f32.partialorder %v5198, 1.0
        %vm5231 = vcmp.ge.f32.partialorder %v5199, 1.0
        %vm5232 = vcmp.ge.f32.partialorder %v5200, 1.0
        %vm5233 = vcmp.ge.f32.partialorder %v5201, 1.0
        %vm5234 = vcmp.ge.f32.partialorder %v5202, 1.0
        %vm5235 = vcmp.ge.f32.partialorder %v5203, 1.0
        %vm5236 = vcmp.ge.f32.partialorder %v5204, 1.0
        %vm5237 = vcmp.ge.f32.partialorder %v5205, 1.0
        %vm5238 = vcmp.ge.f32.partialorder %v5206, 1.0
        %vm5239 = vcmp.ge.f32.partialorder %v5207, 1.0
        %vm5240 = vcmp.ge.f32.partialorder %v5208, 1.0
        %vm5241 = vcmp.ge.f32.partialorder %v5209, 1.0
        %vm5242 = vcmp.ge.f32.partialorder %v5210, 1.0
        %vm5243 = vcmp.ge.f32.partialorder %v5211, 1.0
        %vm5244 = vcmp.ge.f32.partialorder %v5212, 1.0
        %v5245 = vsel %vm5213, 1, 0
        %v5246 = vsel %vm5214, 1, 0
        %v5247 = vsel %vm5215, 1, 0
        %v5248 = vsel %vm5216, 1, 0
        %v5249 = vsel %vm5217, 1, 0
        %v5250 = vsel %vm5218, 1, 0
        %v5251 = vsel %vm5219, 1, 0
        %v5252 = vsel %vm5220, 1, 0
        %v5253 = vsel %vm5221, 1, 0
        %v5254 = vsel %vm5222, 1, 0
        %v5255 = vsel %vm5223, 1, 0
        %v5256 = vsel %vm5224, 1, 0
        %v5257 = vsel %vm5225, 1, 0
        %v5258 = vsel %vm5226, 1, 0
        %v5259 = vsel %vm5227, 1, 0
        %v5260 = vsel %vm5228, 1, 0
        %v5261 = vsel %vm5229, 1, 0
        %v5262 = vsel %vm5230, 1, 0
        %v5263 = vsel %vm5231, 1, 0
        %v5264 = vsel %vm5232, 1, 0
        %v5265 = vsel %vm5233, 1, 0
        %v5266 = vsel %vm5234, 1, 0
        %v5267 = vsel %vm5235, 1, 0
        %v5268 = vsel %vm5236, 1, 0
        %v5269 = vsel %vm5237, 1, 0
        %v5270 = vsel %vm5238, 1, 0
        %v5271 = vsel %vm5239, 1, 0
        %v5272 = vsel %vm5240, 1, 0
        %v5273 = vsel %vm5241, 1, 0
        %v5274 = vsel %vm5242, 1, 0
        %v5275 = vsel %vm5243, 1, 0
        %v5276 = vsel %vm5244, 1, 0
        %v5277 = vcvt.s32.f32 %v5245
        %v5278 = vcvt.s32.f32 %v5246
        %v5279 = vcvt.s32.f32 %v5247
        %v5280 = vcvt.s32.f32 %v5248
        %v5281 = vcvt.s32.f32 %v5249
        %v5282 = vcvt.s32.f32 %v5250
        %v5283 = vcvt.s32.f32 %v5251
        %v5284 = vcvt.s32.f32 %v5252
        %v5285 = vcvt.s32.f32 %v5253
        %v5286 = vcvt.s32.f32 %v5254
        %v5287 = vcvt.s32.f32 %v5255
        %v5288 = vcvt.s32.f32 %v5256
        %v5289 = vcvt.s32.f32 %v5257
        %v5290 = vcvt.s32.f32 %v5258
        %v5291 = vcvt.s32.f32 %v5259
        %v5292 = vcvt.s32.f32 %v5260
        %v5293 = vcvt.s32.f32 %v5261
        %v5294 = vcvt.s32.f32 %v5262
        %v5295 = vcvt.s32.f32 %v5263
        %v5296 = vcvt.s32.f32 %v5264
        %v5297 = vcvt.s32.f32 %v5265
        %v5298 = vcvt.s32.f32 %v5266
        %v5299 = vcvt.s32.f32 %v5267
        %v5300 = vcvt.s32.f32 %v5268
        %v5301 = vcvt.s32.f32 %v5269
        %v5302 = vcvt.s32.f32 %v5270
        %v5303 = vcvt.s32.f32 %v5271
        %v5304 = vcvt.s32.f32 %v5272
        %v5305 = vcvt.s32.f32 %v5273
        %v5306 = vcvt.s32.f32 %v5274
        %v5307 = vcvt.s32.f32 %v5275
        %v5308 = vcvt.s32.f32 %v5276
        %v5309 = vsel %vm5213, 0.0, %v5181
        %v5310 = vsel %vm5214, 0.0, %v5182
        %v5311 = vsel %vm5215, 0.0, %v5183
        %v5312 = vsel %vm5216, 0.0, %v5184
        %v5313 = vsel %vm5217, 0.0, %v5185
        %v5314 = vsel %vm5218, 0.0, %v5186
        %v5315 = vsel %vm5219, 0.0, %v5187
        %v5316 = vsel %vm5220, 0.0, %v5188
        %v5317 = vsel %vm5221, 0.0, %v5189
        %v5318 = vsel %vm5222, 0.0, %v5190
        %v5319 = vsel %vm5223, 0.0, %v5191
        %v5320 = vsel %vm5224, 0.0, %v5192
        %v5321 = vsel %vm5225, 0.0, %v5193
        %v5322 = vsel %vm5226, 0.0, %v5194
        %v5323 = vsel %vm5227, 0.0, %v5195
        %v5324 = vsel %vm5228, 0.0, %v5196
        %v5325 = vsel %vm5229, 0.0, %v5197
        %v5326 = vsel %vm5230, 0.0, %v5198
        %v5327 = vsel %vm5231, 0.0, %v5199
        %v5328 = vsel %vm5232, 0.0, %v5200
        %v5329 = vsel %vm5233, 0.0, %v5201
        %v5330 = vsel %vm5234, 0.0, %v5202
        %v5331 = vsel %vm5235, 0.0, %v5203
        %v5332 = vsel %vm5236, 0.0, %v5204
        %v5333 = vsel %vm5237, 0.0, %v5205
        %v5334 = vsel %vm5238, 0.0, %v5206
        %v5335 = vsel %vm5239, 0.0, %v5207
        %v5336 = vsel %vm5240, 0.0, %v5208
        %v5337 = vsel %vm5241, 0.0, %v5209
        %v5338 = vsel %vm5242, 0.0, %v5210
        %v5339 = vsel %vm5243, 0.0, %v5211
        %v5340 = vsel %vm5244, 0.0, %v5212
        %5341 = vst.msk [vmem:[#allocation2] sm:$0xff] %vm1322, %v5309
        %5342 = vst.msk [vmem:[#allocation2 + $0x8] sm:$0xff] %vm1322, %v5310
        %5343 = vst.msk [vmem:[#allocation2 + $0x10] sm:$0xff] %vm1322, %v5311
        %5344 = vst.msk [vmem:[#allocation2 + $0x18] sm:$0xff] %vm1322, %v5312
        %5345 = vst.msk [vmem:[#allocation2 + $0x20] sm:$0xff] %vm1322, %v5313
        %5346 = vst.msk [vmem:[#allocation2 + $0x28] sm:$0xff] %vm1322, %v5314
        %5347 = vst.msk [vmem:[#allocation2 + $0x30] sm:$0xff] %vm1322, %v5315
        %5348 = vst.msk [vmem:[#allocation2 + $0x38] sm:$0xff] %vm1322, %v5316
        %5349 = vst.msk [vmem:[#allocation2 + $0x40] sm:$0xff] %vm1322, %v5317
        %5350 = vst.msk [vmem:[#allocation2 + $0x48] sm:$0xff] %vm1322, %v5318
        %5351 = vst.msk [vmem:[#allocation2 + $0x50] sm:$0xff] %vm1322, %v5319
        %5352 = vst.msk [vmem:[#allocation2 + $0x58] sm:$0xff] %vm1322, %v5320
        %5353 = vst.msk [vmem:[#allocation2 + $0x60] sm:$0xff] %vm1322, %v5321
        %5354 = vst.msk [vmem:[#allocation2 + $0x68] sm:$0xff] %vm1322, %v5322
        %5355 = vst.msk [vmem:[#allocation2 + $0x70] sm:$0xff] %vm1322, %v5323
        %5356 = vst.msk [vmem:[#allocation2 + $0x78] sm:$0xff] %vm1322, %v5324
        %5357 = vst.msk [vmem:[#allocation2 + $0x80] sm:$0xff] %vm1322, %v5325
        %5358 = vst.msk [vmem:[#allocation2 + $0x88] sm:$0xff] %vm1322, %v5326
        %5359 = vst.msk [vmem:[#allocation2 + $0x90] sm:$0xff] %vm1322, %v5327
        %5360 = vst.msk [vmem:[#allocation2 + $0x98] sm:$0xff] %vm1322, %v5328
        %5361 = vst.msk [vmem:[#allocation2 + $0xa0] sm:$0xff] %vm1322, %v5329
        %5362 = vst.msk [vmem:[#allocation2 + $0xa8] sm:$0xff] %vm1322, %v5330
        %5363 = vst.msk [vmem:[#allocation2 + $0xb0] sm:$0xff] %vm1322, %v5331
        %5364 = vst.msk [vmem:[#allocation2 + $0xb8] sm:$0xff] %vm1322, %v5332
        %5365 = vst.msk [vmem:[#allocation2 + $0xc0] sm:$0xff] %vm1322, %v5333
        %5366 = vst.msk [vmem:[#allocation2 + $0xc8] sm:$0xff] %vm1322, %v5334
        %5367 = vst.msk [vmem:[#allocation2 + $0xd0] sm:$0xff] %vm1322, %v5335
        %5368 = vst.msk [vmem:[#allocation2 + $0xd8] sm:$0xff] %vm1322, %v5336
        %5369 = vst.msk [vmem:[#allocation2 + $0xe0] sm:$0xff] %vm1322, %v5337
        %5370 = vst.msk [vmem:[#allocation2 + $0xe8] sm:$0xff] %vm1322, %v5338
        %5371 = vst.msk [vmem:[#allocation2 + $0xf0] sm:$0xff] %vm1322, %v5339
        %5372 = vst.msk [vmem:[#allocation2 + $0xf8] sm:$0xff] %vm1322, %v5340
        %5373 = vst.msk [vmem:[%s1643 + $0x1] sm:$0xff] %vm1322, %v5277
        %5374 = vst.msk [vmem:[%s1643 + $0x11] sm:$0xff] %vm1322, %v5278
        %5375 = vst.msk [vmem:[%s1643 + $0x21] sm:$0xff] %vm1322, %v5279
        %5376 = vst.msk [vmem:[%s1643 + $0x31] sm:$0xff] %vm1322, %v5280
        %5377 = vst.msk [vmem:[%s1643 + $0x41] sm:$0xff] %vm1322, %v5281
        %5378 = vst.msk [vmem:[%s1643 + $0x51] sm:$0xff] %vm1322, %v5282
        %5379 = vst.msk [vmem:[%s1643 + $0x61] sm:$0xff] %vm1322, %v5283
        %5380 = vst.msk [vmem:[%s1643 + $0x71] sm:$0xff] %vm1322, %v5284
        %5381 = vst.msk [vmem:[%s1643 + $0xa1] sm:$0xff] %vm1322, %v5285
        %5382 = vst.msk [vmem:[%s1643 + $0xb1] sm:$0xff] %vm1322, %v5286
        %5383 = vst.msk [vmem:[%s1643 + $0xc1] sm:$0xff] %vm1322, %v5287
        %5384 = vst.msk [vmem:[%s1643 + $0xd1] sm:$0xff] %vm1322, %v5288
        %5385 = vst.msk [vmem:[%s1643 + $0xe1] sm:$0xff] %vm1322, %v5289
        %5386 = vst.msk [vmem:[%s1643 + $0xf1] sm:$0xff] %vm1322, %v5290
        %5387 = vst.msk [vmem:[%s1643 + $0x101] sm:$0xff] %vm1322, %v5291
        %5388 = vst.msk [vmem:[%s1643 + $0x111] sm:$0xff] %vm1322, %v5292
        %5389 = vst.msk [vmem:[%s1643 + $0x141] sm:$0xff] %vm1322, %v5293
        %5390 = vst.msk [vmem:[%s1643 + $0x151] sm:$0xff] %vm1322, %v5294
        %5391 = vst.msk [vmem:[%s1643 + $0x161] sm:$0xff] %vm1322, %v5295
        %5392 = vst.msk [vmem:[%s1643 + $0x171] sm:$0xff] %vm1322, %v5296
        %5393 = vst.msk [vmem:[%s1643 + $0x181] sm:$0xff] %vm1322, %v5297
        %5394 = vst.msk [vmem:[%s1643 + $0x191] sm:$0xff] %vm1322, %v5298
        %5395 = vst.msk [vmem:[%s1643 + $0x1a1] sm:$0xff] %vm1322, %v5299
        %5396 = vst.msk [vmem:[%s1643 + $0x1b1] sm:$0xff] %vm1322, %v5300
        %5397 = vst.msk [vmem:[%s1643 + $0x1e1] sm:$0xff] %vm1322, %v5301
        %5398 = vst.msk [vmem:[%s1643 + $0x1f1] sm:$0xff] %vm1322, %v5302
        %5399 = vst.msk [vmem:[%s1643 + $0x201] sm:$0xff] %vm1322, %v5303
        %5400 = vst.msk [vmem:[%s1643 + $0x211] sm:$0xff] %vm1322, %v5304
        %5401 = vst.msk [vmem:[%s1643 + $0x221] sm:$0xff] %vm1322, %v5305
        %5402 = vst.msk [vmem:[%s1643 + $0x231] sm:$0xff] %vm1322, %v5306
        %5403 = vst.msk [vmem:[%s1643 + $0x241] sm:$0xff] %vm1322, %v5307
        %5404 = vst.msk [vmem:[%s1643 + $0x251] sm:$0xff] %vm1322, %v5308
        %v5405 = vld [vmem:[#allocation5] sm:$0xff]
        %v5406 = vld [vmem:[#allocation5 + $0x10] sm:$0xff]
        %v5407 = vld [vmem:[#allocation5 + $0x20] sm:$0xff]
        %v5408 = vld [vmem:[#allocation5 + $0x30] sm:$0xff]
        %v5409 = vld [vmem:[#allocation5 + $0x40] sm:$0xff]
        %v5410 = vld [vmem:[#allocation5 + $0x50] sm:$0xff]
        %v5411 = vld [vmem:[#allocation5 + $0x60] sm:$0xff]
        %v5412 = vld [vmem:[#allocation5 + $0x70] sm:$0xff]
        %v5413 = vld [vmem:[#allocation5 + $0xa0] sm:$0xff]
        %v5414 = vld [vmem:[#allocation5 + $0xb0] sm:$0xff]
        %v5415 = vld [vmem:[#allocation5 + $0xc0] sm:$0xff]
        %v5416 = vld [vmem:[#allocation5 + $0xd0] sm:$0xff]
        %v5417 = vld [vmem:[#allocation5 + $0xe0] sm:$0xff]
        %v5418 = vld [vmem:[#allocation5 + $0xf0] sm:$0xff]
        %v5419 = vld [vmem:[#allocation5 + $0x100] sm:$0xff]
        %v5420 = vld [vmem:[#allocation5 + $0x110] sm:$0xff]
        %v5421 = vld [vmem:[#allocation5 + $0x140] sm:$0xff]
        %v5422 = vld [vmem:[#allocation5 + $0x150] sm:$0xff]
        %v5423 = vld [vmem:[#allocation5 + $0x160] sm:$0xff]
        %v5424 = vld [vmem:[#allocation5 + $0x170] sm:$0xff]
        %v5425 = vld [vmem:[#allocation5 + $0x180] sm:$0xff]
        %v5426 = vld [vmem:[#allocation5 + $0x190] sm:$0xff]
        %v5427 = vld [vmem:[#allocation5 + $0x1a0] sm:$0xff]
        %v5428 = vld [vmem:[#allocation5 + $0x1b0] sm:$0xff]
        %v5429 = vld [vmem:[#allocation5 + $0x1e0] sm:$0xff]
        %v5430 = vld [vmem:[#allocation5 + $0x1f0] sm:$0xff]
        %v5431 = vld [vmem:[#allocation5 + $0x200] sm:$0xff]
        %v5432 = vld [vmem:[#allocation5 + $0x210] sm:$0xff]
        %v5433 = vld [vmem:[#allocation5 + $0x220] sm:$0xff]
        %v5434 = vld [vmem:[#allocation5 + $0x230] sm:$0xff]
        %v5435 = vld [vmem:[#allocation5 + $0x240] sm:$0xff]
        %v5436 = vld [vmem:[#allocation5 + $0x250] sm:$0xff]
        %v5438 = vsel %vm1322, %v5405, 0
        %v5441 = vsel %vm1322, %v5406, 0
        %v5444 = vsel %vm1322, %v5407, 0
        %v5447 = vsel %vm1322, %v5408, 0
        %v5450 = vsel %vm1322, %v5409, 0
        %v5453 = vsel %vm1322, %v5410, 0
        %v5456 = vsel %vm1322, %v5411, 0
        %v5459 = vsel %vm1322, %v5412, 0
        %v5462 = vsel %vm1322, %v5413, 0
        %v5465 = vsel %vm1322, %v5414, 0
        %v5468 = vsel %vm1322, %v5415, 0
        %v5471 = vsel %vm1322, %v5416, 0
        %v5474 = vsel %vm1322, %v5417, 0
        %v5477 = vsel %vm1322, %v5418, 0
        %v5480 = vsel %vm1322, %v5419, 0
        %v5483 = vsel %vm1322, %v5420, 0
        %v5486 = vsel %vm1322, %v5421, 0
        %v5489 = vsel %vm1322, %v5422, 0
        %v5492 = vsel %vm1322, %v5423, 0
        %v5495 = vsel %vm1322, %v5424, 0
        %v5498 = vsel %vm1322, %v5425, 0
        %v5501 = vsel %vm1322, %v5426, 0
        %v5504 = vsel %vm1322, %v5427, 0
        %v5507 = vsel %vm1322, %v5428, 0
        %v5510 = vsel %vm1322, %v5429, 0
        %v5513 = vsel %vm1322, %v5430, 0
        %v5516 = vsel %vm1322, %v5431, 0
        %v5519 = vsel %vm1322, %v5432, 0
        %v5522 = vsel %vm1322, %v5433, 0
        %v5525 = vsel %vm1322, %v5434, 0
        %v5528 = vsel %vm1322, %v5435, 0
        %v5531 = vsel %vm1322, %v5436, 0
        %5533 = vmatpush.msra.mxu0 0.0
        %5534 = vmatpush.msra.mxu0 0.0
        %5535 = vmatpush.msra.mxu0 0.0
        %5536 = vmatpush.msra.mxu0 0.0
        %5537 = vmatpush.msra.mxu0 0.0
        %5538 = vmatpush.msra.mxu0 0.0
        %5539 = vmatpush.msra.mxu0 0.0
        %5540 = vmatpush.msra.mxu0 0.0
        %5541 = vmatpush.msra.mxu0 0.0
        %5542 = vmatpush.msra.mxu0 0.0
        %5543 = vmatpush.msra.mxu0 0.0
        %5544 = vmatpush.msra.mxu0 0.0
        %5545 = vmatpush.msra.mxu0 %v926
        %5546 = vmatpush.msra.mxu0 %v925
        %5547 = vmatpush.msra.mxu0 %v924
        %5548 = vmatpush.msra.mxu0 %v923
        %5549 = vmatmul.f32.gmra.mxu0 %v5438
        %v5550 = vpop.f32.mrf.mxu0
        %v5551 = vadd.f32 0.0, %v5550
        %5552 = vmatmul.f32.gmra.mxu0 %v5441
        %v5553 = vpop.f32.mrf.mxu0
        %v5554 = vadd.f32 0.0, %v5553
        %5555 = vmatmul.f32.gmra.mxu0 %v5444
        %v5556 = vpop.f32.mrf.mxu0
        %v5557 = vadd.f32 0.0, %v5556
        %5558 = vmatmul.f32.gmra.mxu0 %v5447
        %v5559 = vpop.f32.mrf.mxu0
        %v5560 = vadd.f32 0.0, %v5559
        %5561 = vmatmul.f32.gmra.mxu0 %v5450
        %v5562 = vpop.f32.mrf.mxu0
        %v5563 = vadd.f32 0.0, %v5562
        %5564 = vmatmul.f32.gmra.mxu0 %v5453
        %v5565 = vpop.f32.mrf.mxu0
        %v5566 = vadd.f32 0.0, %v5565
        %5567 = vmatmul.f32.gmra.mxu0 %v5456
        %v5568 = vpop.f32.mrf.mxu0
        %v5569 = vadd.f32 0.0, %v5568
        %5570 = vmatmul.f32.gmra.mxu0 %v5459
        %v5571 = vpop.f32.mrf.mxu0
        %v5572 = vadd.f32 0.0, %v5571
        %5573 = vmatmul.f32.gmra.mxu0 %v5462
        %v5574 = vpop.f32.mrf.mxu0
        %v5575 = vadd.f32 0.0, %v5574
        %5576 = vmatmul.f32.gmra.mxu0 %v5465
        %v5577 = vpop.f32.mrf.mxu0
        %v5578 = vadd.f32 0.0, %v5577
        %5579 = vmatmul.f32.gmra.mxu0 %v5468
        %v5580 = vpop.f32.mrf.mxu0
        %v5581 = vadd.f32 0.0, %v5580
        %5582 = vmatmul.f32.gmra.mxu0 %v5471
        %v5583 = vpop.f32.mrf.mxu0
        %v5584 = vadd.f32 0.0, %v5583
        %5585 = vmatmul.f32.gmra.mxu0 %v5474
        %v5586 = vpop.f32.mrf.mxu0
        %v5587 = vadd.f32 0.0, %v5586
        %5588 = vmatmul.f32.gmra.mxu0 %v5477
        %v5589 = vpop.f32.mrf.mxu0
        %v5590 = vadd.f32 0.0, %v5589
        %5591 = vmatmul.f32.gmra.mxu0 %v5480
        %v5592 = vpop.f32.mrf.mxu0
        %v5593 = vadd.f32 0.0, %v5592
        %5594 = vmatmul.f32.gmra.mxu0 %v5483
        %v5595 = vpop.f32.mrf.mxu0
        %v5596 = vadd.f32 0.0, %v5595
        %5597 = vmatmul.f32.gmra.mxu0 %v5486
        %v5598 = vpop.f32.mrf.mxu0
        %v5599 = vadd.f32 0.0, %v5598
        %5600 = vmatmul.f32.gmra.mxu0 %v5489
        %v5601 = vpop.f32.mrf.mxu0
        %v5602 = vadd.f32 0.0, %v5601
        %5603 = vmatmul.f32.gmra.mxu0 %v5492
        %v5604 = vpop.f32.mrf.mxu0
        %v5605 = vadd.f32 0.0, %v5604
        %5606 = vmatmul.f32.gmra.mxu0 %v5495
        %v5607 = vpop.f32.mrf.mxu0
        %v5608 = vadd.f32 0.0, %v5607
        %5609 = vmatmul.f32.gmra.mxu0 %v5498
        %v5610 = vpop.f32.mrf.mxu0
        %v5611 = vadd.f32 0.0, %v5610
        %5612 = vmatmul.f32.gmra.mxu0 %v5501
        %v5613 = vpop.f32.mrf.mxu0
        %v5614 = vadd.f32 0.0, %v5613
        %5615 = vmatmul.f32.gmra.mxu0 %v5504
        %v5616 = vpop.f32.mrf.mxu0
        %v5617 = vadd.f32 0.0, %v5616
        %5618 = vmatmul.f32.gmra.mxu0 %v5507
        %v5619 = vpop.f32.mrf.mxu0
        %v5620 = vadd.f32 0.0, %v5619
        %5621 = vmatmul.f32.gmra.mxu0 %v5510
        %v5622 = vpop.f32.mrf.mxu0
        %v5623 = vadd.f32 0.0, %v5622
        %5624 = vmatmul.f32.gmra.mxu0 %v5513
        %v5625 = vpop.f32.mrf.mxu0
        %v5626 = vadd.f32 0.0, %v5625
        %5627 = vmatmul.f32.gmra.mxu0 %v5516
        %v5628 = vpop.f32.mrf.mxu0
        %v5629 = vadd.f32 0.0, %v5628
        %5630 = vmatmul.f32.gmra.mxu0 %v5519
        %v5631 = vpop.f32.mrf.mxu0
        %v5632 = vadd.f32 0.0, %v5631
        %5633 = vmatmul.f32.gmra.mxu0 %v5522
        %v5634 = vpop.f32.mrf.mxu0
        %v5635 = vadd.f32 0.0, %v5634
        %5636 = vmatmul.f32.gmra.mxu0 %v5525
        %v5637 = vpop.f32.mrf.mxu0
        %v5638 = vadd.f32 0.0, %v5637
        %5639 = vmatmul.f32.gmra.mxu0 %v5528
        %v5640 = vpop.f32.mrf.mxu0
        %v5641 = vadd.f32 0.0, %v5640
        %5642 = vmatmul.f32.gmra.mxu0 %v5531
        %v5643 = vpop.f32.mrf.mxu0
        %v5644 = vadd.f32 0.0, %v5643
        %5645 = vdwg.mxu0
        %v5646 = vadd.f32 %v1677, %v5551
        %v5647 = vadd.f32 %v1677, %v5554
        %v5648 = vadd.f32 %v1677, %v5557
        %v5649 = vadd.f32 %v1677, %v5560
        %v5650 = vadd.f32 %v1677, %v5563
        %v5651 = vadd.f32 %v1677, %v5566
        %v5652 = vadd.f32 %v1677, %v5569
        %v5653 = vadd.f32 %v1677, %v5572
        %v5654 = vadd.f32 %v1677, %v5575
        %v5655 = vadd.f32 %v1677, %v5578
        %v5656 = vadd.f32 %v1677, %v5581
        %v5657 = vadd.f32 %v1677, %v5584
        %v5658 = vadd.f32 %v1677, %v5587
        %v5659 = vadd.f32 %v1677, %v5590
        %v5660 = vadd.f32 %v1677, %v5593
        %v5661 = vadd.f32 %v1677, %v5596
        %v5662 = vadd.f32 %v1677, %v5599
        %v5663 = vadd.f32 %v1677, %v5602
        %v5664 = vadd.f32 %v1677, %v5605
        %v5665 = vadd.f32 %v1677, %v5608
        %v5666 = vadd.f32 %v1677, %v5611
        %v5667 = vadd.f32 %v1677, %v5614
        %v5668 = vadd.f32 %v1677, %v5617
        %v5669 = vadd.f32 %v1677, %v5620
        %v5670 = vadd.f32 %v1677, %v5623
        %v5671 = vadd.f32 %v1677, %v5626
        %v5672 = vadd.f32 %v1677, %v5629
        %v5673 = vadd.f32 %v1677, %v5632
        %v5674 = vadd.f32 %v1677, %v5635
        %v5675 = vadd.f32 %v1677, %v5638
        %v5676 = vadd.f32 %v1677, %v5641
        %v5677 = vadd.f32 %v1677, %v5644
        %v5678 = vld [vmem:[#allocation5 + $0x1] sm:$0xff]
        %v5679 = vld [vmem:[#allocation5 + $0x11] sm:$0xff]
        %v5680 = vld [vmem:[#allocation5 + $0x21] sm:$0xff]
        %v5681 = vld [vmem:[#allocation5 + $0x31] sm:$0xff]
        %v5682 = vld [vmem:[#allocation5 + $0x41] sm:$0xff]
        %v5683 = vld [vmem:[#allocation5 + $0x51] sm:$0xff]
        %v5684 = vld [vmem:[#allocation5 + $0x61] sm:$0xff]
        %v5685 = vld [vmem:[#allocation5 + $0x71] sm:$0xff]
        %v5686 = vld [vmem:[#allocation5 + $0xa1] sm:$0xff]
        %v5687 = vld [vmem:[#allocation5 + $0xb1] sm:$0xff]
        %v5688 = vld [vmem:[#allocation5 + $0xc1] sm:$0xff]
        %v5689 = vld [vmem:[#allocation5 + $0xd1] sm:$0xff]
        %v5690 = vld [vmem:[#allocation5 + $0xe1] sm:$0xff]
        %v5691 = vld [vmem:[#allocation5 + $0xf1] sm:$0xff]
        %v5692 = vld [vmem:[#allocation5 + $0x101] sm:$0xff]
        %v5693 = vld [vmem:[#allocation5 + $0x111] sm:$0xff]
        %v5694 = vld [vmem:[#allocation5 + $0x141] sm:$0xff]
        %v5695 = vld [vmem:[#allocation5 + $0x151] sm:$0xff]
        %v5696 = vld [vmem:[#allocation5 + $0x161] sm:$0xff]
        %v5697 = vld [vmem:[#allocation5 + $0x171] sm:$0xff]
        %v5698 = vld [vmem:[#allocation5 + $0x181] sm:$0xff]
        %v5699 = vld [vmem:[#allocation5 + $0x191] sm:$0xff]
        %v5700 = vld [vmem:[#allocation5 + $0x1a1] sm:$0xff]
        %v5701 = vld [vmem:[#allocation5 + $0x1b1] sm:$0xff]
        %v5702 = vld [vmem:[#allocation5 + $0x1e1] sm:$0xff]
        %v5703 = vld [vmem:[#allocation5 + $0x1f1] sm:$0xff]
        %v5704 = vld [vmem:[#allocation5 + $0x201] sm:$0xff]
        %v5705 = vld [vmem:[#allocation5 + $0x211] sm:$0xff]
        %v5706 = vld [vmem:[#allocation5 + $0x221] sm:$0xff]
        %v5707 = vld [vmem:[#allocation5 + $0x231] sm:$0xff]
        %v5708 = vld [vmem:[#allocation5 + $0x241] sm:$0xff]
        %v5709 = vld [vmem:[#allocation5 + $0x251] sm:$0xff]
        %v5711 = vsel %vm1322, %v5678, 0
        %v5714 = vsel %vm1322, %v5679, 0
        %v5717 = vsel %vm1322, %v5680, 0
        %v5720 = vsel %vm1322, %v5681, 0
        %v5723 = vsel %vm1322, %v5682, 0
        %v5726 = vsel %vm1322, %v5683, 0
        %v5729 = vsel %vm1322, %v5684, 0
        %v5732 = vsel %vm1322, %v5685, 0
        %v5735 = vsel %vm1322, %v5686, 0
        %v5738 = vsel %vm1322, %v5687, 0
        %v5741 = vsel %vm1322, %v5688, 0
        %v5744 = vsel %vm1322, %v5689, 0
        %v5747 = vsel %vm1322, %v5690, 0
        %v5750 = vsel %vm1322, %v5691, 0
        %v5753 = vsel %vm1322, %v5692, 0
        %v5756 = vsel %vm1322, %v5693, 0
        %v5759 = vsel %vm1322, %v5694, 0
        %v5762 = vsel %vm1322, %v5695, 0
        %v5765 = vsel %vm1322, %v5696, 0
        %v5768 = vsel %vm1322, %v5697, 0
        %v5771 = vsel %vm1322, %v5698, 0
        %v5774 = vsel %vm1322, %v5699, 0
        %v5777 = vsel %vm1322, %v5700, 0
        %v5780 = vsel %vm1322, %v5701, 0
        %v5783 = vsel %vm1322, %v5702, 0
        %v5786 = vsel %vm1322, %v5703, 0
        %v5789 = vsel %vm1322, %v5704, 0
        %v5792 = vsel %vm1322, %v5705, 0
        %v5795 = vsel %vm1322, %v5706, 0
        %v5798 = vsel %vm1322, %v5707, 0
        %v5801 = vsel %vm1322, %v5708, 0
        %v5804 = vsel %vm1322, %v5709, 0
        %5806 = vmatpush.msra.mxu0 0.0
        %5807 = vmatpush.msra.mxu0 0.0
        %5808 = vmatpush.msra.mxu0 0.0
        %5809 = vmatpush.msra.mxu0 0.0
        %5810 = vmatpush.msra.mxu0 0.0
        %5811 = vmatpush.msra.mxu0 0.0
        %5812 = vmatpush.msra.mxu0 0.0
        %5813 = vmatpush.msra.mxu0 0.0
        %5814 = vmatpush.msra.mxu0 0.0
        %5815 = vmatpush.msra.mxu0 0.0
        %5816 = vmatpush.msra.mxu0 0.0
        %5817 = vmatpush.msra.mxu0 0.0
        %5818 = vmatpush.msra.mxu0 %v930
        %5819 = vmatpush.msra.mxu0 %v929
        %5820 = vmatpush.msra.mxu0 %v928
        %5821 = vmatpush.msra.mxu0 %v927
        %5822 = vmatmul.f32.gmra.mxu0 %v5711
        %v5823 = vpop.f32.mrf.mxu0
        %v5824 = vadd.f32 0.0, %v5823
        %5825 = vmatmul.f32.gmra.mxu0 %v5714
        %v5826 = vpop.f32.mrf.mxu0
        %v5827 = vadd.f32 0.0, %v5826
        %5828 = vmatmul.f32.gmra.mxu0 %v5717
        %v5829 = vpop.f32.mrf.mxu0
        %v5830 = vadd.f32 0.0, %v5829
        %5831 = vmatmul.f32.gmra.mxu0 %v5720
        %v5832 = vpop.f32.mrf.mxu0
        %v5833 = vadd.f32 0.0, %v5832
        %5834 = vmatmul.f32.gmra.mxu0 %v5723
        %v5835 = vpop.f32.mrf.mxu0
        %v5836 = vadd.f32 0.0, %v5835
        %5837 = vmatmul.f32.gmra.mxu0 %v5726
        %v5838 = vpop.f32.mrf.mxu0
        %v5839 = vadd.f32 0.0, %v5838
        %5840 = vmatmul.f32.gmra.mxu0 %v5729
        %v5841 = vpop.f32.mrf.mxu0
        %v5842 = vadd.f32 0.0, %v5841
        %5843 = vmatmul.f32.gmra.mxu0 %v5732
        %v5844 = vpop.f32.mrf.mxu0
        %v5845 = vadd.f32 0.0, %v5844
        %5846 = vmatmul.f32.gmra.mxu0 %v5735
        %v5847 = vpop.f32.mrf.mxu0
        %v5848 = vadd.f32 0.0, %v5847
        %5849 = vmatmul.f32.gmra.mxu0 %v5738
        %v5850 = vpop.f32.mrf.mxu0
        %v5851 = vadd.f32 0.0, %v5850
        %5852 = vmatmul.f32.gmra.mxu0 %v5741
        %v5853 = vpop.f32.mrf.mxu0
        %v5854 = vadd.f32 0.0, %v5853
        %5855 = vmatmul.f32.gmra.mxu0 %v5744
        %v5856 = vpop.f32.mrf.mxu0
        %v5857 = vadd.f32 0.0, %v5856
        %5858 = vmatmul.f32.gmra.mxu0 %v5747
        %v5859 = vpop.f32.mrf.mxu0
        %v5860 = vadd.f32 0.0, %v5859
        %5861 = vmatmul.f32.gmra.mxu0 %v5750
        %v5862 = vpop.f32.mrf.mxu0
        %v5863 = vadd.f32 0.0, %v5862
        %5864 = vmatmul.f32.gmra.mxu0 %v5753
        %v5865 = vpop.f32.mrf.mxu0
        %v5866 = vadd.f32 0.0, %v5865
        %5867 = vmatmul.f32.gmra.mxu0 %v5756
        %v5868 = vpop.f32.mrf.mxu0
        %v5869 = vadd.f32 0.0, %v5868
        %5870 = vmatmul.f32.gmra.mxu0 %v5759
        %v5871 = vpop.f32.mrf.mxu0
        %v5872 = vadd.f32 0.0, %v5871
        %5873 = vmatmul.f32.gmra.mxu0 %v5762
        %v5874 = vpop.f32.mrf.mxu0
        %v5875 = vadd.f32 0.0, %v5874
        %5876 = vmatmul.f32.gmra.mxu0 %v5765
        %v5877 = vpop.f32.mrf.mxu0
        %v5878 = vadd.f32 0.0, %v5877
        %5879 = vmatmul.f32.gmra.mxu0 %v5768
        %v5880 = vpop.f32.mrf.mxu0
        %v5881 = vadd.f32 0.0, %v5880
        %5882 = vmatmul.f32.gmra.mxu0 %v5771
        %v5883 = vpop.f32.mrf.mxu0
        %v5884 = vadd.f32 0.0, %v5883
        %5885 = vmatmul.f32.gmra.mxu0 %v5774
        %v5886 = vpop.f32.mrf.mxu0
        %v5887 = vadd.f32 0.0, %v5886
        %5888 = vmatmul.f32.gmra.mxu0 %v5777
        %v5889 = vpop.f32.mrf.mxu0
        %v5890 = vadd.f32 0.0, %v5889
        %5891 = vmatmul.f32.gmra.mxu0 %v5780
        %v5892 = vpop.f32.mrf.mxu0
        %v5893 = vadd.f32 0.0, %v5892
        %5894 = vmatmul.f32.gmra.mxu0 %v5783
        %v5895 = vpop.f32.mrf.mxu0
        %v5896 = vadd.f32 0.0, %v5895
        %5897 = vmatmul.f32.gmra.mxu0 %v5786
        %v5898 = vpop.f32.mrf.mxu0
        %v5899 = vadd.f32 0.0, %v5898
        %5900 = vmatmul.f32.gmra.mxu0 %v5789
        %v5901 = vpop.f32.mrf.mxu0
        %v5902 = vadd.f32 0.0, %v5901
        %5903 = vmatmul.f32.gmra.mxu0 %v5792
        %v5904 = vpop.f32.mrf.mxu0
        %v5905 = vadd.f32 0.0, %v5904
        %5906 = vmatmul.f32.gmra.mxu0 %v5795
        %v5907 = vpop.f32.mrf.mxu0
        %v5908 = vadd.f32 0.0, %v5907
        %5909 = vmatmul.f32.gmra.mxu0 %v5798
        %v5910 = vpop.f32.mrf.mxu0
        %v5911 = vadd.f32 0.0, %v5910
        %5912 = vmatmul.f32.gmra.mxu0 %v5801
        %v5913 = vpop.f32.mrf.mxu0
        %v5914 = vadd.f32 0.0, %v5913
        %5915 = vmatmul.f32.gmra.mxu0 %v5804
        %v5916 = vpop.f32.mrf.mxu0
        %v5917 = vadd.f32 0.0, %v5916
        %5918 = vdwg.mxu0
        %v5919 = vadd.f32 %v5646, %v5824
        %v5920 = vadd.f32 %v5647, %v5827
        %v5921 = vadd.f32 %v5648, %v5830
        %v5922 = vadd.f32 %v5649, %v5833
        %v5923 = vadd.f32 %v5650, %v5836
        %v5924 = vadd.f32 %v5651, %v5839
        %v5925 = vadd.f32 %v5652, %v5842
        %v5926 = vadd.f32 %v5653, %v5845
        %v5927 = vadd.f32 %v5654, %v5848
        %v5928 = vadd.f32 %v5655, %v5851
        %v5929 = vadd.f32 %v5656, %v5854
        %v5930 = vadd.f32 %v5657, %v5857
        %v5931 = vadd.f32 %v5658, %v5860
        %v5932 = vadd.f32 %v5659, %v5863
        %v5933 = vadd.f32 %v5660, %v5866
        %v5934 = vadd.f32 %v5661, %v5869
        %v5935 = vadd.f32 %v5662, %v5872
        %v5936 = vadd.f32 %v5663, %v5875
        %v5937 = vadd.f32 %v5664, %v5878
        %v5938 = vadd.f32 %v5665, %v5881
        %v5939 = vadd.f32 %v5666, %v5884
        %v5940 = vadd.f32 %v5667, %v5887
        %v5941 = vadd.f32 %v5668, %v5890
        %v5942 = vadd.f32 %v5669, %v5893
        %v5943 = vadd.f32 %v5670, %v5896
        %v5944 = vadd.f32 %v5671, %v5899
        %v5945 = vadd.f32 %v5672, %v5902
        %v5946 = vadd.f32 %v5673, %v5905
        %v5947 = vadd.f32 %v5674, %v5908
        %v5948 = vadd.f32 %v5675, %v5911
        %v5949 = vadd.f32 %v5676, %v5914
        %v5950 = vadd.f32 %v5677, %v5917
        %v5951 = vld [vmem:[#allocation5 + $0x2] sm:$0xff]
        %v5952 = vld [vmem:[#allocation5 + $0x12] sm:$0xff]
        %v5953 = vld [vmem:[#allocation5 + $0x22] sm:$0xff]
        %v5954 = vld [vmem:[#allocation5 + $0x32] sm:$0xff]
        %v5955 = vld [vmem:[#allocation5 + $0x42] sm:$0xff]
        %v5956 = vld [vmem:[#allocation5 + $0x52] sm:$0xff]
        %v5957 = vld [vmem:[#allocation5 + $0x62] sm:$0xff]
        %v5958 = vld [vmem:[#allocation5 + $0x72] sm:$0xff]
        %v5959 = vld [vmem:[#allocation5 + $0xa2] sm:$0xff]
        %v5960 = vld [vmem:[#allocation5 + $0xb2] sm:$0xff]
        %v5961 = vld [vmem:[#allocation5 + $0xc2] sm:$0xff]
        %v5962 = vld [vmem:[#allocation5 + $0xd2] sm:$0xff]
        %v5963 = vld [vmem:[#allocation5 + $0xe2] sm:$0xff]
        %v5964 = vld [vmem:[#allocation5 + $0xf2] sm:$0xff]
        %v5965 = vld [vmem:[#allocation5 + $0x102] sm:$0xff]
        %v5966 = vld [vmem:[#allocation5 + $0x112] sm:$0xff]
        %v5967 = vld [vmem:[#allocation5 + $0x142] sm:$0xff]
        %v5968 = vld [vmem:[#allocation5 + $0x152] sm:$0xff]
        %v5969 = vld [vmem:[#allocation5 + $0x162] sm:$0xff]
        %v5970 = vld [vmem:[#allocation5 + $0x172] sm:$0xff]
        %v5971 = vld [vmem:[#allocation5 + $0x182] sm:$0xff]
        %v5972 = vld [vmem:[#allocation5 + $0x192] sm:$0xff]
        %v5973 = vld [vmem:[#allocation5 + $0x1a2] sm:$0xff]
        %v5974 = vld [vmem:[#allocation5 + $0x1b2] sm:$0xff]
        %v5975 = vld [vmem:[#allocation5 + $0x1e2] sm:$0xff]
        %v5976 = vld [vmem:[#allocation5 + $0x1f2] sm:$0xff]
        %v5977 = vld [vmem:[#allocation5 + $0x202] sm:$0xff]
        %v5978 = vld [vmem:[#allocation5 + $0x212] sm:$0xff]
        %v5979 = vld [vmem:[#allocation5 + $0x222] sm:$0xff]
        %v5980 = vld [vmem:[#allocation5 + $0x232] sm:$0xff]
        %v5981 = vld [vmem:[#allocation5 + $0x242] sm:$0xff]
        %v5982 = vld [vmem:[#allocation5 + $0x252] sm:$0xff]
        %v5984 = vsel %vm1322, %v5951, 0
        %v5987 = vsel %vm1322, %v5952, 0
        %v5990 = vsel %vm1322, %v5953, 0
        %v5993 = vsel %vm1322, %v5954, 0
        %v5996 = vsel %vm1322, %v5955, 0
        %v5999 = vsel %vm1322, %v5956, 0
        %v6002 = vsel %vm1322, %v5957, 0
        %v6005 = vsel %vm1322, %v5958, 0
        %v6008 = vsel %vm1322, %v5959, 0
        %v6011 = vsel %vm1322, %v5960, 0
        %v6014 = vsel %vm1322, %v5961, 0
        %v6017 = vsel %vm1322, %v5962, 0
        %v6020 = vsel %vm1322, %v5963, 0
        %v6023 = vsel %vm1322, %v5964, 0
        %v6026 = vsel %vm1322, %v5965, 0
        %v6029 = vsel %vm1322, %v5966, 0
        %v6032 = vsel %vm1322, %v5967, 0
        %v6035 = vsel %vm1322, %v5968, 0
        %v6038 = vsel %vm1322, %v5969, 0
        %v6041 = vsel %vm1322, %v5970, 0
        %v6044 = vsel %vm1322, %v5971, 0
        %v6047 = vsel %vm1322, %v5972, 0
        %v6050 = vsel %vm1322, %v5973, 0
        %v6053 = vsel %vm1322, %v5974, 0
        %v6056 = vsel %vm1322, %v5975, 0
        %v6059 = vsel %vm1322, %v5976, 0
        %v6062 = vsel %vm1322, %v5977, 0
        %v6065 = vsel %vm1322, %v5978, 0
        %v6068 = vsel %vm1322, %v5979, 0
        %v6071 = vsel %vm1322, %v5980, 0
        %v6074 = vsel %vm1322, %v5981, 0
        %v6077 = vsel %vm1322, %v5982, 0
        %6079 = vmatpush.msra.mxu0 0.0
        %6080 = vmatpush.msra.mxu0 0.0
        %6081 = vmatpush.msra.mxu0 0.0
        %6082 = vmatpush.msra.mxu0 0.0
        %6083 = vmatpush.msra.mxu0 0.0
        %6084 = vmatpush.msra.mxu0 0.0
        %6085 = vmatpush.msra.mxu0 0.0
        %6086 = vmatpush.msra.mxu0 0.0
        %6087 = vmatpush.msra.mxu0 0.0
        %6088 = vmatpush.msra.mxu0 0.0
        %6089 = vmatpush.msra.mxu0 0.0
        %6090 = vmatpush.msra.mxu0 0.0
        %6091 = vmatpush.msra.mxu0 %v934
        %6092 = vmatpush.msra.mxu0 %v933
        %6093 = vmatpush.msra.mxu0 %v932
        %6094 = vmatpush.msra.mxu0 %v931
        %6095 = vmatmul.f32.gmra.mxu0 %v5984
        %v6096 = vpop.f32.mrf.mxu0
        %v6097 = vadd.f32 0.0, %v6096
        %6098 = vmatmul.f32.gmra.mxu0 %v5987
        %v6099 = vpop.f32.mrf.mxu0
        %v6100 = vadd.f32 0.0, %v6099
        %6101 = vmatmul.f32.gmra.mxu0 %v5990
        %v6102 = vpop.f32.mrf.mxu0
        %v6103 = vadd.f32 0.0, %v6102
        %6104 = vmatmul.f32.gmra.mxu0 %v5993
        %v6105 = vpop.f32.mrf.mxu0
        %v6106 = vadd.f32 0.0, %v6105
        %6107 = vmatmul.f32.gmra.mxu0 %v5996
        %v6108 = vpop.f32.mrf.mxu0
        %v6109 = vadd.f32 0.0, %v6108
        %6110 = vmatmul.f32.gmra.mxu0 %v5999
        %v6111 = vpop.f32.mrf.mxu0
        %v6112 = vadd.f32 0.0, %v6111
        %6113 = vmatmul.f32.gmra.mxu0 %v6002
        %v6114 = vpop.f32.mrf.mxu0
        %v6115 = vadd.f32 0.0, %v6114
        %6116 = vmatmul.f32.gmra.mxu0 %v6005
        %v6117 = vpop.f32.mrf.mxu0
        %v6118 = vadd.f32 0.0, %v6117
        %6119 = vmatmul.f32.gmra.mxu0 %v6008
        %v6120 = vpop.f32.mrf.mxu0
        %v6121 = vadd.f32 0.0, %v6120
        %6122 = vmatmul.f32.gmra.mxu0 %v6011
        %v6123 = vpop.f32.mrf.mxu0
        %v6124 = vadd.f32 0.0, %v6123
        %6125 = vmatmul.f32.gmra.mxu0 %v6014
        %v6126 = vpop.f32.mrf.mxu0
        %v6127 = vadd.f32 0.0, %v6126
        %6128 = vmatmul.f32.gmra.mxu0 %v6017
        %v6129 = vpop.f32.mrf.mxu0
        %v6130 = vadd.f32 0.0, %v6129
        %6131 = vmatmul.f32.gmra.mxu0 %v6020
        %v6132 = vpop.f32.mrf.mxu0
        %v6133 = vadd.f32 0.0, %v6132
        %6134 = vmatmul.f32.gmra.mxu0 %v6023
        %v6135 = vpop.f32.mrf.mxu0
        %v6136 = vadd.f32 0.0, %v6135
        %6137 = vmatmul.f32.gmra.mxu0 %v6026
        %v6138 = vpop.f32.mrf.mxu0
        %v6139 = vadd.f32 0.0, %v6138
        %6140 = vmatmul.f32.gmra.mxu0 %v6029
        %v6141 = vpop.f32.mrf.mxu0
        %v6142 = vadd.f32 0.0, %v6141
        %6143 = vmatmul.f32.gmra.mxu0 %v6032
        %v6144 = vpop.f32.mrf.mxu0
        %v6145 = vadd.f32 0.0, %v6144
        %6146 = vmatmul.f32.gmra.mxu0 %v6035
        %v6147 = vpop.f32.mrf.mxu0
        %v6148 = vadd.f32 0.0, %v6147
        %6149 = vmatmul.f32.gmra.mxu0 %v6038
        %v6150 = vpop.f32.mrf.mxu0
        %v6151 = vadd.f32 0.0, %v6150
        %6152 = vmatmul.f32.gmra.mxu0 %v6041
        %v6153 = vpop.f32.mrf.mxu0
        %v6154 = vadd.f32 0.0, %v6153
        %6155 = vmatmul.f32.gmra.mxu0 %v6044
        %v6156 = vpop.f32.mrf.mxu0
        %v6157 = vadd.f32 0.0, %v6156
        %6158 = vmatmul.f32.gmra.mxu0 %v6047
        %v6159 = vpop.f32.mrf.mxu0
        %v6160 = vadd.f32 0.0, %v6159
        %6161 = vmatmul.f32.gmra.mxu0 %v6050
        %v6162 = vpop.f32.mrf.mxu0
        %v6163 = vadd.f32 0.0, %v6162
        %6164 = vmatmul.f32.gmra.mxu0 %v6053
        %v6165 = vpop.f32.mrf.mxu0
        %v6166 = vadd.f32 0.0, %v6165
        %6167 = vmatmul.f32.gmra.mxu0 %v6056
        %v6168 = vpop.f32.mrf.mxu0
        %v6169 = vadd.f32 0.0, %v6168
        %6170 = vmatmul.f32.gmra.mxu0 %v6059
        %v6171 = vpop.f32.mrf.mxu0
        %v6172 = vadd.f32 0.0, %v6171
        %6173 = vmatmul.f32.gmra.mxu0 %v6062
        %v6174 = vpop.f32.mrf.mxu0
        %v6175 = vadd.f32 0.0, %v6174
        %6176 = vmatmul.f32.gmra.mxu0 %v6065
        %v6177 = vpop.f32.mrf.mxu0
        %v6178 = vadd.f32 0.0, %v6177
        %6179 = vmatmul.f32.gmra.mxu0 %v6068
        %v6180 = vpop.f32.mrf.mxu0
        %v6181 = vadd.f32 0.0, %v6180
        %6182 = vmatmul.f32.gmra.mxu0 %v6071
        %v6183 = vpop.f32.mrf.mxu0
        %v6184 = vadd.f32 0.0, %v6183
        %6185 = vmatmul.f32.gmra.mxu0 %v6074
        %v6186 = vpop.f32.mrf.mxu0
        %v6187 = vadd.f32 0.0, %v6186
        %6188 = vmatmul.f32.gmra.mxu0 %v6077
        %v6189 = vpop.f32.mrf.mxu0
        %v6190 = vadd.f32 0.0, %v6189
        %6191 = vdwg.mxu0
        %v6192 = vadd.f32 %v5919, %v6097
        %v6193 = vadd.f32 %v5920, %v6100
        %v6194 = vadd.f32 %v5921, %v6103
        %v6195 = vadd.f32 %v5922, %v6106
        %v6196 = vadd.f32 %v5923, %v6109
        %v6197 = vadd.f32 %v5924, %v6112
        %v6198 = vadd.f32 %v5925, %v6115
        %v6199 = vadd.f32 %v5926, %v6118
        %v6200 = vadd.f32 %v5927, %v6121
        %v6201 = vadd.f32 %v5928, %v6124
        %v6202 = vadd.f32 %v5929, %v6127
        %v6203 = vadd.f32 %v5930, %v6130
        %v6204 = vadd.f32 %v5931, %v6133
        %v6205 = vadd.f32 %v5932, %v6136
        %v6206 = vadd.f32 %v5933, %v6139
        %v6207 = vadd.f32 %v5934, %v6142
        %v6208 = vadd.f32 %v5935, %v6145
        %v6209 = vadd.f32 %v5936, %v6148
        %v6210 = vadd.f32 %v5937, %v6151
        %v6211 = vadd.f32 %v5938, %v6154
        %v6212 = vadd.f32 %v5939, %v6157
        %v6213 = vadd.f32 %v5940, %v6160
        %v6214 = vadd.f32 %v5941, %v6163
        %v6215 = vadd.f32 %v5942, %v6166
        %v6216 = vadd.f32 %v5943, %v6169
        %v6217 = vadd.f32 %v5944, %v6172
        %v6218 = vadd.f32 %v5945, %v6175
        %v6219 = vadd.f32 %v5946, %v6178
        %v6220 = vadd.f32 %v5947, %v6181
        %v6221 = vadd.f32 %v5948, %v6184
        %v6222 = vadd.f32 %v5949, %v6187
        %v6223 = vadd.f32 %v5950, %v6190
        %v6224 = vld [vmem:[%s1643] sm:$0xff]
        %v6225 = vld [vmem:[%s1643 + $0x10] sm:$0xff]
        %v6226 = vld [vmem:[%s1643 + $0x20] sm:$0xff]
        %v6227 = vld [vmem:[%s1643 + $0x30] sm:$0xff]
        %v6228 = vld [vmem:[%s1643 + $0x40] sm:$0xff]
        %v6229 = vld [vmem:[%s1643 + $0x50] sm:$0xff]
        %v6230 = vld [vmem:[%s1643 + $0x60] sm:$0xff]
        %v6231 = vld [vmem:[%s1643 + $0x70] sm:$0xff]
        %v6232 = vld [vmem:[%s1643 + $0xa0] sm:$0xff]
        %v6233 = vld [vmem:[%s1643 + $0xb0] sm:$0xff]
        %v6234 = vld [vmem:[%s1643 + $0xc0] sm:$0xff]
        %v6235 = vld [vmem:[%s1643 + $0xd0] sm:$0xff]
        %v6236 = vld [vmem:[%s1643 + $0xe0] sm:$0xff]
        %v6237 = vld [vmem:[%s1643 + $0xf0] sm:$0xff]
        %v6238 = vld [vmem:[%s1643 + $0x100] sm:$0xff]
        %v6239 = vld [vmem:[%s1643 + $0x110] sm:$0xff]
        %v6240 = vld [vmem:[%s1643 + $0x140] sm:$0xff]
        %v6241 = vld [vmem:[%s1643 + $0x150] sm:$0xff]
        %v6242 = vld [vmem:[%s1643 + $0x160] sm:$0xff]
        %v6243 = vld [vmem:[%s1643 + $0x170] sm:$0xff]
        %v6244 = vld [vmem:[%s1643 + $0x180] sm:$0xff]
        %v6245 = vld [vmem:[%s1643 + $0x190] sm:$0xff]
        %v6246 = vld [vmem:[%s1643 + $0x1a0] sm:$0xff]
        %v6247 = vld [vmem:[%s1643 + $0x1b0] sm:$0xff]
        %v6248 = vld [vmem:[%s1643 + $0x1e0] sm:$0xff]
        %v6249 = vld [vmem:[%s1643 + $0x1f0] sm:$0xff]
        %v6250 = vld [vmem:[%s1643 + $0x200] sm:$0xff]
        %v6251 = vld [vmem:[%s1643 + $0x210] sm:$0xff]
        %v6252 = vld [vmem:[%s1643 + $0x220] sm:$0xff]
        %v6253 = vld [vmem:[%s1643 + $0x230] sm:$0xff]
        %v6254 = vld [vmem:[%s1643 + $0x240] sm:$0xff]
        %v6255 = vld [vmem:[%s1643 + $0x250] sm:$0xff]
        %v6257 = vsel %vm1322, %v6224, 0
        %v6260 = vsel %vm1322, %v6225, 0
        %v6263 = vsel %vm1322, %v6226, 0
        %v6266 = vsel %vm1322, %v6227, 0
        %v6269 = vsel %vm1322, %v6228, 0
        %v6272 = vsel %vm1322, %v6229, 0
        %v6275 = vsel %vm1322, %v6230, 0
        %v6278 = vsel %vm1322, %v6231, 0
        %v6281 = vsel %vm1322, %v6232, 0
        %v6284 = vsel %vm1322, %v6233, 0
        %v6287 = vsel %vm1322, %v6234, 0
        %v6290 = vsel %vm1322, %v6235, 0
        %v6293 = vsel %vm1322, %v6236, 0
        %v6296 = vsel %vm1322, %v6237, 0
        %v6299 = vsel %vm1322, %v6238, 0
        %v6302 = vsel %vm1322, %v6239, 0
        %v6305 = vsel %vm1322, %v6240, 0
        %v6308 = vsel %vm1322, %v6241, 0
        %v6311 = vsel %vm1322, %v6242, 0
        %v6314 = vsel %vm1322, %v6243, 0
        %v6317 = vsel %vm1322, %v6244, 0
        %v6320 = vsel %vm1322, %v6245, 0
        %v6323 = vsel %vm1322, %v6246, 0
        %v6326 = vsel %vm1322, %v6247, 0
        %v6329 = vsel %vm1322, %v6248, 0
        %v6332 = vsel %vm1322, %v6249, 0
        %v6335 = vsel %vm1322, %v6250, 0
        %v6338 = vsel %vm1322, %v6251, 0
        %v6341 = vsel %vm1322, %v6252, 0
        %v6344 = vsel %vm1322, %v6253, 0
        %v6347 = vsel %vm1322, %v6254, 0
        %v6350 = vsel %vm1322, %v6255, 0
        %6352 = vmatpush.msra.mxu0 0.0
        %6353 = vmatpush.msra.mxu0 0.0
        %6354 = vmatpush.msra.mxu0 0.0
        %6355 = vmatpush.msra.mxu0 0.0
        %6356 = vmatpush.msra.mxu0 0.0
        %6357 = vmatpush.msra.mxu0 0.0
        %6358 = vmatpush.msra.mxu0 0.0
        %6359 = vmatpush.msra.mxu0 0.0
        %6360 = vmatpush.msra.mxu0 0.0
        %6361 = vmatpush.msra.mxu0 0.0
        %6362 = vmatpush.msra.mxu0 0.0
        %6363 = vmatpush.msra.mxu0 0.0
        %6364 = vmatpush.msra.mxu0 %v938
        %6365 = vmatpush.msra.mxu0 %v937
        %6366 = vmatpush.msra.mxu0 %v936
        %6367 = vmatpush.msra.mxu0 %v935
        %6368 = vmatmul.f32.gmra.mxu0 %v6257
        %v6369 = vpop.f32.mrf.mxu0
        %v6370 = vadd.f32 0.0, %v6369
        %6371 = vmatmul.f32.gmra.mxu0 %v6260
        %v6372 = vpop.f32.mrf.mxu0
        %v6373 = vadd.f32 0.0, %v6372
        %6374 = vmatmul.f32.gmra.mxu0 %v6263
        %v6375 = vpop.f32.mrf.mxu0
        %v6376 = vadd.f32 0.0, %v6375
        %6377 = vmatmul.f32.gmra.mxu0 %v6266
        %v6378 = vpop.f32.mrf.mxu0
        %v6379 = vadd.f32 0.0, %v6378
        %6380 = vmatmul.f32.gmra.mxu0 %v6269
        %v6381 = vpop.f32.mrf.mxu0
        %v6382 = vadd.f32 0.0, %v6381
        %6383 = vmatmul.f32.gmra.mxu0 %v6272
        %v6384 = vpop.f32.mrf.mxu0
        %v6385 = vadd.f32 0.0, %v6384
        %6386 = vmatmul.f32.gmra.mxu0 %v6275
        %v6387 = vpop.f32.mrf.mxu0
        %v6388 = vadd.f32 0.0, %v6387
        %6389 = vmatmul.f32.gmra.mxu0 %v6278
        %v6390 = vpop.f32.mrf.mxu0
        %v6391 = vadd.f32 0.0, %v6390
        %6392 = vmatmul.f32.gmra.mxu0 %v6281
        %v6393 = vpop.f32.mrf.mxu0
        %v6394 = vadd.f32 0.0, %v6393
        %6395 = vmatmul.f32.gmra.mxu0 %v6284
        %v6396 = vpop.f32.mrf.mxu0
        %v6397 = vadd.f32 0.0, %v6396
        %6398 = vmatmul.f32.gmra.mxu0 %v6287
        %v6399 = vpop.f32.mrf.mxu0
        %v6400 = vadd.f32 0.0, %v6399
        %6401 = vmatmul.f32.gmra.mxu0 %v6290
        %v6402 = vpop.f32.mrf.mxu0
        %v6403 = vadd.f32 0.0, %v6402
        %6404 = vmatmul.f32.gmra.mxu0 %v6293
        %v6405 = vpop.f32.mrf.mxu0
        %v6406 = vadd.f32 0.0, %v6405
        %6407 = vmatmul.f32.gmra.mxu0 %v6296
        %v6408 = vpop.f32.mrf.mxu0
        %v6409 = vadd.f32 0.0, %v6408
        %6410 = vmatmul.f32.gmra.mxu0 %v6299
        %v6411 = vpop.f32.mrf.mxu0
        %v6412 = vadd.f32 0.0, %v6411
        %6413 = vmatmul.f32.gmra.mxu0 %v6302
        %v6414 = vpop.f32.mrf.mxu0
        %v6415 = vadd.f32 0.0, %v6414
        %6416 = vmatmul.f32.gmra.mxu0 %v6305
        %v6417 = vpop.f32.mrf.mxu0
        %v6418 = vadd.f32 0.0, %v6417
        %6419 = vmatmul.f32.gmra.mxu0 %v6308
        %v6420 = vpop.f32.mrf.mxu0
        %v6421 = vadd.f32 0.0, %v6420
        %6422 = vmatmul.f32.gmra.mxu0 %v6311
        %v6423 = vpop.f32.mrf.mxu0
        %v6424 = vadd.f32 0.0, %v6423
        %6425 = vmatmul.f32.gmra.mxu0 %v6314
        %v6426 = vpop.f32.mrf.mxu0
        %v6427 = vadd.f32 0.0, %v6426
        %6428 = vmatmul.f32.gmra.mxu0 %v6317
        %v6429 = vpop.f32.mrf.mxu0
        %v6430 = vadd.f32 0.0, %v6429
        %6431 = vmatmul.f32.gmra.mxu0 %v6320
        %v6432 = vpop.f32.mrf.mxu0
        %v6433 = vadd.f32 0.0, %v6432
        %6434 = vmatmul.f32.gmra.mxu0 %v6323
        %v6435 = vpop.f32.mrf.mxu0
        %v6436 = vadd.f32 0.0, %v6435
        %6437 = vmatmul.f32.gmra.mxu0 %v6326
        %v6438 = vpop.f32.mrf.mxu0
        %v6439 = vadd.f32 0.0, %v6438
        %6440 = vmatmul.f32.gmra.mxu0 %v6329
        %v6441 = vpop.f32.mrf.mxu0
        %v6442 = vadd.f32 0.0, %v6441
        %6443 = vmatmul.f32.gmra.mxu0 %v6332
        %v6444 = vpop.f32.mrf.mxu0
        %v6445 = vadd.f32 0.0, %v6444
        %6446 = vmatmul.f32.gmra.mxu0 %v6335
        %v6447 = vpop.f32.mrf.mxu0
        %v6448 = vadd.f32 0.0, %v6447
        %6449 = vmatmul.f32.gmra.mxu0 %v6338
        %v6450 = vpop.f32.mrf.mxu0
        %v6451 = vadd.f32 0.0, %v6450
        %6452 = vmatmul.f32.gmra.mxu0 %v6341
        %v6453 = vpop.f32.mrf.mxu0
        %v6454 = vadd.f32 0.0, %v6453
        %6455 = vmatmul.f32.gmra.mxu0 %v6344
        %v6456 = vpop.f32.mrf.mxu0
        %v6457 = vadd.f32 0.0, %v6456
        %6458 = vmatmul.f32.gmra.mxu0 %v6347
        %v6459 = vpop.f32.mrf.mxu0
        %v6460 = vadd.f32 0.0, %v6459
        %6461 = vmatmul.f32.gmra.mxu0 %v6350
        %v6462 = vpop.f32.mrf.mxu0
        %v6463 = vadd.f32 0.0, %v6462
        %6464 = vdwg.mxu0
        %v6465 = vadd.f32 %v6192, %v6370
        %v6466 = vadd.f32 %v6193, %v6373
        %v6467 = vadd.f32 %v6194, %v6376
        %v6468 = vadd.f32 %v6195, %v6379
        %v6469 = vadd.f32 %v6196, %v6382
        %v6470 = vadd.f32 %v6197, %v6385
        %v6471 = vadd.f32 %v6198, %v6388
        %v6472 = vadd.f32 %v6199, %v6391
        %v6473 = vadd.f32 %v6200, %v6394
        %v6474 = vadd.f32 %v6201, %v6397
        %v6475 = vadd.f32 %v6202, %v6400
        %v6476 = vadd.f32 %v6203, %v6403
        %v6477 = vadd.f32 %v6204, %v6406
        %v6478 = vadd.f32 %v6205, %v6409
        %v6479 = vadd.f32 %v6206, %v6412
        %v6480 = vadd.f32 %v6207, %v6415
        %v6481 = vadd.f32 %v6208, %v6418
        %v6482 = vadd.f32 %v6209, %v6421
        %v6483 = vadd.f32 %v6210, %v6424
        %v6484 = vadd.f32 %v6211, %v6427
        %v6485 = vadd.f32 %v6212, %v6430
        %v6486 = vadd.f32 %v6213, %v6433
        %v6487 = vadd.f32 %v6214, %v6436
        %v6488 = vadd.f32 %v6215, %v6439
        %v6489 = vadd.f32 %v6216, %v6442
        %v6490 = vadd.f32 %v6217, %v6445
        %v6491 = vadd.f32 %v6218, %v6448
        %v6492 = vadd.f32 %v6219, %v6451
        %v6493 = vadd.f32 %v6220, %v6454
        %v6494 = vadd.f32 %v6221, %v6457
        %v6495 = vadd.f32 %v6222, %v6460
        %v6496 = vadd.f32 %v6223, %v6463
        %v6497 = vld [vmem:[%s1643 + $0x1] sm:$0xff]
        %v6498 = vld [vmem:[%s1643 + $0x11] sm:$0xff]
        %v6499 = vld [vmem:[%s1643 + $0x21] sm:$0xff]
        %v6500 = vld [vmem:[%s1643 + $0x31] sm:$0xff]
        %v6501 = vld [vmem:[%s1643 + $0x41] sm:$0xff]
        %v6502 = vld [vmem:[%s1643 + $0x51] sm:$0xff]
        %v6503 = vld [vmem:[%s1643 + $0x61] sm:$0xff]
        %v6504 = vld [vmem:[%s1643 + $0x71] sm:$0xff]
        %v6505 = vld [vmem:[%s1643 + $0xa1] sm:$0xff]
        %v6506 = vld [vmem:[%s1643 + $0xb1] sm:$0xff]
        %v6507 = vld [vmem:[%s1643 + $0xc1] sm:$0xff]
        %v6508 = vld [vmem:[%s1643 + $0xd1] sm:$0xff]
        %v6509 = vld [vmem:[%s1643 + $0xe1] sm:$0xff]
        %v6510 = vld [vmem:[%s1643 + $0xf1] sm:$0xff]
        %v6511 = vld [vmem:[%s1643 + $0x101] sm:$0xff]
        %v6512 = vld [vmem:[%s1643 + $0x111] sm:$0xff]
        %v6513 = vld [vmem:[%s1643 + $0x141] sm:$0xff]
        %v6514 = vld [vmem:[%s1643 + $0x151] sm:$0xff]
        %v6515 = vld [vmem:[%s1643 + $0x161] sm:$0xff]
        %v6516 = vld [vmem:[%s1643 + $0x171] sm:$0xff]
        %v6517 = vld [vmem:[%s1643 + $0x181] sm:$0xff]
        %v6518 = vld [vmem:[%s1643 + $0x191] sm:$0xff]
        %v6519 = vld [vmem:[%s1643 + $0x1a1] sm:$0xff]
        %v6520 = vld [vmem:[%s1643 + $0x1b1] sm:$0xff]
        %v6521 = vld [vmem:[%s1643 + $0x1e1] sm:$0xff]
        %v6522 = vld [vmem:[%s1643 + $0x1f1] sm:$0xff]
        %v6523 = vld [vmem:[%s1643 + $0x201] sm:$0xff]
        %v6524 = vld [vmem:[%s1643 + $0x211] sm:$0xff]
        %v6525 = vld [vmem:[%s1643 + $0x221] sm:$0xff]
        %v6526 = vld [vmem:[%s1643 + $0x231] sm:$0xff]
        %v6527 = vld [vmem:[%s1643 + $0x241] sm:$0xff]
        %v6528 = vld [vmem:[%s1643 + $0x251] sm:$0xff]
        %v6530 = vsel %vm1322, %v6497, 0
        %v6533 = vsel %vm1322, %v6498, 0
        %v6536 = vsel %vm1322, %v6499, 0
        %v6539 = vsel %vm1322, %v6500, 0
        %v6542 = vsel %vm1322, %v6501, 0
        %v6545 = vsel %vm1322, %v6502, 0
        %v6548 = vsel %vm1322, %v6503, 0
        %v6551 = vsel %vm1322, %v6504, 0
        %v6554 = vsel %vm1322, %v6505, 0
        %v6557 = vsel %vm1322, %v6506, 0
        %v6560 = vsel %vm1322, %v6507, 0
        %v6563 = vsel %vm1322, %v6508, 0
        %v6566 = vsel %vm1322, %v6509, 0
        %v6569 = vsel %vm1322, %v6510, 0
        %v6572 = vsel %vm1322, %v6511, 0
        %v6575 = vsel %vm1322, %v6512, 0
        %v6578 = vsel %vm1322, %v6513, 0
        %v6581 = vsel %vm1322, %v6514, 0
        %v6584 = vsel %vm1322, %v6515, 0
        %v6587 = vsel %vm1322, %v6516, 0
        %v6590 = vsel %vm1322, %v6517, 0
        %v6593 = vsel %vm1322, %v6518, 0
        %v6596 = vsel %vm1322, %v6519, 0
        %v6599 = vsel %vm1322, %v6520, 0
        %v6602 = vsel %vm1322, %v6521, 0
        %v6605 = vsel %vm1322, %v6522, 0
        %v6608 = vsel %vm1322, %v6523, 0
        %v6611 = vsel %vm1322, %v6524, 0
        %v6614 = vsel %vm1322, %v6525, 0
        %v6617 = vsel %vm1322, %v6526, 0
        %v6620 = vsel %vm1322, %v6527, 0
        %v6623 = vsel %vm1322, %v6528, 0
        %6625 = vmatpush.msra.mxu0 0.0
        %6626 = vmatpush.msra.mxu0 0.0
        %6627 = vmatpush.msra.mxu0 0.0
        %6628 = vmatpush.msra.mxu0 0.0
        %6629 = vmatpush.msra.mxu0 0.0
        %6630 = vmatpush.msra.mxu0 0.0
        %6631 = vmatpush.msra.mxu0 0.0
        %6632 = vmatpush.msra.mxu0 0.0
        %6633 = vmatpush.msra.mxu0 0.0
        %6634 = vmatpush.msra.mxu0 0.0
        %6635 = vmatpush.msra.mxu0 0.0
        %6636 = vmatpush.msra.mxu0 0.0
        %6637 = vmatpush.msra.mxu0 %v942
        %6638 = vmatpush.msra.mxu0 %v941
        %6639 = vmatpush.msra.mxu0 %v940
        %6640 = vmatpush.msra.mxu0 %v939
        %6641 = vmatmul.f32.gmra.mxu0 %v6530
        %v6642 = vpop.f32.mrf.mxu0
        %v6643 = vadd.f32 0.0, %v6642
        %6644 = vmatmul.f32.gmra.mxu0 %v6533
        %v6645 = vpop.f32.mrf.mxu0
        %v6646 = vadd.f32 0.0, %v6645
        %6647 = vmatmul.f32.gmra.mxu0 %v6536
        %v6648 = vpop.f32.mrf.mxu0
        %v6649 = vadd.f32 0.0, %v6648
        %6650 = vmatmul.f32.gmra.mxu0 %v6539
        %v6651 = vpop.f32.mrf.mxu0
        %v6652 = vadd.f32 0.0, %v6651
        %6653 = vmatmul.f32.gmra.mxu0 %v6542
        %v6654 = vpop.f32.mrf.mxu0
        %v6655 = vadd.f32 0.0, %v6654
        %6656 = vmatmul.f32.gmra.mxu0 %v6545
        %v6657 = vpop.f32.mrf.mxu0
        %v6658 = vadd.f32 0.0, %v6657
        %6659 = vmatmul.f32.gmra.mxu0 %v6548
        %v6660 = vpop.f32.mrf.mxu0
        %v6661 = vadd.f32 0.0, %v6660
        %6662 = vmatmul.f32.gmra.mxu0 %v6551
        %v6663 = vpop.f32.mrf.mxu0
        %v6664 = vadd.f32 0.0, %v6663
        %6665 = vmatmul.f32.gmra.mxu0 %v6554
        %v6666 = vpop.f32.mrf.mxu0
        %v6667 = vadd.f32 0.0, %v6666
        %6668 = vmatmul.f32.gmra.mxu0 %v6557
        %v6669 = vpop.f32.mrf.mxu0
        %v6670 = vadd.f32 0.0, %v6669
        %6671 = vmatmul.f32.gmra.mxu0 %v6560
        %v6672 = vpop.f32.mrf.mxu0
        %v6673 = vadd.f32 0.0, %v6672
        %6674 = vmatmul.f32.gmra.mxu0 %v6563
        %v6675 = vpop.f32.mrf.mxu0
        %v6676 = vadd.f32 0.0, %v6675
        %6677 = vmatmul.f32.gmra.mxu0 %v6566
        %v6678 = vpop.f32.mrf.mxu0
        %v6679 = vadd.f32 0.0, %v6678
        %6680 = vmatmul.f32.gmra.mxu0 %v6569
        %v6681 = vpop.f32.mrf.mxu0
        %v6682 = vadd.f32 0.0, %v6681
        %6683 = vmatmul.f32.gmra.mxu0 %v6572
        %v6684 = vpop.f32.mrf.mxu0
        %v6685 = vadd.f32 0.0, %v6684
        %6686 = vmatmul.f32.gmra.mxu0 %v6575
        %v6687 = vpop.f32.mrf.mxu0
        %v6688 = vadd.f32 0.0, %v6687
        %6689 = vmatmul.f32.gmra.mxu0 %v6578
        %v6690 = vpop.f32.mrf.mxu0
        %v6691 = vadd.f32 0.0, %v6690
        %6692 = vmatmul.f32.gmra.mxu0 %v6581
        %v6693 = vpop.f32.mrf.mxu0
        %v6694 = vadd.f32 0.0, %v6693
        %6695 = vmatmul.f32.gmra.mxu0 %v6584
        %v6696 = vpop.f32.mrf.mxu0
        %v6697 = vadd.f32 0.0, %v6696
        %6698 = vmatmul.f32.gmra.mxu0 %v6587
        %v6699 = vpop.f32.mrf.mxu0
        %v6700 = vadd.f32 0.0, %v6699
        %6701 = vmatmul.f32.gmra.mxu0 %v6590
        %v6702 = vpop.f32.mrf.mxu0
        %v6703 = vadd.f32 0.0, %v6702
        %6704 = vmatmul.f32.gmra.mxu0 %v6593
        %v6705 = vpop.f32.mrf.mxu0
        %v6706 = vadd.f32 0.0, %v6705
        %6707 = vmatmul.f32.gmra.mxu0 %v6596
        %v6708 = vpop.f32.mrf.mxu0
        %v6709 = vadd.f32 0.0, %v6708
        %6710 = vmatmul.f32.gmra.mxu0 %v6599
        %v6711 = vpop.f32.mrf.mxu0
        %v6712 = vadd.f32 0.0, %v6711
        %6713 = vmatmul.f32.gmra.mxu0 %v6602
        %v6714 = vpop.f32.mrf.mxu0
        %v6715 = vadd.f32 0.0, %v6714
        %6716 = vmatmul.f32.gmra.mxu0 %v6605
        %v6717 = vpop.f32.mrf.mxu0
        %v6718 = vadd.f32 0.0, %v6717
        %6719 = vmatmul.f32.gmra.mxu0 %v6608
        %v6720 = vpop.f32.mrf.mxu0
        %v6721 = vadd.f32 0.0, %v6720
        %6722 = vmatmul.f32.gmra.mxu0 %v6611
        %v6723 = vpop.f32.mrf.mxu0
        %v6724 = vadd.f32 0.0, %v6723
        %6725 = vmatmul.f32.gmra.mxu0 %v6614
        %v6726 = vpop.f32.mrf.mxu0
        %v6727 = vadd.f32 0.0, %v6726
        %6728 = vmatmul.f32.gmra.mxu0 %v6617
        %v6729 = vpop.f32.mrf.mxu0
        %v6730 = vadd.f32 0.0, %v6729
        %6731 = vmatmul.f32.gmra.mxu0 %v6620
        %v6732 = vpop.f32.mrf.mxu0
        %v6733 = vadd.f32 0.0, %v6732
        %6734 = vmatmul.f32.gmra.mxu0 %v6623
        %v6735 = vpop.f32.mrf.mxu0
        %v6736 = vadd.f32 0.0, %v6735
        %6737 = vdwg.mxu0
        %v6738 = vadd.f32 %v6465, %v6643
        %v6739 = vadd.f32 %v6466, %v6646
        %v6740 = vadd.f32 %v6467, %v6649
        %v6741 = vadd.f32 %v6468, %v6652
        %v6742 = vadd.f32 %v6469, %v6655
        %v6743 = vadd.f32 %v6470, %v6658
        %v6744 = vadd.f32 %v6471, %v6661
        %v6745 = vadd.f32 %v6472, %v6664
        %v6746 = vadd.f32 %v6473, %v6667
        %v6747 = vadd.f32 %v6474, %v6670
        %v6748 = vadd.f32 %v6475, %v6673
        %v6749 = vadd.f32 %v6476, %v6676
        %v6750 = vadd.f32 %v6477, %v6679
        %v6751 = vadd.f32 %v6478, %v6682
        %v6752 = vadd.f32 %v6479, %v6685
        %v6753 = vadd.f32 %v6480, %v6688
        %v6754 = vadd.f32 %v6481, %v6691
        %v6755 = vadd.f32 %v6482, %v6694
        %v6756 = vadd.f32 %v6483, %v6697
        %v6757 = vadd.f32 %v6484, %v6700
        %v6758 = vadd.f32 %v6485, %v6703
        %v6759 = vadd.f32 %v6486, %v6706
        %v6760 = vadd.f32 %v6487, %v6709
        %v6761 = vadd.f32 %v6488, %v6712
        %v6762 = vadd.f32 %v6489, %v6715
        %v6763 = vadd.f32 %v6490, %v6718
        %v6764 = vadd.f32 %v6491, %v6721
        %v6765 = vadd.f32 %v6492, %v6724
        %v6766 = vadd.f32 %v6493, %v6727
        %v6767 = vadd.f32 %v6494, %v6730
        %v6768 = vadd.f32 %v6495, %v6733
        %v6769 = vadd.f32 %v6496, %v6736
        %v6770 = vld [vmem:[%s1643 + $0x2] sm:$0xff]
        %v6771 = vld [vmem:[%s1643 + $0x12] sm:$0xff]
        %v6772 = vld [vmem:[%s1643 + $0x22] sm:$0xff]
        %v6773 = vld [vmem:[%s1643 + $0x32] sm:$0xff]
        %v6774 = vld [vmem:[%s1643 + $0x42] sm:$0xff]
        %v6775 = vld [vmem:[%s1643 + $0x52] sm:$0xff]
        %v6776 = vld [vmem:[%s1643 + $0x62] sm:$0xff]
        %v6777 = vld [vmem:[%s1643 + $0x72] sm:$0xff]
        %v6778 = vld [vmem:[%s1643 + $0xa2] sm:$0xff]
        %v6779 = vld [vmem:[%s1643 + $0xb2] sm:$0xff]
        %v6780 = vld [vmem:[%s1643 + $0xc2] sm:$0xff]
        %v6781 = vld [vmem:[%s1643 + $0xd2] sm:$0xff]
        %v6782 = vld [vmem:[%s1643 + $0xe2] sm:$0xff]
        %v6783 = vld [vmem:[%s1643 + $0xf2] sm:$0xff]
        %v6784 = vld [vmem:[%s1643 + $0x102] sm:$0xff]
        %v6785 = vld [vmem:[%s1643 + $0x112] sm:$0xff]
        %v6786 = vld [vmem:[%s1643 + $0x142] sm:$0xff]
        %v6787 = vld [vmem:[%s1643 + $0x152] sm:$0xff]
        %v6788 = vld [vmem:[%s1643 + $0x162] sm:$0xff]
        %v6789 = vld [vmem:[%s1643 + $0x172] sm:$0xff]
        %v6790 = vld [vmem:[%s1643 + $0x182] sm:$0xff]
        %v6791 = vld [vmem:[%s1643 + $0x192] sm:$0xff]
        %v6792 = vld [vmem:[%s1643 + $0x1a2] sm:$0xff]
        %v6793 = vld [vmem:[%s1643 + $0x1b2] sm:$0xff]
        %v6794 = vld [vmem:[%s1643 + $0x1e2] sm:$0xff]
        %v6795 = vld [vmem:[%s1643 + $0x1f2] sm:$0xff]
        %v6796 = vld [vmem:[%s1643 + $0x202] sm:$0xff]
        %v6797 = vld [vmem:[%s1643 + $0x212] sm:$0xff]
        %v6798 = vld [vmem:[%s1643 + $0x222] sm:$0xff]
        %v6799 = vld [vmem:[%s1643 + $0x232] sm:$0xff]
        %v6800 = vld [vmem:[%s1643 + $0x242] sm:$0xff]
        %v6801 = vld [vmem:[%s1643 + $0x252] sm:$0xff]
        %v6803 = vsel %vm1322, %v6770, 0
        %v6806 = vsel %vm1322, %v6771, 0
        %v6809 = vsel %vm1322, %v6772, 0
        %v6812 = vsel %vm1322, %v6773, 0
        %v6815 = vsel %vm1322, %v6774, 0
        %v6818 = vsel %vm1322, %v6775, 0
        %v6821 = vsel %vm1322, %v6776, 0
        %v6824 = vsel %vm1322, %v6777, 0
        %v6827 = vsel %vm1322, %v6778, 0
        %v6830 = vsel %vm1322, %v6779, 0
        %v6833 = vsel %vm1322, %v6780, 0
        %v6836 = vsel %vm1322, %v6781, 0
        %v6839 = vsel %vm1322, %v6782, 0
        %v6842 = vsel %vm1322, %v6783, 0
        %v6845 = vsel %vm1322, %v6784, 0
        %v6848 = vsel %vm1322, %v6785, 0
        %v6851 = vsel %vm1322, %v6786, 0
        %v6854 = vsel %vm1322, %v6787, 0
        %v6857 = vsel %vm1322, %v6788, 0
        %v6860 = vsel %vm1322, %v6789, 0
        %v6863 = vsel %vm1322, %v6790, 0
        %v6866 = vsel %vm1322, %v6791, 0
        %v6869 = vsel %vm1322, %v6792, 0
        %v6872 = vsel %vm1322, %v6793, 0
        %v6875 = vsel %vm1322, %v6794, 0
        %v6878 = vsel %vm1322, %v6795, 0
        %v6881 = vsel %vm1322, %v6796, 0
        %v6884 = vsel %vm1322, %v6797, 0
        %v6887 = vsel %vm1322, %v6798, 0
        %v6890 = vsel %vm1322, %v6799, 0
        %v6893 = vsel %vm1322, %v6800, 0
        %v6896 = vsel %vm1322, %v6801, 0
        %6898 = vmatpush.msra.mxu0 0.0
        %6899 = vmatpush.msra.mxu0 0.0
        %6900 = vmatpush.msra.mxu0 0.0
        %6901 = vmatpush.msra.mxu0 0.0
        %6902 = vmatpush.msra.mxu0 0.0
        %6903 = vmatpush.msra.mxu0 0.0
        %6904 = vmatpush.msra.mxu0 0.0
        %6905 = vmatpush.msra.mxu0 0.0
        %6906 = vmatpush.msra.mxu0 0.0
        %6907 = vmatpush.msra.mxu0 0.0
        %6908 = vmatpush.msra.mxu0 0.0
        %6909 = vmatpush.msra.mxu0 0.0
        %6910 = vmatpush.msra.mxu0 %v946
        %6911 = vmatpush.msra.mxu0 %v945
        %6912 = vmatpush.msra.mxu0 %v944
        %6913 = vmatpush.msra.mxu0 %v943
        %6914 = vmatmul.f32.gmra.mxu0 %v6803
        %v6915 = vpop.f32.mrf.mxu0
        %v6916 = vadd.f32 0.0, %v6915
        %6917 = vmatmul.f32.gmra.mxu0 %v6806
        %v6918 = vpop.f32.mrf.mxu0
        %v6919 = vadd.f32 0.0, %v6918
        %6920 = vmatmul.f32.gmra.mxu0 %v6809
        %v6921 = vpop.f32.mrf.mxu0
        %v6922 = vadd.f32 0.0, %v6921
        %6923 = vmatmul.f32.gmra.mxu0 %v6812
        %v6924 = vpop.f32.mrf.mxu0
        %v6925 = vadd.f32 0.0, %v6924
        %6926 = vmatmul.f32.gmra.mxu0 %v6815
        %v6927 = vpop.f32.mrf.mxu0
        %v6928 = vadd.f32 0.0, %v6927
        %6929 = vmatmul.f32.gmra.mxu0 %v6818
        %v6930 = vpop.f32.mrf.mxu0
        %v6931 = vadd.f32 0.0, %v6930
        %6932 = vmatmul.f32.gmra.mxu0 %v6821
        %v6933 = vpop.f32.mrf.mxu0
        %v6934 = vadd.f32 0.0, %v6933
        %6935 = vmatmul.f32.gmra.mxu0 %v6824
        %v6936 = vpop.f32.mrf.mxu0
        %v6937 = vadd.f32 0.0, %v6936
        %6938 = vmatmul.f32.gmra.mxu0 %v6827
        %v6939 = vpop.f32.mrf.mxu0
        %v6940 = vadd.f32 0.0, %v6939
        %6941 = vmatmul.f32.gmra.mxu0 %v6830
        %v6942 = vpop.f32.mrf.mxu0
        %v6943 = vadd.f32 0.0, %v6942
        %6944 = vmatmul.f32.gmra.mxu0 %v6833
        %v6945 = vpop.f32.mrf.mxu0
        %v6946 = vadd.f32 0.0, %v6945
        %6947 = vmatmul.f32.gmra.mxu0 %v6836
        %v6948 = vpop.f32.mrf.mxu0
        %v6949 = vadd.f32 0.0, %v6948
        %6950 = vmatmul.f32.gmra.mxu0 %v6839
        %v6951 = vpop.f32.mrf.mxu0
        %v6952 = vadd.f32 0.0, %v6951
        %6953 = vmatmul.f32.gmra.mxu0 %v6842
        %v6954 = vpop.f32.mrf.mxu0
        %v6955 = vadd.f32 0.0, %v6954
        %6956 = vmatmul.f32.gmra.mxu0 %v6845
        %v6957 = vpop.f32.mrf.mxu0
        %v6958 = vadd.f32 0.0, %v6957
        %6959 = vmatmul.f32.gmra.mxu0 %v6848
        %v6960 = vpop.f32.mrf.mxu0
        %v6961 = vadd.f32 0.0, %v6960
        %6962 = vmatmul.f32.gmra.mxu0 %v6851
        %v6963 = vpop.f32.mrf.mxu0
        %v6964 = vadd.f32 0.0, %v6963
        %6965 = vmatmul.f32.gmra.mxu0 %v6854
        %v6966 = vpop.f32.mrf.mxu0
        %v6967 = vadd.f32 0.0, %v6966
        %6968 = vmatmul.f32.gmra.mxu0 %v6857
        %v6969 = vpop.f32.mrf.mxu0
        %v6970 = vadd.f32 0.0, %v6969
        %6971 = vmatmul.f32.gmra.mxu0 %v6860
        %v6972 = vpop.f32.mrf.mxu0
        %v6973 = vadd.f32 0.0, %v6972
        %6974 = vmatmul.f32.gmra.mxu0 %v6863
        %v6975 = vpop.f32.mrf.mxu0
        %v6976 = vadd.f32 0.0, %v6975
        %6977 = vmatmul.f32.gmra.mxu0 %v6866
        %v6978 = vpop.f32.mrf.mxu0
        %v6979 = vadd.f32 0.0, %v6978
        %6980 = vmatmul.f32.gmra.mxu0 %v6869
        %v6981 = vpop.f32.mrf.mxu0
        %v6982 = vadd.f32 0.0, %v6981
        %6983 = vmatmul.f32.gmra.mxu0 %v6872
        %v6984 = vpop.f32.mrf.mxu0
        %v6985 = vadd.f32 0.0, %v6984
        %6986 = vmatmul.f32.gmra.mxu0 %v6875
        %v6987 = vpop.f32.mrf.mxu0
        %v6988 = vadd.f32 0.0, %v6987
        %6989 = vmatmul.f32.gmra.mxu0 %v6878
        %v6990 = vpop.f32.mrf.mxu0
        %v6991 = vadd.f32 0.0, %v6990
        %6992 = vmatmul.f32.gmra.mxu0 %v6881
        %v6993 = vpop.f32.mrf.mxu0
        %v6994 = vadd.f32 0.0, %v6993
        %6995 = vmatmul.f32.gmra.mxu0 %v6884
        %v6996 = vpop.f32.mrf.mxu0
        %v6997 = vadd.f32 0.0, %v6996
        %6998 = vmatmul.f32.gmra.mxu0 %v6887
        %v6999 = vpop.f32.mrf.mxu0
        %v7000 = vadd.f32 0.0, %v6999
        %7001 = vmatmul.f32.gmra.mxu0 %v6890
        %v7002 = vpop.f32.mrf.mxu0
        %v7003 = vadd.f32 0.0, %v7002
        %7004 = vmatmul.f32.gmra.mxu0 %v6893
        %v7005 = vpop.f32.mrf.mxu0
        %v7006 = vadd.f32 0.0, %v7005
        %7007 = vmatmul.f32.gmra.mxu0 %v6896
        %v7008 = vpop.f32.mrf.mxu0
        %v7009 = vadd.f32 0.0, %v7008
        %7010 = vdwg.mxu0
        %v7011 = vadd.f32 %v6738, %v6916
        %v7012 = vadd.f32 %v6739, %v6919
        %v7013 = vadd.f32 %v6740, %v6922
        %v7014 = vadd.f32 %v6741, %v6925
        %v7015 = vadd.f32 %v6742, %v6928
        %v7016 = vadd.f32 %v6743, %v6931
        %v7017 = vadd.f32 %v6744, %v6934
        %v7018 = vadd.f32 %v6745, %v6937
        %v7019 = vadd.f32 %v6746, %v6940
        %v7020 = vadd.f32 %v6747, %v6943
        %v7021 = vadd.f32 %v6748, %v6946
        %v7022 = vadd.f32 %v6749, %v6949
        %v7023 = vadd.f32 %v6750, %v6952
        %v7024 = vadd.f32 %v6751, %v6955
        %v7025 = vadd.f32 %v6752, %v6958
        %v7026 = vadd.f32 %v6753, %v6961
        %v7027 = vadd.f32 %v6754, %v6964
        %v7028 = vadd.f32 %v6755, %v6967
        %v7029 = vadd.f32 %v6756, %v6970
        %v7030 = vadd.f32 %v6757, %v6973
        %v7031 = vadd.f32 %v6758, %v6976
        %v7032 = vadd.f32 %v6759, %v6979
        %v7033 = vadd.f32 %v6760, %v6982
        %v7034 = vadd.f32 %v6761, %v6985
        %v7035 = vadd.f32 %v6762, %v6988
        %v7036 = vadd.f32 %v6763, %v6991
        %v7037 = vadd.f32 %v6764, %v6994
        %v7038 = vadd.f32 %v6765, %v6997
        %v7039 = vadd.f32 %v6766, %v7000
        %v7040 = vadd.f32 %v6767, %v7003
        %v7041 = vadd.f32 %v6768, %v7006
        %v7042 = vadd.f32 %v6769, %v7009
        %v7043 = vld [vmem:[%s3317] sm:$0xff]
        %v7044 = vld [vmem:[%s3317 + $0x10] sm:$0xff]
        %v7045 = vld [vmem:[%s3317 + $0x20] sm:$0xff]
        %v7046 = vld [vmem:[%s3317 + $0x30] sm:$0xff]
        %v7047 = vld [vmem:[%s3317 + $0x40] sm:$0xff]
        %v7048 = vld [vmem:[%s3317 + $0x50] sm:$0xff]
        %v7049 = vld [vmem:[%s3317 + $0x60] sm:$0xff]
        %v7050 = vld [vmem:[%s3317 + $0x70] sm:$0xff]
        %v7051 = vld [vmem:[%s3317 + $0xa0] sm:$0xff]
        %v7052 = vld [vmem:[%s3317 + $0xb0] sm:$0xff]
        %v7053 = vld [vmem:[%s3317 + $0xc0] sm:$0xff]
        %v7054 = vld [vmem:[%s3317 + $0xd0] sm:$0xff]
        %v7055 = vld [vmem:[%s3317 + $0xe0] sm:$0xff]
        %v7056 = vld [vmem:[%s3317 + $0xf0] sm:$0xff]
        %v7057 = vld [vmem:[%s3317 + $0x100] sm:$0xff]
        %v7058 = vld [vmem:[%s3317 + $0x110] sm:$0xff]
        %v7059 = vld [vmem:[%s3317 + $0x140] sm:$0xff]
        %v7060 = vld [vmem:[%s3317 + $0x150] sm:$0xff]
        %v7061 = vld [vmem:[%s3317 + $0x160] sm:$0xff]
        %v7062 = vld [vmem:[%s3317 + $0x170] sm:$0xff]
        %v7063 = vld [vmem:[%s3317 + $0x180] sm:$0xff]
        %v7064 = vld [vmem:[%s3317 + $0x190] sm:$0xff]
        %v7065 = vld [vmem:[%s3317 + $0x1a0] sm:$0xff]
        %v7066 = vld [vmem:[%s3317 + $0x1b0] sm:$0xff]
        %v7067 = vld [vmem:[%s3317 + $0x1e0] sm:$0xff]
        %v7068 = vld [vmem:[%s3317 + $0x1f0] sm:$0xff]
        %v7069 = vld [vmem:[%s3317 + $0x200] sm:$0xff]
        %v7070 = vld [vmem:[%s3317 + $0x210] sm:$0xff]
        %v7071 = vld [vmem:[%s3317 + $0x220] sm:$0xff]
        %v7072 = vld [vmem:[%s3317 + $0x230] sm:$0xff]
        %v7073 = vld [vmem:[%s3317 + $0x240] sm:$0xff]
        %v7074 = vld [vmem:[%s3317 + $0x250] sm:$0xff]
        %v7076 = vsel %vm1322, %v7043, 0
        %v7079 = vsel %vm1322, %v7044, 0
        %v7082 = vsel %vm1322, %v7045, 0
        %v7085 = vsel %vm1322, %v7046, 0
        %v7088 = vsel %vm1322, %v7047, 0
        %v7091 = vsel %vm1322, %v7048, 0
        %v7094 = vsel %vm1322, %v7049, 0
        %v7097 = vsel %vm1322, %v7050, 0
        %v7100 = vsel %vm1322, %v7051, 0
        %v7103 = vsel %vm1322, %v7052, 0
        %v7106 = vsel %vm1322, %v7053, 0
        %v7109 = vsel %vm1322, %v7054, 0
        %v7112 = vsel %vm1322, %v7055, 0
        %v7115 = vsel %vm1322, %v7056, 0
        %v7118 = vsel %vm1322, %v7057, 0
        %v7121 = vsel %vm1322, %v7058, 0
        %v7124 = vsel %vm1322, %v7059, 0
        %v7127 = vsel %vm1322, %v7060, 0
        %v7130 = vsel %vm1322, %v7061, 0
        %v7133 = vsel %vm1322, %v7062, 0
        %v7136 = vsel %vm1322, %v7063, 0
        %v7139 = vsel %vm1322, %v7064, 0
        %v7142 = vsel %vm1322, %v7065, 0
        %v7145 = vsel %vm1322, %v7066, 0
        %v7148 = vsel %vm1322, %v7067, 0
        %v7151 = vsel %vm1322, %v7068, 0
        %v7154 = vsel %vm1322, %v7069, 0
        %v7157 = vsel %vm1322, %v7070, 0
        %v7160 = vsel %vm1322, %v7071, 0
        %v7163 = vsel %vm1322, %v7072, 0
        %v7166 = vsel %vm1322, %v7073, 0
        %v7169 = vsel %vm1322, %v7074, 0
        %7171 = vmatpush.msra.mxu0 0.0
        %7172 = vmatpush.msra.mxu0 0.0
        %7173 = vmatpush.msra.mxu0 0.0
        %7174 = vmatpush.msra.mxu0 0.0
        %7175 = vmatpush.msra.mxu0 0.0
        %7176 = vmatpush.msra.mxu0 0.0
        %7177 = vmatpush.msra.mxu0 0.0
        %7178 = vmatpush.msra.mxu0 0.0
        %7179 = vmatpush.msra.mxu0 0.0
        %7180 = vmatpush.msra.mxu0 0.0
        %7181 = vmatpush.msra.mxu0 0.0
        %7182 = vmatpush.msra.mxu0 0.0
        %7183 = vmatpush.msra.mxu0 %v950
        %7184 = vmatpush.msra.mxu0 %v949
        %7185 = vmatpush.msra.mxu0 %v948
        %7186 = vmatpush.msra.mxu0 %v947
        %7187 = vmatmul.f32.gmra.mxu0 %v7076
        %v7188 = vpop.f32.mrf.mxu0
        %v7189 = vadd.f32 0.0, %v7188
        %7190 = vmatmul.f32.gmra.mxu0 %v7079
        %v7191 = vpop.f32.mrf.mxu0
        %v7192 = vadd.f32 0.0, %v7191
        %7193 = vmatmul.f32.gmra.mxu0 %v7082
        %v7194 = vpop.f32.mrf.mxu0
        %v7195 = vadd.f32 0.0, %v7194
        %7196 = vmatmul.f32.gmra.mxu0 %v7085
        %v7197 = vpop.f32.mrf.mxu0
        %v7198 = vadd.f32 0.0, %v7197
        %7199 = vmatmul.f32.gmra.mxu0 %v7088
        %v7200 = vpop.f32.mrf.mxu0
        %v7201 = vadd.f32 0.0, %v7200
        %7202 = vmatmul.f32.gmra.mxu0 %v7091
        %v7203 = vpop.f32.mrf.mxu0
        %v7204 = vadd.f32 0.0, %v7203
        %7205 = vmatmul.f32.gmra.mxu0 %v7094
        %v7206 = vpop.f32.mrf.mxu0
        %v7207 = vadd.f32 0.0, %v7206
        %7208 = vmatmul.f32.gmra.mxu0 %v7097
        %v7209 = vpop.f32.mrf.mxu0
        %v7210 = vadd.f32 0.0, %v7209
        %7211 = vmatmul.f32.gmra.mxu0 %v7100
        %v7212 = vpop.f32.mrf.mxu0
        %v7213 = vadd.f32 0.0, %v7212
        %7214 = vmatmul.f32.gmra.mxu0 %v7103
        %v7215 = vpop.f32.mrf.mxu0
        %v7216 = vadd.f32 0.0, %v7215
        %7217 = vmatmul.f32.gmra.mxu0 %v7106
        %v7218 = vpop.f32.mrf.mxu0
        %v7219 = vadd.f32 0.0, %v7218
        %7220 = vmatmul.f32.gmra.mxu0 %v7109
        %v7221 = vpop.f32.mrf.mxu0
        %v7222 = vadd.f32 0.0, %v7221
        %7223 = vmatmul.f32.gmra.mxu0 %v7112
        %v7224 = vpop.f32.mrf.mxu0
        %v7225 = vadd.f32 0.0, %v7224
        %7226 = vmatmul.f32.gmra.mxu0 %v7115
        %v7227 = vpop.f32.mrf.mxu0
        %v7228 = vadd.f32 0.0, %v7227
        %7229 = vmatmul.f32.gmra.mxu0 %v7118
        %v7230 = vpop.f32.mrf.mxu0
        %v7231 = vadd.f32 0.0, %v7230
        %7232 = vmatmul.f32.gmra.mxu0 %v7121
        %v7233 = vpop.f32.mrf.mxu0
        %v7234 = vadd.f32 0.0, %v7233
        %7235 = vmatmul.f32.gmra.mxu0 %v7124
        %v7236 = vpop.f32.mrf.mxu0
        %v7237 = vadd.f32 0.0, %v7236
        %7238 = vmatmul.f32.gmra.mxu0 %v7127
        %v7239 = vpop.f32.mrf.mxu0
        %v7240 = vadd.f32 0.0, %v7239
        %7241 = vmatmul.f32.gmra.mxu0 %v7130
        %v7242 = vpop.f32.mrf.mxu0
        %v7243 = vadd.f32 0.0, %v7242
        %7244 = vmatmul.f32.gmra.mxu0 %v7133
        %v7245 = vpop.f32.mrf.mxu0
        %v7246 = vadd.f32 0.0, %v7245
        %7247 = vmatmul.f32.gmra.mxu0 %v7136
        %v7248 = vpop.f32.mrf.mxu0
        %v7249 = vadd.f32 0.0, %v7248
        %7250 = vmatmul.f32.gmra.mxu0 %v7139
        %v7251 = vpop.f32.mrf.mxu0
        %v7252 = vadd.f32 0.0, %v7251
        %7253 = vmatmul.f32.gmra.mxu0 %v7142
        %v7254 = vpop.f32.mrf.mxu0
        %v7255 = vadd.f32 0.0, %v7254
        %7256 = vmatmul.f32.gmra.mxu0 %v7145
        %v7257 = vpop.f32.mrf.mxu0
        %v7258 = vadd.f32 0.0, %v7257
        %7259 = vmatmul.f32.gmra.mxu0 %v7148
        %v7260 = vpop.f32.mrf.mxu0
        %v7261 = vadd.f32 0.0, %v7260
        %7262 = vmatmul.f32.gmra.mxu0 %v7151
        %v7263 = vpop.f32.mrf.mxu0
        %v7264 = vadd.f32 0.0, %v7263
        %7265 = vmatmul.f32.gmra.mxu0 %v7154
        %v7266 = vpop.f32.mrf.mxu0
        %v7267 = vadd.f32 0.0, %v7266
        %7268 = vmatmul.f32.gmra.mxu0 %v7157
        %v7269 = vpop.f32.mrf.mxu0
        %v7270 = vadd.f32 0.0, %v7269
        %7271 = vmatmul.f32.gmra.mxu0 %v7160
        %v7272 = vpop.f32.mrf.mxu0
        %v7273 = vadd.f32 0.0, %v7272
        %7274 = vmatmul.f32.gmra.mxu0 %v7163
        %v7275 = vpop.f32.mrf.mxu0
        %v7276 = vadd.f32 0.0, %v7275
        %7277 = vmatmul.f32.gmra.mxu0 %v7166
        %v7278 = vpop.f32.mrf.mxu0
        %v7279 = vadd.f32 0.0, %v7278
        %7280 = vmatmul.f32.gmra.mxu0 %v7169
        %v7281 = vpop.f32.mrf.mxu0
        %v7282 = vadd.f32 0.0, %v7281
        %7283 = vdwg.mxu0
        %v7284 = vadd.f32 %v7011, %v7189
        %v7285 = vadd.f32 %v7012, %v7192
        %v7286 = vadd.f32 %v7013, %v7195
        %v7287 = vadd.f32 %v7014, %v7198
        %v7288 = vadd.f32 %v7015, %v7201
        %v7289 = vadd.f32 %v7016, %v7204
        %v7290 = vadd.f32 %v7017, %v7207
        %v7291 = vadd.f32 %v7018, %v7210
        %v7292 = vadd.f32 %v7019, %v7213
        %v7293 = vadd.f32 %v7020, %v7216
        %v7294 = vadd.f32 %v7021, %v7219
        %v7295 = vadd.f32 %v7022, %v7222
        %v7296 = vadd.f32 %v7023, %v7225
        %v7297 = vadd.f32 %v7024, %v7228
        %v7298 = vadd.f32 %v7025, %v7231
        %v7299 = vadd.f32 %v7026, %v7234
        %v7300 = vadd.f32 %v7027, %v7237
        %v7301 = vadd.f32 %v7028, %v7240
        %v7302 = vadd.f32 %v7029, %v7243
        %v7303 = vadd.f32 %v7030, %v7246
        %v7304 = vadd.f32 %v7031, %v7249
        %v7305 = vadd.f32 %v7032, %v7252
        %v7306 = vadd.f32 %v7033, %v7255
        %v7307 = vadd.f32 %v7034, %v7258
        %v7308 = vadd.f32 %v7035, %v7261
        %v7309 = vadd.f32 %v7036, %v7264
        %v7310 = vadd.f32 %v7037, %v7267
        %v7311 = vadd.f32 %v7038, %v7270
        %v7312 = vadd.f32 %v7039, %v7273
        %v7313 = vadd.f32 %v7040, %v7276
        %v7314 = vadd.f32 %v7041, %v7279
        %v7315 = vadd.f32 %v7042, %v7282
        %v7316 = vld [vmem:[%s3317 + $0x1] sm:$0xff]
        %v7317 = vld [vmem:[%s3317 + $0x11] sm:$0xff]
        %v7318 = vld [vmem:[%s3317 + $0x21] sm:$0xff]
        %v7319 = vld [vmem:[%s3317 + $0x31] sm:$0xff]
        %v7320 = vld [vmem:[%s3317 + $0x41] sm:$0xff]
        %v7321 = vld [vmem:[%s3317 + $0x51] sm:$0xff]
        %v7322 = vld [vmem:[%s3317 + $0x61] sm:$0xff]
        %v7323 = vld [vmem:[%s3317 + $0x71] sm:$0xff]
        %v7324 = vld [vmem:[%s3317 + $0xa1] sm:$0xff]
        %v7325 = vld [vmem:[%s3317 + $0xb1] sm:$0xff]
        %v7326 = vld [vmem:[%s3317 + $0xc1] sm:$0xff]
        %v7327 = vld [vmem:[%s3317 + $0xd1] sm:$0xff]
        %v7328 = vld [vmem:[%s3317 + $0xe1] sm:$0xff]
        %v7329 = vld [vmem:[%s3317 + $0xf1] sm:$0xff]
        %v7330 = vld [vmem:[%s3317 + $0x101] sm:$0xff]
        %v7331 = vld [vmem:[%s3317 + $0x111] sm:$0xff]
        %v7332 = vld [vmem:[%s3317 + $0x141] sm:$0xff]
        %v7333 = vld [vmem:[%s3317 + $0x151] sm:$0xff]
        %v7334 = vld [vmem:[%s3317 + $0x161] sm:$0xff]
        %v7335 = vld [vmem:[%s3317 + $0x171] sm:$0xff]
        %v7336 = vld [vmem:[%s3317 + $0x181] sm:$0xff]
        %v7337 = vld [vmem:[%s3317 + $0x191] sm:$0xff]
        %v7338 = vld [vmem:[%s3317 + $0x1a1] sm:$0xff]
        %v7339 = vld [vmem:[%s3317 + $0x1b1] sm:$0xff]
        %v7340 = vld [vmem:[%s3317 + $0x1e1] sm:$0xff]
        %v7341 = vld [vmem:[%s3317 + $0x1f1] sm:$0xff]
        %v7342 = vld [vmem:[%s3317 + $0x201] sm:$0xff]
        %v7343 = vld [vmem:[%s3317 + $0x211] sm:$0xff]
        %v7344 = vld [vmem:[%s3317 + $0x221] sm:$0xff]
        %v7345 = vld [vmem:[%s3317 + $0x231] sm:$0xff]
        %v7346 = vld [vmem:[%s3317 + $0x241] sm:$0xff]
        %v7347 = vld [vmem:[%s3317 + $0x251] sm:$0xff]
        %v7349 = vsel %vm1322, %v7316, 0
        %v7352 = vsel %vm1322, %v7317, 0
        %v7355 = vsel %vm1322, %v7318, 0
        %v7358 = vsel %vm1322, %v7319, 0
        %v7361 = vsel %vm1322, %v7320, 0
        %v7364 = vsel %vm1322, %v7321, 0
        %v7367 = vsel %vm1322, %v7322, 0
        %v7370 = vsel %vm1322, %v7323, 0
        %v7373 = vsel %vm1322, %v7324, 0
        %v7376 = vsel %vm1322, %v7325, 0
        %v7379 = vsel %vm1322, %v7326, 0
        %v7382 = vsel %vm1322, %v7327, 0
        %v7385 = vsel %vm1322, %v7328, 0
        %v7388 = vsel %vm1322, %v7329, 0
        %v7391 = vsel %vm1322, %v7330, 0
        %v7394 = vsel %vm1322, %v7331, 0
        %v7397 = vsel %vm1322, %v7332, 0
        %v7400 = vsel %vm1322, %v7333, 0
        %v7403 = vsel %vm1322, %v7334, 0
        %v7406 = vsel %vm1322, %v7335, 0
        %v7409 = vsel %vm1322, %v7336, 0
        %v7412 = vsel %vm1322, %v7337, 0
        %v7415 = vsel %vm1322, %v7338, 0
        %v7418 = vsel %vm1322, %v7339, 0
        %v7421 = vsel %vm1322, %v7340, 0
        %v7424 = vsel %vm1322, %v7341, 0
        %v7427 = vsel %vm1322, %v7342, 0
        %v7430 = vsel %vm1322, %v7343, 0
        %v7433 = vsel %vm1322, %v7344, 0
        %v7436 = vsel %vm1322, %v7345, 0
        %v7439 = vsel %vm1322, %v7346, 0
        %v7442 = vsel %vm1322, %v7347, 0
        %7444 = vmatpush.msra.mxu0 0.0
        %7445 = vmatpush.msra.mxu0 0.0
        %7446 = vmatpush.msra.mxu0 0.0
        %7447 = vmatpush.msra.mxu0 0.0
        %7448 = vmatpush.msra.mxu0 0.0
        %7449 = vmatpush.msra.mxu0 0.0
        %7450 = vmatpush.msra.mxu0 0.0
        %7451 = vmatpush.msra.mxu0 0.0
        %7452 = vmatpush.msra.mxu0 0.0
        %7453 = vmatpush.msra.mxu0 0.0
        %7454 = vmatpush.msra.mxu0 0.0
        %7455 = vmatpush.msra.mxu0 0.0
        %7456 = vmatpush.msra.mxu0 %v954
        %7457 = vmatpush.msra.mxu0 %v953
        %7458 = vmatpush.msra.mxu0 %v952
        %7459 = vmatpush.msra.mxu0 %v951
        %7460 = vmatmul.f32.gmra.mxu0 %v7349
        %v7461 = vpop.f32.mrf.mxu0
        %v7462 = vadd.f32 0.0, %v7461
        %7463 = vmatmul.f32.gmra.mxu0 %v7352
        %v7464 = vpop.f32.mrf.mxu0
        %v7465 = vadd.f32 0.0, %v7464
        %7466 = vmatmul.f32.gmra.mxu0 %v7355
        %v7467 = vpop.f32.mrf.mxu0
        %v7468 = vadd.f32 0.0, %v7467
        %7469 = vmatmul.f32.gmra.mxu0 %v7358
        %v7470 = vpop.f32.mrf.mxu0
        %v7471 = vadd.f32 0.0, %v7470
        %7472 = vmatmul.f32.gmra.mxu0 %v7361
        %v7473 = vpop.f32.mrf.mxu0
        %v7474 = vadd.f32 0.0, %v7473
        %7475 = vmatmul.f32.gmra.mxu0 %v7364
        %v7476 = vpop.f32.mrf.mxu0
        %v7477 = vadd.f32 0.0, %v7476
        %7478 = vmatmul.f32.gmra.mxu0 %v7367
        %v7479 = vpop.f32.mrf.mxu0
        %v7480 = vadd.f32 0.0, %v7479
        %7481 = vmatmul.f32.gmra.mxu0 %v7370
        %v7482 = vpop.f32.mrf.mxu0
        %v7483 = vadd.f32 0.0, %v7482
        %7484 = vmatmul.f32.gmra.mxu0 %v7373
        %v7485 = vpop.f32.mrf.mxu0
        %v7486 = vadd.f32 0.0, %v7485
        %7487 = vmatmul.f32.gmra.mxu0 %v7376
        %v7488 = vpop.f32.mrf.mxu0
        %v7489 = vadd.f32 0.0, %v7488
        %7490 = vmatmul.f32.gmra.mxu0 %v7379
        %v7491 = vpop.f32.mrf.mxu0
        %v7492 = vadd.f32 0.0, %v7491
        %7493 = vmatmul.f32.gmra.mxu0 %v7382
        %v7494 = vpop.f32.mrf.mxu0
        %v7495 = vadd.f32 0.0, %v7494
        %7496 = vmatmul.f32.gmra.mxu0 %v7385
        %v7497 = vpop.f32.mrf.mxu0
        %v7498 = vadd.f32 0.0, %v7497
        %7499 = vmatmul.f32.gmra.mxu0 %v7388
        %v7500 = vpop.f32.mrf.mxu0
        %v7501 = vadd.f32 0.0, %v7500
        %7502 = vmatmul.f32.gmra.mxu0 %v7391
        %v7503 = vpop.f32.mrf.mxu0
        %v7504 = vadd.f32 0.0, %v7503
        %7505 = vmatmul.f32.gmra.mxu0 %v7394
        %v7506 = vpop.f32.mrf.mxu0
        %v7507 = vadd.f32 0.0, %v7506
        %7508 = vmatmul.f32.gmra.mxu0 %v7397
        %v7509 = vpop.f32.mrf.mxu0
        %v7510 = vadd.f32 0.0, %v7509
        %7511 = vmatmul.f32.gmra.mxu0 %v7400
        %v7512 = vpop.f32.mrf.mxu0
        %v7513 = vadd.f32 0.0, %v7512
        %7514 = vmatmul.f32.gmra.mxu0 %v7403
        %v7515 = vpop.f32.mrf.mxu0
        %v7516 = vadd.f32 0.0, %v7515
        %7517 = vmatmul.f32.gmra.mxu0 %v7406
        %v7518 = vpop.f32.mrf.mxu0
        %v7519 = vadd.f32 0.0, %v7518
        %7520 = vmatmul.f32.gmra.mxu0 %v7409
        %v7521 = vpop.f32.mrf.mxu0
        %v7522 = vadd.f32 0.0, %v7521
        %7523 = vmatmul.f32.gmra.mxu0 %v7412
        %v7524 = vpop.f32.mrf.mxu0
        %v7525 = vadd.f32 0.0, %v7524
        %7526 = vmatmul.f32.gmra.mxu0 %v7415
        %v7527 = vpop.f32.mrf.mxu0
        %v7528 = vadd.f32 0.0, %v7527
        %7529 = vmatmul.f32.gmra.mxu0 %v7418
        %v7530 = vpop.f32.mrf.mxu0
        %v7531 = vadd.f32 0.0, %v7530
        %7532 = vmatmul.f32.gmra.mxu0 %v7421
        %v7533 = vpop.f32.mrf.mxu0
        %v7534 = vadd.f32 0.0, %v7533
        %7535 = vmatmul.f32.gmra.mxu0 %v7424
        %v7536 = vpop.f32.mrf.mxu0
        %v7537 = vadd.f32 0.0, %v7536
        %7538 = vmatmul.f32.gmra.mxu0 %v7427
        %v7539 = vpop.f32.mrf.mxu0
        %v7540 = vadd.f32 0.0, %v7539
        %7541 = vmatmul.f32.gmra.mxu0 %v7430
        %v7542 = vpop.f32.mrf.mxu0
        %v7543 = vadd.f32 0.0, %v7542
        %7544 = vmatmul.f32.gmra.mxu0 %v7433
        %v7545 = vpop.f32.mrf.mxu0
        %v7546 = vadd.f32 0.0, %v7545
        %7547 = vmatmul.f32.gmra.mxu0 %v7436
        %v7548 = vpop.f32.mrf.mxu0
        %v7549 = vadd.f32 0.0, %v7548
        %7550 = vmatmul.f32.gmra.mxu0 %v7439
        %v7551 = vpop.f32.mrf.mxu0
        %v7552 = vadd.f32 0.0, %v7551
        %7553 = vmatmul.f32.gmra.mxu0 %v7442
        %v7554 = vpop.f32.mrf.mxu0
        %v7555 = vadd.f32 0.0, %v7554
        %7556 = vdwg.mxu0
        %v7557 = vadd.f32 %v7284, %v7462
        %v7558 = vadd.f32 %v7285, %v7465
        %v7559 = vadd.f32 %v7286, %v7468
        %v7560 = vadd.f32 %v7287, %v7471
        %v7561 = vadd.f32 %v7288, %v7474
        %v7562 = vadd.f32 %v7289, %v7477
        %v7563 = vadd.f32 %v7290, %v7480
        %v7564 = vadd.f32 %v7291, %v7483
        %v7565 = vadd.f32 %v7292, %v7486
        %v7566 = vadd.f32 %v7293, %v7489
        %v7567 = vadd.f32 %v7294, %v7492
        %v7568 = vadd.f32 %v7295, %v7495
        %v7569 = vadd.f32 %v7296, %v7498
        %v7570 = vadd.f32 %v7297, %v7501
        %v7571 = vadd.f32 %v7298, %v7504
        %v7572 = vadd.f32 %v7299, %v7507
        %v7573 = vadd.f32 %v7300, %v7510
        %v7574 = vadd.f32 %v7301, %v7513
        %v7575 = vadd.f32 %v7302, %v7516
        %v7576 = vadd.f32 %v7303, %v7519
        %v7577 = vadd.f32 %v7304, %v7522
        %v7578 = vadd.f32 %v7305, %v7525
        %v7579 = vadd.f32 %v7306, %v7528
        %v7580 = vadd.f32 %v7307, %v7531
        %v7581 = vadd.f32 %v7308, %v7534
        %v7582 = vadd.f32 %v7309, %v7537
        %v7583 = vadd.f32 %v7310, %v7540
        %v7584 = vadd.f32 %v7311, %v7543
        %v7585 = vadd.f32 %v7312, %v7546
        %v7586 = vadd.f32 %v7313, %v7549
        %v7587 = vadd.f32 %v7314, %v7552
        %v7588 = vadd.f32 %v7315, %v7555
        %v7589 = vld [vmem:[%s3317 + $0x2] sm:$0xff]
        %v7590 = vld [vmem:[%s3317 + $0x12] sm:$0xff]
        %v7591 = vld [vmem:[%s3317 + $0x22] sm:$0xff]
        %v7592 = vld [vmem:[%s3317 + $0x32] sm:$0xff]
        %v7593 = vld [vmem:[%s3317 + $0x42] sm:$0xff]
        %v7594 = vld [vmem:[%s3317 + $0x52] sm:$0xff]
        %v7595 = vld [vmem:[%s3317 + $0x62] sm:$0xff]
        %v7596 = vld [vmem:[%s3317 + $0x72] sm:$0xff]
        %v7597 = vld [vmem:[%s3317 + $0xa2] sm:$0xff]
        %v7598 = vld [vmem:[%s3317 + $0xb2] sm:$0xff]
        %v7599 = vld [vmem:[%s3317 + $0xc2] sm:$0xff]
        %v7600 = vld [vmem:[%s3317 + $0xd2] sm:$0xff]
        %v7601 = vld [vmem:[%s3317 + $0xe2] sm:$0xff]
        %v7602 = vld [vmem:[%s3317 + $0xf2] sm:$0xff]
        %v7603 = vld [vmem:[%s3317 + $0x102] sm:$0xff]
        %v7604 = vld [vmem:[%s3317 + $0x112] sm:$0xff]
        %v7605 = vld [vmem:[%s3317 + $0x142] sm:$0xff]
        %v7606 = vld [vmem:[%s3317 + $0x152] sm:$0xff]
        %v7607 = vld [vmem:[%s3317 + $0x162] sm:$0xff]
        %v7608 = vld [vmem:[%s3317 + $0x172] sm:$0xff]
        %v7609 = vld [vmem:[%s3317 + $0x182] sm:$0xff]
        %v7610 = vld [vmem:[%s3317 + $0x192] sm:$0xff]
        %v7611 = vld [vmem:[%s3317 + $0x1a2] sm:$0xff]
        %v7612 = vld [vmem:[%s3317 + $0x1b2] sm:$0xff]
        %v7613 = vld [vmem:[%s3317 + $0x1e2] sm:$0xff]
        %v7614 = vld [vmem:[%s3317 + $0x1f2] sm:$0xff]
        %v7615 = vld [vmem:[%s3317 + $0x202] sm:$0xff]
        %v7616 = vld [vmem:[%s3317 + $0x212] sm:$0xff]
        %v7617 = vld [vmem:[%s3317 + $0x222] sm:$0xff]
        %v7618 = vld [vmem:[%s3317 + $0x232] sm:$0xff]
        %v7619 = vld [vmem:[%s3317 + $0x242] sm:$0xff]
        %v7620 = vld [vmem:[%s3317 + $0x252] sm:$0xff]
        %v7622 = vsel %vm1322, %v7589, 0
        %v7625 = vsel %vm1322, %v7590, 0
        %v7628 = vsel %vm1322, %v7591, 0
        %v7631 = vsel %vm1322, %v7592, 0
        %v7634 = vsel %vm1322, %v7593, 0
        %v7637 = vsel %vm1322, %v7594, 0
        %v7640 = vsel %vm1322, %v7595, 0
        %v7643 = vsel %vm1322, %v7596, 0
        %v7646 = vsel %vm1322, %v7597, 0
        %v7649 = vsel %vm1322, %v7598, 0
        %v7652 = vsel %vm1322, %v7599, 0
        %v7655 = vsel %vm1322, %v7600, 0
        %v7658 = vsel %vm1322, %v7601, 0
        %v7661 = vsel %vm1322, %v7602, 0
        %v7664 = vsel %vm1322, %v7603, 0
        %v7667 = vsel %vm1322, %v7604, 0
        %v7670 = vsel %vm1322, %v7605, 0
        %v7673 = vsel %vm1322, %v7606, 0
        %v7676 = vsel %vm1322, %v7607, 0
        %v7679 = vsel %vm1322, %v7608, 0
        %v7682 = vsel %vm1322, %v7609, 0
        %v7685 = vsel %vm1322, %v7610, 0
        %v7688 = vsel %vm1322, %v7611, 0
        %v7691 = vsel %vm1322, %v7612, 0
        %v7694 = vsel %vm1322, %v7613, 0
        %v7697 = vsel %vm1322, %v7614, 0
        %v7700 = vsel %vm1322, %v7615, 0
        %v7703 = vsel %vm1322, %v7616, 0
        %v7706 = vsel %vm1322, %v7617, 0
        %v7709 = vsel %vm1322, %v7618, 0
        %v7712 = vsel %vm1322, %v7619, 0
        %v7715 = vsel %vm1322, %v7620, 0
        %7717 = vmatpush.msra.mxu0 0.0
        %7718 = vmatpush.msra.mxu0 0.0
        %7719 = vmatpush.msra.mxu0 0.0
        %7720 = vmatpush.msra.mxu0 0.0
        %7721 = vmatpush.msra.mxu0 0.0
        %7722 = vmatpush.msra.mxu0 0.0
        %7723 = vmatpush.msra.mxu0 0.0
        %7724 = vmatpush.msra.mxu0 0.0
        %7725 = vmatpush.msra.mxu0 0.0
        %7726 = vmatpush.msra.mxu0 0.0
        %7727 = vmatpush.msra.mxu0 0.0
        %7728 = vmatpush.msra.mxu0 0.0
        %7729 = vmatpush.msra.mxu0 %v958
        %7730 = vmatpush.msra.mxu0 %v957
        %7731 = vmatpush.msra.mxu0 %v956
        %7732 = vmatpush.msra.mxu0 %v955
        %7733 = vmatmul.f32.gmra.mxu0 %v7622
        %v7734 = vpop.f32.mrf.mxu0
        %v7735 = vadd.f32 0.0, %v7734
        %7736 = vmatmul.f32.gmra.mxu0 %v7625
        %v7737 = vpop.f32.mrf.mxu0
        %v7738 = vadd.f32 0.0, %v7737
        %7739 = vmatmul.f32.gmra.mxu0 %v7628
        %v7740 = vpop.f32.mrf.mxu0
        %v7741 = vadd.f32 0.0, %v7740
        %7742 = vmatmul.f32.gmra.mxu0 %v7631
        %v7743 = vpop.f32.mrf.mxu0
        %v7744 = vadd.f32 0.0, %v7743
        %7745 = vmatmul.f32.gmra.mxu0 %v7634
        %v7746 = vpop.f32.mrf.mxu0
        %v7747 = vadd.f32 0.0, %v7746
        %7748 = vmatmul.f32.gmra.mxu0 %v7637
        %v7749 = vpop.f32.mrf.mxu0
        %v7750 = vadd.f32 0.0, %v7749
        %7751 = vmatmul.f32.gmra.mxu0 %v7640
        %v7752 = vpop.f32.mrf.mxu0
        %v7753 = vadd.f32 0.0, %v7752
        %7754 = vmatmul.f32.gmra.mxu0 %v7643
        %v7755 = vpop.f32.mrf.mxu0
        %v7756 = vadd.f32 0.0, %v7755
        %7757 = vmatmul.f32.gmra.mxu0 %v7646
        %v7758 = vpop.f32.mrf.mxu0
        %v7759 = vadd.f32 0.0, %v7758
        %7760 = vmatmul.f32.gmra.mxu0 %v7649
        %v7761 = vpop.f32.mrf.mxu0
        %v7762 = vadd.f32 0.0, %v7761
        %7763 = vmatmul.f32.gmra.mxu0 %v7652
        %v7764 = vpop.f32.mrf.mxu0
        %v7765 = vadd.f32 0.0, %v7764
        %7766 = vmatmul.f32.gmra.mxu0 %v7655
        %v7767 = vpop.f32.mrf.mxu0
        %v7768 = vadd.f32 0.0, %v7767
        %7769 = vmatmul.f32.gmra.mxu0 %v7658
        %v7770 = vpop.f32.mrf.mxu0
        %v7771 = vadd.f32 0.0, %v7770
        %7772 = vmatmul.f32.gmra.mxu0 %v7661
        %v7773 = vpop.f32.mrf.mxu0
        %v7774 = vadd.f32 0.0, %v7773
        %7775 = vmatmul.f32.gmra.mxu0 %v7664
        %v7776 = vpop.f32.mrf.mxu0
        %v7777 = vadd.f32 0.0, %v7776
        %7778 = vmatmul.f32.gmra.mxu0 %v7667
        %v7779 = vpop.f32.mrf.mxu0
        %v7780 = vadd.f32 0.0, %v7779
        %7781 = vmatmul.f32.gmra.mxu0 %v7670
        %v7782 = vpop.f32.mrf.mxu0
        %v7783 = vadd.f32 0.0, %v7782
        %7784 = vmatmul.f32.gmra.mxu0 %v7673
        %v7785 = vpop.f32.mrf.mxu0
        %v7786 = vadd.f32 0.0, %v7785
        %7787 = vmatmul.f32.gmra.mxu0 %v7676
        %v7788 = vpop.f32.mrf.mxu0
        %v7789 = vadd.f32 0.0, %v7788
        %7790 = vmatmul.f32.gmra.mxu0 %v7679
        %v7791 = vpop.f32.mrf.mxu0
        %v7792 = vadd.f32 0.0, %v7791
        %7793 = vmatmul.f32.gmra.mxu0 %v7682
        %v7794 = vpop.f32.mrf.mxu0
        %v7795 = vadd.f32 0.0, %v7794
        %7796 = vmatmul.f32.gmra.mxu0 %v7685
        %v7797 = vpop.f32.mrf.mxu0
        %v7798 = vadd.f32 0.0, %v7797
        %7799 = vmatmul.f32.gmra.mxu0 %v7688
        %v7800 = vpop.f32.mrf.mxu0
        %v7801 = vadd.f32 0.0, %v7800
        %7802 = vmatmul.f32.gmra.mxu0 %v7691
        %v7803 = vpop.f32.mrf.mxu0
        %v7804 = vadd.f32 0.0, %v7803
        %7805 = vmatmul.f32.gmra.mxu0 %v7694
        %v7806 = vpop.f32.mrf.mxu0
        %v7807 = vadd.f32 0.0, %v7806
        %7808 = vmatmul.f32.gmra.mxu0 %v7697
        %v7809 = vpop.f32.mrf.mxu0
        %v7810 = vadd.f32 0.0, %v7809
        %7811 = vmatmul.f32.gmra.mxu0 %v7700
        %v7812 = vpop.f32.mrf.mxu0
        %v7813 = vadd.f32 0.0, %v7812
        %7814 = vmatmul.f32.gmra.mxu0 %v7703
        %v7815 = vpop.f32.mrf.mxu0
        %v7816 = vadd.f32 0.0, %v7815
        %7817 = vmatmul.f32.gmra.mxu0 %v7706
        %v7818 = vpop.f32.mrf.mxu0
        %v7819 = vadd.f32 0.0, %v7818
        %7820 = vmatmul.f32.gmra.mxu0 %v7709
        %v7821 = vpop.f32.mrf.mxu0
        %v7822 = vadd.f32 0.0, %v7821
        %7823 = vmatmul.f32.gmra.mxu0 %v7712
        %v7824 = vpop.f32.mrf.mxu0
        %v7825 = vadd.f32 0.0, %v7824
        %7826 = vmatmul.f32.gmra.mxu0 %v7715
        %v7827 = vpop.f32.mrf.mxu0
        %v7828 = vadd.f32 0.0, %v7827
        %7829 = vdwg.mxu0
        %v7830 = vadd.f32 %v7557, %v7735
        %v7831 = vadd.f32 %v7558, %v7738
        %v7832 = vadd.f32 %v7559, %v7741
        %v7833 = vadd.f32 %v7560, %v7744
        %v7834 = vadd.f32 %v7561, %v7747
        %v7835 = vadd.f32 %v7562, %v7750
        %v7836 = vadd.f32 %v7563, %v7753
        %v7837 = vadd.f32 %v7564, %v7756
        %v7838 = vadd.f32 %v7565, %v7759
        %v7839 = vadd.f32 %v7566, %v7762
        %v7840 = vadd.f32 %v7567, %v7765
        %v7841 = vadd.f32 %v7568, %v7768
        %v7842 = vadd.f32 %v7569, %v7771
        %v7843 = vadd.f32 %v7570, %v7774
        %v7844 = vadd.f32 %v7571, %v7777
        %v7845 = vadd.f32 %v7572, %v7780
        %v7846 = vadd.f32 %v7573, %v7783
        %v7847 = vadd.f32 %v7574, %v7786
        %v7848 = vadd.f32 %v7575, %v7789
        %v7849 = vadd.f32 %v7576, %v7792
        %v7850 = vadd.f32 %v7577, %v7795
        %v7851 = vadd.f32 %v7578, %v7798
        %v7852 = vadd.f32 %v7579, %v7801
        %v7853 = vadd.f32 %v7580, %v7804
        %v7854 = vadd.f32 %v7581, %v7807
        %v7855 = vadd.f32 %v7582, %v7810
        %v7856 = vadd.f32 %v7583, %v7813
        %v7857 = vadd.f32 %v7584, %v7816
        %v7858 = vadd.f32 %v7585, %v7819
        %v7859 = vadd.f32 %v7586, %v7822
        %v7860 = vadd.f32 %v7587, %v7825
        %v7861 = vadd.f32 %v7588, %v7828
        %v7862 = vld [vmem:[#allocation3] sm:$0xff]
        %v7863 = vld [vmem:[#allocation3 + $0x8] sm:$0xff]
        %v7864 = vld [vmem:[#allocation3 + $0x10] sm:$0xff]
        %v7865 = vld [vmem:[#allocation3 + $0x18] sm:$0xff]
        %v7866 = vld [vmem:[#allocation3 + $0x20] sm:$0xff]
        %v7867 = vld [vmem:[#allocation3 + $0x28] sm:$0xff]
        %v7868 = vld [vmem:[#allocation3 + $0x30] sm:$0xff]
        %v7869 = vld [vmem:[#allocation3 + $0x38] sm:$0xff]
        %v7870 = vld [vmem:[#allocation3 + $0x40] sm:$0xff]
        %v7871 = vld [vmem:[#allocation3 + $0x48] sm:$0xff]
        %v7872 = vld [vmem:[#allocation3 + $0x50] sm:$0xff]
        %v7873 = vld [vmem:[#allocation3 + $0x58] sm:$0xff]
        %v7874 = vld [vmem:[#allocation3 + $0x60] sm:$0xff]
        %v7875 = vld [vmem:[#allocation3 + $0x68] sm:$0xff]
        %v7876 = vld [vmem:[#allocation3 + $0x70] sm:$0xff]
        %v7877 = vld [vmem:[#allocation3 + $0x78] sm:$0xff]
        %v7878 = vld [vmem:[#allocation3 + $0x80] sm:$0xff]
        %v7879 = vld [vmem:[#allocation3 + $0x88] sm:$0xff]
        %v7880 = vld [vmem:[#allocation3 + $0x90] sm:$0xff]
        %v7881 = vld [vmem:[#allocation3 + $0x98] sm:$0xff]
        %v7882 = vld [vmem:[#allocation3 + $0xa0] sm:$0xff]
        %v7883 = vld [vmem:[#allocation3 + $0xa8] sm:$0xff]
        %v7884 = vld [vmem:[#allocation3 + $0xb0] sm:$0xff]
        %v7885 = vld [vmem:[#allocation3 + $0xb8] sm:$0xff]
        %v7886 = vld [vmem:[#allocation3 + $0xc0] sm:$0xff]
        %v7887 = vld [vmem:[#allocation3 + $0xc8] sm:$0xff]
        %v7888 = vld [vmem:[#allocation3 + $0xd0] sm:$0xff]
        %v7889 = vld [vmem:[#allocation3 + $0xd8] sm:$0xff]
        %v7890 = vld [vmem:[#allocation3 + $0xe0] sm:$0xff]
        %v7891 = vld [vmem:[#allocation3 + $0xe8] sm:$0xff]
        %v7892 = vld [vmem:[#allocation3 + $0xf0] sm:$0xff]
        %v7893 = vld [vmem:[#allocation3 + $0xf8] sm:$0xff]
        %v7894 = vadd.f32 %v7862, %v7830
        %v7895 = vadd.f32 %v7863, %v7831
        %v7896 = vadd.f32 %v7864, %v7832
        %v7897 = vadd.f32 %v7865, %v7833
        %v7898 = vadd.f32 %v7866, %v7834
        %v7899 = vadd.f32 %v7867, %v7835
        %v7900 = vadd.f32 %v7868, %v7836
        %v7901 = vadd.f32 %v7869, %v7837
        %v7902 = vadd.f32 %v7870, %v7838
        %v7903 = vadd.f32 %v7871, %v7839
        %v7904 = vadd.f32 %v7872, %v7840
        %v7905 = vadd.f32 %v7873, %v7841
        %v7906 = vadd.f32 %v7874, %v7842
        %v7907 = vadd.f32 %v7875, %v7843
        %v7908 = vadd.f32 %v7876, %v7844
        %v7909 = vadd.f32 %v7877, %v7845
        %v7910 = vadd.f32 %v7878, %v7846
        %v7911 = vadd.f32 %v7879, %v7847
        %v7912 = vadd.f32 %v7880, %v7848
        %v7913 = vadd.f32 %v7881, %v7849
        %v7914 = vadd.f32 %v7882, %v7850
        %v7915 = vadd.f32 %v7883, %v7851
        %v7916 = vadd.f32 %v7884, %v7852
        %v7917 = vadd.f32 %v7885, %v7853
        %v7918 = vadd.f32 %v7886, %v7854
        %v7919 = vadd.f32 %v7887, %v7855
        %v7920 = vadd.f32 %v7888, %v7856
        %v7921 = vadd.f32 %v7889, %v7857
        %v7922 = vadd.f32 %v7890, %v7858
        %v7923 = vadd.f32 %v7891, %v7859
        %v7924 = vadd.f32 %v7892, %v7860
        %v7925 = vadd.f32 %v7893, %v7861
        %vm7926 = vcmp.ge.f32.partialorder %v7894, 1.0
        %vm7927 = vcmp.ge.f32.partialorder %v7895, 1.0
        %vm7928 = vcmp.ge.f32.partialorder %v7896, 1.0
        %vm7929 = vcmp.ge.f32.partialorder %v7897, 1.0
        %vm7930 = vcmp.ge.f32.partialorder %v7898, 1.0
        %vm7931 = vcmp.ge.f32.partialorder %v7899, 1.0
        %vm7932 = vcmp.ge.f32.partialorder %v7900, 1.0
        %vm7933 = vcmp.ge.f32.partialorder %v7901, 1.0
        %vm7934 = vcmp.ge.f32.partialorder %v7902, 1.0
        %vm7935 = vcmp.ge.f32.partialorder %v7903, 1.0
        %vm7936 = vcmp.ge.f32.partialorder %v7904, 1.0
        %vm7937 = vcmp.ge.f32.partialorder %v7905, 1.0
        %vm7938 = vcmp.ge.f32.partialorder %v7906, 1.0
        %vm7939 = vcmp.ge.f32.partialorder %v7907, 1.0
        %vm7940 = vcmp.ge.f32.partialorder %v7908, 1.0
        %vm7941 = vcmp.ge.f32.partialorder %v7909, 1.0
        %vm7942 = vcmp.ge.f32.partialorder %v7910, 1.0
        %vm7943 = vcmp.ge.f32.partialorder %v7911, 1.0
        %vm7944 = vcmp.ge.f32.partialorder %v7912, 1.0
        %vm7945 = vcmp.ge.f32.partialorder %v7913, 1.0
        %vm7946 = vcmp.ge.f32.partialorder %v7914, 1.0
        %vm7947 = vcmp.ge.f32.partialorder %v7915, 1.0
        %vm7948 = vcmp.ge.f32.partialorder %v7916, 1.0
        %vm7949 = vcmp.ge.f32.partialorder %v7917, 1.0
        %vm7950 = vcmp.ge.f32.partialorder %v7918, 1.0
        %vm7951 = vcmp.ge.f32.partialorder %v7919, 1.0
        %vm7952 = vcmp.ge.f32.partialorder %v7920, 1.0
        %vm7953 = vcmp.ge.f32.partialorder %v7921, 1.0
        %vm7954 = vcmp.ge.f32.partialorder %v7922, 1.0
        %vm7955 = vcmp.ge.f32.partialorder %v7923, 1.0
        %vm7956 = vcmp.ge.f32.partialorder %v7924, 1.0
        %vm7957 = vcmp.ge.f32.partialorder %v7925, 1.0
        %v7958 = vsel %vm7926, 1, 0
        %v7959 = vsel %vm7927, 1, 0
        %v7960 = vsel %vm7928, 1, 0
        %v7961 = vsel %vm7929, 1, 0
        %v7962 = vsel %vm7930, 1, 0
        %v7963 = vsel %vm7931, 1, 0
        %v7964 = vsel %vm7932, 1, 0
        %v7965 = vsel %vm7933, 1, 0
        %v7966 = vsel %vm7934, 1, 0
        %v7967 = vsel %vm7935, 1, 0
        %v7968 = vsel %vm7936, 1, 0
        %v7969 = vsel %vm7937, 1, 0
        %v7970 = vsel %vm7938, 1, 0
        %v7971 = vsel %vm7939, 1, 0
        %v7972 = vsel %vm7940, 1, 0
        %v7973 = vsel %vm7941, 1, 0
        %v7974 = vsel %vm7942, 1, 0
        %v7975 = vsel %vm7943, 1, 0
        %v7976 = vsel %vm7944, 1, 0
        %v7977 = vsel %vm7945, 1, 0
        %v7978 = vsel %vm7946, 1, 0
        %v7979 = vsel %vm7947, 1, 0
        %v7980 = vsel %vm7948, 1, 0
        %v7981 = vsel %vm7949, 1, 0
        %v7982 = vsel %vm7950, 1, 0
        %v7983 = vsel %vm7951, 1, 0
        %v7984 = vsel %vm7952, 1, 0
        %v7985 = vsel %vm7953, 1, 0
        %v7986 = vsel %vm7954, 1, 0
        %v7987 = vsel %vm7955, 1, 0
        %v7988 = vsel %vm7956, 1, 0
        %v7989 = vsel %vm7957, 1, 0
        %v7990 = vcvt.s32.f32 %v7958
        %v7991 = vcvt.s32.f32 %v7959
        %v7992 = vcvt.s32.f32 %v7960
        %v7993 = vcvt.s32.f32 %v7961
        %v7994 = vcvt.s32.f32 %v7962
        %v7995 = vcvt.s32.f32 %v7963
        %v7996 = vcvt.s32.f32 %v7964
        %v7997 = vcvt.s32.f32 %v7965
        %v7998 = vcvt.s32.f32 %v7966
        %v7999 = vcvt.s32.f32 %v7967
        %v8000 = vcvt.s32.f32 %v7968
        %v8001 = vcvt.s32.f32 %v7969
        %v8002 = vcvt.s32.f32 %v7970
        %v8003 = vcvt.s32.f32 %v7971
        %v8004 = vcvt.s32.f32 %v7972
        %v8005 = vcvt.s32.f32 %v7973
        %v8006 = vcvt.s32.f32 %v7974
        %v8007 = vcvt.s32.f32 %v7975
        %v8008 = vcvt.s32.f32 %v7976
        %v8009 = vcvt.s32.f32 %v7977
        %v8010 = vcvt.s32.f32 %v7978
        %v8011 = vcvt.s32.f32 %v7979
        %v8012 = vcvt.s32.f32 %v7980
        %v8013 = vcvt.s32.f32 %v7981
        %v8014 = vcvt.s32.f32 %v7982
        %v8015 = vcvt.s32.f32 %v7983
        %v8016 = vcvt.s32.f32 %v7984
        %v8017 = vcvt.s32.f32 %v7985
        %v8018 = vcvt.s32.f32 %v7986
        %v8019 = vcvt.s32.f32 %v7987
        %v8020 = vcvt.s32.f32 %v7988
        %v8021 = vcvt.s32.f32 %v7989
        %v8022 = vsel %vm7926, 0.0, %v7894
        %v8023 = vsel %vm7927, 0.0, %v7895
        %v8024 = vsel %vm7928, 0.0, %v7896
        %v8025 = vsel %vm7929, 0.0, %v7897
        %v8026 = vsel %vm7930, 0.0, %v7898
        %v8027 = vsel %vm7931, 0.0, %v7899
        %v8028 = vsel %vm7932, 0.0, %v7900
        %v8029 = vsel %vm7933, 0.0, %v7901
        %v8030 = vsel %vm7934, 0.0, %v7902
        %v8031 = vsel %vm7935, 0.0, %v7903
        %v8032 = vsel %vm7936, 0.0, %v7904
        %v8033 = vsel %vm7937, 0.0, %v7905
        %v8034 = vsel %vm7938, 0.0, %v7906
        %v8035 = vsel %vm7939, 0.0, %v7907
        %v8036 = vsel %vm7940, 0.0, %v7908
        %v8037 = vsel %vm7941, 0.0, %v7909
        %v8038 = vsel %vm7942, 0.0, %v7910
        %v8039 = vsel %vm7943, 0.0, %v7911
        %v8040 = vsel %vm7944, 0.0, %v7912
        %v8041 = vsel %vm7945, 0.0, %v7913
        %v8042 = vsel %vm7946, 0.0, %v7914
        %v8043 = vsel %vm7947, 0.0, %v7915
        %v8044 = vsel %vm7948, 0.0, %v7916
        %v8045 = vsel %vm7949, 0.0, %v7917
        %v8046 = vsel %vm7950, 0.0, %v7918
        %v8047 = vsel %vm7951, 0.0, %v7919
        %v8048 = vsel %vm7952, 0.0, %v7920
        %v8049 = vsel %vm7953, 0.0, %v7921
        %v8050 = vsel %vm7954, 0.0, %v7922
        %v8051 = vsel %vm7955, 0.0, %v7923
        %v8052 = vsel %vm7956, 0.0, %v7924
        %v8053 = vsel %vm7957, 0.0, %v7925
        %8054 = vst.msk [vmem:[#allocation3] sm:$0xff] %vm1322, %v8022
        %8055 = vst.msk [vmem:[#allocation3 + $0x8] sm:$0xff] %vm1322, %v8023
        %8056 = vst.msk [vmem:[#allocation3 + $0x10] sm:$0xff] %vm1322, %v8024
        %8057 = vst.msk [vmem:[#allocation3 + $0x18] sm:$0xff] %vm1322, %v8025
        %8058 = vst.msk [vmem:[#allocation3 + $0x20] sm:$0xff] %vm1322, %v8026
        %8059 = vst.msk [vmem:[#allocation3 + $0x28] sm:$0xff] %vm1322, %v8027
        %8060 = vst.msk [vmem:[#allocation3 + $0x30] sm:$0xff] %vm1322, %v8028
        %8061 = vst.msk [vmem:[#allocation3 + $0x38] sm:$0xff] %vm1322, %v8029
        %8062 = vst.msk [vmem:[#allocation3 + $0x40] sm:$0xff] %vm1322, %v8030
        %8063 = vst.msk [vmem:[#allocation3 + $0x48] sm:$0xff] %vm1322, %v8031
        %8064 = vst.msk [vmem:[#allocation3 + $0x50] sm:$0xff] %vm1322, %v8032
        %8065 = vst.msk [vmem:[#allocation3 + $0x58] sm:$0xff] %vm1322, %v8033
        %8066 = vst.msk [vmem:[#allocation3 + $0x60] sm:$0xff] %vm1322, %v8034
        %8067 = vst.msk [vmem:[#allocation3 + $0x68] sm:$0xff] %vm1322, %v8035
        %8068 = vst.msk [vmem:[#allocation3 + $0x70] sm:$0xff] %vm1322, %v8036
        %8069 = vst.msk [vmem:[#allocation3 + $0x78] sm:$0xff] %vm1322, %v8037
        %8070 = vst.msk [vmem:[#allocation3 + $0x80] sm:$0xff] %vm1322, %v8038
        %8071 = vst.msk [vmem:[#allocation3 + $0x88] sm:$0xff] %vm1322, %v8039
        %8072 = vst.msk [vmem:[#allocation3 + $0x90] sm:$0xff] %vm1322, %v8040
        %8073 = vst.msk [vmem:[#allocation3 + $0x98] sm:$0xff] %vm1322, %v8041
        %8074 = vst.msk [vmem:[#allocation3 + $0xa0] sm:$0xff] %vm1322, %v8042
        %8075 = vst.msk [vmem:[#allocation3 + $0xa8] sm:$0xff] %vm1322, %v8043
        %8076 = vst.msk [vmem:[#allocation3 + $0xb0] sm:$0xff] %vm1322, %v8044
        %8077 = vst.msk [vmem:[#allocation3 + $0xb8] sm:$0xff] %vm1322, %v8045
        %8078 = vst.msk [vmem:[#allocation3 + $0xc0] sm:$0xff] %vm1322, %v8046
        %8079 = vst.msk [vmem:[#allocation3 + $0xc8] sm:$0xff] %vm1322, %v8047
        %8080 = vst.msk [vmem:[#allocation3 + $0xd0] sm:$0xff] %vm1322, %v8048
        %8081 = vst.msk [vmem:[#allocation3 + $0xd8] sm:$0xff] %vm1322, %v8049
        %8082 = vst.msk [vmem:[#allocation3 + $0xe0] sm:$0xff] %vm1322, %v8050
        %8083 = vst.msk [vmem:[#allocation3 + $0xe8] sm:$0xff] %vm1322, %v8051
        %8084 = vst.msk [vmem:[#allocation3 + $0xf0] sm:$0xff] %vm1322, %v8052
        %8085 = vst.msk [vmem:[#allocation3 + $0xf8] sm:$0xff] %vm1322, %v8053
        %v8087 = vsel %vm1322, %v7990, 0
        %v8090 = vsel %vm1322, %v7991, 0
        %v8093 = vsel %vm1322, %v7992, 0
        %v8096 = vsel %vm1322, %v7993, 0
        %v8099 = vsel %vm1322, %v7994, 0
        %v8102 = vsel %vm1322, %v7995, 0
        %v8105 = vsel %vm1322, %v7996, 0
        %v8108 = vsel %vm1322, %v7997, 0
        %v8111 = vsel %vm1322, %v7998, 0
        %v8114 = vsel %vm1322, %v7999, 0
        %v8117 = vsel %vm1322, %v8000, 0
        %v8120 = vsel %vm1322, %v8001, 0
        %v8123 = vsel %vm1322, %v8002, 0
        %v8126 = vsel %vm1322, %v8003, 0
        %v8129 = vsel %vm1322, %v8004, 0
        %v8132 = vsel %vm1322, %v8005, 0
        %v8135 = vsel %vm1322, %v8006, 0
        %v8138 = vsel %vm1322, %v8007, 0
        %v8141 = vsel %vm1322, %v8008, 0
        %v8144 = vsel %vm1322, %v8009, 0
        %v8147 = vsel %vm1322, %v8010, 0
        %v8150 = vsel %vm1322, %v8011, 0
        %v8153 = vsel %vm1322, %v8012, 0
        %v8156 = vsel %vm1322, %v8013, 0
        %v8159 = vsel %vm1322, %v8014, 0
        %v8162 = vsel %vm1322, %v8015, 0
        %v8165 = vsel %vm1322, %v8016, 0
        %v8168 = vsel %vm1322, %v8017, 0
        %v8171 = vsel %vm1322, %v8018, 0
        %v8174 = vsel %vm1322, %v8019, 0
        %v8177 = vsel %vm1322, %v8020, 0
        %v8180 = vsel %vm1322, %v8021, 0
        %8182 = vmatpush.msra.mxu0 0.0
        %8183 = vmatpush.msra.mxu0 0.0
        %8184 = vmatpush.msra.mxu0 0.0
        %8185 = vmatpush.msra.mxu0 0.0
        %8186 = vmatpush.msra.mxu0 0.0
        %8187 = vmatpush.msra.mxu0 0.0
        %8188 = vmatpush.msra.mxu0 0.0
        %8189 = vmatpush.msra.mxu0 0.0
        %8190 = vmatpush.msra.mxu0 0.0
        %8191 = vmatpush.msra.mxu0 0.0
        %8192 = vmatpush.msra.mxu0 0.0
        %8193 = vmatpush.msra.mxu0 0.0
        %8194 = vmatpush.msra.mxu0 %v962
        %8195 = vmatpush.msra.mxu0 %v961
        %8196 = vmatpush.msra.mxu0 %v960
        %8197 = vmatpush.msra.mxu0 %v959
        %8198 = vmatmul.f32.gmra.mxu0 %v8087
        %v8199 = vpop.f32.mrf.mxu0
        %v8200 = vadd.f32 %v4362, %v8199
        %8201 = vmatmul.f32.gmra.mxu0 %v8090
        %v8202 = vpop.f32.mrf.mxu0
        %v8203 = vadd.f32 %v4362, %v8202
        %8204 = vmatmul.f32.gmra.mxu0 %v8093
        %v8205 = vpop.f32.mrf.mxu0
        %v8206 = vadd.f32 %v4362, %v8205
        %8207 = vmatmul.f32.gmra.mxu0 %v8096
        %v8208 = vpop.f32.mrf.mxu0
        %v8209 = vadd.f32 %v4362, %v8208
        %8210 = vmatmul.f32.gmra.mxu0 %v8099
        %v8211 = vpop.f32.mrf.mxu0
        %v8212 = vadd.f32 %v4362, %v8211
        %8213 = vmatmul.f32.gmra.mxu0 %v8102
        %v8214 = vpop.f32.mrf.mxu0
        %v8215 = vadd.f32 %v4362, %v8214
        %8216 = vmatmul.f32.gmra.mxu0 %v8105
        %v8217 = vpop.f32.mrf.mxu0
        %v8218 = vadd.f32 %v4362, %v8217
        %8219 = vmatmul.f32.gmra.mxu0 %v8108
        %v8220 = vpop.f32.mrf.mxu0
        %v8221 = vadd.f32 %v4362, %v8220
        %8222 = vmatmul.f32.gmra.mxu0 %v8111
        %v8223 = vpop.f32.mrf.mxu0
        %v8224 = vadd.f32 %v4362, %v8223
        %8225 = vmatmul.f32.gmra.mxu0 %v8114
        %v8226 = vpop.f32.mrf.mxu0
        %v8227 = vadd.f32 %v4362, %v8226
        %8228 = vmatmul.f32.gmra.mxu0 %v8117
        %v8229 = vpop.f32.mrf.mxu0
        %v8230 = vadd.f32 %v4362, %v8229
        %8231 = vmatmul.f32.gmra.mxu0 %v8120
        %v8232 = vpop.f32.mrf.mxu0
        %v8233 = vadd.f32 %v4362, %v8232
        %8234 = vmatmul.f32.gmra.mxu0 %v8123
        %v8235 = vpop.f32.mrf.mxu0
        %v8236 = vadd.f32 %v4362, %v8235
        %8237 = vmatmul.f32.gmra.mxu0 %v8126
        %v8238 = vpop.f32.mrf.mxu0
        %v8239 = vadd.f32 %v4362, %v8238
        %8240 = vmatmul.f32.gmra.mxu0 %v8129
        %v8241 = vpop.f32.mrf.mxu0
        %v8242 = vadd.f32 %v4362, %v8241
        %8243 = vmatmul.f32.gmra.mxu0 %v8132
        %v8244 = vpop.f32.mrf.mxu0
        %v8245 = vadd.f32 %v4362, %v8244
        %8246 = vmatmul.f32.gmra.mxu0 %v8135
        %v8247 = vpop.f32.mrf.mxu0
        %v8248 = vadd.f32 %v4362, %v8247
        %8249 = vmatmul.f32.gmra.mxu0 %v8138
        %v8250 = vpop.f32.mrf.mxu0
        %v8251 = vadd.f32 %v4362, %v8250
        %8252 = vmatmul.f32.gmra.mxu0 %v8141
        %v8253 = vpop.f32.mrf.mxu0
        %v8254 = vadd.f32 %v4362, %v8253
        %8255 = vmatmul.f32.gmra.mxu0 %v8144
        %v8256 = vpop.f32.mrf.mxu0
        %v8257 = vadd.f32 %v4362, %v8256
        %8258 = vmatmul.f32.gmra.mxu0 %v8147
        %v8259 = vpop.f32.mrf.mxu0
        %v8260 = vadd.f32 %v4362, %v8259
        %8261 = vmatmul.f32.gmra.mxu0 %v8150
        %v8262 = vpop.f32.mrf.mxu0
        %v8263 = vadd.f32 %v4362, %v8262
        %8264 = vmatmul.f32.gmra.mxu0 %v8153
        %v8265 = vpop.f32.mrf.mxu0
        %v8266 = vadd.f32 %v4362, %v8265
        %8267 = vmatmul.f32.gmra.mxu0 %v8156
        %v8268 = vpop.f32.mrf.mxu0
        %v8269 = vadd.f32 %v4362, %v8268
        %8270 = vmatmul.f32.gmra.mxu0 %v8159
        %v8271 = vpop.f32.mrf.mxu0
        %v8272 = vadd.f32 %v4362, %v8271
        %8273 = vmatmul.f32.gmra.mxu0 %v8162
        %v8274 = vpop.f32.mrf.mxu0
        %v8275 = vadd.f32 %v4362, %v8274
        %8276 = vmatmul.f32.gmra.mxu0 %v8165
        %v8277 = vpop.f32.mrf.mxu0
        %v8278 = vadd.f32 %v4362, %v8277
        %8279 = vmatmul.f32.gmra.mxu0 %v8168
        %v8280 = vpop.f32.mrf.mxu0
        %v8281 = vadd.f32 %v4362, %v8280
        %8282 = vmatmul.f32.gmra.mxu0 %v8171
        %v8283 = vpop.f32.mrf.mxu0
        %v8284 = vadd.f32 %v4362, %v8283
        %8285 = vmatmul.f32.gmra.mxu0 %v8174
        %v8286 = vpop.f32.mrf.mxu0
        %v8287 = vadd.f32 %v4362, %v8286
        %8288 = vmatmul.f32.gmra.mxu0 %v8177
        %v8289 = vpop.f32.mrf.mxu0
        %v8290 = vadd.f32 %v4362, %v8289
        %8291 = vmatmul.f32.gmra.mxu0 %v8180
        %v8292 = vpop.f32.mrf.mxu0
        %v8293 = vadd.f32 %v4362, %v8292
        %8294 = vdwg.mxu0
        %v8295 = vld [vmem:[#allocation4] sm:$0xff]
        %v8296 = vld [vmem:[#allocation4 + $0x8] sm:$0xff]
        %v8297 = vld [vmem:[#allocation4 + $0x10] sm:$0xff]
        %v8298 = vld [vmem:[#allocation4 + $0x18] sm:$0xff]
        %v8299 = vld [vmem:[#allocation4 + $0x20] sm:$0xff]
        %v8300 = vld [vmem:[#allocation4 + $0x28] sm:$0xff]
        %v8301 = vld [vmem:[#allocation4 + $0x30] sm:$0xff]
        %v8302 = vld [vmem:[#allocation4 + $0x38] sm:$0xff]
        %v8303 = vld [vmem:[#allocation4 + $0x40] sm:$0xff]
        %v8304 = vld [vmem:[#allocation4 + $0x48] sm:$0xff]
        %v8305 = vld [vmem:[#allocation4 + $0x50] sm:$0xff]
        %v8306 = vld [vmem:[#allocation4 + $0x58] sm:$0xff]
        %v8307 = vld [vmem:[#allocation4 + $0x60] sm:$0xff]
        %v8308 = vld [vmem:[#allocation4 + $0x68] sm:$0xff]
        %v8309 = vld [vmem:[#allocation4 + $0x70] sm:$0xff]
        %v8310 = vld [vmem:[#allocation4 + $0x78] sm:$0xff]
        %v8311 = vld [vmem:[#allocation4 + $0x80] sm:$0xff]
        %v8312 = vld [vmem:[#allocation4 + $0x88] sm:$0xff]
        %v8313 = vld [vmem:[#allocation4 + $0x90] sm:$0xff]
        %v8314 = vld [vmem:[#allocation4 + $0x98] sm:$0xff]
        %v8315 = vld [vmem:[#allocation4 + $0xa0] sm:$0xff]
        %v8316 = vld [vmem:[#allocation4 + $0xa8] sm:$0xff]
        %v8317 = vld [vmem:[#allocation4 + $0xb0] sm:$0xff]
        %v8318 = vld [vmem:[#allocation4 + $0xb8] sm:$0xff]
        %v8319 = vld [vmem:[#allocation4 + $0xc0] sm:$0xff]
        %v8320 = vld [vmem:[#allocation4 + $0xc8] sm:$0xff]
        %v8321 = vld [vmem:[#allocation4 + $0xd0] sm:$0xff]
        %v8322 = vld [vmem:[#allocation4 + $0xd8] sm:$0xff]
        %v8323 = vld [vmem:[#allocation4 + $0xe0] sm:$0xff]
        %v8324 = vld [vmem:[#allocation4 + $0xe8] sm:$0xff]
        %v8325 = vld [vmem:[#allocation4 + $0xf0] sm:$0xff]
        %v8326 = vld [vmem:[#allocation4 + $0xf8] sm:$0xff]
        %v8327 = vadd.f32 %v8295, %v8200
        %v8328 = vadd.f32 %v8296, %v8203
        %v8329 = vadd.f32 %v8297, %v8206
        %v8330 = vadd.f32 %v8298, %v8209
        %v8331 = vadd.f32 %v8299, %v8212
        %v8332 = vadd.f32 %v8300, %v8215
        %v8333 = vadd.f32 %v8301, %v8218
        %v8334 = vadd.f32 %v8302, %v8221
        %v8335 = vadd.f32 %v8303, %v8224
        %v8336 = vadd.f32 %v8304, %v8227
        %v8337 = vadd.f32 %v8305, %v8230
        %v8338 = vadd.f32 %v8306, %v8233
        %v8339 = vadd.f32 %v8307, %v8236
        %v8340 = vadd.f32 %v8308, %v8239
        %v8341 = vadd.f32 %v8309, %v8242
        %v8342 = vadd.f32 %v8310, %v8245
        %v8343 = vadd.f32 %v8311, %v8248
        %v8344 = vadd.f32 %v8312, %v8251
        %v8345 = vadd.f32 %v8313, %v8254
        %v8346 = vadd.f32 %v8314, %v8257
        %v8347 = vadd.f32 %v8315, %v8260
        %v8348 = vadd.f32 %v8316, %v8263
        %v8349 = vadd.f32 %v8317, %v8266
        %v8350 = vadd.f32 %v8318, %v8269
        %v8351 = vadd.f32 %v8319, %v8272
        %v8352 = vadd.f32 %v8320, %v8275
        %v8353 = vadd.f32 %v8321, %v8278
        %v8354 = vadd.f32 %v8322, %v8281
        %v8355 = vadd.f32 %v8323, %v8284
        %v8356 = vadd.f32 %v8324, %v8287
        %v8357 = vadd.f32 %v8325, %v8290
        %v8358 = vadd.f32 %v8326, %v8293
        %vm8359 = vcmp.ge.f32.partialorder %v8327, 1.0
        %vm8360 = vcmp.ge.f32.partialorder %v8328, 1.0
        %vm8361 = vcmp.ge.f32.partialorder %v8329, 1.0
        %vm8362 = vcmp.ge.f32.partialorder %v8330, 1.0
        %vm8363 = vcmp.ge.f32.partialorder %v8331, 1.0
        %vm8364 = vcmp.ge.f32.partialorder %v8332, 1.0
        %vm8365 = vcmp.ge.f32.partialorder %v8333, 1.0
        %vm8366 = vcmp.ge.f32.partialorder %v8334, 1.0
        %vm8367 = vcmp.ge.f32.partialorder %v8335, 1.0
        %vm8368 = vcmp.ge.f32.partialorder %v8336, 1.0
        %vm8369 = vcmp.ge.f32.partialorder %v8337, 1.0
        %vm8370 = vcmp.ge.f32.partialorder %v8338, 1.0
        %vm8371 = vcmp.ge.f32.partialorder %v8339, 1.0
        %vm8372 = vcmp.ge.f32.partialorder %v8340, 1.0
        %vm8373 = vcmp.ge.f32.partialorder %v8341, 1.0
        %vm8374 = vcmp.ge.f32.partialorder %v8342, 1.0
        %vm8375 = vcmp.ge.f32.partialorder %v8343, 1.0
        %vm8376 = vcmp.ge.f32.partialorder %v8344, 1.0
        %vm8377 = vcmp.ge.f32.partialorder %v8345, 1.0
        %vm8378 = vcmp.ge.f32.partialorder %v8346, 1.0
        %vm8379 = vcmp.ge.f32.partialorder %v8347, 1.0
        %vm8380 = vcmp.ge.f32.partialorder %v8348, 1.0
        %vm8381 = vcmp.ge.f32.partialorder %v8349, 1.0
        %vm8382 = vcmp.ge.f32.partialorder %v8350, 1.0
        %vm8383 = vcmp.ge.f32.partialorder %v8351, 1.0
        %vm8384 = vcmp.ge.f32.partialorder %v8352, 1.0
        %vm8385 = vcmp.ge.f32.partialorder %v8353, 1.0
        %vm8386 = vcmp.ge.f32.partialorder %v8354, 1.0
        %vm8387 = vcmp.ge.f32.partialorder %v8355, 1.0
        %vm8388 = vcmp.ge.f32.partialorder %v8356, 1.0
        %vm8389 = vcmp.ge.f32.partialorder %v8357, 1.0
        %vm8390 = vcmp.ge.f32.partialorder %v8358, 1.0
        %v8391 = vsel %vm8359, 1, 0
        %v8392 = vsel %vm8360, 1, 0
        %v8393 = vsel %vm8361, 1, 0
        %v8394 = vsel %vm8362, 1, 0
        %v8395 = vsel %vm8363, 1, 0
        %v8396 = vsel %vm8364, 1, 0
        %v8397 = vsel %vm8365, 1, 0
        %v8398 = vsel %vm8366, 1, 0
        %v8399 = vsel %vm8367, 1, 0
        %v8400 = vsel %vm8368, 1, 0
        %v8401 = vsel %vm8369, 1, 0
        %v8402 = vsel %vm8370, 1, 0
        %v8403 = vsel %vm8371, 1, 0
        %v8404 = vsel %vm8372, 1, 0
        %v8405 = vsel %vm8373, 1, 0
        %v8406 = vsel %vm8374, 1, 0
        %v8407 = vsel %vm8375, 1, 0
        %v8408 = vsel %vm8376, 1, 0
        %v8409 = vsel %vm8377, 1, 0
        %v8410 = vsel %vm8378, 1, 0
        %v8411 = vsel %vm8379, 1, 0
        %v8412 = vsel %vm8380, 1, 0
        %v8413 = vsel %vm8381, 1, 0
        %v8414 = vsel %vm8382, 1, 0
        %v8415 = vsel %vm8383, 1, 0
        %v8416 = vsel %vm8384, 1, 0
        %v8417 = vsel %vm8385, 1, 0
        %v8418 = vsel %vm8386, 1, 0
        %v8419 = vsel %vm8387, 1, 0
        %v8420 = vsel %vm8388, 1, 0
        %v8421 = vsel %vm8389, 1, 0
        %v8422 = vsel %vm8390, 1, 0
        %v8423 = vcvt.s32.f32 %v8391
        %v8424 = vcvt.s32.f32 %v8392
        %v8425 = vcvt.s32.f32 %v8393
        %v8426 = vcvt.s32.f32 %v8394
        %v8427 = vcvt.s32.f32 %v8395
        %v8428 = vcvt.s32.f32 %v8396
        %v8429 = vcvt.s32.f32 %v8397
        %v8430 = vcvt.s32.f32 %v8398
        %v8431 = vcvt.s32.f32 %v8399
        %v8432 = vcvt.s32.f32 %v8400
        %v8433 = vcvt.s32.f32 %v8401
        %v8434 = vcvt.s32.f32 %v8402
        %v8435 = vcvt.s32.f32 %v8403
        %v8436 = vcvt.s32.f32 %v8404
        %v8437 = vcvt.s32.f32 %v8405
        %v8438 = vcvt.s32.f32 %v8406
        %v8439 = vcvt.s32.f32 %v8407
        %v8440 = vcvt.s32.f32 %v8408
        %v8441 = vcvt.s32.f32 %v8409
        %v8442 = vcvt.s32.f32 %v8410
        %v8443 = vcvt.s32.f32 %v8411
        %v8444 = vcvt.s32.f32 %v8412
        %v8445 = vcvt.s32.f32 %v8413
        %v8446 = vcvt.s32.f32 %v8414
        %v8447 = vcvt.s32.f32 %v8415
        %v8448 = vcvt.s32.f32 %v8416
        %v8449 = vcvt.s32.f32 %v8417
        %v8450 = vcvt.s32.f32 %v8418
        %v8451 = vcvt.s32.f32 %v8419
        %v8452 = vcvt.s32.f32 %v8420
        %v8453 = vcvt.s32.f32 %v8421
        %v8454 = vcvt.s32.f32 %v8422
        %v8455 = vsel %vm8359, 0.0, %v8327
        %v8456 = vsel %vm8360, 0.0, %v8328
        %v8457 = vsel %vm8361, 0.0, %v8329
        %v8458 = vsel %vm8362, 0.0, %v8330
        %v8459 = vsel %vm8363, 0.0, %v8331
        %v8460 = vsel %vm8364, 0.0, %v8332
        %v8461 = vsel %vm8365, 0.0, %v8333
        %v8462 = vsel %vm8366, 0.0, %v8334
        %v8463 = vsel %vm8367, 0.0, %v8335
        %v8464 = vsel %vm8368, 0.0, %v8336
        %v8465 = vsel %vm8369, 0.0, %v8337
        %v8466 = vsel %vm8370, 0.0, %v8338
        %v8467 = vsel %vm8371, 0.0, %v8339
        %v8468 = vsel %vm8372, 0.0, %v8340
        %v8469 = vsel %vm8373, 0.0, %v8341
        %v8470 = vsel %vm8374, 0.0, %v8342
        %v8471 = vsel %vm8375, 0.0, %v8343
        %v8472 = vsel %vm8376, 0.0, %v8344
        %v8473 = vsel %vm8377, 0.0, %v8345
        %v8474 = vsel %vm8378, 0.0, %v8346
        %v8475 = vsel %vm8379, 0.0, %v8347
        %v8476 = vsel %vm8380, 0.0, %v8348
        %v8477 = vsel %vm8381, 0.0, %v8349
        %v8478 = vsel %vm8382, 0.0, %v8350
        %v8479 = vsel %vm8383, 0.0, %v8351
        %v8480 = vsel %vm8384, 0.0, %v8352
        %v8481 = vsel %vm8385, 0.0, %v8353
        %v8482 = vsel %vm8386, 0.0, %v8354
        %v8483 = vsel %vm8387, 0.0, %v8355
        %v8484 = vsel %vm8388, 0.0, %v8356
        %v8485 = vsel %vm8389, 0.0, %v8357
        %v8486 = vsel %vm8390, 0.0, %v8358
        %8487 = vst [vmem:[#allocation4] sm:$0xff] %v8455
        %8488 = vst [vmem:[#allocation4 + $0x8] sm:$0xff] %v8456
        %8489 = vst [vmem:[#allocation4 + $0x10] sm:$0xff] %v8457
        %8490 = vst [vmem:[#allocation4 + $0x18] sm:$0xff] %v8458
        %8491 = vst [vmem:[#allocation4 + $0x20] sm:$0xff] %v8459
        %8492 = vst [vmem:[#allocation4 + $0x28] sm:$0xff] %v8460
        %8493 = vst [vmem:[#allocation4 + $0x30] sm:$0xff] %v8461
        %8494 = vst [vmem:[#allocation4 + $0x38] sm:$0xff] %v8462
        %8495 = vst [vmem:[#allocation4 + $0x40] sm:$0xff] %v8463
        %8496 = vst [vmem:[#allocation4 + $0x48] sm:$0xff] %v8464
        %8497 = vst [vmem:[#allocation4 + $0x50] sm:$0xff] %v8465
        %8498 = vst [vmem:[#allocation4 + $0x58] sm:$0xff] %v8466
        %8499 = vst [vmem:[#allocation4 + $0x60] sm:$0xff] %v8467
        %8500 = vst [vmem:[#allocation4 + $0x68] sm:$0xff] %v8468
        %8501 = vst [vmem:[#allocation4 + $0x70] sm:$0xff] %v8469
        %8502 = vst [vmem:[#allocation4 + $0x78] sm:$0xff] %v8470
        %8503 = vst [vmem:[#allocation4 + $0x80] sm:$0xff] %v8471
        %8504 = vst [vmem:[#allocation4 + $0x88] sm:$0xff] %v8472
        %8505 = vst [vmem:[#allocation4 + $0x90] sm:$0xff] %v8473
        %8506 = vst [vmem:[#allocation4 + $0x98] sm:$0xff] %v8474
        %8507 = vst [vmem:[#allocation4 + $0xa0] sm:$0xff] %v8475
        %8508 = vst [vmem:[#allocation4 + $0xa8] sm:$0xff] %v8476
        %8509 = vst [vmem:[#allocation4 + $0xb0] sm:$0xff] %v8477
        %8510 = vst [vmem:[#allocation4 + $0xb8] sm:$0xff] %v8478
        %8511 = vst [vmem:[#allocation4 + $0xc0] sm:$0xff] %v8479
        %8512 = vst [vmem:[#allocation4 + $0xc8] sm:$0xff] %v8480
        %8513 = vst [vmem:[#allocation4 + $0xd0] sm:$0xff] %v8481
        %8514 = vst [vmem:[#allocation4 + $0xd8] sm:$0xff] %v8482
        %8515 = vst [vmem:[#allocation4 + $0xe0] sm:$0xff] %v8483
        %8516 = vst [vmem:[#allocation4 + $0xe8] sm:$0xff] %v8484
        %8517 = vst [vmem:[#allocation4 + $0xf0] sm:$0xff] %v8485
        %8518 = vst [vmem:[#allocation4 + $0xf8] sm:$0xff] %v8486
        %s8519 = scalar_lea.vmem %s680, 128 [#allocation7]
        %v8520 = vld [vmem:[%s8519] sm:$0xf]
        %v8521 = vld [vmem:[%s8519 + $0x4] sm:$0xf]
        %v8522 = vld [vmem:[%s8519 + $0x8] sm:$0xf]
        %v8523 = vld [vmem:[%s8519 + $0xc] sm:$0xf]
        %v8524 = vld [vmem:[%s8519 + $0x10] sm:$0xf]
        %v8525 = vld [vmem:[%s8519 + $0x14] sm:$0xf]
        %v8526 = vld [vmem:[%s8519 + $0x18] sm:$0xf]
        %v8527 = vld [vmem:[%s8519 + $0x1c] sm:$0xf]
        %v8528 = vld [vmem:[%s8519 + $0x20] sm:$0xf]
        %v8529 = vld [vmem:[%s8519 + $0x24] sm:$0xf]
        %v8530 = vld [vmem:[%s8519 + $0x28] sm:$0xf]
        %v8531 = vld [vmem:[%s8519 + $0x2c] sm:$0xf]
        %v8532 = vld [vmem:[%s8519 + $0x30] sm:$0xf]
        %v8533 = vld [vmem:[%s8519 + $0x34] sm:$0xf]
        %v8534 = vld [vmem:[%s8519 + $0x38] sm:$0xf]
        %v8535 = vld [vmem:[%s8519 + $0x3c] sm:$0xf]
        %v8536 = vld [vmem:[%s8519 + $0x40] sm:$0xf]
        %v8537 = vld [vmem:[%s8519 + $0x44] sm:$0xf]
        %v8538 = vld [vmem:[%s8519 + $0x48] sm:$0xf]
        %v8539 = vld [vmem:[%s8519 + $0x4c] sm:$0xf]
        %v8540 = vld [vmem:[%s8519 + $0x50] sm:$0xf]
        %v8541 = vld [vmem:[%s8519 + $0x54] sm:$0xf]
        %v8542 = vld [vmem:[%s8519 + $0x58] sm:$0xf]
        %v8543 = vld [vmem:[%s8519 + $0x5c] sm:$0xf]
        %v8544 = vld [vmem:[%s8519 + $0x60] sm:$0xf]
        %v8545 = vld [vmem:[%s8519 + $0x64] sm:$0xf]
        %v8546 = vld [vmem:[%s8519 + $0x68] sm:$0xf]
        %v8547 = vld [vmem:[%s8519 + $0x6c] sm:$0xf]
        %v8548 = vld [vmem:[%s8519 + $0x70] sm:$0xf]
        %v8549 = vld [vmem:[%s8519 + $0x74] sm:$0xf]
        %v8550 = vld [vmem:[%s8519 + $0x78] sm:$0xf]
        %v8551 = vld [vmem:[%s8519 + $0x7c] sm:$0xf]
        %v8552 = vunpack.c.l.bf16 %v8520
        %v8553 = vunpack.c.l.bf16 %v8521
        %v8554 = vunpack.c.l.bf16 %v8522
        %v8555 = vunpack.c.l.bf16 %v8523
        %v8556 = vunpack.c.l.bf16 %v8524
        %v8557 = vunpack.c.l.bf16 %v8525
        %v8558 = vunpack.c.l.bf16 %v8526
        %v8559 = vunpack.c.l.bf16 %v8527
        %v8560 = vunpack.c.l.bf16 %v8528
        %v8561 = vunpack.c.l.bf16 %v8529
        %v8562 = vunpack.c.l.bf16 %v8530
        %v8563 = vunpack.c.l.bf16 %v8531
        %v8564 = vunpack.c.l.bf16 %v8532
        %v8565 = vunpack.c.l.bf16 %v8533
        %v8566 = vunpack.c.l.bf16 %v8534
        %v8567 = vunpack.c.l.bf16 %v8535
        %v8568 = vunpack.c.l.bf16 %v8536
        %v8569 = vunpack.c.l.bf16 %v8537
        %v8570 = vunpack.c.l.bf16 %v8538
        %v8571 = vunpack.c.l.bf16 %v8539
        %v8572 = vunpack.c.l.bf16 %v8540
        %v8573 = vunpack.c.l.bf16 %v8541
        %v8574 = vunpack.c.l.bf16 %v8542
        %v8575 = vunpack.c.l.bf16 %v8543
        %v8576 = vunpack.c.l.bf16 %v8544
        %v8577 = vunpack.c.l.bf16 %v8545
        %v8578 = vunpack.c.l.bf16 %v8546
        %v8579 = vunpack.c.l.bf16 %v8547
        %v8580 = vunpack.c.l.bf16 %v8548
        %v8581 = vunpack.c.l.bf16 %v8549
        %v8582 = vunpack.c.l.bf16 %v8550
        %v8583 = vunpack.c.l.bf16 %v8551
        %s8584 = scalar_lea.vmem %s688, 128 [#allocation8]
        %v8585 = vld [vmem:[%s8584] sm:$0xf]
        %v8586 = vld [vmem:[%s8584 + $0x4] sm:$0xf]
        %v8587 = vld [vmem:[%s8584 + $0x8] sm:$0xf]
        %v8588 = vld [vmem:[%s8584 + $0xc] sm:$0xf]
        %v8589 = vld [vmem:[%s8584 + $0x10] sm:$0xf]
        %v8590 = vld [vmem:[%s8584 + $0x14] sm:$0xf]
        %v8591 = vld [vmem:[%s8584 + $0x18] sm:$0xf]
        %v8592 = vld [vmem:[%s8584 + $0x1c] sm:$0xf]
        %v8593 = vld [vmem:[%s8584 + $0x20] sm:$0xf]
        %v8594 = vld [vmem:[%s8584 + $0x24] sm:$0xf]
        %v8595 = vld [vmem:[%s8584 + $0x28] sm:$0xf]
        %v8596 = vld [vmem:[%s8584 + $0x2c] sm:$0xf]
        %v8597 = vld [vmem:[%s8584 + $0x30] sm:$0xf]
        %v8598 = vld [vmem:[%s8584 + $0x34] sm:$0xf]
        %v8599 = vld [vmem:[%s8584 + $0x38] sm:$0xf]
        %v8600 = vld [vmem:[%s8584 + $0x3c] sm:$0xf]
        %v8601 = vld [vmem:[%s8584 + $0x40] sm:$0xf]
        %v8602 = vld [vmem:[%s8584 + $0x44] sm:$0xf]
        %v8603 = vld [vmem:[%s8584 + $0x48] sm:$0xf]
        %v8604 = vld [vmem:[%s8584 + $0x4c] sm:$0xf]
        %v8605 = vld [vmem:[%s8584 + $0x50] sm:$0xf]
        %v8606 = vld [vmem:[%s8584 + $0x54] sm:$0xf]
        %v8607 = vld [vmem:[%s8584 + $0x58] sm:$0xf]
        %v8608 = vld [vmem:[%s8584 + $0x5c] sm:$0xf]
        %v8609 = vld [vmem:[%s8584 + $0x60] sm:$0xf]
        %v8610 = vld [vmem:[%s8584 + $0x64] sm:$0xf]
        %v8611 = vld [vmem:[%s8584 + $0x68] sm:$0xf]
        %v8612 = vld [vmem:[%s8584 + $0x6c] sm:$0xf]
        %v8613 = vld [vmem:[%s8584 + $0x70] sm:$0xf]
        %v8614 = vld [vmem:[%s8584 + $0x74] sm:$0xf]
        %v8615 = vld [vmem:[%s8584 + $0x78] sm:$0xf]
        %v8616 = vld [vmem:[%s8584 + $0x7c] sm:$0xf]
        %v8617 = vunpack.c.l.bf16 %v8585
        %v8618 = vunpack.c.l.bf16 %v8586
        %v8619 = vunpack.c.l.bf16 %v8587
        %v8620 = vunpack.c.l.bf16 %v8588
        %v8621 = vunpack.c.l.bf16 %v8589
        %v8622 = vunpack.c.l.bf16 %v8590
        %v8623 = vunpack.c.l.bf16 %v8591
        %v8624 = vunpack.c.l.bf16 %v8592
        %v8625 = vunpack.c.l.bf16 %v8593
        %v8626 = vunpack.c.l.bf16 %v8594
        %v8627 = vunpack.c.l.bf16 %v8595
        %v8628 = vunpack.c.l.bf16 %v8596
        %v8629 = vunpack.c.l.bf16 %v8597
        %v8630 = vunpack.c.l.bf16 %v8598
        %v8631 = vunpack.c.l.bf16 %v8599
        %v8632 = vunpack.c.l.bf16 %v8600
        %v8633 = vunpack.c.l.bf16 %v8601
        %v8634 = vunpack.c.l.bf16 %v8602
        %v8635 = vunpack.c.l.bf16 %v8603
        %v8636 = vunpack.c.l.bf16 %v8604
        %v8637 = vunpack.c.l.bf16 %v8605
        %v8638 = vunpack.c.l.bf16 %v8606
        %v8639 = vunpack.c.l.bf16 %v8607
        %v8640 = vunpack.c.l.bf16 %v8608
        %v8641 = vunpack.c.l.bf16 %v8609
        %v8642 = vunpack.c.l.bf16 %v8610
        %v8643 = vunpack.c.l.bf16 %v8611
        %v8644 = vunpack.c.l.bf16 %v8612
        %v8645 = vunpack.c.l.bf16 %v8613
        %v8646 = vunpack.c.l.bf16 %v8614
        %v8647 = vunpack.c.l.bf16 %v8615
        %v8648 = vunpack.c.l.bf16 %v8616
        %v8649 = vadd.f32 %v8617, %v8423
        %v8650 = vadd.f32 %v8618, %v8424
        %v8651 = vadd.f32 %v8619, %v8425
        %v8652 = vadd.f32 %v8620, %v8426
        %v8653 = vadd.f32 %v8621, %v8427
        %v8654 = vadd.f32 %v8622, %v8428
        %v8655 = vadd.f32 %v8623, %v8429
        %v8656 = vadd.f32 %v8624, %v8430
        %v8657 = vadd.f32 %v8625, %v8431
        %v8658 = vadd.f32 %v8626, %v8432
        %v8659 = vadd.f32 %v8627, %v8433
        %v8660 = vadd.f32 %v8628, %v8434
        %v8661 = vadd.f32 %v8629, %v8435
        %v8662 = vadd.f32 %v8630, %v8436
        %v8663 = vadd.f32 %v8631, %v8437
        %v8664 = vadd.f32 %v8632, %v8438
        %v8665 = vadd.f32 %v8633, %v8439
        %v8666 = vadd.f32 %v8634, %v8440
        %v8667 = vadd.f32 %v8635, %v8441
        %v8668 = vadd.f32 %v8636, %v8442
        %v8669 = vadd.f32 %v8637, %v8443
        %v8670 = vadd.f32 %v8638, %v8444
        %v8671 = vadd.f32 %v8639, %v8445
        %v8672 = vadd.f32 %v8640, %v8446
        %v8673 = vadd.f32 %v8641, %v8447
        %v8674 = vadd.f32 %v8642, %v8448
        %v8675 = vadd.f32 %v8643, %v8449
        %v8676 = vadd.f32 %v8644, %v8450
        %v8677 = vadd.f32 %v8645, %v8451
        %v8678 = vadd.f32 %v8646, %v8452
        %v8679 = vadd.f32 %v8647, %v8453
        %v8680 = vadd.f32 %v8648, %v8454
        %v8681 = vpack.c.bf16 %v8649, %v8649
        %v8682 = vpack.c.bf16 %v8650, %v8650
        %v8683 = vpack.c.bf16 %v8651, %v8651
        %v8684 = vpack.c.bf16 %v8652, %v8652
        %v8685 = vpack.c.bf16 %v8653, %v8653
        %v8686 = vpack.c.bf16 %v8654, %v8654
        %v8687 = vpack.c.bf16 %v8655, %v8655
        %v8688 = vpack.c.bf16 %v8656, %v8656
        %v8689 = vpack.c.bf16 %v8657, %v8657
        %v8690 = vpack.c.bf16 %v8658, %v8658
        %v8691 = vpack.c.bf16 %v8659, %v8659
        %v8692 = vpack.c.bf16 %v8660, %v8660
        %v8693 = vpack.c.bf16 %v8661, %v8661
        %v8694 = vpack.c.bf16 %v8662, %v8662
        %v8695 = vpack.c.bf16 %v8663, %v8663
        %v8696 = vpack.c.bf16 %v8664, %v8664
        %v8697 = vpack.c.bf16 %v8665, %v8665
        %v8698 = vpack.c.bf16 %v8666, %v8666
        %v8699 = vpack.c.bf16 %v8667, %v8667
        %v8700 = vpack.c.bf16 %v8668, %v8668
        %v8701 = vpack.c.bf16 %v8669, %v8669
        %v8702 = vpack.c.bf16 %v8670, %v8670
        %v8703 = vpack.c.bf16 %v8671, %v8671
        %v8704 = vpack.c.bf16 %v8672, %v8672
        %v8705 = vpack.c.bf16 %v8673, %v8673
        %v8706 = vpack.c.bf16 %v8674, %v8674
        %v8707 = vpack.c.bf16 %v8675, %v8675
        %v8708 = vpack.c.bf16 %v8676, %v8676
        %v8709 = vpack.c.bf16 %v8677, %v8677
        %v8710 = vpack.c.bf16 %v8678, %v8678
        %v8711 = vpack.c.bf16 %v8679, %v8679
        %v8712 = vpack.c.bf16 %v8680, %v8680
        %s8713 = scalar_lea.vmem %s732, 128 [#allocation12]
        %8714 = vst [vmem:[%s8713] sm:$0xf] %v8681
        %8715 = vst [vmem:[%s8713 + $0x4] sm:$0xf] %v8682
        %8716 = vst [vmem:[%s8713 + $0x8] sm:$0xf] %v8683
        %8717 = vst [vmem:[%s8713 + $0xc] sm:$0xf] %v8684
        %8718 = vst [vmem:[%s8713 + $0x10] sm:$0xf] %v8685
        %8719 = vst [vmem:[%s8713 + $0x14] sm:$0xf] %v8686
        %8720 = vst [vmem:[%s8713 + $0x18] sm:$0xf] %v8687
        %8721 = vst [vmem:[%s8713 + $0x1c] sm:$0xf] %v8688
        %8722 = vst [vmem:[%s8713 + $0x20] sm:$0xf] %v8689
        %8723 = vst [vmem:[%s8713 + $0x24] sm:$0xf] %v8690
        %8724 = vst [vmem:[%s8713 + $0x28] sm:$0xf] %v8691
        %8725 = vst [vmem:[%s8713 + $0x2c] sm:$0xf] %v8692
        %8726 = vst [vmem:[%s8713 + $0x30] sm:$0xf] %v8693
        %8727 = vst [vmem:[%s8713 + $0x34] sm:$0xf] %v8694
        %8728 = vst [vmem:[%s8713 + $0x38] sm:$0xf] %v8695
        %8729 = vst [vmem:[%s8713 + $0x3c] sm:$0xf] %v8696
        %8730 = vst [vmem:[%s8713 + $0x40] sm:$0xf] %v8697
        %8731 = vst [vmem:[%s8713 + $0x44] sm:$0xf] %v8698
        %8732 = vst [vmem:[%s8713 + $0x48] sm:$0xf] %v8699
        %8733 = vst [vmem:[%s8713 + $0x4c] sm:$0xf] %v8700
        %8734 = vst [vmem:[%s8713 + $0x50] sm:$0xf] %v8701
        %8735 = vst [vmem:[%s8713 + $0x54] sm:$0xf] %v8702
        %8736 = vst [vmem:[%s8713 + $0x58] sm:$0xf] %v8703
        %8737 = vst [vmem:[%s8713 + $0x5c] sm:$0xf] %v8704
        %8738 = vst [vmem:[%s8713 + $0x60] sm:$0xf] %v8705
        %8739 = vst [vmem:[%s8713 + $0x64] sm:$0xf] %v8706
        %8740 = vst [vmem:[%s8713 + $0x68] sm:$0xf] %v8707
        %8741 = vst [vmem:[%s8713 + $0x6c] sm:$0xf] %v8708
        %8742 = vst [vmem:[%s8713 + $0x70] sm:$0xf] %v8709
        %8743 = vst [vmem:[%s8713 + $0x74] sm:$0xf] %v8710
        %8744 = vst [vmem:[%s8713 + $0x78] sm:$0xf] %v8711
        %8745 = vst [vmem:[%s8713 + $0x7c] sm:$0xf] %v8712
        %v8746 = vmul.f32 %v8423, %v8552
        %v8747 = vmul.f32 %v8424, %v8553
        %v8748 = vmul.f32 %v8425, %v8554
        %v8749 = vmul.f32 %v8426, %v8555
        %v8750 = vmul.f32 %v8427, %v8556
        %v8751 = vmul.f32 %v8428, %v8557
        %v8752 = vmul.f32 %v8429, %v8558
        %v8753 = vmul.f32 %v8430, %v8559
        %v8754 = vmul.f32 %v8431, %v8560
        %v8755 = vmul.f32 %v8432, %v8561
        %v8756 = vmul.f32 %v8433, %v8562
        %v8757 = vmul.f32 %v8434, %v8563
        %v8758 = vmul.f32 %v8435, %v8564
        %v8759 = vmul.f32 %v8436, %v8565
        %v8760 = vmul.f32 %v8437, %v8566
        %v8761 = vmul.f32 %v8438, %v8567
        %v8762 = vmul.f32 %v8439, %v8568
        %v8763 = vmul.f32 %v8440, %v8569
        %v8764 = vmul.f32 %v8441, %v8570
        %v8765 = vmul.f32 %v8442, %v8571
        %v8766 = vmul.f32 %v8443, %v8572
        %v8767 = vmul.f32 %v8444, %v8573
        %v8768 = vmul.f32 %v8445, %v8574
        %v8769 = vmul.f32 %v8446, %v8575
        %v8770 = vmul.f32 %v8447, %v8576
        %v8771 = vmul.f32 %v8448, %v8577
        %v8772 = vmul.f32 %v8449, %v8578
        %v8773 = vmul.f32 %v8450, %v8579
        %v8774 = vmul.f32 %v8451, %v8580
        %v8775 = vmul.f32 %v8452, %v8581
        %v8776 = vmul.f32 %v8453, %v8582
        %v8777 = vmul.f32 %v8454, %v8583
        %v8778 = vpack.c.bf16 %v8746, %v8746
        %v8779 = vpack.c.bf16 %v8747, %v8747
        %v8780 = vpack.c.bf16 %v8748, %v8748
        %v8781 = vpack.c.bf16 %v8749, %v8749
        %v8782 = vpack.c.bf16 %v8750, %v8750
        %v8783 = vpack.c.bf16 %v8751, %v8751
        %v8784 = vpack.c.bf16 %v8752, %v8752
        %v8785 = vpack.c.bf16 %v8753, %v8753
        %v8786 = vpack.c.bf16 %v8754, %v8754
        %v8787 = vpack.c.bf16 %v8755, %v8755
        %v8788 = vpack.c.bf16 %v8756, %v8756
        %v8789 = vpack.c.bf16 %v8757, %v8757
        %v8790 = vpack.c.bf16 %v8758, %v8758
        %v8791 = vpack.c.bf16 %v8759, %v8759
        %v8792 = vpack.c.bf16 %v8760, %v8760
        %v8793 = vpack.c.bf16 %v8761, %v8761
        %v8794 = vpack.c.bf16 %v8762, %v8762
        %v8795 = vpack.c.bf16 %v8763, %v8763
        %v8796 = vpack.c.bf16 %v8764, %v8764
        %v8797 = vpack.c.bf16 %v8765, %v8765
        %v8798 = vpack.c.bf16 %v8766, %v8766
        %v8799 = vpack.c.bf16 %v8767, %v8767
        %v8800 = vpack.c.bf16 %v8768, %v8768
        %v8801 = vpack.c.bf16 %v8769, %v8769
        %v8802 = vpack.c.bf16 %v8770, %v8770
        %v8803 = vpack.c.bf16 %v8771, %v8771
        %v8804 = vpack.c.bf16 %v8772, %v8772
        %v8805 = vpack.c.bf16 %v8773, %v8773
        %v8806 = vpack.c.bf16 %v8774, %v8774
        %v8807 = vpack.c.bf16 %v8775, %v8775
        %v8808 = vpack.c.bf16 %v8776, %v8776
        %v8809 = vpack.c.bf16 %v8777, %v8777
        %s8810 = scalar_lea.vmem %s725, 128 [#allocation11]
        %8811 = vst [vmem:[%s8810] sm:$0xf] %v8778
        %8812 = vst [vmem:[%s8810 + $0x4] sm:$0xf] %v8779
        %8813 = vst [vmem:[%s8810 + $0x8] sm:$0xf] %v8780
        %8814 = vst [vmem:[%s8810 + $0xc] sm:$0xf] %v8781
        %8815 = vst [vmem:[%s8810 + $0x10] sm:$0xf] %v8782
        %8816 = vst [vmem:[%s8810 + $0x14] sm:$0xf] %v8783
        %8817 = vst [vmem:[%s8810 + $0x18] sm:$0xf] %v8784
        %8818 = vst [vmem:[%s8810 + $0x1c] sm:$0xf] %v8785
        %8819 = vst [vmem:[%s8810 + $0x20] sm:$0xf] %v8786
        %8820 = vst [vmem:[%s8810 + $0x24] sm:$0xf] %v8787
        %8821 = vst [vmem:[%s8810 + $0x28] sm:$0xf] %v8788
        %8822 = vst [vmem:[%s8810 + $0x2c] sm:$0xf] %v8789
        %8823 = vst [vmem:[%s8810 + $0x30] sm:$0xf] %v8790
        %8824 = vst [vmem:[%s8810 + $0x34] sm:$0xf] %v8791
        %8825 = vst [vmem:[%s8810 + $0x38] sm:$0xf] %v8792
        %8826 = vst [vmem:[%s8810 + $0x3c] sm:$0xf] %v8793
        %8827 = vst [vmem:[%s8810 + $0x40] sm:$0xf] %v8794
        %8828 = vst [vmem:[%s8810 + $0x44] sm:$0xf] %v8795
        %8829 = vst [vmem:[%s8810 + $0x48] sm:$0xf] %v8796
        %8830 = vst [vmem:[%s8810 + $0x4c] sm:$0xf] %v8797
        %8831 = vst [vmem:[%s8810 + $0x50] sm:$0xf] %v8798
        %8832 = vst [vmem:[%s8810 + $0x54] sm:$0xf] %v8799
        %8833 = vst [vmem:[%s8810 + $0x58] sm:$0xf] %v8800
        %8834 = vst [vmem:[%s8810 + $0x5c] sm:$0xf] %v8801
        %8835 = vst [vmem:[%s8810 + $0x60] sm:$0xf] %v8802
        %8836 = vst [vmem:[%s8810 + $0x64] sm:$0xf] %v8803
        %8837 = vst [vmem:[%s8810 + $0x68] sm:$0xf] %v8804
        %8838 = vst [vmem:[%s8810 + $0x6c] sm:$0xf] %v8805
        %8839 = vst [vmem:[%s8810 + $0x70] sm:$0xf] %v8806
        %8840 = vst [vmem:[%s8810 + $0x74] sm:$0xf] %v8807
        %8841 = vst [vmem:[%s8810 + $0x78] sm:$0xf] %v8808
        %8842 = vst [vmem:[%s8810 + $0x7c] sm:$0xf] %v8809
        %s8843 = sand.u32 %s234, 1
        %s8844 = scalar_lea.sflag [#allocation10], %s8843
        %s8845 = sand.u32 %s234, 1
        %s8846 = smul.addr %s8845, 256
        %s8847 = scalar_lea.vmem [#allocation11], %s8846
        %s8848 = sand.u32 %s262, 1
        %s8849 = scalar_lea.sflag [#allocation13], %s8848
        %s8850 = sand.u32 %s262, 1
        %s8851 = smul.addr %s8850, 256
        %s8852 = scalar_lea.vmem [#allocation12], %s8851
        // Predicated region
        $region102: #{tpu_custom_call.1} parent=88 // pred_check
          %p8853 = pneg %p244
        $region103: #{tpu_custom_call.1} parent=88 // pred_check_branch
          %8855 = sbr.rel (%p8853) target = $region105
        $region104: #{tpu_custom_call.1} parent=88 // pred_region
          #allocation17 [shape = 'u32[6]{0}', space=smem, size = 0x18, scoped, tag = 'DMA stride descriptor']
          %s8856 = smul.u32 2, %s35
          %s8857 = smul.u32 4, %s34
          %8859 = vsyncadd %s8844, 0
          %s8860 = smul.addr %s8857, 8
          %s8861 = smul.addr %s8856, 64
          %s8862 = sadd.s32 %s8860, %s8861
          %s8863 = smul.addr %s8862, 4
          %s8864 = scalar_lea.hbm %s8, %s8863
          %s8866 = sshll.u32 1, 14
          %s8867 = sxor.u32 4294967295, %s8866
          %s8870 = sshll.u32 7, 18
          %s8871 = sxor.u32 4294967295, %s8870
          %s8872 = sand.u32 0, %s8871
          %s8874 = sor.u32 %s8872, 0
          %s8875 = sshll.u32 %s8847, 4
          %s8876 = int_to_ptr.vmem [resolvable:$true] %s8875
          %s8877 = sshll.u32 %s8864, 4
          %s8878 = int_to_ptr.hbm [resolvable:$true] %s8877
          %8884 = sst [smem:[#allocation17]] 2048
          %s8885 = scalar_lea.smem [#allocation17], 1
          %8886 = sst [smem:[%s8885]] 4096
          %s8887 = scalar_lea.smem [#allocation17], 2
          %8888 = sst [smem:[%s8887]] 32
          %s8889 = scalar_lea.smem [#allocation17], 3
          %8890 = sst [smem:[%s8889]] 64
          %s8891 = scalar_lea.smem [#allocation17], 4
          %8892 = sst [smem:[%s8891]] 64
          %s8893 = scalar_lea.smem [#allocation17], 5
          %8894 = sst [smem:[%s8893]] 4
          %8896 = dma.general %s8876, 4096, %s8878, %s8844, [#allocation16], [#allocation17], %s8874, 0
        $region105: #{tpu_custom_call.1} parent=88 // pred_fallthru
          _
        // Predicated region
        $region106: #{tpu_custom_call.1} parent=88 // pred_check
          %p8897 = pneg %p272
        $region107: #{tpu_custom_call.1} parent=88 // pred_check_branch
          %8899 = sbr.rel (%p8897) target = $region109
        $region108: #{tpu_custom_call.1} parent=88 // pred_region
          #allocation19 [shape = 'u32[6]{0}', space=smem, size = 0x18, scoped, tag = 'DMA stride descriptor']
          %s8900 = smul.u32 2, %s35
          %s8901 = smul.u32 4, %s34
          %8903 = vsyncadd %s8849, 0
          %s8904 = smul.addr %s8901, 8
          %s8905 = smul.addr %s8900, 64
          %s8906 = sadd.s32 %s8904, %s8905
          %s8907 = smul.addr %s8906, 4
          %s8908 = scalar_lea.hbm %s9, %s8907
          %s8910 = sshll.u32 1, 14
          %s8911 = sxor.u32 4294967295, %s8910
          %s8914 = sshll.u32 7, 18
          %s8915 = sxor.u32 4294967295, %s8914
          %s8916 = sand.u32 0, %s8915
          %s8918 = sor.u32 %s8916, 0
          %s8919 = sshll.u32 %s8852, 4
          %s8920 = int_to_ptr.vmem [resolvable:$true] %s8919
          %s8921 = sshll.u32 %s8908, 4
          %s8922 = int_to_ptr.hbm [resolvable:$true] %s8921
          %8928 = sst [smem:[#allocation19]] 2048
          %s8929 = scalar_lea.smem [#allocation19], 1
          %8930 = sst [smem:[%s8929]] 4096
          %s8931 = scalar_lea.smem [#allocation19], 2
          %8932 = sst [smem:[%s8931]] 32
          %s8933 = scalar_lea.smem [#allocation19], 3
          %8934 = sst [smem:[%s8933]] 64
          %s8935 = scalar_lea.smem [#allocation19], 4
          %8936 = sst [smem:[%s8935]] 64
          %s8937 = scalar_lea.smem [#allocation19], 5
          %8938 = sst [smem:[%s8937]] 4
          %8940 = dma.general %s8920, 4096, %s8922, %s8849, [#allocation18], [#allocation19], %s8918, 0
        $region109: #{tpu_custom_call.1} parent=88 // pred_fallthru
          _
      $region89: #{tpu_custom_call.1} parent=5 // pred_fallthru
        _
      %p8941 = scmp.le.s32.totalorder 2, %s25
      // Predicated region
      $region110: #{tpu_custom_call.1} parent=5 // pred_check
        %p8942 = pneg %p8941
      $region111: #{tpu_custom_call.1} parent=5 // pred_check_branch
        %8944 = sbr.rel (%p8942) target = $region113
      $region112: #{tpu_custom_call.1} parent=5 // pred_region
        %s8945 = ssub.s32 %s25, 2
        // Predicated region
        $region114: #{tpu_custom_call.1} parent=112 // pred_check
          %p8946 = pneg %p250
        $region115: #{tpu_custom_call.1} parent=112 // pred_check_branch
          %8948 = sbr.rel (%p8946) target = $region117
        $region116: #{tpu_custom_call.1} parent=112 // pred_region
          %s8949 = sand.u32 %s235, 1
          %s8950 = scalar_lea.sflag [#allocation10], %s8949
          %s8951 = sand.u32 %s235, 1
          %s8952 = smul.addr %s8951, 256
          %s8953 = scalar_lea.vmem [#allocation11], %s8952
          %8955 = dma.done %s8950, 4096
        $region117: #{tpu_custom_call.1} parent=112 // pred_fallthru
          _
        // Predicated region
        $region118: #{tpu_custom_call.1} parent=112 // pred_check
          %p8956 = pneg %p278
        $region119: #{tpu_custom_call.1} parent=112 // pred_check_branch
          %8958 = sbr.rel (%p8956) target = $region121
        $region120: #{tpu_custom_call.1} parent=112 // pred_region
          %s8959 = sand.u32 %s263, 1
          %s8960 = scalar_lea.sflag [#allocation13], %s8959
          %s8961 = sand.u32 %s263, 1
          %s8962 = smul.addr %s8961, 256
          %s8963 = scalar_lea.vmem [#allocation12], %s8962
          %8965 = dma.done %s8960, 4096
        $region121: #{tpu_custom_call.1} parent=112 // pred_fallthru
          _
      $region113: #{tpu_custom_call.1} parent=5 // pred_fallthru
        _
    $region6: #{tpu_custom_call.1} parent=1 // loop_footer
      %s29 = sadd.s32 1, %s25
    $region7: #{tpu_custom_call.1} parent=1 // loop_footer_branch
      %24 = sbr.rel target = $region3
    $region8: #{tpu_custom_call.1} parent=1 // loop_exit
      _
    %8966 = vsyncpa [#allocation9], 1
    %s8967 = scalar_lea.sflag [#allocation9], 1
    %8968 = vsyncpa %s8967, 1
    %8969 = vsyncpa [#allocation10], 1
    %s8970 = scalar_lea.sflag [#allocation10], 1
    %8971 = vsyncpa %s8970, 1
    %8972 = vsyncpa [#allocation13], 1
    %s8973 = scalar_lea.sflag [#allocation13], 1
    %8974 = vsyncpa %s8973, 1

</llo_original>
